<compile_context>
chip_gen: v6e
topology: v6e:2x2x1
jax: 0.10.0
libtpu: 0.0.40
codegen_flags: <defaults>
</compile_context>

<pallas_src>
import functools

import jax
import jax.numpy as jnp
import numpy as np
from jax import lax
from jax.experimental import pallas as pl
from jax.experimental.pallas import tpu as pltpu

HEADS = 2          # GATConv(heads=2, concat=True)
NEG_SLOPE = 0.2    # GATConv default negative_slope
MASK_VAL = -1e30   # softmax mask sentinel (f32)


def _mm_nt(a, b):
    # a @ b.T without materializing a transpose (MXU transposed-RHS path).
    return lax.dot_general(a, b, (((1,), (1,)), ((), ())),
                           preferred_element_type=jnp.float32)


# ----------------------------------------------------------------------------
# Kernel 1: one HeteroConv(GATConv, aggr='sum') layer for a tile of targets.
# ----------------------------------------------------------------------------
def _gat_layer_kernel(x_ref, adj_ref, w_ref, as_ref, ad_ref, b_ref, out_ref, *,
                      heads, num_edge_types, neg_slope, tile_n, apply_relu,
                      mm_dtype):
    """x_ref   : [N, F]       all source-node features (mm_dtype)
       adj_ref : [E, TILE, N] int8 mask for this target tile (i=target, j=src)
       w_ref   : [E, F, H*O]  per-edge-type weights (mm_dtype)
       as_ref  : [E, H, H*O]  block-diagonal att_src rows (mm_dtype)
       ad_ref  : [E, H, H*O]  block-diagonal att_dst rows (mm_dtype)
       b_ref   : [1, H*O]     sum of per-edge-type biases (f32)
       out_ref : [TILE, H*O]  f32 layer output tile
    """
    ho = out_ref.shape[-1]
    o = ho // heads
    row0 = pl.multiple_of(pl.program_id(0) * tile_n, tile_n)
    x_full = x_ref[...]                                   # [N, F]
    x_tile = x_ref[pl.ds(row0, tile_n), :]                # [TILE, F]

    out_ref[...] = jnp.zeros_like(out_ref)
    for e in range(num_edge_types):        # HeteroConv aggr='sum' (static unroll)
        # int8 mask upcast to 32-bit before comparing (safe Mosaic path).
        mask = adj_ref[e].astype(jnp.int32) > 0                          # [TILE, N]
        w_e = w_ref[e]
        xw_full = jnp.dot(x_full, w_e, preferred_element_type=jnp.float32)  # [N, H*O]
        xw_op = xw_full.astype(mm_dtype)                  # operand copy for later dots
        xw_tile = jnp.dot(x_tile, w_e,
                          preferred_element_type=jnp.float32).astype(mm_dtype)
        src_rows = _mm_nt(as_ref[e], xw_op)               # [H, N]    <W x_j, a_src_h>
        dst_cols = _mm_nt(xw_tile, ad_ref[e])             # [TILE, H] <W x_i, a_dst_h>
        for h in range(heads):
            sl = slice(h * o, (h + 1) * o)
            z = dst_cols[:, h:h + 1] + src_rows[h:h + 1, :]       # [TILE, N] f32
            z = jnp.maximum(z, neg_slope * z)                     # LeakyReLU(0.2)
            z = jnp.where(mask, z, jnp.float32(MASK_VAL))
            z = z - jnp.max(z, axis=-1, keepdims=True)            # softmax over j
            # Masked logits sit near -1e30 after the row-max subtraction, so
            # exp underflows to exactly 0 in f32 -> no second mask select.
            p = jnp.exp(z)
            # Self loops guarantee >=1 nonzero per row -> denom >= 1.
            inv = pl.reciprocal(jnp.sum(p, axis=-1, keepdims=True), approx=False)
            agg = jnp.dot(p.astype(mm_dtype), xw_op[:, sl],
                          preferred_element_type=jnp.float32)     # [TILE, O]
            out_ref[:, sl] += agg * inv          # normalize AFTER the matmul
    res = out_ref[...] + b_ref[...]              # + sum_e bias_e
    if apply_relu:
        res = jnp.maximum(res, 0.0)
    out_ref[...] = res


# ----------------------------------------------------------------------------
# Kernel 2: pairwise head.  out[i, j] = lin(h2[i]+h2[j]) = s[i]+s[j]+b,
# s = h2 @ lin_w  (lane-dense [TILE, N] output tiles).
# ----------------------------------------------------------------------------
def _pair_kernel(h2_ref, linw_ref, linb_ref, out_ref, *, tile_n):
    row0 = pl.multiple_of(pl.program_id(0) * tile_n, tile_n)
    h2_tile = h2_ref[pl.ds(row0, tile_n), :]
    s_col = _mm_nt(h2_tile, linw_ref[...])      # [TILE, 1]
    s_row = _mm_nt(linw_ref[...], h2_ref[...])  # [1, N]
    out_ref[...] = s_col + s_row + linb_ref[0, 0]


def _block_att(att, heads):
    """[E, 1, heads*o] att vector -> [E, heads, heads*o] block-diagonal rows.

    Row h holds the head-h attention vector in its own channel block and zeros
    elsewhere, so <xw, row_h> only touches head h's channels.
    """
    E, _, ho = att.shape
    o = ho // heads
    per_head = att.reshape(E, heads, o)
    eye = jnp.eye(heads, dtype=att.dtype)
    return (per_head[:, :, None, :] * eye[None, :, :, None]).reshape(E, heads, ho)


def hetero_gat_forward(x, params, *, mm_dtype=jnp.float32, tile_n=None,
                       single_buffer_invariants=True):
    N, f_in = x.shape
    E, _, ho1 = params['W1'].shape
    ho2 = params['W2'].shape[-1]

    if tile_n is None:
        tile_n = N if N <= 128 else 128
    # TODO(synk): masked last tile for N that is not a multiple of tile_n.
    assert N % tile_n == 0 and (tile_n == N or tile_n % 8 == 0)
    num_tiles = N // tile_n

    # Wrapper-side layout plumbing / parameter prep (not compute hoisting).
    cast = lambda a: a.astype(mm_dtype)
    as1 = cast(_block_att(params['as1'], HEADS))
    ad1 = cast(_block_att(params['ad1'], HEADS))
    as2 = cast(_block_att(params['as2'], HEADS))
    ad2 = cast(_block_att(params['ad2'], HEADS))
    b1s = jnp.sum(params['b1'], axis=0)            # [1, ho1] (aggr='sum' is linear in bias)
    b2s = jnp.sum(params['b2'], axis=0)            # [1, ho2]
    W1c, W2c = cast(params['W1']), cast(params['W2'])
    linw_row = params['lin_w'].T                   # [1, ho2]
    adj = params['adj']                            # [E, N, N] int8

    if single_buffer_invariants:
        # Grid-invariant operands: same block every step -> one VMEM buffer.
        inv_kwargs = dict(pipeline_mode=pl.Buffered(1))
    else:
        inv_kwargs = {}

    def invariant(shape):
        return pl.BlockSpec(shape, lambda i: (0,) * len(shape), **inv_kwargs)

    cparams = pltpu.CompilerParams(
        dimension_semantics=("parallel",),         # node-tile axis -> megacore
        vmem_limit_bytes=32 * 1024 * 1024,
    )

    def gat_layer(x_in, W, asb, adb, bsum, apply_relu):
        f_l = x_in.shape[1]
        ho = W.shape[-1]
        kern = functools.partial(
            _gat_layer_kernel, heads=HEADS, num_edge_types=E,
            neg_slope=NEG_SLOPE, tile_n=tile_n, apply_relu=apply_relu,
            mm_dtype=mm_dtype)
        return pl.pallas_call(
            kern,
            out_shape=jax.ShapeDtypeStruct((N, ho), jnp.float32),
            grid=(num_tiles,),
            in_specs=[
                invariant((N, f_l)),                                  # x (all sources)
                pl.BlockSpec((E, tile_n, N), lambda i: (0, i, 0)),    # adj tile (int8)
                invariant((E, f_l, ho)),                              # W
                invariant((E, HEADS, ho)),                            # att_src (block-diag)
                invariant((E, HEADS, ho)),                            # att_dst (block-diag)
                invariant((1, ho)),                                   # summed bias
            ],
            out_specs=pl.BlockSpec((tile_n, ho), lambda i: (i, 0)),
            compiler_params=cparams,
        )(x_in, adj, W, asb, adb, bsum)

    h1 = gat_layer(cast(x), W1c, as1, ad1, b1s, True)     # [N, ho1] f32 (ReLU'd)
    h2 = gat_layer(cast(h1), W2c, as2, ad2, b2s, False)   # [N, ho2] f32

    out2d = pl.pallas_call(
        functools.partial(_pair_kernel, tile_n=tile_n),
        out_shape=jax.ShapeDtypeStruct((N, N), jnp.float32),
        grid=(num_tiles,),
        in_specs=[
            invariant((N, ho2)),                                      # h2 (all nodes)
            invariant((1, ho2)),                                      # lin_w row
            pl.BlockSpec(memory_space=pltpu.MemorySpace.SMEM),        # lin_b scalar
        ],
        out_specs=pl.BlockSpec((tile_n, N), lambda i: (i, 0)),
        compiler_params=cparams,
    )(h2, linw_row, params['lin_b'])

    # pair index p = i*N + j ('ij' meshgrid, row-major flatten)
    return out2d.reshape(N * N, 1)


# ----------------------------------------------------------------------------
# Deterministic parameter / graph construction and pure-JAX reference
# ----------------------------------------------------------------------------
def init_params(key, E, f_in, hidden, N):
    h1, h2 = hidden
    ks = jax.random.split(key, 11)

    def glorot(k, shape):
        fi, fo = shape[-2], shape[-1]
        lim = (6.0 / (fi + fo)) ** 0.5
        return jax.random.uniform(k, shape, jnp.float32, -lim, lim)

    params = dict(
        W1=glorot(ks[0], (E, f_in, HEADS * h1)),
        as1=0.1 * jax.random.normal(ks[1], (E, 1, HEADS * h1), jnp.float32),
        ad1=0.1 * jax.random.normal(ks[2], (E, 1, HEADS * h1), jnp.float32),
        b1=0.1 * jax.random.normal(ks[3], (E, 1, HEADS * h1), jnp.float32),
        W2=glorot(ks[4], (E, HEADS * h1, HEADS * h2)),
        as2=0.1 * jax.random.normal(ks[5], (E, 1, HEADS * h2), jnp.float32),
        ad2=0.1 * jax.random.normal(ks[6], (E, 1, HEADS * h2), jnp.float32),
        b2=0.1 * jax.random.normal(ks[7], (E, 1, HEADS * h2), jnp.float32),
        lin_w=glorot(ks[8], (HEADS * h2, 1)),
        lin_b=0.1 * jax.random.normal(ks[9], (1, 1), jnp.float32),
    )
    # Random adjacency per edge type + self loops (GATConv add_self_loops=True),
    # stored as int8: only ever a compare mask, never an MXU operand.
    u = jax.random.uniform(ks[10], (E, N, N))
    adj = (u < 0.3).astype(jnp.int8)
    adj = jnp.maximum(adj, jnp.eye(N, dtype=jnp.int8)[None])
    params['adj'] = adj
    return params


def ref_forward(x, params):
    def layer(x, W, asrc, adst, bias, adj, relu):
        E, _, ho = W.shape
        N = x.shape[0]
        o = ho // HEADS
        acc = jnp.zeros((N, ho), jnp.float32)
        for e in range(E):
            xw = x @ W[e]
            outs = []
            for h in range(HEADS):
                sl = slice(h * o, (h + 1) * o)
                xh = xw[:, sl]
                a_s = jnp.sum(xh * asrc[e, :, sl], -1)
                a_d = jnp.sum(xh * adst[e, :, sl], -1)
                z = a_d[:, None] + a_s[None, :]
                z = jnp.where(z > 0, z, NEG_SLOPE * z)
                z = jnp.where(adj[e] > 0, z, MASK_VAL)
                z = z - z.max(-1, keepdims=True)
                p = jnp.exp(z) * (adj[e] > 0)
                attn = p / p.sum(-1, keepdims=True)
                outs.append(attn @ xh)
            acc = acc + (jnp.concatenate(outs, -1) + bias[e])
        return jnp.maximum(acc, 0.0) if relu else acc

    h1 = layer(x, params['W1'], params['as1'], params['ad1'], params['b1'],
               params['adj'], True)
    h2 = layer(h1, params['W2'], params['as2'], params['ad2'], params['b2'],
               params['adj'], False)
    N = x.shape[0]
    pairs = (h2[:, None, :] + h2[None, :, :]).reshape(N * N, -1)
    return pairs @ params['lin_w'] + params['lin_b']


if __name__ == "__main__":
    N = 64             # num_nodes
    F_IN = 8           # in_channels = data['node'].x.size(1)
    HIDDEN = (32, 16)  # small stand-in for the module default [256, 64]
    E = 2              # two ('node', rel, 'node') edge types
    TILE_N = 32        # 2 target-node tiles -> exercises the parallel grid axis

    key = jax.random.PRNGKey(0)
    kx, kp = jax.random.split(key)
    x = jax.random.normal(kx, (N, F_IN), jnp.float32)
    params = init_params(kp, E, F_IN, HIDDEN, N)
    ref = ref_forward(x, params)

    def make_fwd(mm_dtype, single_buffer):
        return jax.jit(functools.partial(
            hetero_gat_forward, mm_dtype=mm_dtype, tile_n=TILE_N,
            single_buffer_invariants=single_buffer))

    # f32 path (tight check).  Fall back to default double-buffering if this
    # jax build rejects pipeline_mode=pl.Buffered(1).
    try:
        out = jax.block_until_ready(make_fwd(jnp.float32, True)(x, params))
        single_buffer = True
    except Exception:
        out = jax.block_until_ready(make_fwd(jnp.float32, False)(x, params))
        single_buffer = False

    assert out.shape == (N * N, 1)
    np.testing.assert_allclose(np.asarray(out), np.asarray(ref),
                               rtol=5e-3, atol=5e-3)

    # bf16 matmul operands / f32 accumulate (v5e & v6e MXU recommendation);
    # logits, mask sentinel, exp and reciprocal stay f32 -> loose check only.
    out_bf16 = jax.block_until_ready(
        make_fwd(jnp.bfloat16, single_buffer)(x, params))
    np.testing.assert_allclose(np.asarray(out_bf16), np.asarray(ref),
                               rtol=1e-1, atol=1e-1)

    print("KERNEL_OK")
</pallas_src>

<mosaic_0001>
module attributes {stable_mosaic.version = 11 : i64} {
  func.func @_gat_layer_kernel(%arg0: i32, %arg1: memref<64x64xf32, #tpu.memory_space<vmem>>, %arg2: memref<2x32x64xi8, #tpu.memory_space<vmem>>, %arg3: memref<2x64x32xf32, #tpu.memory_space<vmem>>, %arg4: memref<2x2x32xf32, #tpu.memory_space<vmem>>, %arg5: memref<2x2x32xf32, #tpu.memory_space<vmem>>, %arg6: memref<1x32xf32, #tpu.memory_space<vmem>>, %arg7: memref<32x32xf32, #tpu.memory_space<vmem>>) attributes {dimension_semantics = [#tpu.dimension_semantics<parallel>], iteration_bounds = array<i64: 2>, scalar_prefetch = 0 : i64, scratch_operands = 0 : i64, tpu.core_type = #tpu.core_type<tc>, window_params = [{pipeline_mode = #tpu.pipeline_mode<synchronous>, transform_indices = @transform_0, window_bounds = array<i64: 64, 64>}, {transform_indices = @transform_1, window_bounds = array<i64: 2, 32, 64>}, {pipeline_mode = #tpu.pipeline_mode<synchronous>, transform_indices = @transform_2, window_bounds = array<i64: 2, 64, 32>}, {pipeline_mode = #tpu.pipeline_mode<synchronous>, transform_indices = @transform_3, window_bounds = array<i64: 2, 2, 32>}, {pipeline_mode = #tpu.pipeline_mode<synchronous>, transform_indices = @transform_4, window_bounds = array<i64: 2, 2, 32>}, {pipeline_mode = #tpu.pipeline_mode<synchronous>, transform_indices = @transform_5, window_bounds = array<i64: 1, 32>}, {transform_indices = @transform_6, window_bounds = array<i64: 32, 32>}]} {
    %c32_i32 = arith.constant 32 : i32
    %0 = arith.muli %arg0, %c32_i32 : i32
    %1 = tpu.assume_multiple %0, 32 : i32
    %c0 = arith.constant 0 : index
    %c0_0 = arith.constant 0 : index
    %2 = vector.load %arg1[%c0, %c0_0] : memref<64x64xf32, #tpu.memory_space<vmem>>, vector<64x64xf32>
    %3 = arith.index_cast %1 : i32 to index
    %c0_1 = arith.constant 0 : index
    %4 = vector.load %arg1[%3, %c0_1] : memref<64x64xf32, #tpu.memory_space<vmem>>, vector<32x64xf32>
    %cst = arith.constant 0.000000e+00 : f32
    %5 = vector.broadcast %cst : f32 to vector<32x32xf32>
    %c0_2 = arith.constant 0 : index
    %c0_3 = arith.constant 0 : index
    %6 = vector.load %arg7[%c0_2, %c0_3] : memref<32x32xf32, #tpu.memory_space<vmem>>, vector<32x32xf32>
    tpu.vector_store %arg7[%c0_2, %c0_3], %5 {strides = array<i32>} : memref<32x32xf32, #tpu.memory_space<vmem>>, vector<32x32xf32>,
    %c0_4 = arith.constant 0 : index
    %c0_5 = arith.constant 0 : index
    %c0_6 = arith.constant 0 : index
    %7 = vector.load %arg2[%c0_4, %c0_5, %c0_6] : memref<2x32x64xi8, #tpu.memory_space<vmem>>, vector<1x32x64xi8>
    %8 = vector.shape_cast %7 : vector<1x32x64xi8> to vector<32x64xi8>
    %9 = arith.extsi %8 : vector<32x64xi8> to vector<32x64xi32>
    %c0_i32 = arith.constant 0 : i32
    %10 = vector.broadcast %c0_i32 : i32 to vector<32x64xi32>
    %11 = arith.cmpi sgt, %9, %10 : vector<32x64xi32>
    %c0_7 = arith.constant 0 : index
    %c0_8 = arith.constant 0 : index
    %c0_9 = arith.constant 0 : index
    %12 = vector.load %arg3[%c0_7, %c0_8, %c0_9] : memref<2x64x32xf32, #tpu.memory_space<vmem>>, vector<1x64x32xf32>
    %13 = vector.shape_cast %12 : vector<1x64x32xf32> to vector<64x32xf32>
    %cst_10 = arith.constant dense<0.000000e+00> : vector<64x32xf32>
    %14 = tpu.matmul %2, %13, %cst_10 {dimension_numbers = #tpu.dot_dimension_numbers<[1], [0], [0], [1], [0, 0, 1, 1], [], []>} : vector<64x64xf32>, vector<64x32xf32>, vector<64x32xf32> -> vector<64x32xf32>
    %cst_11 = arith.constant dense<0.000000e+00> : vector<32x32xf32>
    %15 = tpu.matmul %4, %13, %cst_11 {dimension_numbers = #tpu.dot_dimension_numbers<[1], [0], [0], [1], [0, 0, 1, 1], [], []>} : vector<32x64xf32>, vector<64x32xf32>, vector<32x32xf32> -> vector<32x32xf32>
    %c0_12 = arith.constant 0 : index
    %c0_13 = arith.constant 0 : index
    %c0_14 = arith.constant 0 : index
    %16 = vector.load %arg4[%c0_12, %c0_13, %c0_14] : memref<2x2x32xf32, #tpu.memory_space<vmem>>, vector<1x2x32xf32>
    %17 = vector.shape_cast %16 : vector<1x2x32xf32> to vector<2x32xf32>
    %cst_15 = arith.constant dense<0.000000e+00> : vector<2x64xf32>
    %18 = tpu.matmul %17, %14, %cst_15 {dimension_numbers = #tpu.dot_dimension_numbers<[1], [1], [0], [0], [0, 0, 1, 0], [], []>} : vector<2x32xf32>, vector<64x32xf32>, vector<2x64xf32> -> vector<2x64xf32>
    %c0_16 = arith.constant 0 : index
    %c0_17 = arith.constant 0 : index
    %c0_18 = arith.constant 0 : index
    %19 = vector.load %arg5[%c0_16, %c0_17, %c0_18] : memref<2x2x32xf32, #tpu.memory_space<vmem>>, vector<1x2x32xf32>
    %20 = vector.shape_cast %19 : vector<1x2x32xf32> to vector<2x32xf32>
    %cst_19 = arith.constant dense<0.000000e+00> : vector<32x2xf32>
    %21 = tpu.matmul %15, %20, %cst_19 {dimension_numbers = #tpu.dot_dimension_numbers<[1], [1], [0], [0], [0, 0, 1, 0], [], []>} : vector<32x32xf32>, vector<2x32xf32>, vector<32x2xf32> -> vector<32x2xf32>
    %22 = vector.extract_strided_slice %21 {offsets = [0, 0], sizes = [32, 1], strides = [1, 1]} : vector<32x2xf32> to vector<32x1xf32>
    %23 = vector.extract_strided_slice %18 {offsets = [0, 0], sizes = [1, 64], strides = [1, 1]} : vector<2x64xf32> to vector<1x64xf32>
    %24 = vector.broadcast %22 : vector<32x1xf32> to vector<32x64xf32>
    %25 = vector.broadcast %23 : vector<1x64xf32> to vector<32x64xf32>
    %26 = arith.addf %24, %25 : vector<32x64xf32>
    %cst_20 = arith.constant 2.000000e-01 : f32
    %27 = vector.broadcast %cst_20 : f32 to vector<32x64xf32>
    %28 = arith.mulf %27, %26 : vector<32x64xf32>
    %29 = arith.maximumf %26, %28 : vector<32x64xf32>
    %cst_21 = arith.constant -1.000000e+30 : f32
    %30 = vector.broadcast %cst_21 : f32 to vector<32x64xf32>
    %31 = arith.select %11, %29, %30 : vector<32x64xi1>, vector<32x64xf32>
    %cst_22 = arith.constant dense<0xFF800000> : vector<32xf32>
    %32 = vector.multi_reduction <maximumf>, %31, %cst_22 [1] : vector<32x64xf32> to vector<32xf32>
    %33 = vector.shape_cast %32 : vector<32xf32> to vector<32x1xf32>
    %34 = vector.broadcast %33 : vector<32x1xf32> to vector<32x64xf32>
    %35 = arith.subf %31, %34 : vector<32x64xf32>
    %36 = math.exp %35 : vector<32x64xf32>
    %cst_23 = arith.constant dense<0.000000e+00> : vector<32xf32>
    %37 = vector.multi_reduction <add>, %36, %cst_23 [1] : vector<32x64xf32> to vector<32xf32>
    %38 = vector.shape_cast %37 : vector<32xf32> to vector<32x1xf32>
    %39 = tpu.reciprocal %38 : vector<32x1xf32> -> vector<32x1xf32>
    %40 = vector.extract_strided_slice %14 {offsets = [0, 0], sizes = [64, 16], strides = [1, 1]} : vector<64x32xf32> to vector<64x16xf32>
    %cst_24 = arith.constant dense<0.000000e+00> : vector<32x16xf32>
    %41 = tpu.matmul %36, %40, %cst_24 {dimension_numbers = #tpu.dot_dimension_numbers<[1], [0], [0], [1], [0, 0, 1, 1], [], []>} : vector<32x64xf32>, vector<64x16xf32>, vector<32x16xf32> -> vector<32x16xf32>
    %c0_25 = arith.constant 0 : index
    %c0_26 = arith.constant 0 : index
    %42 = vector.load %arg7[%c0_25, %c0_26] : memref<32x32xf32, #tpu.memory_space<vmem>>, vector<32x16xf32>
    %43 = vector.broadcast %39 : vector<32x1xf32> to vector<32x16xf32>
    %44 = arith.mulf %41, %43 : vector<32x16xf32>
    %45 = arith.addf %42, %44 : vector<32x16xf32>
    %c0_27 = arith.constant 0 : index
    %c0_28 = arith.constant 0 : index
    %46 = vector.load %arg7[%c0_27, %c0_28] : memref<32x32xf32, #tpu.memory_space<vmem>>, vector<32x16xf32>
    tpu.vector_store %arg7[%c0_27, %c0_28], %45 {strides = array<i32>} : memref<32x32xf32, #tpu.memory_space<vmem>>, vector<32x16xf32>,
    %47 = vector.extract_strided_slice %21 {offsets = [0, 1], sizes = [32, 1], strides = [1, 1]} : vector<32x2xf32> to vector<32x1xf32>
    %48 = vector.extract_strided_slice %18 {offsets = [1, 0], sizes = [1, 64], strides = [1, 1]} : vector<2x64xf32> to vector<1x64xf32>
    %49 = vector.broadcast %47 : vector<32x1xf32> to vector<32x64xf32>
    %50 = vector.broadcast %48 : vector<1x64xf32> to vector<32x64xf32>
    %51 = arith.addf %49, %50 : vector<32x64xf32>
    %cst_29 = arith.constant 2.000000e-01 : f32
    %52 = vector.broadcast %cst_29 : f32 to vector<32x64xf32>
    %53 = arith.mulf %52, %51 : vector<32x64xf32>
    %54 = arith.maximumf %51, %53 : vector<32x64xf32>
    %cst_30 = arith.constant -1.000000e+30 : f32
    %55 = vector.broadcast %cst_30 : f32 to vector<32x64xf32>
    %56 = arith.select %11, %54, %55 : vector<32x64xi1>, vector<32x64xf32>
    %cst_31 = arith.constant dense<0xFF800000> : vector<32xf32>
    %57 = vector.multi_reduction <maximumf>, %56, %cst_31 [1] : vector<32x64xf32> to vector<32xf32>
    %58 = vector.shape_cast %57 : vector<32xf32> to vector<32x1xf32>
    %59 = vector.broadcast %58 : vector<32x1xf32> to vector<32x64xf32>
    %60 = arith.subf %56, %59 : vector<32x64xf32>
    %61 = math.exp %60 : vector<32x64xf32>
    %cst_32 = arith.constant dense<0.000000e+00> : vector<32xf32>
    %62 = vector.multi_reduction <add>, %61, %cst_32 [1] : vector<32x64xf32> to vector<32xf32>
    %63 = vector.shape_cast %62 : vector<32xf32> to vector<32x1xf32>
    %64 = tpu.reciprocal %63 : vector<32x1xf32> -> vector<32x1xf32>
    %65 = vector.extract_strided_slice %14 {offsets = [0, 16], sizes = [64, 16], strides = [1, 1]} : vector<64x32xf32> to vector<64x16xf32>
    %cst_33 = arith.constant dense<0.000000e+00> : vector<32x16xf32>
    %66 = tpu.matmul %61, %65, %cst_33 {dimension_numbers = #tpu.dot_dimension_numbers<[1], [0], [0], [1], [0, 0, 1, 1], [], []>} : vector<32x64xf32>, vector<64x16xf32>, vector<32x16xf32> -> vector<32x16xf32>
    %c0_34 = arith.constant 0 : index
    %c16 = arith.constant 16 : index
    %67 = vector.load %arg7[%c0_34, %c16] : memref<32x32xf32, #tpu.memory_space<vmem>>, vector<32x16xf32>
    %68 = vector.broadcast %64 : vector<32x1xf32> to vector<32x16xf32>
    %69 = arith.mulf %66, %68 : vector<32x16xf32>
    %70 = arith.addf %67, %69 : vector<32x16xf32>
    %c0_35 = arith.constant 0 : index
    %c16_36 = arith.constant 16 : index
    %71 = vector.load %arg7[%c0_35, %c16_36] : memref<32x32xf32, #tpu.memory_space<vmem>>, vector<32x16xf32>
    tpu.vector_store %arg7[%c0_35, %c16_36], %70 {strides = array<i32>} : memref<32x32xf32, #tpu.memory_space<vmem>>, vector<32x16xf32>,
    %c1 = arith.constant 1 : index
    %c0_37 = arith.constant 0 : index
    %c0_38 = arith.constant 0 : index
    %72 = vector.load %arg2[%c1, %c0_37, %c0_38] : memref<2x32x64xi8, #tpu.memory_space<vmem>>, vector<1x32x64xi8>
    %73 = vector.shape_cast %72 : vector<1x32x64xi8> to vector<32x64xi8>
    %74 = arith.extsi %73 : vector<32x64xi8> to vector<32x64xi32>
    %c0_i32_39 = arith.constant 0 : i32
    %75 = vector.broadcast %c0_i32_39 : i32 to vector<32x64xi32>
    %76 = arith.cmpi sgt, %74, %75 : vector<32x64xi32>
    %c1_40 = arith.constant 1 : index
    %c0_41 = arith.constant 0 : index
    %c0_42 = arith.constant 0 : index
    %77 = vector.load %arg3[%c1_40, %c0_41, %c0_42] : memref<2x64x32xf32, #tpu.memory_space<vmem>>, vector<1x64x32xf32>
    %78 = vector.shape_cast %77 : vector<1x64x32xf32> to vector<64x32xf32>
    %cst_43 = arith.constant dense<0.000000e+00> : vector<64x32xf32>
    %79 = tpu.matmul %2, %78, %cst_43 {dimension_numbers = #tpu.dot_dimension_numbers<[1], [0], [0], [1], [0, 0, 1, 1], [], []>} : vector<64x64xf32>, vector<64x32xf32>, vector<64x32xf32> -> vector<64x32xf32>
    %cst_44 = arith.constant dense<0.000000e+00> : vector<32x32xf32>
    %80 = tpu.matmul %4, %78, %cst_44 {dimension_numbers = #tpu.dot_dimension_numbers<[1], [0], [0], [1], [0, 0, 1, 1], [], []>} : vector<32x64xf32>, vector<64x32xf32>, vector<32x32xf32> -> vector<32x32xf32>
    %c1_45 = arith.constant 1 : index
    %c0_46 = arith.constant 0 : index
    %c0_47 = arith.constant 0 : index
    %81 = vector.load %arg4[%c1_45, %c0_46, %c0_47] : memref<2x2x32xf32, #tpu.memory_space<vmem>>, vector<1x2x32xf32>
    %82 = vector.shape_cast %81 : vector<1x2x32xf32> to vector<2x32xf32>
    %cst_48 = arith.constant dense<0.000000e+00> : vector<2x64xf32>
    %83 = tpu.matmul %82, %79, %cst_48 {dimension_numbers = #tpu.dot_dimension_numbers<[1], [1], [0], [0], [0, 0, 1, 0], [], []>} : vector<2x32xf32>, vector<64x32xf32>, vector<2x64xf32> -> vector<2x64xf32>
    %c1_49 = arith.constant 1 : index
    %c0_50 = arith.constant 0 : index
    %c0_51 = arith.constant 0 : index
    %84 = vector.load %arg5[%c1_49, %c0_50, %c0_51] : memref<2x2x32xf32, #tpu.memory_space<vmem>>, vector<1x2x32xf32>
    %85 = vector.shape_cast %84 : vector<1x2x32xf32> to vector<2x32xf32>
    %cst_52 = arith.constant dense<0.000000e+00> : vector<32x2xf32>
    %86 = tpu.matmul %80, %85, %cst_52 {dimension_numbers = #tpu.dot_dimension_numbers<[1], [1], [0], [0], [0, 0, 1, 0], [], []>} : vector<32x32xf32>, vector<2x32xf32>, vector<32x2xf32> -> vector<32x2xf32>
    %87 = vector.extract_strided_slice %86 {offsets = [0, 0], sizes = [32, 1], strides = [1, 1]} : vector<32x2xf32> to vector<32x1xf32>
    %88 = vector.extract_strided_slice %83 {offsets = [0, 0], sizes = [1, 64], strides = [1, 1]} : vector<2x64xf32> to vector<1x64xf32>
    %89 = vector.broadcast %87 : vector<32x1xf32> to vector<32x64xf32>
    %90 = vector.broadcast %88 : vector<1x64xf32> to vector<32x64xf32>
    %91 = arith.addf %89, %90 : vector<32x64xf32>
    %cst_53 = arith.constant 2.000000e-01 : f32
    %92 = vector.broadcast %cst_53 : f32 to vector<32x64xf32>
    %93 = arith.mulf %92, %91 : vector<32x64xf32>
    %94 = arith.maximumf %91, %93 : vector<32x64xf32>
    %cst_54 = arith.constant -1.000000e+30 : f32
    %95 = vector.broadcast %cst_54 : f32 to vector<32x64xf32>
    %96 = arith.select %76, %94, %95 : vector<32x64xi1>, vector<32x64xf32>
    %cst_55 = arith.constant dense<0xFF800000> : vector<32xf32>
    %97 = vector.multi_reduction <maximumf>, %96, %cst_55 [1] : vector<32x64xf32> to vector<32xf32>
    %98 = vector.shape_cast %97 : vector<32xf32> to vector<32x1xf32>
    %99 = vector.broadcast %98 : vector<32x1xf32> to vector<32x64xf32>
    %100 = arith.subf %96, %99 : vector<32x64xf32>
    %101 = math.exp %100 : vector<32x64xf32>
    %cst_56 = arith.constant dense<0.000000e+00> : vector<32xf32>
    %102 = vector.multi_reduction <add>, %101, %cst_56 [1] : vector<32x64xf32> to vector<32xf32>
    %103 = vector.shape_cast %102 : vector<32xf32> to vector<32x1xf32>
    %104 = tpu.reciprocal %103 : vector<32x1xf32> -> vector<32x1xf32>
    %105 = vector.extract_strided_slice %79 {offsets = [0, 0], sizes = [64, 16], strides = [1, 1]} : vector<64x32xf32> to vector<64x16xf32>
    %cst_57 = arith.constant dense<0.000000e+00> : vector<32x16xf32>
    %106 = tpu.matmul %101, %105, %cst_57 {dimension_numbers = #tpu.dot_dimension_numbers<[1], [0], [0], [1], [0, 0, 1, 1], [], []>} : vector<32x64xf32>, vector<64x16xf32>, vector<32x16xf32> -> vector<32x16xf32>
    %c0_58 = arith.constant 0 : index
    %c0_59 = arith.constant 0 : index
    %107 = vector.load %arg7[%c0_58, %c0_59] : memref<32x32xf32, #tpu.memory_space<vmem>>, vector<32x16xf32>
    %108 = vector.broadcast %104 : vector<32x1xf32> to vector<32x16xf32>
    %109 = arith.mulf %106, %108 : vector<32x16xf32>
    %110 = arith.addf %107, %109 : vector<32x16xf32>
    %c0_60 = arith.constant 0 : index
    %c0_61 = arith.constant 0 : index
    %111 = vector.load %arg7[%c0_60, %c0_61] : memref<32x32xf32, #tpu.memory_space<vmem>>, vector<32x16xf32>
    tpu.vector_store %arg7[%c0_60, %c0_61], %110 {strides = array<i32>} : memref<32x32xf32, #tpu.memory_space<vmem>>, vector<32x16xf32>,
    %112 = vector.extract_strided_slice %86 {offsets = [0, 1], sizes = [32, 1], strides = [1, 1]} : vector<32x2xf32> to vector<32x1xf32>
    %113 = vector.extract_strided_slice %83 {offsets = [1, 0], sizes = [1, 64], strides = [1, 1]} : vector<2x64xf32> to vector<1x64xf32>
    %114 = vector.broadcast %112 : vector<32x1xf32> to vector<32x64xf32>
    %115 = vector.broadcast %113 : vector<1x64xf32> to vector<32x64xf32>
    %116 = arith.addf %114, %115 : vector<32x64xf32>
    %cst_62 = arith.constant 2.000000e-01 : f32
    %117 = vector.broadcast %cst_62 : f32 to vector<32x64xf32>
    %118 = arith.mulf %117, %116 : vector<32x64xf32>
    %119 = arith.maximumf %116, %118 : vector<32x64xf32>
    %cst_63 = arith.constant -1.000000e+30 : f32
    %120 = vector.broadcast %cst_63 : f32 to vector<32x64xf32>
    %121 = arith.select %76, %119, %120 : vector<32x64xi1>, vector<32x64xf32>
    %cst_64 = arith.constant dense<0xFF800000> : vector<32xf32>
    %122 = vector.multi_reduction <maximumf>, %121, %cst_64 [1] : vector<32x64xf32> to vector<32xf32>
    %123 = vector.shape_cast %122 : vector<32xf32> to vector<32x1xf32>
    %124 = vector.broadcast %123 : vector<32x1xf32> to vector<32x64xf32>
    %125 = arith.subf %121, %124 : vector<32x64xf32>
    %126 = math.exp %125 : vector<32x64xf32>
    %cst_65 = arith.constant dense<0.000000e+00> : vector<32xf32>
    %127 = vector.multi_reduction <add>, %126, %cst_65 [1] : vector<32x64xf32> to vector<32xf32>
    %128 = vector.shape_cast %127 : vector<32xf32> to vector<32x1xf32>
    %129 = tpu.reciprocal %128 : vector<32x1xf32> -> vector<32x1xf32>
    %130 = vector.extract_strided_slice %79 {offsets = [0, 16], sizes = [64, 16], strides = [1, 1]} : vector<64x32xf32> to vector<64x16xf32>
    %cst_66 = arith.constant dense<0.000000e+00> : vector<32x16xf32>
    %131 = tpu.matmul %126, %130, %cst_66 {dimension_numbers = #tpu.dot_dimension_numbers<[1], [0], [0], [1], [0, 0, 1, 1], [], []>} : vector<32x64xf32>, vector<64x16xf32>, vector<32x16xf32> -> vector<32x16xf32>
    %c0_67 = arith.constant 0 : index
    %c16_68 = arith.constant 16 : index
    %132 = vector.load %arg7[%c0_67, %c16_68] : memref<32x32xf32, #tpu.memory_space<vmem>>, vector<32x16xf32>
    %133 = vector.broadcast %129 : vector<32x1xf32> to vector<32x16xf32>
    %134 = arith.mulf %131, %133 : vector<32x16xf32>
    %135 = arith.addf %132, %134 : vector<32x16xf32>
    %c0_69 = arith.constant 0 : index
    %c16_70 = arith.constant 16 : index
    %136 = vector.load %arg7[%c0_69, %c16_70] : memref<32x32xf32, #tpu.memory_space<vmem>>, vector<32x16xf32>
    tpu.vector_store %arg7[%c0_69, %c16_70], %135 {strides = array<i32>} : memref<32x32xf32, #tpu.memory_space<vmem>>, vector<32x16xf32>,
    %c0_71 = arith.constant 0 : index
    %c0_72 = arith.constant 0 : index
    %137 = vector.load %arg7[%c0_71, %c0_72] : memref<32x32xf32, #tpu.memory_space<vmem>>, vector<32x32xf32>
    %c0_73 = arith.constant 0 : index
    %c0_74 = arith.constant 0 : index
    %138 = vector.load %arg6[%c0_73, %c0_74] : memref<1x32xf32, #tpu.memory_space<vmem>>, vector<1x32xf32>
    %139 = vector.broadcast %138 : vector<1x32xf32> to vector<32x32xf32>
    %140 = arith.addf %137, %139 : vector<32x32xf32>
    %c0_75 = arith.constant 0 : index
    %c0_76 = arith.constant 0 : index
    %141 = vector.load %arg7[%c0_75, %c0_76] : memref<32x32xf32, #tpu.memory_space<vmem>>, vector<32x32xf32>
    tpu.vector_store %arg7[%c0_75, %c0_76], %140 {strides = array<i32>} : memref<32x32xf32, #tpu.memory_space<vmem>>, vector<32x32xf32>,
    return
  }
  func.func @transform_0(%arg0: i32) -> (i32, i32) {
    %c0_i32 = arith.constant 0 : i32
    %c0_i32_0 = arith.constant 0 : i32
    %c0_i32_1 = arith.constant 0 : i32
    return %c0_i32, %c0_i32_0 : i32, i32
  }
  func.func @transform_1(%arg0: i32) -> (i32, i32, i32) {
    %c0_i32 = arith.constant 0 : i32
    %c0_i32_0 = arith.constant 0 : i32
    %c0_i32_1 = arith.constant 0 : i32
    return %c0_i32, %arg0, %c0_i32_0 : i32, i32, i32
  }
  func.func @transform_2(%arg0: i32) -> (i32, i32, i32) {
    %c0_i32 = arith.constant 0 : i32
    %c0_i32_0 = arith.constant 0 : i32
    %c0_i32_1 = arith.constant 0 : i32
    %c0_i32_2 = arith.constant 0 : i32
    return %c0_i32, %c0_i32_0, %c0_i32_1 : i32, i32, i32
  }
  func.func @transform_3(%arg0: i32) -> (i32, i32, i32) {
    %c0_i32 = arith.constant 0 : i32
    %c0_i32_0 = arith.constant 0 : i32
    %c0_i32_1 = arith.constant 0 : i32
    %c0_i32_2 = arith.constant 0 : i32
    return %c0_i32, %c0_i32_0, %c0_i32_1 : i32, i32, i32
  }
  func.func @transform_4(%arg0: i32) -> (i32, i32, i32) {
    %c0_i32 = arith.constant 0 : i32
    %c0_i32_0 = arith.constant 0 : i32
    %c0_i32_1 = arith.constant 0 : i32
    %c0_i32_2 = arith.constant 0 : i32
    return %c0_i32, %c0_i32_0, %c0_i32_1 : i32, i32, i32
  }
  func.func @transform_5(%arg0: i32) -> (i32, i32) {
    %c0_i32 = arith.constant 0 : i32
    %c0_i32_0 = arith.constant 0 : i32
    %c0_i32_1 = arith.constant 0 : i32
    return %c0_i32, %c0_i32_0 : i32, i32
  }
  func.func @transform_6(%arg0: i32) -> (i32, i32) {
    %c0_i32 = arith.constant 0 : i32
    %c0_i32_0 = arith.constant 0 : i32
    return %arg0, %c0_i32 : i32, i32
  }
}

module attributes {stable_mosaic.version = 11 : i64} {
  func.func @_gat_layer_kernel(%arg0: i32, %arg1: memref<64x8xf32, #tpu.memory_space<vmem>>, %arg2: memref<2x32x64xi8, #tpu.memory_space<vmem>>, %arg3: memref<2x8x64xf32, #tpu.memory_space<vmem>>, %arg4: memref<2x2x64xf32, #tpu.memory_space<vmem>>, %arg5: memref<2x2x64xf32, #tpu.memory_space<vmem>>, %arg6: memref<1x64xf32, #tpu.memory_space<vmem>>, %arg7: memref<32x64xf32, #tpu.memory_space<vmem>>) attributes {dimension_semantics = [#tpu.dimension_semantics<parallel>], iteration_bounds = array<i64: 2>, scalar_prefetch = 0 : i64, scratch_operands = 0 : i64, tpu.core_type = #tpu.core_type<tc>, window_params = [{pipeline_mode = #tpu.pipeline_mode<synchronous>, transform_indices = @transform_0, window_bounds = array<i64: 64, 8>}, {transform_indices = @transform_1, window_bounds = array<i64: 2, 32, 64>}, {pipeline_mode = #tpu.pipeline_mode<synchronous>, transform_indices = @transform_2, window_bounds = array<i64: 2, 8, 64>}, {pipeline_mode = #tpu.pipeline_mode<synchronous>, transform_indices = @transform_3, window_bounds = array<i64: 2, 2, 64>}, {pipeline_mode = #tpu.pipeline_mode<synchronous>, transform_indices = @transform_4, window_bounds = array<i64: 2, 2, 64>}, {pipeline_mode = #tpu.pipeline_mode<synchronous>, transform_indices = @transform_5, window_bounds = array<i64: 1, 64>}, {transform_indices = @transform_6, window_bounds = array<i64: 32, 64>}]} {
    %c32_i32 = arith.constant 32 : i32
    %0 = arith.muli %arg0, %c32_i32 : i32
    %1 = tpu.assume_multiple %0, 32 : i32
    %c0 = arith.constant 0 : index
    %c0_0 = arith.constant 0 : index
    %2 = vector.load %arg1[%c0, %c0_0] : memref<64x8xf32, #tpu.memory_space<vmem>>, vector<64x8xf32>
    %3 = arith.index_cast %1 : i32 to index
    %c0_1 = arith.constant 0 : index
    %4 = vector.load %arg1[%3, %c0_1] : memref<64x8xf32, #tpu.memory_space<vmem>>, vector<32x8xf32>
    %cst = arith.constant 0.000000e+00 : f32
    %5 = vector.broadcast %cst : f32 to vector<32x64xf32>
    %c0_2 = arith.constant 0 : index
    %c0_3 = arith.constant 0 : index
    %6 = vector.load %arg7[%c0_2, %c0_3] : memref<32x64xf32, #tpu.memory_space<vmem>>, vector<32x64xf32>
    tpu.vector_store %arg7[%c0_2, %c0_3], %5 {strides = array<i32>} : memref<32x64xf32, #tpu.memory_space<vmem>>, vector<32x64xf32>,
    %c0_4 = arith.constant 0 : index
    %c0_5 = arith.constant 0 : index
    %c0_6 = arith.constant 0 : index
    %7 = vector.load %arg2[%c0_4, %c0_5, %c0_6] : memref<2x32x64xi8, #tpu.memory_space<vmem>>, vector<1x32x64xi8>
    %8 = vector.shape_cast %7 : vector<1x32x64xi8> to vector<32x64xi8>
    %9 = arith.extsi %8 : vector<32x64xi8> to vector<32x64xi32>
    %c0_i32 = arith.constant 0 : i32
    %10 = vector.broadcast %c0_i32 : i32 to vector<32x64xi32>
    %11 = arith.cmpi sgt, %9, %10 : vector<32x64xi32>
    %c0_7 = arith.constant 0 : index
    %c0_8 = arith.constant 0 : index
    %c0_9 = arith.constant 0 : index
    %12 = vector.load %arg3[%c0_7, %c0_8, %c0_9] : memref<2x8x64xf32, #tpu.memory_space<vmem>>, vector<1x8x64xf32>
    %13 = vector.shape_cast %12 : vector<1x8x64xf32> to vector<8x64xf32>
    %cst_10 = arith.constant dense<0.000000e+00> : vector<64x64xf32>
    %14 = tpu.matmul %2, %13, %cst_10 {dimension_numbers = #tpu.dot_dimension_numbers<[1], [0], [0], [1], [0, 0, 1, 1], [], []>} : vector<64x8xf32>, vector<8x64xf32>, vector<64x64xf32> -> vector<64x64xf32>
    %cst_11 = arith.constant dense<0.000000e+00> : vector<32x64xf32>
    %15 = tpu.matmul %4, %13, %cst_11 {dimension_numbers = #tpu.dot_dimension_numbers<[1], [0], [0], [1], [0, 0, 1, 1], [], []>} : vector<32x8xf32>, vector<8x64xf32>, vector<32x64xf32> -> vector<32x64xf32>
    %c0_12 = arith.constant 0 : index
    %c0_13 = arith.constant 0 : index
    %c0_14 = arith.constant 0 : index
    %16 = vector.load %arg4[%c0_12, %c0_13, %c0_14] : memref<2x2x64xf32, #tpu.memory_space<vmem>>, vector<1x2x64xf32>
    %17 = vector.shape_cast %16 : vector<1x2x64xf32> to vector<2x64xf32>
    %cst_15 = arith.constant dense<0.000000e+00> : vector<2x64xf32>
    %18 = tpu.matmul %17, %14, %cst_15 {dimension_numbers = #tpu.dot_dimension_numbers<[1], [1], [0], [0], [0, 0, 1, 0], [], []>} : vector<2x64xf32>, vector<64x64xf32>, vector<2x64xf32> -> vector<2x64xf32>
    %c0_16 = arith.constant 0 : index
    %c0_17 = arith.constant 0 : index
    %c0_18 = arith.constant 0 : index
    %19 = vector.load %arg5[%c0_16, %c0_17, %c0_18] : memref<2x2x64xf32, #tpu.memory_space<vmem>>, vector<1x2x64xf32>
    %20 = vector.shape_cast %19 : vector<1x2x64xf32> to vector<2x64xf32>
    %cst_19 = arith.constant dense<0.000000e+00> : vector<32x2xf32>
    %21 = tpu.matmul %15, %20, %cst_19 {dimension_numbers = #tpu.dot_dimension_numbers<[1], [1], [0], [0], [0, 0, 1, 0], [], []>} : vector<32x64xf32>, vector<2x64xf32>, vector<32x2xf32> -> vector<32x2xf32>
    %22 = vector.extract_strided_slice %21 {offsets = [0, 0], sizes = [32, 1], strides = [1, 1]} : vector<32x2xf32> to vector<32x1xf32>
    %23 = vector.extract_strided_slice %18 {offsets = [0, 0], sizes = [1, 64], strides = [1, 1]} : vector<2x64xf32> to vector<1x64xf32>
    %24 = vector.broadcast %22 : vector<32x1xf32> to vector<32x64xf32>
    %25 = vector.broadcast %23 : vector<1x64xf32> to vector<32x64xf32>
    %26 = arith.addf %24, %25 : vector<32x64xf32>
    %cst_20 = arith.constant 2.000000e-01 : f32
    %27 = vector.broadcast %cst_20 : f32 to vector<32x64xf32>
    %28 = arith.mulf %27, %26 : vector<32x64xf32>
    %29 = arith.maximumf %26, %28 : vector<32x64xf32>
    %cst_21 = arith.constant -1.000000e+30 : f32
    %30 = vector.broadcast %cst_21 : f32 to vector<32x64xf32>
    %31 = arith.select %11, %29, %30 : vector<32x64xi1>, vector<32x64xf32>
    %cst_22 = arith.constant dense<0xFF800000> : vector<32xf32>
    %32 = vector.multi_reduction <maximumf>, %31, %cst_22 [1] : vector<32x64xf32> to vector<32xf32>
    %33 = vector.shape_cast %32 : vector<32xf32> to vector<32x1xf32>
    %34 = vector.broadcast %33 : vector<32x1xf32> to vector<32x64xf32>
    %35 = arith.subf %31, %34 : vector<32x64xf32>
    %36 = math.exp %35 : vector<32x64xf32>
    %cst_23 = arith.constant dense<0.000000e+00> : vector<32xf32>
    %37 = vector.multi_reduction <add>, %36, %cst_23 [1] : vector<32x64xf32> to vector<32xf32>
    %38 = vector.shape_cast %37 : vector<32xf32> to vector<32x1xf32>
    %39 = tpu.reciprocal %38 : vector<32x1xf32> -> vector<32x1xf32>
    %40 = vector.extract_strided_slice %14 {offsets = [0, 0], sizes = [64, 32], strides = [1, 1]} : vector<64x64xf32> to vector<64x32xf32>
    %cst_24 = arith.constant dense<0.000000e+00> : vector<32x32xf32>
    %41 = tpu.matmul %36, %40, %cst_24 {dimension_numbers = #tpu.dot_dimension_numbers<[1], [0], [0], [1], [0, 0, 1, 1], [], []>} : vector<32x64xf32>, vector<64x32xf32>, vector<32x32xf32> -> vector<32x32xf32>
    %c0_25 = arith.constant 0 : index
    %c0_26 = arith.constant 0 : index
    %42 = vector.load %arg7[%c0_25, %c0_26] : memref<32x64xf32, #tpu.memory_space<vmem>>, vector<32x32xf32>
    %43 = vector.broadcast %39 : vector<32x1xf32> to vector<32x32xf32>
    %44 = arith.mulf %41, %43 : vector<32x32xf32>
    %45 = arith.addf %42, %44 : vector<32x32xf32>
    %c0_27 = arith.constant 0 : index
    %c0_28 = arith.constant 0 : index
    %46 = vector.load %arg7[%c0_27, %c0_28] : memref<32x64xf32, #tpu.memory_space<vmem>>, vector<32x32xf32>
    tpu.vector_store %arg7[%c0_27, %c0_28], %45 {strides = array<i32>} : memref<32x64xf32, #tpu.memory_space<vmem>>, vector<32x32xf32>,
    %47 = vector.extract_strided_slice %21 {offsets = [0, 1], sizes = [32, 1], strides = [1, 1]} : vector<32x2xf32> to vector<32x1xf32>
    %48 = vector.extract_strided_slice %18 {offsets = [1, 0], sizes = [1, 64], strides = [1, 1]} : vector<2x64xf32> to vector<1x64xf32>
    %49 = vector.broadcast %47 : vector<32x1xf32> to vector<32x64xf32>
    %50 = vector.broadcast %48 : vector<1x64xf32> to vector<32x64xf32>
    %51 = arith.addf %49, %50 : vector<32x64xf32>
    %cst_29 = arith.constant 2.000000e-01 : f32
    %52 = vector.broadcast %cst_29 : f32 to vector<32x64xf32>
    %53 = arith.mulf %52, %51 : vector<32x64xf32>
    %54 = arith.maximumf %51, %53 : vector<32x64xf32>
    %cst_30 = arith.constant -1.000000e+30 : f32
    %55 = vector.broadcast %cst_30 : f32 to vector<32x64xf32>
    %56 = arith.select %11, %54, %55 : vector<32x64xi1>, vector<32x64xf32>
    %cst_31 = arith.constant dense<0xFF800000> : vector<32xf32>
    %57 = vector.multi_reduction <maximumf>, %56, %cst_31 [1] : vector<32x64xf32> to vector<32xf32>
    %58 = vector.shape_cast %57 : vector<32xf32> to vector<32x1xf32>
    %59 = vector.broadcast %58 : vector<32x1xf32> to vector<32x64xf32>
    %60 = arith.subf %56, %59 : vector<32x64xf32>
    %61 = math.exp %60 : vector<32x64xf32>
    %cst_32 = arith.constant dense<0.000000e+00> : vector<32xf32>
    %62 = vector.multi_reduction <add>, %61, %cst_32 [1] : vector<32x64xf32> to vector<32xf32>
    %63 = vector.shape_cast %62 : vector<32xf32> to vector<32x1xf32>
    %64 = tpu.reciprocal %63 : vector<32x1xf32> -> vector<32x1xf32>
    %65 = vector.extract_strided_slice %14 {offsets = [0, 32], sizes = [64, 32], strides = [1, 1]} : vector<64x64xf32> to vector<64x32xf32>
    %cst_33 = arith.constant dense<0.000000e+00> : vector<32x32xf32>
    %66 = tpu.matmul %61, %65, %cst_33 {dimension_numbers = #tpu.dot_dimension_numbers<[1], [0], [0], [1], [0, 0, 1, 1], [], []>} : vector<32x64xf32>, vector<64x32xf32>, vector<32x32xf32> -> vector<32x32xf32>
    %c0_34 = arith.constant 0 : index
    %c32 = arith.constant 32 : index
    %67 = vector.load %arg7[%c0_34, %c32] : memref<32x64xf32, #tpu.memory_space<vmem>>, vector<32x32xf32>
    %68 = vector.broadcast %64 : vector<32x1xf32> to vector<32x32xf32>
    %69 = arith.mulf %66, %68 : vector<32x32xf32>
    %70 = arith.addf %67, %69 : vector<32x32xf32>
    %c0_35 = arith.constant 0 : index
    %c32_36 = arith.constant 32 : index
    %71 = vector.load %arg7[%c0_35, %c32_36] : memref<32x64xf32, #tpu.memory_space<vmem>>, vector<32x32xf32>
    tpu.vector_store %arg7[%c0_35, %c32_36], %70 {strides = array<i32>} : memref<32x64xf32, #tpu.memory_space<vmem>>, vector<32x32xf32>,
    %c1 = arith.constant 1 : index
    %c0_37 = arith.constant 0 : index
    %c0_38 = arith.constant 0 : index
    %72 = vector.load %arg2[%c1, %c0_37, %c0_38] : memref<2x32x64xi8, #tpu.memory_space<vmem>>, vector<1x32x64xi8>
    %73 = vector.shape_cast %72 : vector<1x32x64xi8> to vector<32x64xi8>
    %74 = arith.extsi %73 : vector<32x64xi8> to vector<32x64xi32>
    %c0_i32_39 = arith.constant 0 : i32
    %75 = vector.broadcast %c0_i32_39 : i32 to vector<32x64xi32>
    %76 = arith.cmpi sgt, %74, %75 : vector<32x64xi32>
    %c1_40 = arith.constant 1 : index
    %c0_41 = arith.constant 0 : index
    %c0_42 = arith.constant 0 : index
    %77 = vector.load %arg3[%c1_40, %c0_41, %c0_42] : memref<2x8x64xf32, #tpu.memory_space<vmem>>, vector<1x8x64xf32>
    %78 = vector.shape_cast %77 : vector<1x8x64xf32> to vector<8x64xf32>
    %cst_43 = arith.constant dense<0.000000e+00> : vector<64x64xf32>
    %79 = tpu.matmul %2, %78, %cst_43 {dimension_numbers = #tpu.dot_dimension_numbers<[1], [0], [0], [1], [0, 0, 1, 1], [], []>} : vector<64x8xf32>, vector<8x64xf32>, vector<64x64xf32> -> vector<64x64xf32>
    %cst_44 = arith.constant dense<0.000000e+00> : vector<32x64xf32>
    %80 = tpu.matmul %4, %78, %cst_44 {dimension_numbers = #tpu.dot_dimension_numbers<[1], [0], [0], [1], [0, 0, 1, 1], [], []>} : vector<32x8xf32>, vector<8x64xf32>, vector<32x64xf32> -> vector<32x64xf32>
    %c1_45 = arith.constant 1 : index
    %c0_46 = arith.constant 0 : index
    %c0_47 = arith.constant 0 : index
    %81 = vector.load %arg4[%c1_45, %c0_46, %c0_47] : memref<2x2x64xf32, #tpu.memory_space<vmem>>, vector<1x2x64xf32>
    %82 = vector.shape_cast %81 : vector<1x2x64xf32> to vector<2x64xf32>
    %cst_48 = arith.constant dense<0.000000e+00> : vector<2x64xf32>
    %83 = tpu.matmul %82, %79, %cst_48 {dimension_numbers = #tpu.dot_dimension_numbers<[1], [1], [0], [0], [0, 0, 1, 0], [], []>} : vector<2x64xf32>, vector<64x64xf32>, vector<2x64xf32> -> vector<2x64xf32>
    %c1_49 = arith.constant 1 : index
    %c0_50 = arith.constant 0 : index
    %c0_51 = arith.constant 0 : index
    %84 = vector.load %arg5[%c1_49, %c0_50, %c0_51] : memref<2x2x64xf32, #tpu.memory_space<vmem>>, vector<1x2x64xf32>
    %85 = vector.shape_cast %84 : vector<1x2x64xf32> to vector<2x64xf32>
    %cst_52 = arith.constant dense<0.000000e+00> : vector<32x2xf32>
    %86 = tpu.matmul %80, %85, %cst_52 {dimension_numbers = #tpu.dot_dimension_numbers<[1], [1], [0], [0], [0, 0, 1, 0], [], []>} : vector<32x64xf32>, vector<2x64xf32>, vector<32x2xf32> -> vector<32x2xf32>
    %87 = vector.extract_strided_slice %86 {offsets = [0, 0], sizes = [32, 1], strides = [1, 1]} : vector<32x2xf32> to vector<32x1xf32>
    %88 = vector.extract_strided_slice %83 {offsets = [0, 0], sizes = [1, 64], strides = [1, 1]} : vector<2x64xf32> to vector<1x64xf32>
    %89 = vector.broadcast %87 : vector<32x1xf32> to vector<32x64xf32>
    %90 = vector.broadcast %88 : vector<1x64xf32> to vector<32x64xf32>
    %91 = arith.addf %89, %90 : vector<32x64xf32>
    %cst_53 = arith.constant 2.000000e-01 : f32
    %92 = vector.broadcast %cst_53 : f32 to vector<32x64xf32>
    %93 = arith.mulf %92, %91 : vector<32x64xf32>
    %94 = arith.maximumf %91, %93 : vector<32x64xf32>
    %cst_54 = arith.constant -1.000000e+30 : f32
    %95 = vector.broadcast %cst_54 : f32 to vector<32x64xf32>
    %96 = arith.select %76, %94, %95 : vector<32x64xi1>, vector<32x64xf32>
    %cst_55 = arith.constant dense<0xFF800000> : vector<32xf32>
    %97 = vector.multi_reduction <maximumf>, %96, %cst_55 [1] : vector<32x64xf32> to vector<32xf32>
    %98 = vector.shape_cast %97 : vector<32xf32> to vector<32x1xf32>
    %99 = vector.broadcast %98 : vector<32x1xf32> to vector<32x64xf32>
    %100 = arith.subf %96, %99 : vector<32x64xf32>
    %101 = math.exp %100 : vector<32x64xf32>
    %cst_56 = arith.constant dense<0.000000e+00> : vector<32xf32>
    %102 = vector.multi_reduction <add>, %101, %cst_56 [1] : vector<32x64xf32> to vector<32xf32>
    %103 = vector.shape_cast %102 : vector<32xf32> to vector<32x1xf32>
    %104 = tpu.reciprocal %103 : vector<32x1xf32> -> vector<32x1xf32>
    %105 = vector.extract_strided_slice %79 {offsets = [0, 0], sizes = [64, 32], strides = [1, 1]} : vector<64x64xf32> to vector<64x32xf32>
    %cst_57 = arith.constant dense<0.000000e+00> : vector<32x32xf32>
    %106 = tpu.matmul %101, %105, %cst_57 {dimension_numbers = #tpu.dot_dimension_numbers<[1], [0], [0], [1], [0, 0, 1, 1], [], []>} : vector<32x64xf32>, vector<64x32xf32>, vector<32x32xf32> -> vector<32x32xf32>
    %c0_58 = arith.constant 0 : index
    %c0_59 = arith.constant 0 : index
    %107 = vector.load %arg7[%c0_58, %c0_59] : memref<32x64xf32, #tpu.memory_space<vmem>>, vector<32x32xf32>
    %108 = vector.broadcast %104 : vector<32x1xf32> to vector<32x32xf32>
    %109 = arith.mulf %106, %108 : vector<32x32xf32>
    %110 = arith.addf %107, %109 : vector<32x32xf32>
    %c0_60 = arith.constant 0 : index
    %c0_61 = arith.constant 0 : index
    %111 = vector.load %arg7[%c0_60, %c0_61] : memref<32x64xf32, #tpu.memory_space<vmem>>, vector<32x32xf32>
    tpu.vector_store %arg7[%c0_60, %c0_61], %110 {strides = array<i32>} : memref<32x64xf32, #tpu.memory_space<vmem>>, vector<32x32xf32>,
    %112 = vector.extract_strided_slice %86 {offsets = [0, 1], sizes = [32, 1], strides = [1, 1]} : vector<32x2xf32> to vector<32x1xf32>
    %113 = vector.extract_strided_slice %83 {offsets = [1, 0], sizes = [1, 64], strides = [1, 1]} : vector<2x64xf32> to vector<1x64xf32>
    %114 = vector.broadcast %112 : vector<32x1xf32> to vector<32x64xf32>
    %115 = vector.broadcast %113 : vector<1x64xf32> to vector<32x64xf32>
    %116 = arith.addf %114, %115 : vector<32x64xf32>
    %cst_62 = arith.constant 2.000000e-01 : f32
    %117 = vector.broadcast %cst_62 : f32 to vector<32x64xf32>
    %118 = arith.mulf %117, %116 : vector<32x64xf32>
    %119 = arith.maximumf %116, %118 : vector<32x64xf32>
    %cst_63 = arith.constant -1.000000e+30 : f32
    %120 = vector.broadcast %cst_63 : f32 to vector<32x64xf32>
    %121 = arith.select %76, %119, %120 : vector<32x64xi1>, vector<32x64xf32>
    %cst_64 = arith.constant dense<0xFF800000> : vector<32xf32>
    %122 = vector.multi_reduction <maximumf>, %121, %cst_64 [1] : vector<32x64xf32> to vector<32xf32>
    %123 = vector.shape_cast %122 : vector<32xf32> to vector<32x1xf32>
    %124 = vector.broadcast %123 : vector<32x1xf32> to vector<32x64xf32>
    %125 = arith.subf %121, %124 : vector<32x64xf32>
    %126 = math.exp %125 : vector<32x64xf32>
    %cst_65 = arith.constant dense<0.000000e+00> : vector<32xf32>
    %127 = vector.multi_reduction <add>, %126, %cst_65 [1] : vector<32x64xf32> to vector<32xf32>
    %128 = vector.shape_cast %127 : vector<32xf32> to vector<32x1xf32>
    %129 = tpu.reciprocal %128 : vector<32x1xf32> -> vector<32x1xf32>
    %130 = vector.extract_strided_slice %79 {offsets = [0, 32], sizes = [64, 32], strides = [1, 1]} : vector<64x64xf32> to vector<64x32xf32>
    %cst_66 = arith.constant dense<0.000000e+00> : vector<32x32xf32>
    %131 = tpu.matmul %126, %130, %cst_66 {dimension_numbers = #tpu.dot_dimension_numbers<[1], [0], [0], [1], [0, 0, 1, 1], [], []>} : vector<32x64xf32>, vector<64x32xf32>, vector<32x32xf32> -> vector<32x32xf32>
    %c0_67 = arith.constant 0 : index
    %c32_68 = arith.constant 32 : index
    %132 = vector.load %arg7[%c0_67, %c32_68] : memref<32x64xf32, #tpu.memory_space<vmem>>, vector<32x32xf32>
    %133 = vector.broadcast %129 : vector<32x1xf32> to vector<32x32xf32>
    %134 = arith.mulf %131, %133 : vector<32x32xf32>
    %135 = arith.addf %132, %134 : vector<32x32xf32>
    %c0_69 = arith.constant 0 : index
    %c32_70 = arith.constant 32 : index
    %136 = vector.load %arg7[%c0_69, %c32_70] : memref<32x64xf32, #tpu.memory_space<vmem>>, vector<32x32xf32>
    tpu.vector_store %arg7[%c0_69, %c32_70], %135 {strides = array<i32>} : memref<32x64xf32, #tpu.memory_space<vmem>>, vector<32x32xf32>,
    %c0_71 = arith.constant 0 : index
    %c0_72 = arith.constant 0 : index
    %137 = vector.load %arg7[%c0_71, %c0_72] : memref<32x64xf32, #tpu.memory_space<vmem>>, vector<32x64xf32>
    %c0_73 = arith.constant 0 : index
    %c0_74 = arith.constant 0 : index
    %138 = vector.load %arg6[%c0_73, %c0_74] : memref<1x64xf32, #tpu.memory_space<vmem>>, vector<1x64xf32>
    %139 = vector.broadcast %138 : vector<1x64xf32> to vector<32x64xf32>
    %140 = arith.addf %137, %139 : vector<32x64xf32>
    %cst_75 = arith.constant 0.000000e+00 : f32
    %141 = vector.broadcast %cst_75 : f32 to vector<32x64xf32>
    %142 = arith.maximumf %140, %141 : vector<32x64xf32>
    %c0_76 = arith.constant 0 : index
    %c0_77 = arith.constant 0 : index
    %143 = vector.load %arg7[%c0_76, %c0_77] : memref<32x64xf32, #tpu.memory_space<vmem>>, vector<32x64xf32>
    tpu.vector_store %arg7[%c0_76, %c0_77], %142 {strides = array<i32>} : memref<32x64xf32, #tpu.memory_space<vmem>>, vector<32x64xf32>,
    return
  }
  func.func @transform_0(%arg0: i32) -> (i32, i32) {
    %c0_i32 = arith.constant 0 : i32
    %c0_i32_0 = arith.constant 0 : i32
    %c0_i32_1 = arith.constant 0 : i32
    return %c0_i32, %c0_i32_0 : i32, i32
  }
  func.func @transform_1(%arg0: i32) -> (i32, i32, i32) {
    %c0_i32 = arith.constant 0 : i32
    %c0_i32_0 = arith.constant 0 : i32
    %c0_i32_1 = arith.constant 0 : i32
    return %c0_i32, %arg0, %c0_i32_0 : i32, i32, i32
  }
  func.func @transform_2(%arg0: i32) -> (i32, i32, i32) {
    %c0_i32 = arith.constant 0 : i32
    %c0_i32_0 = arith.constant 0 : i32
    %c0_i32_1 = arith.constant 0 : i32
    %c0_i32_2 = arith.constant 0 : i32
    return %c0_i32, %c0_i32_0, %c0_i32_1 : i32, i32, i32
  }
  func.func @transform_3(%arg0: i32) -> (i32, i32, i32) {
    %c0_i32 = arith.constant 0 : i32
    %c0_i32_0 = arith.constant 0 : i32
    %c0_i32_1 = arith.constant 0 : i32
    %c0_i32_2 = arith.constant 0 : i32
    return %c0_i32, %c0_i32_0, %c0_i32_1 : i32, i32, i32
  }
  func.func @transform_4(%arg0: i32) -> (i32, i32, i32) {
    %c0_i32 = arith.constant 0 : i32
    %c0_i32_0 = arith.constant 0 : i32
    %c0_i32_1 = arith.constant 0 : i32
    %c0_i32_2 = arith.constant 0 : i32
    return %c0_i32, %c0_i32_0, %c0_i32_1 : i32, i32, i32
  }
  func.func @transform_5(%arg0: i32) -> (i32, i32) {
    %c0_i32 = arith.constant 0 : i32
    %c0_i32_0 = arith.constant 0 : i32
    %c0_i32_1 = arith.constant 0 : i32
    return %c0_i32, %c0_i32_0 : i32, i32
  }
  func.func @transform_6(%arg0: i32) -> (i32, i32) {
    %c0_i32 = arith.constant 0 : i32
    %c0_i32_0 = arith.constant 0 : i32
    return %arg0, %c0_i32 : i32, i32
  }
}

module attributes {stable_mosaic.version = 11 : i64} {
  func.func @_pair_kernel(%arg0: i32, %arg1: memref<64x32xf32, #tpu.memory_space<vmem>>, %arg2: memref<1x32xf32, #tpu.memory_space<vmem>>, %arg3: memref<1x1xf32, #tpu.memory_space<smem>>, %arg4: memref<32x64xf32, #tpu.memory_space<vmem>>) attributes {dimension_semantics = [#tpu.dimension_semantics<parallel>], iteration_bounds = array<i64: 2>, scalar_prefetch = 0 : i64, scratch_operands = 0 : i64, tpu.core_type = #tpu.core_type<tc>, window_params = [{pipeline_mode = #tpu.pipeline_mode<synchronous>, transform_indices = @transform_0, window_bounds = array<i64: 64, 32>}, {pipeline_mode = #tpu.pipeline_mode<synchronous>, transform_indices = @transform_1, window_bounds = array<i64: 1, 32>}, {transform_indices = @transform_2, window_bounds = array<i64: 1, 1>}, {transform_indices = @transform_3, window_bounds = array<i64: 32, 64>}]} {
    %c32_i32 = arith.constant 32 : i32
    %0 = arith.muli %arg0, %c32_i32 : i32
    %1 = tpu.assume_multiple %0, 32 : i32
    %2 = arith.index_cast %1 : i32 to index
    %c0 = arith.constant 0 : index
    %3 = vector.load %arg1[%2, %c0] : memref<64x32xf32, #tpu.memory_space<vmem>>, vector<32x32xf32>
    %c0_0 = arith.constant 0 : index
    %c0_1 = arith.constant 0 : index
    %4 = vector.load %arg2[%c0_0, %c0_1] : memref<1x32xf32, #tpu.memory_space<vmem>>, vector<1x32xf32>
    %cst = arith.constant dense<0.000000e+00> : vector<32x1xf32>
    %5 = tpu.matmul %3, %4, %cst {dimension_numbers = #tpu.dot_dimension_numbers<[1], [1], [0], [0], [0, 0, 1, 0], [], []>} : vector<32x32xf32>, vector<1x32xf32>, vector<32x1xf32> -> vector<32x1xf32>
    %c0_2 = arith.constant 0 : index
    %c0_3 = arith.constant 0 : index
    %6 = vector.load %arg2[%c0_2, %c0_3] : memref<1x32xf32, #tpu.memory_space<vmem>>, vector<1x32xf32>
    %c0_4 = arith.constant 0 : index
    %c0_5 = arith.constant 0 : index
    %7 = vector.load %arg1[%c0_4, %c0_5] : memref<64x32xf32, #tpu.memory_space<vmem>>, vector<64x32xf32>
    %cst_6 = arith.constant dense<0.000000e+00> : vector<1x64xf32>
    %8 = tpu.matmul %6, %7, %cst_6 {dimension_numbers = #tpu.dot_dimension_numbers<[1], [1], [0], [0], [0, 0, 1, 0], [], []>} : vector<1x32xf32>, vector<64x32xf32>, vector<1x64xf32> -> vector<1x64xf32>
    %9 = vector.broadcast %5 : vector<32x1xf32> to vector<32x64xf32>
    %10 = vector.broadcast %8 : vector<1x64xf32> to vector<32x64xf32>
    %11 = arith.addf %9, %10 : vector<32x64xf32>
    %c0_7 = arith.constant 0 : index
    %c0_8 = arith.constant 0 : index
    %12 = memref.load %arg3[%c0_7, %c0_8] : memref<1x1xf32, #tpu.memory_space<smem>>
    %13 = vector.broadcast %12 : f32 to vector<32x64xf32>
    %14 = arith.addf %11, %13 : vector<32x64xf32>
    %c0_9 = arith.constant 0 : index
    %c0_10 = arith.constant 0 : index
    %15 = vector.load %arg4[%c0_9, %c0_10] : memref<32x64xf32, #tpu.memory_space<vmem>>, vector<32x64xf32>
    tpu.vector_store %arg4[%c0_9, %c0_10], %14 {strides = array<i32>} : memref<32x64xf32, #tpu.memory_space<vmem>>, vector<32x64xf32>,
    return
  }
  func.func @transform_0(%arg0: i32) -> (i32, i32) {
    %c0_i32 = arith.constant 0 : i32
    %c0_i32_0 = arith.constant 0 : i32
    %c0_i32_1 = arith.constant 0 : i32
    return %c0_i32, %c0_i32_0 : i32, i32
  }
  func.func @transform_1(%arg0: i32) -> (i32, i32) {
    %c0_i32 = arith.constant 0 : i32
    %c0_i32_0 = arith.constant 0 : i32
    %c0_i32_1 = arith.constant 0 : i32
    return %c0_i32, %c0_i32_0 : i32, i32
  }
  func.func @transform_2(%arg0: i32) -> (i32, i32) {
    %c0_i32 = arith.constant 0 : i32
    %c0_i32_0 = arith.constant 0 : i32
    %c0_i32_1 = arith.constant 0 : i32
    return %c0_i32, %c0_i32_0 : i32, i32
  }
  func.func @transform_3(%arg0: i32) -> (i32, i32) {
    %c0_i32 = arith.constant 0 : i32
    %c0_i32_0 = arith.constant 0 : i32
    return %arg0, %c0_i32 : i32, i32
  }
}

module attributes {stable_mosaic.version = 11 : i64} {
  func.func @_gat_layer_kernel(%arg0: i32, %arg1: memref<64x8xf32, #tpu.memory_space<vmem>>, %arg2: memref<2x32x64xi8, #tpu.memory_space<vmem>>, %arg3: memref<2x8x64xf32, #tpu.memory_space<vmem>>, %arg4: memref<2x2x64xf32, #tpu.memory_space<vmem>>, %arg5: memref<2x2x64xf32, #tpu.memory_space<vmem>>, %arg6: memref<1x64xf32, #tpu.memory_space<vmem>>, %arg7: memref<32x64xf32, #tpu.memory_space<vmem>>) attributes {dimension_semantics = [#tpu.dimension_semantics<parallel>], iteration_bounds = array<i64: 2>, scalar_prefetch = 0 : i64, scratch_operands = 0 : i64, tpu.core_type = #tpu.core_type<tc>, window_params = [{pipeline_mode = #tpu.pipeline_mode<synchronous>, transform_indices = @transform_0, window_bounds = array<i64: 64, 8>}, {transform_indices = @transform_1, window_bounds = array<i64: 2, 32, 64>}, {pipeline_mode = #tpu.pipeline_mode<synchronous>, transform_indices = @transform_2, window_bounds = array<i64: 2, 8, 64>}, {pipeline_mode = #tpu.pipeline_mode<synchronous>, transform_indices = @transform_3, window_bounds = array<i64: 2, 2, 64>}, {pipeline_mode = #tpu.pipeline_mode<synchronous>, transform_indices = @transform_4, window_bounds = array<i64: 2, 2, 64>}, {pipeline_mode = #tpu.pipeline_mode<synchronous>, transform_indices = @transform_5, window_bounds = array<i64: 1, 64>}, {transform_indices = @transform_6, window_bounds = array<i64: 32, 64>}]} {
    %c32_i32 = arith.constant 32 : i32
    %0 = arith.muli %arg0, %c32_i32 : i32
    %1 = tpu.assume_multiple %0, 32 : i32
    %c0 = arith.constant 0 : index
    %c0_0 = arith.constant 0 : index
    %2 = vector.load %arg1[%c0, %c0_0] : memref<64x8xf32, #tpu.memory_space<vmem>>, vector<64x8xf32>
    %3 = arith.index_cast %1 : i32 to index
    %c0_1 = arith.constant 0 : index
    %4 = vector.load %arg1[%3, %c0_1] : memref<64x8xf32, #tpu.memory_space<vmem>>, vector<32x8xf32>
    %cst = arith.constant 0.000000e+00 : f32
    %5 = vector.broadcast %cst : f32 to vector<32x64xf32>
    %c0_2 = arith.constant 0 : index
    %c0_3 = arith.constant 0 : index
    %6 = vector.load %arg7[%c0_2, %c0_3] : memref<32x64xf32, #tpu.memory_space<vmem>>, vector<32x64xf32>
    tpu.vector_store %arg7[%c0_2, %c0_3], %5 {strides = array<i32>} : memref<32x64xf32, #tpu.memory_space<vmem>>, vector<32x64xf32>,
    %c0_4 = arith.constant 0 : index
    %c0_5 = arith.constant 0 : index
    %c0_6 = arith.constant 0 : index
    %7 = vector.load %arg2[%c0_4, %c0_5, %c0_6] : memref<2x32x64xi8, #tpu.memory_space<vmem>>, vector<1x32x64xi8>
    %8 = vector.shape_cast %7 : vector<1x32x64xi8> to vector<32x64xi8>
    %9 = arith.extsi %8 : vector<32x64xi8> to vector<32x64xi32>
    %c0_i32 = arith.constant 0 : i32
    %10 = vector.broadcast %c0_i32 : i32 to vector<32x64xi32>
    %11 = arith.cmpi sgt, %9, %10 : vector<32x64xi32>
    %c0_7 = arith.constant 0 : index
    %c0_8 = arith.constant 0 : index
    %c0_9 = arith.constant 0 : index
    %12 = vector.load %arg3[%c0_7, %c0_8, %c0_9] : memref<2x8x64xf32, #tpu.memory_space<vmem>>, vector<1x8x64xf32>
    %13 = vector.shape_cast %12 : vector<1x8x64xf32> to vector<8x64xf32>
    %cst_10 = arith.constant dense<0.000000e+00> : vector<64x64xf32>
    %14 = tpu.matmul %2, %13, %cst_10 {dimension_numbers = #tpu.dot_dimension_numbers<[1], [0], [0], [1], [0, 0, 1, 1], [], []>} : vector<64x8xf32>, vector<8x64xf32>, vector<64x64xf32> -> vector<64x64xf32>
    %cst_11 = arith.constant dense<0.000000e+00> : vector<32x64xf32>
    %15 = tpu.matmul %4, %13, %cst_11 {dimension_numbers = #tpu.dot_dimension_numbers<[1], [0], [0], [1], [0, 0, 1, 1], [], []>} : vector<32x8xf32>, vector<8x64xf32>, vector<32x64xf32> -> vector<32x64xf32>
    %c0_12 = arith.constant 0 : index
    %c0_13 = arith.constant 0 : index
    %c0_14 = arith.constant 0 : index
    %16 = vector.load %arg4[%c0_12, %c0_13, %c0_14] : memref<2x2x64xf32, #tpu.memory_space<vmem>>, vector<1x2x64xf32>
    %17 = vector.shape_cast %16 : vector<1x2x64xf32> to vector<2x64xf32>
    %cst_15 = arith.constant dense<0.000000e+00> : vector<2x64xf32>
    %18 = tpu.matmul %17, %14, %cst_15 {dimension_numbers = #tpu.dot_dimension_numbers<[1], [1], [0], [0], [0, 0, 1, 0], [], []>} : vector<2x64xf32>, vector<64x64xf32>, vector<2x64xf32> -> vector<2x64xf32>
    %c0_16 = arith.constant 0 : index
    %c0_17 = arith.constant 0 : index
    %c0_18 = arith.constant 0 : index
    %19 = vector.load %arg5[%c0_16, %c0_17, %c0_18] : memref<2x2x64xf32, #tpu.memory_space<vmem>>, vector<1x2x64xf32>
    %20 = vector.shape_cast %19 : vector<1x2x64xf32> to vector<2x64xf32>
    %cst_19 = arith.constant dense<0.000000e+00> : vector<32x2xf32>
    %21 = tpu.matmul %15, %20, %cst_19 {dimension_numbers = #tpu.dot_dimension_numbers<[1], [1], [0], [0], [0, 0, 1, 0], [], []>} : vector<32x64xf32>, vector<2x64xf32>, vector<32x2xf32> -> vector<32x2xf32>
    %22 = vector.extract_strided_slice %21 {offsets = [0, 0], sizes = [32, 1], strides = [1, 1]} : vector<32x2xf32> to vector<32x1xf32>
    %23 = vector.extract_strided_slice %18 {offsets = [0, 0], sizes = [1, 64], strides = [1, 1]} : vector<2x64xf32> to vector<1x64xf32>
    %24 = vector.broadcast %22 : vector<32x1xf32> to vector<32x64xf32>
    %25 = vector.broadcast %23 : vector<1x64xf32> to vector<32x64xf32>
    %26 = arith.addf %24, %25 : vector<32x64xf32>
    %cst_20 = arith.constant 2.000000e-01 : f32
    %27 = vector.broadcast %cst_20 : f32 to vector<32x64xf32>
    %28 = arith.mulf %27, %26 : vector<32x64xf32>
    %29 = arith.maximumf %26, %28 : vector<32x64xf32>
    %cst_21 = arith.constant -1.000000e+30 : f32
    %30 = vector.broadcast %cst_21 : f32 to vector<32x64xf32>
    %31 = arith.select %11, %29, %30 : vector<32x64xi1>, vector<32x64xf32>
    %cst_22 = arith.constant dense<0xFF800000> : vector<32xf32>
    %32 = vector.multi_reduction <maximumf>, %31, %cst_22 [1] : vector<32x64xf32> to vector<32xf32>
    %33 = vector.shape_cast %32 : vector<32xf32> to vector<32x1xf32>
    %34 = vector.broadcast %33 : vector<32x1xf32> to vector<32x64xf32>
    %35 = arith.subf %31, %34 : vector<32x64xf32>
    %36 = math.exp %35 : vector<32x64xf32>
    %cst_23 = arith.constant dense<0.000000e+00> : vector<32xf32>
    %37 = vector.multi_reduction <add>, %36, %cst_23 [1] : vector<32x64xf32> to vector<32xf32>
    %38 = vector.shape_cast %37 : vector<32xf32> to vector<32x1xf32>
    %39 = tpu.reciprocal %38 : vector<32x1xf32> -> vector<32x1xf32>
    %40 = vector.extract_strided_slice %14 {offsets = [0, 0], sizes = [64, 32], strides = [1, 1]} : vector<64x64xf32> to vector<64x32xf32>
    %cst_24 = arith.constant dense<0.000000e+00> : vector<32x32xf32>
    %41 = tpu.matmul %36, %40, %cst_24 {dimension_numbers = #tpu.dot_dimension_numbers<[1], [0], [0], [1], [0, 0, 1, 1], [], []>} : vector<32x64xf32>, vector<64x32xf32>, vector<32x32xf32> -> vector<32x32xf32>
    %c0_25 = arith.constant 0 : index
    %c0_26 = arith.constant 0 : index
    %42 = vector.load %arg7[%c0_25, %c0_26] : memref<32x64xf32, #tpu.memory_space<vmem>>, vector<32x32xf32>
    %43 = vector.broadcast %39 : vector<32x1xf32> to vector<32x32xf32>
    %44 = arith.mulf %41, %43 : vector<32x32xf32>
    %45 = arith.addf %42, %44 : vector<32x32xf32>
    %c0_27 = arith.constant 0 : index
    %c0_28 = arith.constant 0 : index
    %46 = vector.load %arg7[%c0_27, %c0_28] : memref<32x64xf32, #tpu.memory_space<vmem>>, vector<32x32xf32>
    tpu.vector_store %arg7[%c0_27, %c0_28], %45 {strides = array<i32>} : memref<32x64xf32, #tpu.memory_space<vmem>>, vector<32x32xf32>,
    %47 = vector.extract_strided_slice %21 {offsets = [0, 1], sizes = [32, 1], strides = [1, 1]} : vector<32x2xf32> to vector<32x1xf32>
    %48 = vector.extract_strided_slice %18 {offsets = [1, 0], sizes = [1, 64], strides = [1, 1]} : vector<2x64xf32> to vector<1x64xf32>
    %49 = vector.broadcast %47 : vector<32x1xf32> to vector<32x64xf32>
    %50 = vector.broadcast %48 : vector<1x64xf32> to vector<32x64xf32>
    %51 = arith.addf %49, %50 : vector<32x64xf32>
    %cst_29 = arith.constant 2.000000e-01 : f32
    %52 = vector.broadcast %cst_29 : f32 to vector<32x64xf32>
    %53 = arith.mulf %52, %51 : vector<32x64xf32>
    %54 = arith.maximumf %51, %53 : vector<32x64xf32>
    %cst_30 = arith.constant -1.000000e+30 : f32
    %55 = vector.broadcast %cst_30 : f32 to vector<32x64xf32>
    %56 = arith.select %11, %54, %55 : vector<32x64xi1>, vector<32x64xf32>
    %cst_31 = arith.constant dense<0xFF800000> : vector<32xf32>
    %57 = vector.multi_reduction <maximumf>, %56, %cst_31 [1] : vector<32x64xf32> to vector<32xf32>
    %58 = vector.shape_cast %57 : vector<32xf32> to vector<32x1xf32>
    %59 = vector.broadcast %58 : vector<32x1xf32> to vector<32x64xf32>
    %60 = arith.subf %56, %59 : vector<32x64xf32>
    %61 = math.exp %60 : vector<32x64xf32>
    %cst_32 = arith.constant dense<0.000000e+00> : vector<32xf32>
    %62 = vector.multi_reduction <add>, %61, %cst_32 [1] : vector<32x64xf32> to vector<32xf32>
    %63 = vector.shape_cast %62 : vector<32xf32> to vector<32x1xf32>
    %64 = tpu.reciprocal %63 : vector<32x1xf32> -> vector<32x1xf32>
    %65 = vector.extract_strided_slice %14 {offsets = [0, 32], sizes = [64, 32], strides = [1, 1]} : vector<64x64xf32> to vector<64x32xf32>
    %cst_33 = arith.constant dense<0.000000e+00> : vector<32x32xf32>
    %66 = tpu.matmul %61, %65, %cst_33 {dimension_numbers = #tpu.dot_dimension_numbers<[1], [0], [0], [1], [0, 0, 1, 1], [], []>} : vector<32x64xf32>, vector<64x32xf32>, vector<32x32xf32> -> vector<32x32xf32>
    %c0_34 = arith.constant 0 : index
    %c32 = arith.constant 32 : index
    %67 = vector.load %arg7[%c0_34, %c32] : memref<32x64xf32, #tpu.memory_space<vmem>>, vector<32x32xf32>
    %68 = vector.broadcast %64 : vector<32x1xf32> to vector<32x32xf32>
    %69 = arith.mulf %66, %68 : vector<32x32xf32>
    %70 = arith.addf %67, %69 : vector<32x32xf32>
    %c0_35 = arith.constant 0 : index
    %c32_36 = arith.constant 32 : index
    %71 = vector.load %arg7[%c0_35, %c32_36] : memref<32x64xf32, #tpu.memory_space<vmem>>, vector<32x32xf32>
    tpu.vector_store %arg7[%c0_35, %c32_36], %70 {strides = array<i32>} : memref<32x64xf32, #tpu.memory_space<vmem>>, vector<32x32xf32>,
    %c1 = arith.constant 1 : index
    %c0_37 = arith.constant 0 : index
    %c0_38 = arith.constant 0 : index
    %72 = vector.load %arg2[%c1, %c0_37, %c0_38] : memref<2x32x64xi8, #tpu.memory_space<vmem>>, vector<1x32x64xi8>
    %73 = vector.shape_cast %72 : vector<1x32x64xi8> to vector<32x64xi8>
    %74 = arith.extsi %73 : vector<32x64xi8> to vector<32x64xi32>
    %c0_i32_39 = arith.constant 0 : i32
    %75 = vector.broadcast %c0_i32_39 : i32 to vector<32x64xi32>
    %76 = arith.cmpi sgt, %74, %75 : vector<32x64xi32>
    %c1_40 = arith.constant 1 : index
    %c0_41 = arith.constant 0 : index
    %c0_42 = arith.constant 0 : index
    %77 = vector.load %arg3[%c1_40, %c0_41, %c0_42] : memref<2x8x64xf32, #tpu.memory_space<vmem>>, vector<1x8x64xf32>
    %78 = vector.shape_cast %77 : vector<1x8x64xf32> to vector<8x64xf32>
    %cst_43 = arith.constant dense<0.000000e+00> : vector<64x64xf32>
    %79 = tpu.matmul %2, %78, %cst_43 {dimension_numbers = #tpu.dot_dimension_numbers<[1], [0], [0], [1], [0, 0, 1, 1], [], []>} : vector<64x8xf32>, vector<8x64xf32>, vector<64x64xf32> -> vector<64x64xf32>
    %cst_44 = arith.constant dense<0.000000e+00> : vector<32x64xf32>
    %80 = tpu.matmul %4, %78, %cst_44 {dimension_numbers = #tpu.dot_dimension_numbers<[1], [0], [0], [1], [0, 0, 1, 1], [], []>} : vector<32x8xf32>, vector<8x64xf32>, vector<32x64xf32> -> vector<32x64xf32>
    %c1_45 = arith.constant 1 : index
    %c0_46 = arith.constant 0 : index
    %c0_47 = arith.constant 0 : index
    %81 = vector.load %arg4[%c1_45, %c0_46, %c0_47] : memref<2x2x64xf32, #tpu.memory_space<vmem>>, vector<1x2x64xf32>
    %82 = vector.shape_cast %81 : vector<1x2x64xf32> to vector<2x64xf32>
    %cst_48 = arith.constant dense<0.000000e+00> : vector<2x64xf32>
    %83 = tpu.matmul %82, %79, %cst_48 {dimension_numbers = #tpu.dot_dimension_numbers<[1], [1], [0], [0], [0, 0, 1, 0], [], []>} : vector<2x64xf32>, vector<64x64xf32>, vector<2x64xf32> -> vector<2x64xf32>
    %c1_49 = arith.constant 1 : index
    %c0_50 = arith.constant 0 : index
    %c0_51 = arith.constant 0 : index
    %84 = vector.load %arg5[%c1_49, %c0_50, %c0_51] : memref<2x2x64xf32, #tpu.memory_space<vmem>>, vector<1x2x64xf32>
    %85 = vector.shape_cast %84 : vector<1x2x64xf32> to vector<2x64xf32>
    %cst_52 = arith.constant dense<0.000000e+00> : vector<32x2xf32>
    %86 = tpu.matmul %80, %85, %cst_52 {dimension_numbers = #tpu.dot_dimension_numbers<[1], [1], [0], [0], [0, 0, 1, 0], [], []>} : vector<32x64xf32>, vector<2x64xf32>, vector<32x2xf32> -> vector<32x2xf32>
    %87 = vector.extract_strided_slice %86 {offsets = [0, 0], sizes = [32, 1], strides = [1, 1]} : vector<32x2xf32> to vector<32x1xf32>
    %88 = vector.extract_strided_slice %83 {offsets = [0, 0], sizes = [1, 64], strides = [1, 1]} : vector<2x64xf32> to vector<1x64xf32>
    %89 = vector.broadcast %87 : vector<32x1xf32> to vector<32x64xf32>
    %90 = vector.broadcast %88 : vector<1x64xf32> to vector<32x64xf32>
    %91 = arith.addf %89, %90 : vector<32x64xf32>
    %cst_53 = arith.constant 2.000000e-01 : f32
    %92 = vector.broadcast %cst_53 : f32 to vector<32x64xf32>
    %93 = arith.mulf %92, %91 : vector<32x64xf32>
    %94 = arith.maximumf %91, %93 : vector<32x64xf32>
    %cst_54 = arith.constant -1.000000e+30 : f32
    %95 = vector.broadcast %cst_54 : f32 to vector<32x64xf32>
    %96 = arith.select %76, %94, %95 : vector<32x64xi1>, vector<32x64xf32>
    %cst_55 = arith.constant dense<0xFF800000> : vector<32xf32>
    %97 = vector.multi_reduction <maximumf>, %96, %cst_55 [1] : vector<32x64xf32> to vector<32xf32>
    %98 = vector.shape_cast %97 : vector<32xf32> to vector<32x1xf32>
    %99 = vector.broadcast %98 : vector<32x1xf32> to vector<32x64xf32>
    %100 = arith.subf %96, %99 : vector<32x64xf32>
    %101 = math.exp %100 : vector<32x64xf32>
    %cst_56 = arith.constant dense<0.000000e+00> : vector<32xf32>
    %102 = vector.multi_reduction <add>, %101, %cst_56 [1] : vector<32x64xf32> to vector<32xf32>
    %103 = vector.shape_cast %102 : vector<32xf32> to vector<32x1xf32>
    %104 = tpu.reciprocal %103 : vector<32x1xf32> -> vector<32x1xf32>
    %105 = vector.extract_strided_slice %79 {offsets = [0, 0], sizes = [64, 32], strides = [1, 1]} : vector<64x64xf32> to vector<64x32xf32>
    %cst_57 = arith.constant dense<0.000000e+00> : vector<32x32xf32>
    %106 = tpu.matmul %101, %105, %cst_57 {dimension_numbers = #tpu.dot_dimension_numbers<[1], [0], [0], [1], [0, 0, 1, 1], [], []>} : vector<32x64xf32>, vector<64x32xf32>, vector<32x32xf32> -> vector<32x32xf32>
    %c0_58 = arith.constant 0 : index
    %c0_59 = arith.constant 0 : index
    %107 = vector.load %arg7[%c0_58, %c0_59] : memref<32x64xf32, #tpu.memory_space<vmem>>, vector<32x32xf32>
    %108 = vector.broadcast %104 : vector<32x1xf32> to vector<32x32xf32>
    %109 = arith.mulf %106, %108 : vector<32x32xf32>
    %110 = arith.addf %107, %109 : vector<32x32xf32>
    %c0_60 = arith.constant 0 : index
    %c0_61 = arith.constant 0 : index
    %111 = vector.load %arg7[%c0_60, %c0_61] : memref<32x64xf32, #tpu.memory_space<vmem>>, vector<32x32xf32>
    tpu.vector_store %arg7[%c0_60, %c0_61], %110 {strides = array<i32>} : memref<32x64xf32, #tpu.memory_space<vmem>>, vector<32x32xf32>,
    %112 = vector.extract_strided_slice %86 {offsets = [0, 1], sizes = [32, 1], strides = [1, 1]} : vector<32x2xf32> to vector<32x1xf32>
    %113 = vector.extract_strided_slice %83 {offsets = [1, 0], sizes = [1, 64], strides = [1, 1]} : vector<2x64xf32> to vector<1x64xf32>
    %114 = vector.broadcast %112 : vector<32x1xf32> to vector<32x64xf32>
    %115 = vector.broadcast %113 : vector<1x64xf32> to vector<32x64xf32>
    %116 = arith.addf %114, %115 : vector<32x64xf32>
    %cst_62 = arith.constant 2.000000e-01 : f32
    %117 = vector.broadcast %cst_62 : f32 to vector<32x64xf32>
    %118 = arith.mulf %117, %116 : vector<32x64xf32>
    %119 = arith.maximumf %116, %118 : vector<32x64xf32>
    %cst_63 = arith.constant -1.000000e+30 : f32
    %120 = vector.broadcast %cst_63 : f32 to vector<32x64xf32>
    %121 = arith.select %76, %119, %120 : vector<32x64xi1>, vector<32x64xf32>
    %cst_64 = arith.constant dense<0xFF800000> : vector<32xf32>
    %122 = vector.multi_reduction <maximumf>, %121, %cst_64 [1] : vector<32x64xf32> to vector<32xf32>
    %123 = vector.shape_cast %122 : vector<32xf32> to vector<32x1xf32>
    %124 = vector.broadcast %123 : vector<32x1xf32> to vector<32x64xf32>
    %125 = arith.subf %121, %124 : vector<32x64xf32>
    %126 = math.exp %125 : vector<32x64xf32>
    %cst_65 = arith.constant dense<0.000000e+00> : vector<32xf32>
    %127 = vector.multi_reduction <add>, %126, %cst_65 [1] : vector<32x64xf32> to vector<32xf32>
    %128 = vector.shape_cast %127 : vector<32xf32> to vector<32x1xf32>
    %129 = tpu.reciprocal %128 : vector<32x1xf32> -> vector<32x1xf32>
    %130 = vector.extract_strided_slice %79 {offsets = [0, 32], sizes = [64, 32], strides = [1, 1]} : vector<64x64xf32> to vector<64x32xf32>
    %cst_66 = arith.constant dense<0.000000e+00> : vector<32x32xf32>
    %131 = tpu.matmul %126, %130, %cst_66 {dimension_numbers = #tpu.dot_dimension_numbers<[1], [0], [0], [1], [0, 0, 1, 1], [], []>} : vector<32x64xf32>, vector<64x32xf32>, vector<32x32xf32> -> vector<32x32xf32>
    %c0_67 = arith.constant 0 : index
    %c32_68 = arith.constant 32 : index
    %132 = vector.load %arg7[%c0_67, %c32_68] : memref<32x64xf32, #tpu.memory_space<vmem>>, vector<32x32xf32>
    %133 = vector.broadcast %129 : vector<32x1xf32> to vector<32x32xf32>
    %134 = arith.mulf %131, %133 : vector<32x32xf32>
    %135 = arith.addf %132, %134 : vector<32x32xf32>
    %c0_69 = arith.constant 0 : index
    %c32_70 = arith.constant 32 : index
    %136 = vector.load %arg7[%c0_69, %c32_70] : memref<32x64xf32, #tpu.memory_space<vmem>>, vector<32x32xf32>
    tpu.vector_store %arg7[%c0_69, %c32_70], %135 {strides = array<i32>} : memref<32x64xf32, #tpu.memory_space<vmem>>, vector<32x32xf32>,
    %c0_71 = arith.constant 0 : index
    %c0_72 = arith.constant 0 : index
    %137 = vector.load %arg7[%c0_71, %c0_72] : memref<32x64xf32, #tpu.memory_space<vmem>>, vector<32x64xf32>
    %c0_73 = arith.constant 0 : index
    %c0_74 = arith.constant 0 : index
    %138 = vector.load %arg6[%c0_73, %c0_74] : memref<1x64xf32, #tpu.memory_space<vmem>>, vector<1x64xf32>
    %139 = vector.broadcast %138 : vector<1x64xf32> to vector<32x64xf32>
    %140 = arith.addf %137, %139 : vector<32x64xf32>
    %cst_75 = arith.constant 0.000000e+00 : f32
    %141 = vector.broadcast %cst_75 : f32 to vector<32x64xf32>
    %142 = arith.maximumf %140, %141 : vector<32x64xf32>
    %c0_76 = arith.constant 0 : index
    %c0_77 = arith.constant 0 : index
    %143 = vector.load %arg7[%c0_76, %c0_77] : memref<32x64xf32, #tpu.memory_space<vmem>>, vector<32x64xf32>
    tpu.vector_store %arg7[%c0_76, %c0_77], %142 {strides = array<i32>} : memref<32x64xf32, #tpu.memory_space<vmem>>, vector<32x64xf32>,
    return
  }
  func.func @transform_0(%arg0: i32) -> (i32, i32) {
    %c0_i32 = arith.constant 0 : i32
    %c0_i32_0 = arith.constant 0 : i32
    %c0_i32_1 = arith.constant 0 : i32
    return %c0_i32, %c0_i32_0 : i32, i32
  }
  func.func @transform_1(%arg0: i32) -> (i32, i32, i32) {
    %c0_i32 = arith.constant 0 : i32
    %c0_i32_0 = arith.constant 0 : i32
    %c0_i32_1 = arith.constant 0 : i32
    return %c0_i32, %arg0, %c0_i32_0 : i32, i32, i32
  }
  func.func @transform_2(%arg0: i32) -> (i32, i32, i32) {
    %c0_i32 = arith.constant 0 : i32
    %c0_i32_0 = arith.constant 0 : i32
    %c0_i32_1 = arith.constant 0 : i32
    %c0_i32_2 = arith.constant 0 : i32
    return %c0_i32, %c0_i32_0, %c0_i32_1 : i32, i32, i32
  }
  func.func @transform_3(%arg0: i32) -> (i32, i32, i32) {
    %c0_i32 = arith.constant 0 : i32
    %c0_i32_0 = arith.constant 0 : i32
    %c0_i32_1 = arith.constant 0 : i32
    %c0_i32_2 = arith.constant 0 : i32
    return %c0_i32, %c0_i32_0, %c0_i32_1 : i32, i32, i32
  }
  func.func @transform_4(%arg0: i32) -> (i32, i32, i32) {
    %c0_i32 = arith.constant 0 : i32
    %c0_i32_0 = arith.constant 0 : i32
    %c0_i32_1 = arith.constant 0 : i32
    %c0_i32_2 = arith.constant 0 : i32
    return %c0_i32, %c0_i32_0, %c0_i32_1 : i32, i32, i32
  }
  func.func @transform_5(%arg0: i32) -> (i32, i32) {
    %c0_i32 = arith.constant 0 : i32
    %c0_i32_0 = arith.constant 0 : i32
    %c0_i32_1 = arith.constant 0 : i32
    return %c0_i32, %c0_i32_0 : i32, i32
  }
  func.func @transform_6(%arg0: i32) -> (i32, i32) {
    %c0_i32 = arith.constant 0 : i32
    %c0_i32_0 = arith.constant 0 : i32
    return %arg0, %c0_i32 : i32, i32
  }
}

module attributes {stable_mosaic.version = 11 : i64} {
  func.func @_gat_layer_kernel(%arg0: i32, %arg1: memref<64x64xf32, #tpu.memory_space<vmem>>, %arg2: memref<2x32x64xi8, #tpu.memory_space<vmem>>, %arg3: memref<2x64x32xf32, #tpu.memory_space<vmem>>, %arg4: memref<2x2x32xf32, #tpu.memory_space<vmem>>, %arg5: memref<2x2x32xf32, #tpu.memory_space<vmem>>, %arg6: memref<1x32xf32, #tpu.memory_space<vmem>>, %arg7: memref<32x32xf32, #tpu.memory_space<vmem>>) attributes {dimension_semantics = [#tpu.dimension_semantics<parallel>], iteration_bounds = array<i64: 2>, scalar_prefetch = 0 : i64, scratch_operands = 0 : i64, tpu.core_type = #tpu.core_type<tc>, window_params = [{pipeline_mode = #tpu.pipeline_mode<synchronous>, transform_indices = @transform_0, window_bounds = array<i64: 64, 64>}, {transform_indices = @transform_1, window_bounds = array<i64: 2, 32, 64>}, {pipeline_mode = #tpu.pipeline_mode<synchronous>, transform_indices = @transform_2, window_bounds = array<i64: 2, 64, 32>}, {pipeline_mode = #tpu.pipeline_mode<synchronous>, transform_indices = @transform_3, window_bounds = array<i64: 2, 2, 32>}, {pipeline_mode = #tpu.pipeline_mode<synchronous>, transform_indices = @transform_4, window_bounds = array<i64: 2, 2, 32>}, {pipeline_mode = #tpu.pipeline_mode<synchronous>, transform_indices = @transform_5, window_bounds = array<i64: 1, 32>}, {transform_indices = @transform_6, window_bounds = array<i64: 32, 32>}]} {
    %c32_i32 = arith.constant 32 : i32
    %0 = arith.muli %arg0, %c32_i32 : i32
    %1 = tpu.assume_multiple %0, 32 : i32
    %c0 = arith.constant 0 : index
    %c0_0 = arith.constant 0 : index
    %2 = vector.load %arg1[%c0, %c0_0] : memref<64x64xf32, #tpu.memory_space<vmem>>, vector<64x64xf32>
    %3 = arith.index_cast %1 : i32 to index
    %c0_1 = arith.constant 0 : index
    %4 = vector.load %arg1[%3, %c0_1] : memref<64x64xf32, #tpu.memory_space<vmem>>, vector<32x64xf32>
    %cst = arith.constant 0.000000e+00 : f32
    %5 = vector.broadcast %cst : f32 to vector<32x32xf32>
    %c0_2 = arith.constant 0 : index
    %c0_3 = arith.constant 0 : index
    %6 = vector.load %arg7[%c0_2, %c0_3] : memref<32x32xf32, #tpu.memory_space<vmem>>, vector<32x32xf32>
    tpu.vector_store %arg7[%c0_2, %c0_3], %5 {strides = array<i32>} : memref<32x32xf32, #tpu.memory_space<vmem>>, vector<32x32xf32>,
    %c0_4 = arith.constant 0 : index
    %c0_5 = arith.constant 0 : index
    %c0_6 = arith.constant 0 : index
    %7 = vector.load %arg2[%c0_4, %c0_5, %c0_6] : memref<2x32x64xi8, #tpu.memory_space<vmem>>, vector<1x32x64xi8>
    %8 = vector.shape_cast %7 : vector<1x32x64xi8> to vector<32x64xi8>
    %9 = arith.extsi %8 : vector<32x64xi8> to vector<32x64xi32>
    %c0_i32 = arith.constant 0 : i32
    %10 = vector.broadcast %c0_i32 : i32 to vector<32x64xi32>
    %11 = arith.cmpi sgt, %9, %10 : vector<32x64xi32>
    %c0_7 = arith.constant 0 : index
    %c0_8 = arith.constant 0 : index
    %c0_9 = arith.constant 0 : index
    %12 = vector.load %arg3[%c0_7, %c0_8, %c0_9] : memref<2x64x32xf32, #tpu.memory_space<vmem>>, vector<1x64x32xf32>
    %13 = vector.shape_cast %12 : vector<1x64x32xf32> to vector<64x32xf32>
    %cst_10 = arith.constant dense<0.000000e+00> : vector<64x32xf32>
    %14 = tpu.matmul %2, %13, %cst_10 {dimension_numbers = #tpu.dot_dimension_numbers<[1], [0], [0], [1], [0, 0, 1, 1], [], []>} : vector<64x64xf32>, vector<64x32xf32>, vector<64x32xf32> -> vector<64x32xf32>
    %cst_11 = arith.constant dense<0.000000e+00> : vector<32x32xf32>
    %15 = tpu.matmul %4, %13, %cst_11 {dimension_numbers = #tpu.dot_dimension_numbers<[1], [0], [0], [1], [0, 0, 1, 1], [], []>} : vector<32x64xf32>, vector<64x32xf32>, vector<32x32xf32> -> vector<32x32xf32>
    %c0_12 = arith.constant 0 : index
    %c0_13 = arith.constant 0 : index
    %c0_14 = arith.constant 0 : index
    %16 = vector.load %arg4[%c0_12, %c0_13, %c0_14] : memref<2x2x32xf32, #tpu.memory_space<vmem>>, vector<1x2x32xf32>
    %17 = vector.shape_cast %16 : vector<1x2x32xf32> to vector<2x32xf32>
    %cst_15 = arith.constant dense<0.000000e+00> : vector<2x64xf32>
    %18 = tpu.matmul %17, %14, %cst_15 {dimension_numbers = #tpu.dot_dimension_numbers<[1], [1], [0], [0], [0, 0, 1, 0], [], []>} : vector<2x32xf32>, vector<64x32xf32>, vector<2x64xf32> -> vector<2x64xf32>
    %c0_16 = arith.constant 0 : index
    %c0_17 = arith.constant 0 : index
    %c0_18 = arith.constant 0 : index
    %19 = vector.load %arg5[%c0_16, %c0_17, %c0_18] : memref<2x2x32xf32, #tpu.memory_space<vmem>>, vector<1x2x32xf32>
    %20 = vector.shape_cast %19 : vector<1x2x32xf32> to vector<2x32xf32>
    %cst_19 = arith.constant dense<0.000000e+00> : vector<32x2xf32>
    %21 = tpu.matmul %15, %20, %cst_19 {dimension_numbers = #tpu.dot_dimension_numbers<[1], [1], [0], [0], [0, 0, 1, 0], [], []>} : vector<32x32xf32>, vector<2x32xf32>, vector<32x2xf32> -> vector<32x2xf32>
    %22 = vector.extract_strided_slice %21 {offsets = [0, 0], sizes = [32, 1], strides = [1, 1]} : vector<32x2xf32> to vector<32x1xf32>
    %23 = vector.extract_strided_slice %18 {offsets = [0, 0], sizes = [1, 64], strides = [1, 1]} : vector<2x64xf32> to vector<1x64xf32>
    %24 = vector.broadcast %22 : vector<32x1xf32> to vector<32x64xf32>
    %25 = vector.broadcast %23 : vector<1x64xf32> to vector<32x64xf32>
    %26 = arith.addf %24, %25 : vector<32x64xf32>
    %cst_20 = arith.constant 2.000000e-01 : f32
    %27 = vector.broadcast %cst_20 : f32 to vector<32x64xf32>
    %28 = arith.mulf %27, %26 : vector<32x64xf32>
    %29 = arith.maximumf %26, %28 : vector<32x64xf32>
    %cst_21 = arith.constant -1.000000e+30 : f32
    %30 = vector.broadcast %cst_21 : f32 to vector<32x64xf32>
    %31 = arith.select %11, %29, %30 : vector<32x64xi1>, vector<32x64xf32>
    %cst_22 = arith.constant dense<0xFF800000> : vector<32xf32>
    %32 = vector.multi_reduction <maximumf>, %31, %cst_22 [1] : vector<32x64xf32> to vector<32xf32>
    %33 = vector.shape_cast %32 : vector<32xf32> to vector<32x1xf32>
    %34 = vector.broadcast %33 : vector<32x1xf32> to vector<32x64xf32>
    %35 = arith.subf %31, %34 : vector<32x64xf32>
    %36 = math.exp %35 : vector<32x64xf32>
    %cst_23 = arith.constant dense<0.000000e+00> : vector<32xf32>
    %37 = vector.multi_reduction <add>, %36, %cst_23 [1] : vector<32x64xf32> to vector<32xf32>
    %38 = vector.shape_cast %37 : vector<32xf32> to vector<32x1xf32>
    %39 = tpu.reciprocal %38 : vector<32x1xf32> -> vector<32x1xf32>
    %40 = vector.extract_strided_slice %14 {offsets = [0, 0], sizes = [64, 16], strides = [1, 1]} : vector<64x32xf32> to vector<64x16xf32>
    %cst_24 = arith.constant dense<0.000000e+00> : vector<32x16xf32>
    %41 = tpu.matmul %36, %40, %cst_24 {dimension_numbers = #tpu.dot_dimension_numbers<[1], [0], [0], [1], [0, 0, 1, 1], [], []>} : vector<32x64xf32>, vector<64x16xf32>, vector<32x16xf32> -> vector<32x16xf32>
    %c0_25 = arith.constant 0 : index
    %c0_26 = arith.constant 0 : index
    %42 = vector.load %arg7[%c0_25, %c0_26] : memref<32x32xf32, #tpu.memory_space<vmem>>, vector<32x16xf32>
    %43 = vector.broadcast %39 : vector<32x1xf32> to vector<32x16xf32>
    %44 = arith.mulf %41, %43 : vector<32x16xf32>
    %45 = arith.addf %42, %44 : vector<32x16xf32>
    %c0_27 = arith.constant 0 : index
    %c0_28 = arith.constant 0 : index
    %46 = vector.load %arg7[%c0_27, %c0_28] : memref<32x32xf32, #tpu.memory_space<vmem>>, vector<32x16xf32>
    tpu.vector_store %arg7[%c0_27, %c0_28], %45 {strides = array<i32>} : memref<32x32xf32, #tpu.memory_space<vmem>>, vector<32x16xf32>,
    %47 = vector.extract_strided_slice %21 {offsets = [0, 1], sizes = [32, 1], strides = [1, 1]} : vector<32x2xf32> to vector<32x1xf32>
    %48 = vector.extract_strided_slice %18 {offsets = [1, 0], sizes = [1, 64], strides = [1, 1]} : vector<2x64xf32> to vector<1x64xf32>
    %49 = vector.broadcast %47 : vector<32x1xf32> to vector<32x64xf32>
    %50 = vector.broadcast %48 : vector<1x64xf32> to vector<32x64xf32>
    %51 = arith.addf %49, %50 : vector<32x64xf32>
    %cst_29 = arith.constant 2.000000e-01 : f32
    %52 = vector.broadcast %cst_29 : f32 to vector<32x64xf32>
    %53 = arith.mulf %52, %51 : vector<32x64xf32>
    %54 = arith.maximumf %51, %53 : vector<32x64xf32>
    %cst_30 = arith.constant -1.000000e+30 : f32
    %55 = vector.broadcast %cst_30 : f32 to vector<32x64xf32>
    %56 = arith.select %11, %54, %55 : vector<32x64xi1>, vector<32x64xf32>
    %cst_31 = arith.constant dense<0xFF800000> : vector<32xf32>
    %57 = vector.multi_reduction <maximumf>, %56, %cst_31 [1] : vector<32x64xf32> to vector<32xf32>
    %58 = vector.shape_cast %57 : vector<32xf32> to vector<32x1xf32>
    %59 = vector.broadcast %58 : vector<32x1xf32> to vector<32x64xf32>
    %60 = arith.subf %56, %59 : vector<32x64xf32>
    %61 = math.exp %60 : vector<32x64xf32>
    %cst_32 = arith.constant dense<0.000000e+00> : vector<32xf32>
    %62 = vector.multi_reduction <add>, %61, %cst_32 [1] : vector<32x64xf32> to vector<32xf32>
    %63 = vector.shape_cast %62 : vector<32xf32> to vector<32x1xf32>
    %64 = tpu.reciprocal %63 : vector<32x1xf32> -> vector<32x1xf32>
    %65 = vector.extract_strided_slice %14 {offsets = [0, 16], sizes = [64, 16], strides = [1, 1]} : vector<64x32xf32> to vector<64x16xf32>
    %cst_33 = arith.constant dense<0.000000e+00> : vector<32x16xf32>
    %66 = tpu.matmul %61, %65, %cst_33 {dimension_numbers = #tpu.dot_dimension_numbers<[1], [0], [0], [1], [0, 0, 1, 1], [], []>} : vector<32x64xf32>, vector<64x16xf32>, vector<32x16xf32> -> vector<32x16xf32>
    %c0_34 = arith.constant 0 : index
    %c16 = arith.constant 16 : index
    %67 = vector.load %arg7[%c0_34, %c16] : memref<32x32xf32, #tpu.memory_space<vmem>>, vector<32x16xf32>
    %68 = vector.broadcast %64 : vector<32x1xf32> to vector<32x16xf32>
    %69 = arith.mulf %66, %68 : vector<32x16xf32>
    %70 = arith.addf %67, %69 : vector<32x16xf32>
    %c0_35 = arith.constant 0 : index
    %c16_36 = arith.constant 16 : index
    %71 = vector.load %arg7[%c0_35, %c16_36] : memref<32x32xf32, #tpu.memory_space<vmem>>, vector<32x16xf32>
    tpu.vector_store %arg7[%c0_35, %c16_36], %70 {strides = array<i32>} : memref<32x32xf32, #tpu.memory_space<vmem>>, vector<32x16xf32>,
    %c1 = arith.constant 1 : index
    %c0_37 = arith.constant 0 : index
    %c0_38 = arith.constant 0 : index
    %72 = vector.load %arg2[%c1, %c0_37, %c0_38] : memref<2x32x64xi8, #tpu.memory_space<vmem>>, vector<1x32x64xi8>
    %73 = vector.shape_cast %72 : vector<1x32x64xi8> to vector<32x64xi8>
    %74 = arith.extsi %73 : vector<32x64xi8> to vector<32x64xi32>
    %c0_i32_39 = arith.constant 0 : i32
    %75 = vector.broadcast %c0_i32_39 : i32 to vector<32x64xi32>
    %76 = arith.cmpi sgt, %74, %75 : vector<32x64xi32>
    %c1_40 = arith.constant 1 : index
    %c0_41 = arith.constant 0 : index
    %c0_42 = arith.constant 0 : index
    %77 = vector.load %arg3[%c1_40, %c0_41, %c0_42] : memref<2x64x32xf32, #tpu.memory_space<vmem>>, vector<1x64x32xf32>
    %78 = vector.shape_cast %77 : vector<1x64x32xf32> to vector<64x32xf32>
    %cst_43 = arith.constant dense<0.000000e+00> : vector<64x32xf32>
    %79 = tpu.matmul %2, %78, %cst_43 {dimension_numbers = #tpu.dot_dimension_numbers<[1], [0], [0], [1], [0, 0, 1, 1], [], []>} : vector<64x64xf32>, vector<64x32xf32>, vector<64x32xf32> -> vector<64x32xf32>
    %cst_44 = arith.constant dense<0.000000e+00> : vector<32x32xf32>
    %80 = tpu.matmul %4, %78, %cst_44 {dimension_numbers = #tpu.dot_dimension_numbers<[1], [0], [0], [1], [0, 0, 1, 1], [], []>} : vector<32x64xf32>, vector<64x32xf32>, vector<32x32xf32> -> vector<32x32xf32>
    %c1_45 = arith.constant 1 : index
    %c0_46 = arith.constant 0 : index
    %c0_47 = arith.constant 0 : index
    %81 = vector.load %arg4[%c1_45, %c0_46, %c0_47] : memref<2x2x32xf32, #tpu.memory_space<vmem>>, vector<1x2x32xf32>
    %82 = vector.shape_cast %81 : vector<1x2x32xf32> to vector<2x32xf32>
    %cst_48 = arith.constant dense<0.000000e+00> : vector<2x64xf32>
    %83 = tpu.matmul %82, %79, %cst_48 {dimension_numbers = #tpu.dot_dimension_numbers<[1], [1], [0], [0], [0, 0, 1, 0], [], []>} : vector<2x32xf32>, vector<64x32xf32>, vector<2x64xf32> -> vector<2x64xf32>
    %c1_49 = arith.constant 1 : index
    %c0_50 = arith.constant 0 : index
    %c0_51 = arith.constant 0 : index
    %84 = vector.load %arg5[%c1_49, %c0_50, %c0_51] : memref<2x2x32xf32, #tpu.memory_space<vmem>>, vector<1x2x32xf32>
    %85 = vector.shape_cast %84 : vector<1x2x32xf32> to vector<2x32xf32>
    %cst_52 = arith.constant dense<0.000000e+00> : vector<32x2xf32>
    %86 = tpu.matmul %80, %85, %cst_52 {dimension_numbers = #tpu.dot_dimension_numbers<[1], [1], [0], [0], [0, 0, 1, 0], [], []>} : vector<32x32xf32>, vector<2x32xf32>, vector<32x2xf32> -> vector<32x2xf32>
    %87 = vector.extract_strided_slice %86 {offsets = [0, 0], sizes = [32, 1], strides = [1, 1]} : vector<32x2xf32> to vector<32x1xf32>
    %88 = vector.extract_strided_slice %83 {offsets = [0, 0], sizes = [1, 64], strides = [1, 1]} : vector<2x64xf32> to vector<1x64xf32>
    %89 = vector.broadcast %87 : vector<32x1xf32> to vector<32x64xf32>
    %90 = vector.broadcast %88 : vector<1x64xf32> to vector<32x64xf32>
    %91 = arith.addf %89, %90 : vector<32x64xf32>
    %cst_53 = arith.constant 2.000000e-01 : f32
    %92 = vector.broadcast %cst_53 : f32 to vector<32x64xf32>
    %93 = arith.mulf %92, %91 : vector<32x64xf32>
    %94 = arith.maximumf %91, %93 : vector<32x64xf32>
    %cst_54 = arith.constant -1.000000e+30 : f32
    %95 = vector.broadcast %cst_54 : f32 to vector<32x64xf32>
    %96 = arith.select %76, %94, %95 : vector<32x64xi1>, vector<32x64xf32>
    %cst_55 = arith.constant dense<0xFF800000> : vector<32xf32>
    %97 = vector.multi_reduction <maximumf>, %96, %cst_55 [1] : vector<32x64xf32> to vector<32xf32>
    %98 = vector.shape_cast %97 : vector<32xf32> to vector<32x1xf32>
    %99 = vector.broadcast %98 : vector<32x1xf32> to vector<32x64xf32>
    %100 = arith.subf %96, %99 : vector<32x64xf32>
    %101 = math.exp %100 : vector<32x64xf32>
    %cst_56 = arith.constant dense<0.000000e+00> : vector<32xf32>
    %102 = vector.multi_reduction <add>, %101, %cst_56 [1] : vector<32x64xf32> to vector<32xf32>
    %103 = vector.shape_cast %102 : vector<32xf32> to vector<32x1xf32>
    %104 = tpu.reciprocal %103 : vector<32x1xf32> -> vector<32x1xf32>
    %105 = vector.extract_strided_slice %79 {offsets = [0, 0], sizes = [64, 16], strides = [1, 1]} : vector<64x32xf32> to vector<64x16xf32>
    %cst_57 = arith.constant dense<0.000000e+00> : vector<32x16xf32>
    %106 = tpu.matmul %101, %105, %cst_57 {dimension_numbers = #tpu.dot_dimension_numbers<[1], [0], [0], [1], [0, 0, 1, 1], [], []>} : vector<32x64xf32>, vector<64x16xf32>, vector<32x16xf32> -> vector<32x16xf32>
    %c0_58 = arith.constant 0 : index
    %c0_59 = arith.constant 0 : index
    %107 = vector.load %arg7[%c0_58, %c0_59] : memref<32x32xf32, #tpu.memory_space<vmem>>, vector<32x16xf32>
    %108 = vector.broadcast %104 : vector<32x1xf32> to vector<32x16xf32>
    %109 = arith.mulf %106, %108 : vector<32x16xf32>
    %110 = arith.addf %107, %109 : vector<32x16xf32>
    %c0_60 = arith.constant 0 : index
    %c0_61 = arith.constant 0 : index
    %111 = vector.load %arg7[%c0_60, %c0_61] : memref<32x32xf32, #tpu.memory_space<vmem>>, vector<32x16xf32>
    tpu.vector_store %arg7[%c0_60, %c0_61], %110 {strides = array<i32>} : memref<32x32xf32, #tpu.memory_space<vmem>>, vector<32x16xf32>,
    %112 = vector.extract_strided_slice %86 {offsets = [0, 1], sizes = [32, 1], strides = [1, 1]} : vector<32x2xf32> to vector<32x1xf32>
    %113 = vector.extract_strided_slice %83 {offsets = [1, 0], sizes = [1, 64], strides = [1, 1]} : vector<2x64xf32> to vector<1x64xf32>
    %114 = vector.broadcast %112 : vector<32x1xf32> to vector<32x64xf32>
    %115 = vector.broadcast %113 : vector<1x64xf32> to vector<32x64xf32>
    %116 = arith.addf %114, %115 : vector<32x64xf32>
    %cst_62 = arith.constant 2.000000e-01 : f32
    %117 = vector.broadcast %cst_62 : f32 to vector<32x64xf32>
    %118 = arith.mulf %117, %116 : vector<32x64xf32>
    %119 = arith.maximumf %116, %118 : vector<32x64xf32>
    %cst_63 = arith.constant -1.000000e+30 : f32
    %120 = vector.broadcast %cst_63 : f32 to vector<32x64xf32>
    %121 = arith.select %76, %119, %120 : vector<32x64xi1>, vector<32x64xf32>
    %cst_64 = arith.constant dense<0xFF800000> : vector<32xf32>
    %122 = vector.multi_reduction <maximumf>, %121, %cst_64 [1] : vector<32x64xf32> to vector<32xf32>
    %123 = vector.shape_cast %122 : vector<32xf32> to vector<32x1xf32>
    %124 = vector.broadcast %123 : vector<32x1xf32> to vector<32x64xf32>
    %125 = arith.subf %121, %124 : vector<32x64xf32>
    %126 = math.exp %125 : vector<32x64xf32>
    %cst_65 = arith.constant dense<0.000000e+00> : vector<32xf32>
    %127 = vector.multi_reduction <add>, %126, %cst_65 [1] : vector<32x64xf32> to vector<32xf32>
    %128 = vector.shape_cast %127 : vector<32xf32> to vector<32x1xf32>
    %129 = tpu.reciprocal %128 : vector<32x1xf32> -> vector<32x1xf32>
    %130 = vector.extract_strided_slice %79 {offsets = [0, 16], sizes = [64, 16], strides = [1, 1]} : vector<64x32xf32> to vector<64x16xf32>
    %cst_66 = arith.constant dense<0.000000e+00> : vector<32x16xf32>
    %131 = tpu.matmul %126, %130, %cst_66 {dimension_numbers = #tpu.dot_dimension_numbers<[1], [0], [0], [1], [0, 0, 1, 1], [], []>} : vector<32x64xf32>, vector<64x16xf32>, vector<32x16xf32> -> vector<32x16xf32>
    %c0_67 = arith.constant 0 : index
    %c16_68 = arith.constant 16 : index
    %132 = vector.load %arg7[%c0_67, %c16_68] : memref<32x32xf32, #tpu.memory_space<vmem>>, vector<32x16xf32>
    %133 = vector.broadcast %129 : vector<32x1xf32> to vector<32x16xf32>
    %134 = arith.mulf %131, %133 : vector<32x16xf32>
    %135 = arith.addf %132, %134 : vector<32x16xf32>
    %c0_69 = arith.constant 0 : index
    %c16_70 = arith.constant 16 : index
    %136 = vector.load %arg7[%c0_69, %c16_70] : memref<32x32xf32, #tpu.memory_space<vmem>>, vector<32x16xf32>
    tpu.vector_store %arg7[%c0_69, %c16_70], %135 {strides = array<i32>} : memref<32x32xf32, #tpu.memory_space<vmem>>, vector<32x16xf32>,
    %c0_71 = arith.constant 0 : index
    %c0_72 = arith.constant 0 : index
    %137 = vector.load %arg7[%c0_71, %c0_72] : memref<32x32xf32, #tpu.memory_space<vmem>>, vector<32x32xf32>
    %c0_73 = arith.constant 0 : index
    %c0_74 = arith.constant 0 : index
    %138 = vector.load %arg6[%c0_73, %c0_74] : memref<1x32xf32, #tpu.memory_space<vmem>>, vector<1x32xf32>
    %139 = vector.broadcast %138 : vector<1x32xf32> to vector<32x32xf32>
    %140 = arith.addf %137, %139 : vector<32x32xf32>
    %c0_75 = arith.constant 0 : index
    %c0_76 = arith.constant 0 : index
    %141 = vector.load %arg7[%c0_75, %c0_76] : memref<32x32xf32, #tpu.memory_space<vmem>>, vector<32x32xf32>
    tpu.vector_store %arg7[%c0_75, %c0_76], %140 {strides = array<i32>} : memref<32x32xf32, #tpu.memory_space<vmem>>, vector<32x32xf32>,
    return
  }
  func.func @transform_0(%arg0: i32) -> (i32, i32) {
    %c0_i32 = arith.constant 0 : i32
    %c0_i32_0 = arith.constant 0 : i32
    %c0_i32_1 = arith.constant 0 : i32
    return %c0_i32, %c0_i32_0 : i32, i32
  }
  func.func @transform_1(%arg0: i32) -> (i32, i32, i32) {
    %c0_i32 = arith.constant 0 : i32
    %c0_i32_0 = arith.constant 0 : i32
    %c0_i32_1 = arith.constant 0 : i32
    return %c0_i32, %arg0, %c0_i32_0 : i32, i32, i32
  }
  func.func @transform_2(%arg0: i32) -> (i32, i32, i32) {
    %c0_i32 = arith.constant 0 : i32
    %c0_i32_0 = arith.constant 0 : i32
    %c0_i32_1 = arith.constant 0 : i32
    %c0_i32_2 = arith.constant 0 : i32
    return %c0_i32, %c0_i32_0, %c0_i32_1 : i32, i32, i32
  }
  func.func @transform_3(%arg0: i32) -> (i32, i32, i32) {
    %c0_i32 = arith.constant 0 : i32
    %c0_i32_0 = arith.constant 0 : i32
    %c0_i32_1 = arith.constant 0 : i32
    %c0_i32_2 = arith.constant 0 : i32
    return %c0_i32, %c0_i32_0, %c0_i32_1 : i32, i32, i32
  }
  func.func @transform_4(%arg0: i32) -> (i32, i32, i32) {
    %c0_i32 = arith.constant 0 : i32
    %c0_i32_0 = arith.constant 0 : i32
    %c0_i32_1 = arith.constant 0 : i32
    %c0_i32_2 = arith.constant 0 : i32
    return %c0_i32, %c0_i32_0, %c0_i32_1 : i32, i32, i32
  }
  func.func @transform_5(%arg0: i32) -> (i32, i32) {
    %c0_i32 = arith.constant 0 : i32
    %c0_i32_0 = arith.constant 0 : i32
    %c0_i32_1 = arith.constant 0 : i32
    return %c0_i32, %c0_i32_0 : i32, i32
  }
  func.func @transform_6(%arg0: i32) -> (i32, i32) {
    %c0_i32 = arith.constant 0 : i32
    %c0_i32_0 = arith.constant 0 : i32
    return %arg0, %c0_i32 : i32, i32
  }
}

module attributes {stable_mosaic.version = 11 : i64} {
  func.func @_pair_kernel(%arg0: i32, %arg1: memref<64x32xf32, #tpu.memory_space<vmem>>, %arg2: memref<1x32xf32, #tpu.memory_space<vmem>>, %arg3: memref<1x1xf32, #tpu.memory_space<smem>>, %arg4: memref<32x64xf32, #tpu.memory_space<vmem>>) attributes {dimension_semantics = [#tpu.dimension_semantics<parallel>], iteration_bounds = array<i64: 2>, scalar_prefetch = 0 : i64, scratch_operands = 0 : i64, tpu.core_type = #tpu.core_type<tc>, window_params = [{pipeline_mode = #tpu.pipeline_mode<synchronous>, transform_indices = @transform_0, window_bounds = array<i64: 64, 32>}, {pipeline_mode = #tpu.pipeline_mode<synchronous>, transform_indices = @transform_1, window_bounds = array<i64: 1, 32>}, {transform_indices = @transform_2, window_bounds = array<i64: 1, 1>}, {transform_indices = @transform_3, window_bounds = array<i64: 32, 64>}]} {
    %c32_i32 = arith.constant 32 : i32
    %0 = arith.muli %arg0, %c32_i32 : i32
    %1 = tpu.assume_multiple %0, 32 : i32
    %2 = arith.index_cast %1 : i32 to index
    %c0 = arith.constant 0 : index
    %3 = vector.load %arg1[%2, %c0] : memref<64x32xf32, #tpu.memory_space<vmem>>, vector<32x32xf32>
    %c0_0 = arith.constant 0 : index
    %c0_1 = arith.constant 0 : index
    %4 = vector.load %arg2[%c0_0, %c0_1] : memref<1x32xf32, #tpu.memory_space<vmem>>, vector<1x32xf32>
    %cst = arith.constant dense<0.000000e+00> : vector<32x1xf32>
    %5 = tpu.matmul %3, %4, %cst {dimension_numbers = #tpu.dot_dimension_numbers<[1], [1], [0], [0], [0, 0, 1, 0], [], []>} : vector<32x32xf32>, vector<1x32xf32>, vector<32x1xf32> -> vector<32x1xf32>
    %c0_2 = arith.constant 0 : index
    %c0_3 = arith.constant 0 : index
    %6 = vector.load %arg2[%c0_2, %c0_3] : memref<1x32xf32, #tpu.memory_space<vmem>>, vector<1x32xf32>
    %c0_4 = arith.constant 0 : index
    %c0_5 = arith.constant 0 : index
    %7 = vector.load %arg1[%c0_4, %c0_5] : memref<64x32xf32, #tpu.memory_space<vmem>>, vector<64x32xf32>
    %cst_6 = arith.constant dense<0.000000e+00> : vector<1x64xf32>
    %8 = tpu.matmul %6, %7, %cst_6 {dimension_numbers = #tpu.dot_dimension_numbers<[1], [1], [0], [0], [0, 0, 1, 0], [], []>} : vector<1x32xf32>, vector<64x32xf32>, vector<1x64xf32> -> vector<1x64xf32>
    %9 = vector.broadcast %5 : vector<32x1xf32> to vector<32x64xf32>
    %10 = vector.broadcast %8 : vector<1x64xf32> to vector<32x64xf32>
    %11 = arith.addf %9, %10 : vector<32x64xf32>
    %c0_7 = arith.constant 0 : index
    %c0_8 = arith.constant 0 : index
    %12 = memref.load %arg3[%c0_7, %c0_8] : memref<1x1xf32, #tpu.memory_space<smem>>
    %13 = vector.broadcast %12 : f32 to vector<32x64xf32>
    %14 = arith.addf %11, %13 : vector<32x64xf32>
    %c0_9 = arith.constant 0 : index
    %c0_10 = arith.constant 0 : index
    %15 = vector.load %arg4[%c0_9, %c0_10] : memref<32x64xf32, #tpu.memory_space<vmem>>, vector<32x64xf32>
    tpu.vector_store %arg4[%c0_9, %c0_10], %14 {strides = array<i32>} : memref<32x64xf32, #tpu.memory_space<vmem>>, vector<32x64xf32>,
    return
  }
  func.func @transform_0(%arg0: i32) -> (i32, i32) {
    %c0_i32 = arith.constant 0 : i32
    %c0_i32_0 = arith.constant 0 : i32
    %c0_i32_1 = arith.constant 0 : i32
    return %c0_i32, %c0_i32_0 : i32, i32
  }
  func.func @transform_1(%arg0: i32) -> (i32, i32) {
    %c0_i32 = arith.constant 0 : i32
    %c0_i32_0 = arith.constant 0 : i32
    %c0_i32_1 = arith.constant 0 : i32
    return %c0_i32, %c0_i32_0 : i32, i32
  }
  func.func @transform_2(%arg0: i32) -> (i32, i32) {
    %c0_i32 = arith.constant 0 : i32
    %c0_i32_0 = arith.constant 0 : i32
    %c0_i32_1 = arith.constant 0 : i32
    return %c0_i32, %c0_i32_0 : i32, i32
  }
  func.func @transform_3(%arg0: i32) -> (i32, i32) {
    %c0_i32 = arith.constant 0 : i32
    %c0_i32_0 = arith.constant 0 : i32
    return %arg0, %c0_i32 : i32, i32
  }
}

</mosaic_0001>

<llo_original>
// kernel: mul.29
$region0: #{mul.29}
  %s0 = inlined_call_operand.vmem [shape: f32[2,64], index: 0, kind: input, shape index: {}]
  %s1 = inlined_call_operand.vmem [shape: f32[2,2,32], index: 1, kind: output, shape index: {}]
  $region1: #{mul.29} parent=0
    #allocation0 [shape = 'u8[8192]{0}', space=vmem, size = 0x2000, scoped, tag = 'scoped mem for output reshape']
    #allocation1 [shape = 'u8[4096]{0}', space=vmem, size = 0x1000, scoped, tag = 'scoped mem for input reshape']
    %s3 = sshll.u32 1, 2
    %s4 = ssub.s32 %s3, 1
    %v5 = vld [vmem:[%s0] sm:%s4]
    %6 = vst [vmem:[#allocation1] sm:%s4] %v5
    %v7 = vld [vmem:[#allocation1] sm:$0x3]
    %vm8 = vcmask 261120
    %9 = vst.msk [vmem:[#allocation0] ss:$8 sm:$0x3] %vm8, %v7
    %v10 = vld [vmem:[#allocation1] sm:$0x3]
    %11 = vrot.lane.b32.xlu0 %v10, 96
    %v12 = vpop.permute.xlu0 %11
    %vm13 = vcmask 261120
    %s14 = scalar_lea.vmem [#allocation0], 1
    %15 = vst.msk [vmem:[%s14] ss:$8 sm:$0x3] %vm13, %v12
    %s17 = sshll.u32 1, 2
    %s18 = ssub.s32 %s17, 1
    %v20 = vld [vmem:[#allocation0] sm:%s18]
    %s21 = sshll.u32 1, 2
    %s22 = ssub.s32 %s21, 1
    %23 = vst [vmem:[%s1] sm:%s22] %v20
    %s24 = scalar_lea.vmem [#allocation0], 8
    %v25 = vld [vmem:[%s24] sm:%s18]
    %s26 = sshll.u32 1, 2
    %s27 = ssub.s32 %s26, 1
    %s28 = scalar_lea.vmem %s1, 2
    %29 = vst [vmem:[%s28] sm:%s27] %v25

// kernel: mul.43
$region0: #{mul.43}
  %s0 = inlined_call_operand.vmem [shape: f32[2,32], index: 0, kind: input, shape index: {}]
  %s1 = inlined_call_operand.vmem [shape: f32[2,2,16], index: 1, kind: output, shape index: {}]
  $region1: #{mul.43} parent=0
    #allocation0 [shape = 'u8[8192]{0}', space=vmem, size = 0x2000, scoped, tag = 'scoped mem for output reshape']
    #allocation1 [shape = 'u8[4096]{0}', space=vmem, size = 0x1000, scoped, tag = 'scoped mem for input reshape']
    %s3 = sshll.u32 1, 2
    %s4 = ssub.s32 %s3, 1
    %v5 = vld [vmem:[%s0] sm:%s4]
    %6 = vst [vmem:[#allocation1] sm:%s4] %v5
    %v7 = vld [vmem:[#allocation1] sm:$0x3]
    %vm8 = vcmask 130048
    %9 = vst.msk [vmem:[#allocation0] ss:$8 sm:$0x3] %vm8, %v7
    %v10 = vld [vmem:[#allocation1] sm:$0x3]
    %11 = vrot.lane.b32.xlu0 %v10, 112
    %v12 = vpop.permute.xlu0 %11
    %vm13 = vcmask 130048
    %s14 = scalar_lea.vmem [#allocation0], 1
    %15 = vst.msk [vmem:[%s14] ss:$8 sm:$0x3] %vm13, %v12
    %s17 = sshll.u32 1, 2
    %s18 = ssub.s32 %s17, 1
    %v20 = vld [vmem:[#allocation0] sm:%s18]
    %s21 = sshll.u32 1, 2
    %s22 = ssub.s32 %s21, 1
    %23 = vst [vmem:[%s1] sm:%s22] %v20
    %s24 = scalar_lea.vmem [#allocation0], 8
    %v25 = vld [vmem:[%s24] sm:%s18]
    %s26 = sshll.u32 1, 2
    %s27 = ssub.s32 %s26, 1
    %s28 = scalar_lea.vmem %s1, 2
    %29 = vst [vmem:[%s28] sm:%s27] %v25

// kernel: hetero_gat_forward.5
$region0: #{hetero_gat_forward.5}
  #allocation0 [shape = 'u32[]', space=smem, size = 0x4, offset = 0x4, fixed_abs, tag = 'smem constant byte address 0x4 - core index']
  #allocation1 [shape = 'u32[144,128]{1,0:T(1,128)}', space=vmem, size = 0x12000, scoped, tag = 'internal scratch']
  #allocation2 [shape = 'f32[1,1]{1,0:T(1,128)S(6)}', space=smem, size = 0x200, scoped, tag = 'scoped memory for hetero_gat_forward.5']
  %s0 = inlined_call_operand.vmem [shape: f32[64,32], index: 0, kind: input, shape index: {}]
  %s1 = inlined_call_operand.vmem [shape: f32[1,32], index: 1, kind: input, shape index: {}]
  %s2 = inlined_call_operand.<no memory space> [shape: f32[1,1], index: 2, kind: input, shape index: {}]
  %s3 = inlined_call_operand.vmem [shape: f32[64,64], index: 3, kind: output, shape index: {}]
  %s4 = sld [smem:[#allocation0]]
  $region45: #{hetero_gat_forward.5} parent=0
    _
  %s6 = ssub.s32 1, %s4
  %s7 = scalar_select 0, %s6, %s4
  %8 = sst [smem:[#allocation2]] %s2
  loop: start=0, step=1, limit=4
  $region2: #{hetero_gat_forward.5} parent=0 // loop_pre_header
    _
  $region3: #{hetero_gat_forward.5} parent=0 // loop_header
    %s10 = sphi 0, %s14
    %p11 = scmp.ge.s32.totalorder %s10, 4
    %s18 = sphi 0, %s18
    %s20 = sphi 0, %s18
    %s21 = sphi 0, %s20
    %s35 = sphi 0, %s21
    %s39 = sphi 0, %s39
    %s41 = sphi 0, %s39
    %s42 = sphi 0, %s41
    %s56 = sphi 0, %s42
    %s60 = sphi 0, %s60
    %s62 = sphi 0, %s60
    %s63 = sphi 0, %s62
    %s77 = sphi 0, %s63
    %s83 = sphi 0, %s85
    %s86 = sphi 0, %s83
    %s87 = sphi 0, %s86
    %s103 = sphi 0, %s87
  $region4: #{hetero_gat_forward.5} parent=0 // loop_header_branch
    %13 = sbr.rel (%p11) target = $region8
  $region5: #{hetero_gat_forward.5} parent=0 // loop_body
    %s15 = ssub.s32 %s10, 1
    %s16 = ssub.s32 %s10, 2
    %s17 = sadd.s32 %s10, 1
    %s19 = sadd.s32 %s18, 1
    %p22 = scmp.eq.s32.totalorder %s10, 1
    %p23 = scmp.ne.s32.totalorder %s18, %s20
    %p24 = scmp.eq.s32.totalorder %s10, 0
    %p25 = por %p23, %p24
    %p26 = scmp.ne.s32.totalorder %s18, %s20
    %p27 = scmp.eq.s32.totalorder %s15, 1
    %p28 = por %p26, %p27
    %p29 = scmp.ne.s32.totalorder %s20, %s21
    %p30 = scmp.eq.s32.totalorder %s15, 0
    %p31 = por %p29, %p30
    %p32 = scmp.ne.s32.totalorder %s20, %s21
    %p33 = scmp.eq.s32.totalorder %s16, 1
    %p34 = por %p32, %p33
    %p36 = scmp.ne.s32.totalorder %s21, %s35
    %p37 = scmp.eq.s32.totalorder %s16, 0
    %p38 = por %p36, %p37
    %s40 = sadd.s32 %s39, 1
    %p43 = scmp.eq.s32.totalorder %s10, 1
    %p44 = scmp.ne.s32.totalorder %s39, %s41
    %p45 = scmp.eq.s32.totalorder %s10, 0
    %p46 = por %p44, %p45
    %p47 = scmp.ne.s32.totalorder %s39, %s41
    %p48 = scmp.eq.s32.totalorder %s15, 1
    %p49 = por %p47, %p48
    %p50 = scmp.ne.s32.totalorder %s41, %s42
    %p51 = scmp.eq.s32.totalorder %s15, 0
    %p52 = por %p50, %p51
    %p53 = scmp.ne.s32.totalorder %s41, %s42
    %p54 = scmp.eq.s32.totalorder %s16, 1
    %p55 = por %p53, %p54
    %p57 = scmp.ne.s32.totalorder %s42, %s56
    %p58 = scmp.eq.s32.totalorder %s16, 0
    %p59 = por %p57, %p58
    %s61 = sadd.s32 %s60, 1
    %p64 = scmp.eq.s32.totalorder %s10, 1
    %p65 = scmp.ne.s32.totalorder %s60, %s62
    %p66 = scmp.eq.s32.totalorder %s10, 0
    %p67 = por %p65, %p66
    %p68 = scmp.ne.s32.totalorder %s60, %s62
    %p69 = scmp.eq.s32.totalorder %s15, 1
    %p70 = por %p68, %p69
    %p71 = scmp.ne.s32.totalorder %s62, %s63
    %p72 = scmp.eq.s32.totalorder %s15, 0
    %p73 = por %p71, %p72
    %p74 = scmp.ne.s32.totalorder %s62, %s63
    %p75 = scmp.eq.s32.totalorder %s16, 1
    %p76 = por %p74, %p75
    %p78 = scmp.ne.s32.totalorder %s63, %s77
    %p79 = scmp.eq.s32.totalorder %s16, 0
    %p80 = por %p78, %p79
    %s81 = ssub.s32 %s10, %s17
    %p82 = scmp.eq.s32.totalorder %s81, 0
    %s84 = sadd.s32 %s83, 1
    %s85 = scalar_select %p82, %s83, %s84
    %p88 = pneg %p82
    %p89 = scmp.eq.s32.totalorder %s10, 1
    %p90 = por %p88, %p89
    %p91 = scmp.ne.s32.totalorder %s83, %s86
    %p92 = scmp.eq.s32.totalorder %s10, 0
    %p93 = por %p91, %p92
    %p94 = scmp.ne.s32.totalorder %s83, %s86
    %p95 = scmp.eq.s32.totalorder %s15, 1
    %p96 = por %p94, %p95
    %p97 = scmp.ne.s32.totalorder %s86, %s87
    %p98 = scmp.eq.s32.totalorder %s15, 0
    %p99 = por %p97, %p98
    %p100 = scmp.ne.s32.totalorder %s86, %s87
    %p101 = scmp.eq.s32.totalorder %s16, 1
    %p102 = por %p100, %p101
    %p104 = scmp.ne.s32.totalorder %s87, %s103
    %p105 = scmp.eq.s32.totalorder %s16, 0
    %p106 = por %p104, %p105
    %p107 = scmp.le.s32.totalorder 1, %s10
    %p108 = scmp.lt.s32.totalorder %s10, 3
    %p109 = pnand %p107, %p108
    %p110 = pneg %p109
    // Predicated region
    $region9: #{hetero_gat_forward.5} parent=5 // pred_check
      _
    $region10: #{hetero_gat_forward.5} parent=5 // pred_check_branch
      %112 = sbr.rel (%p109) target = $region12
    $region11: #{hetero_gat_forward.5} parent=5 // pred_region
      %s113 = ssub.s32 %s10, 1
      // Predicated region
      $region13: #{hetero_gat_forward.5} parent=11 // pred_check
        %p114 = pneg %p31
      $region14: #{hetero_gat_forward.5} parent=11 // pred_check_branch
        %116 = sbr.rel (%p114) target = $region16
      $region15: #{hetero_gat_forward.5} parent=11 // pred_region
        _
      $region16: #{hetero_gat_forward.5} parent=11 // pred_fallthru
        _
      // Predicated region
      $region17: #{hetero_gat_forward.5} parent=11 // pred_check
        %p117 = pneg %p52
      $region18: #{hetero_gat_forward.5} parent=11 // pred_check_branch
        %119 = sbr.rel (%p117) target = $region20
      $region19: #{hetero_gat_forward.5} parent=11 // pred_region
        _
      $region20: #{hetero_gat_forward.5} parent=11 // pred_fallthru
        _
      // Predicated region
      $region21: #{hetero_gat_forward.5} parent=11 // pred_check
        %p120 = pneg %p73
      $region22: #{hetero_gat_forward.5} parent=11 // pred_check_branch
        %122 = sbr.rel (%p120) target = $region24
      $region23: #{hetero_gat_forward.5} parent=11 // pred_region
        _
      $region24: #{hetero_gat_forward.5} parent=11 // pred_fallthru
        _
    $region12: #{hetero_gat_forward.5} parent=5 // pred_fallthru
      _
    %p123 = scmp.lt.s32.totalorder %s10, 2
    // Predicated region
    $region25: #{hetero_gat_forward.5} parent=5 // pred_check
      %p124 = pneg %p123
    $region26: #{hetero_gat_forward.5} parent=5 // pred_check_branch
      %126 = sbr.rel (%p124) target = $region28
    $region27: #{hetero_gat_forward.5} parent=5 // pred_region
      _
    $region28: #{hetero_gat_forward.5} parent=5 // pred_fallthru
      _
    %p127 = scmp.le.s32.totalorder 1, %s10
    %p128 = scmp.lt.s32.totalorder %s10, 3
    %p129 = pnand %p127, %p128
    %p130 = pneg %p129
    // Predicated region
    $region29: #{hetero_gat_forward.5} parent=5 // pred_check
      _
    $region30: #{hetero_gat_forward.5} parent=5 // pred_check_branch
      %132 = sbr.rel (%p129) target = $region32
    $region31: #{hetero_gat_forward.5} parent=5 // pred_region
      %s133 = ssub.s32 %s10, 1
      %p134 = pneg %p31
      %p135 = pneg %p28
      %p136 = pneg %p52
      %p137 = pneg %p49
      %p138 = pneg %p73
      %p139 = pneg %p70
      %p140 = pneg %p99
      %p141 = pneg %p96
      %s142 = smul.u32 4, %s15
      %p143 = scmp.lt.s32.totalorder %s142, 7
      %s144 = scalar_select %p143, %s142, 7
      %s145 = smul.addr %s144, 8
      %s146 = scalar_lea.vmem %s3, %s145
      %s147 = smul.u32 4, %s15
      %p148 = scmp.lt.s32.totalorder %s147, 7
      %s149 = scalar_select %p148, %s147, 7
      %s150 = smul.addr %s149, 8
      %s151 = scalar_lea.vmem %s3, %s150
      %s152 = smul.u32 4, %s15
      %s153 = smul.u32 %s15, 32
      %s154 = scalar_lea.vmem %s0, %s153
      %v155 = vld [vmem:[%s154] sm:$0xff]
      %v156 = vld [vmem:[%s154 + $0x8] sm:$0xff]
      %v157 = vld [vmem:[%s154 + $0x10] sm:$0xff]
      %v158 = vld [vmem:[%s154 + $0x18] sm:$0xff]
      %v159 = vld [vmem:[%s1] sm:$0x1]
      %v161 = vlaneseq
      %v162 = vshrl.u32 %v161, 7
      %v163 = vsub.s32 0, %v162
      %v164 = vrot.slane %v159, %v163
      %v166 = vmul.f32 %v155, %v164
      %v167 = vmul.f32 %v156, %v164
      %v168 = vmul.f32 %v157, %v164
      %v169 = vmul.f32 %v158, %v164
      %vm170 = vcmask 261120
      %v171 = vsel %vm170, %v166, 0.0
      %172 = vadd.xlane.f32.xlu0 %v171
      %v173 = vpop.xlane.xlu0 %172
      %v174 = vsel %vm170, %v167, 0.0
      %175 = vadd.xlane.f32.xlu0 %v174
      %v176 = vpop.xlane.xlu0 %175
      %v177 = vsel %vm170, %v168, 0.0
      %178 = vadd.xlane.f32.xlu0 %v177
      %v179 = vpop.xlane.xlu0 %178
      %v180 = vsel %vm170, %v169, 0.0
      %181 = vadd.xlane.f32.xlu0 %v180
      %v182 = vpop.xlane.xlu0 %181
      %v183 = vld [vmem:[%s0] sm:$0xff]
      %v184 = vld [vmem:[%s0 + $0x8] sm:$0xff]
      %v185 = vld [vmem:[%s0 + $0x10] sm:$0xff]
      %v186 = vld [vmem:[%s0 + $0x18] sm:$0xff]
      %v187 = vld [vmem:[%s0 + $0x20] sm:$0xff]
      %v188 = vld [vmem:[%s0 + $0x28] sm:$0xff]
      %v189 = vld [vmem:[%s0 + $0x30] sm:$0xff]
      %v190 = vld [vmem:[%s0 + $0x38] sm:$0xff]
      %v191 = vsel %vm170, %v159, 0
      %v194 = vsel %vm170, %v183, 0
      %v197 = vsel %vm170, %v184, 0
      %v200 = vsel %vm170, %v185, 0
      %v203 = vsel %vm170, %v186, 0
      %v206 = vsel %vm170, %v187, 0
      %v209 = vsel %vm170, %v188, 0
      %v212 = vsel %vm170, %v189, 0
      %v215 = vsel %vm170, %v190, 0
      %217 = vmatprep.subr.mxu0 0.0
      %218 = vmatpush1.xpose.msra.mxu0 0.0
      %219 = vmatprep.subr.mxu0 0.0
      %220 = vmatpush1.xpose.msra.mxu0 0.0
      %221 = vmatprep.subr.mxu0 0.0
      %222 = vmatpush1.xpose.msra.mxu0 0.0
      %223 = vmatprep.subr.mxu0 0.0
      %224 = vmatpush1.xpose.msra.mxu0 0.0
      %225 = vmatprep.subr.mxu0 0.0
      %226 = vmatpush1.xpose.msra.mxu0 0.0
      %227 = vmatprep.subr.mxu0 0.0
      %228 = vmatpush1.xpose.msra.mxu0 0.0
      %229 = vmatprep.subr.mxu0 0.0
      %230 = vmatpush1.xpose.msra.mxu0 0.0
      %231 = vmatprep.subr.mxu0 0.0
      %232 = vmatpush1.xpose.msra.mxu0 0.0
      %233 = vmatprep.subr.mxu0 0.0
      %234 = vmatpush1.xpose.msra.mxu0 %v215
      %235 = vmatprep.subr.mxu0 0.0
      %236 = vmatpush1.xpose.msra.mxu0 %v212
      %237 = vmatprep.subr.mxu0 0.0
      %238 = vmatpush1.xpose.msra.mxu0 %v209
      %239 = vmatprep.subr.mxu0 0.0
      %240 = vmatpush1.xpose.msra.mxu0 %v206
      %241 = vmatprep.subr.mxu0 0.0
      %242 = vmatpush1.xpose.msra.mxu0 %v203
      %243 = vmatprep.subr.mxu0 0.0
      %244 = vmatpush1.xpose.msra.mxu0 %v200
      %245 = vmatprep.subr.mxu0 0.0
      %246 = vmatpush1.xpose.msra.mxu0 %v197
      %247 = vmatprep.subr.mxu0 0.0
      %248 = vmatpush1.xpose.msra.mxu0 %v194
      %249 = vmatprep.subr.mxu0 0.0
      %250 = vmatpush2.xpose.msra.mxu0 0.0
      %251 = vmatprep.subr.mxu0 0.0
      %252 = vmatpush2.xpose.msra.mxu0 0.0
      %253 = vmatprep.subr.mxu0 0.0
      %254 = vmatpush2.xpose.msra.mxu0 0.0
      %255 = vmatprep.subr.mxu0 0.0
      %256 = vmatpush2.xpose.msra.mxu0 0.0
      %257 = vmatprep.subr.mxu0 0.0
      %258 = vmatpush2.xpose.msra.mxu0 0.0
      %259 = vmatprep.subr.mxu0 0.0
      %260 = vmatpush2.xpose.msra.mxu0 0.0
      %261 = vmatprep.subr.mxu0 0.0
      %262 = vmatpush2.xpose.msra.mxu0 0.0
      %263 = vmatprep.subr.mxu0 0.0
      %264 = vmatpush2.xpose.msra.mxu0 0.0
      %265 = vmatprep.subr.mxu0 0.0
      %266 = vmatpush2.xpose.msra.mxu0 0.0
      %267 = vmatprep.subr.mxu0 0.0
      %268 = vmatpush2.xpose.msra.mxu0 0.0
      %269 = vmatprep.subr.mxu0 0.0
      %270 = vmatpush2.xpose.msra.mxu0 0.0
      %271 = vmatprep.subr.mxu0 0.0
      %272 = vmatpush2.xpose.msra.mxu0 0.0
      %273 = vmatprep.subr.mxu0 0.0
      %274 = vmatpush2.xpose.msra.mxu0 0.0
      %275 = vmatprep.subr.mxu0 0.0
      %276 = vmatpush2.xpose.msra.mxu0 0.0
      %277 = vmatprep.subr.mxu0 0.0
      %278 = vmatpush2.xpose.msra.mxu0 0.0
      %279 = vmatprep.subr.mxu0 0.0
      %280 = vmatpush2.xpose.msra.mxu0 0.0
      %281 = vmatprep.mubr.f32.mxu0 0.0
      %282 = vmatmul.mubr.f32.gmra.mxu0 %v191
      %v283 = vpop.f32.mrf.mxu0
      %v284 = vadd.f32 0.0, %v283
      %v285 = vpop.f32.mrf.mxu0
      %286 = vdwg.mxu0
      %v287 = vlaneseq
      %v288 = vshrl.u32 %v287, 7
      %v289 = vsub.s32 0, %v288
      %v290 = vrot.slane %v284, %v289
      %v291 = vadd.f32 %v173, %v290
      %v292 = vadd.f32 %v176, %v290
      %v293 = vadd.f32 %v179, %v290
      %v294 = vadd.f32 %v182, %v290
      %s295 = sld [smem:[#allocation2]]
      %v296 = vstv %s295
      %v297 = vadd.f32 %v291, %v296
      %v298 = vadd.f32 %v292, %v296
      %v299 = vadd.f32 %v293, %v296
      %v300 = vadd.f32 %v294, %v296
      %vm301 = vcmask 523264
      %302 = vst.msk [vmem:[%s151] sm:$0xff] %vm301, %v297
      %303 = vst.msk [vmem:[%s151 + $0x8] sm:$0xff] %vm301, %v298
      %304 = vst.msk [vmem:[%s151 + $0x10] sm:$0xff] %vm301, %v299
      %305 = vst.msk [vmem:[%s151 + $0x18] sm:$0xff] %vm301, %v300
      %s306 = smul.u32 4, %s15
      %p307 = scmp.lt.s32.totalorder %s306, 7
      %s308 = scalar_select %p307, %s306, 7
      %s309 = smul.addr %s308, 8
      %s310 = scalar_lea.vmem %s3, %s309
      // Predicated region
      $region33: #{hetero_gat_forward.5} parent=31 // pred_check
        %p311 = pneg %p96
      $region34: #{hetero_gat_forward.5} parent=31 // pred_check_branch
        %313 = sbr.rel (%p311) target = $region36
      $region35: #{hetero_gat_forward.5} parent=31 // pred_region
        %s314 = smul.u32 4, %s15
      $region36: #{hetero_gat_forward.5} parent=31 // pred_fallthru
        _
    $region32: #{hetero_gat_forward.5} parent=5 // pred_fallthru
      _
    %p315 = scmp.le.s32.totalorder 2, %s10
    // Predicated region
    $region37: #{hetero_gat_forward.5} parent=5 // pred_check
      %p316 = pneg %p315
    $region38: #{hetero_gat_forward.5} parent=5 // pred_check_branch
      %318 = sbr.rel (%p316) target = $region40
    $region39: #{hetero_gat_forward.5} parent=5 // pred_region
      %s319 = ssub.s32 %s10, 2
      // Predicated region
      $region41: #{hetero_gat_forward.5} parent=39 // pred_check
        %p320 = pneg %p102
      $region42: #{hetero_gat_forward.5} parent=39 // pred_check_branch
        %322 = sbr.rel (%p320) target = $region44
      $region43: #{hetero_gat_forward.5} parent=39 // pred_region
        %s323 = smul.u32 4, %s16
        %p324 = scmp.lt.s32.totalorder %s323, 7
        %s325 = scalar_select %p324, %s323, 7
        %s326 = smul.addr %s325, 8
        %s327 = scalar_lea.vmem %s3, %s326
      $region44: #{hetero_gat_forward.5} parent=39 // pred_fallthru
        _
    $region40: #{hetero_gat_forward.5} parent=5 // pred_fallthru
      _
  $region6: #{hetero_gat_forward.5} parent=0 // loop_footer
    %s14 = sadd.s32 1, %s10
  $region7: #{hetero_gat_forward.5} parent=0 // loop_footer_branch
    %9 = sbr.rel target = $region3
  $region8: #{hetero_gat_forward.5} parent=0 // loop_exit
    _

// kernel: hetero_gat_forward.4
$region0: #{hetero_gat_forward.4}
  #allocation0 [shape = 'u32[]', space=smem, size = 0x4, offset = 0x4, fixed_abs, tag = 'smem constant byte address 0x4 - core index']
  #allocation1 [shape = 'u32[144,128]{1,0:T(1,128)}', space=vmem, size = 0x12000, scoped, tag = 'internal scratch']
  %s0 = inlined_call_operand.vmem [shape: f32[64,64], index: 0, kind: input, shape index: {}]
  %s1 = inlined_call_operand.vmem [shape: s8[2,64,64], index: 1, kind: input, shape index: {}]
  %s2 = inlined_call_operand.vmem [shape: f32[2,64,32], index: 2, kind: input, shape index: {}]
  %s3 = inlined_call_operand.vmem [shape: f32[2,2,32], index: 3, kind: input, shape index: {}]
  %s4 = inlined_call_operand.vmem [shape: f32[2,2,32], index: 4, kind: input, shape index: {}]
  %s5 = inlined_call_operand.vmem [shape: f32[1,32], index: 5, kind: input, shape index: {}]
  %s6 = inlined_call_operand.vmem [shape: f32[64,32], index: 6, kind: output, shape index: {}]
  %s7 = sld [smem:[#allocation0]]
  $region95: #{hetero_gat_forward.4} parent=0
    _
  %s9 = ssub.s32 1, %s7
  %s10 = scalar_select 0, %s9, %s7
  $region1: #{hetero_gat_forward.4} parent=0
    #allocation2 [shape = 'u8[16384]{0}', space=vmem, size = 0x4000, scoped, tag = 'input window, operand 1']
    loop: start=0, step=1, limit=4
    $region2: #{hetero_gat_forward.4} parent=1 // loop_pre_header
      _
    $region3: #{hetero_gat_forward.4} parent=1 // loop_header
      %s12 = sphi 0, %s16
      %p13 = scmp.ge.s32.totalorder %s12, 4
      %s20 = sphi 0, %s20
      %s22 = sphi 0, %s20
      %s23 = sphi 0, %s22
      %s37 = sphi 0, %s23
      %s43 = sphi 0, %s45
      %s46 = sphi 0, %s43
      %s47 = sphi 0, %s46
      %s63 = sphi 0, %s47
      %s67 = sphi 0, %s67
      %s69 = sphi 0, %s67
      %s70 = sphi 0, %s69
      %s84 = sphi 0, %s70
      %s88 = sphi 0, %s88
      %s90 = sphi 0, %s88
      %s91 = sphi 0, %s90
      %s105 = sphi 0, %s91
      %s109 = sphi 0, %s109
      %s111 = sphi 0, %s109
      %s112 = sphi 0, %s111
      %s126 = sphi 0, %s112
      %s130 = sphi 0, %s130
      %s132 = sphi 0, %s130
      %s133 = sphi 0, %s132
      %s147 = sphi 0, %s133
      %s153 = sphi 0, %s155
      %s156 = sphi 0, %s153
      %s157 = sphi 0, %s156
      %s173 = sphi 0, %s157
    $region4: #{hetero_gat_forward.4} parent=1 // loop_header_branch
      %15 = sbr.rel (%p13) target = $region8
    $region5: #{hetero_gat_forward.4} parent=1 // loop_body
      %s17 = ssub.s32 %s12, 1
      %s18 = ssub.s32 %s12, 2
      %s19 = sadd.s32 %s12, 1
      %s21 = sadd.s32 %s20, 1
      %p24 = scmp.eq.s32.totalorder %s12, 1
      %p25 = scmp.ne.s32.totalorder %s20, %s22
      %p26 = scmp.eq.s32.totalorder %s12, 0
      %p27 = por %p25, %p26
      %p28 = scmp.ne.s32.totalorder %s20, %s22
      %p29 = scmp.eq.s32.totalorder %s17, 1
      %p30 = por %p28, %p29
      %p31 = scmp.ne.s32.totalorder %s22, %s23
      %p32 = scmp.eq.s32.totalorder %s17, 0
      %p33 = por %p31, %p32
      %p34 = scmp.ne.s32.totalorder %s22, %s23
      %p35 = scmp.eq.s32.totalorder %s18, 1
      %p36 = por %p34, %p35
      %p38 = scmp.ne.s32.totalorder %s23, %s37
      %p39 = scmp.eq.s32.totalorder %s18, 0
      %p40 = por %p38, %p39
      %s41 = ssub.s32 %s12, %s19
      %p42 = scmp.eq.s32.totalorder %s41, 0
      %s44 = sadd.s32 %s43, 1
      %s45 = scalar_select %p42, %s43, %s44
      %p48 = pneg %p42
      %p49 = scmp.eq.s32.totalorder %s12, 1
      %p50 = por %p48, %p49
      %p51 = scmp.ne.s32.totalorder %s43, %s46
      %p52 = scmp.eq.s32.totalorder %s12, 0
      %p53 = por %p51, %p52
      %p54 = scmp.ne.s32.totalorder %s43, %s46
      %p55 = scmp.eq.s32.totalorder %s17, 1
      %p56 = por %p54, %p55
      %p57 = scmp.ne.s32.totalorder %s46, %s47
      %p58 = scmp.eq.s32.totalorder %s17, 0
      %p59 = por %p57, %p58
      %p60 = scmp.ne.s32.totalorder %s46, %s47
      %p61 = scmp.eq.s32.totalorder %s18, 1
      %p62 = por %p60, %p61
      %p64 = scmp.ne.s32.totalorder %s47, %s63
      %p65 = scmp.eq.s32.totalorder %s18, 0
      %p66 = por %p64, %p65
      %s68 = sadd.s32 %s67, 1
      %p71 = scmp.eq.s32.totalorder %s12, 1
      %p72 = scmp.ne.s32.totalorder %s67, %s69
      %p73 = scmp.eq.s32.totalorder %s12, 0
      %p74 = por %p72, %p73
      %p75 = scmp.ne.s32.totalorder %s67, %s69
      %p76 = scmp.eq.s32.totalorder %s17, 1
      %p77 = por %p75, %p76
      %p78 = scmp.ne.s32.totalorder %s69, %s70
      %p79 = scmp.eq.s32.totalorder %s17, 0
      %p80 = por %p78, %p79
      %p81 = scmp.ne.s32.totalorder %s69, %s70
      %p82 = scmp.eq.s32.totalorder %s18, 1
      %p83 = por %p81, %p82
      %p85 = scmp.ne.s32.totalorder %s70, %s84
      %p86 = scmp.eq.s32.totalorder %s18, 0
      %p87 = por %p85, %p86
      %s89 = sadd.s32 %s88, 1
      %p92 = scmp.eq.s32.totalorder %s12, 1
      %p93 = scmp.ne.s32.totalorder %s88, %s90
      %p94 = scmp.eq.s32.totalorder %s12, 0
      %p95 = por %p93, %p94
      %p96 = scmp.ne.s32.totalorder %s88, %s90
      %p97 = scmp.eq.s32.totalorder %s17, 1
      %p98 = por %p96, %p97
      %p99 = scmp.ne.s32.totalorder %s90, %s91
      %p100 = scmp.eq.s32.totalorder %s17, 0
      %p101 = por %p99, %p100
      %p102 = scmp.ne.s32.totalorder %s90, %s91
      %p103 = scmp.eq.s32.totalorder %s18, 1
      %p104 = por %p102, %p103
      %p106 = scmp.ne.s32.totalorder %s91, %s105
      %p107 = scmp.eq.s32.totalorder %s18, 0
      %p108 = por %p106, %p107
      %s110 = sadd.s32 %s109, 1
      %p113 = scmp.eq.s32.totalorder %s12, 1
      %p114 = scmp.ne.s32.totalorder %s109, %s111
      %p115 = scmp.eq.s32.totalorder %s12, 0
      %p116 = por %p114, %p115
      %p117 = scmp.ne.s32.totalorder %s109, %s111
      %p118 = scmp.eq.s32.totalorder %s17, 1
      %p119 = por %p117, %p118
      %p120 = scmp.ne.s32.totalorder %s111, %s112
      %p121 = scmp.eq.s32.totalorder %s17, 0
      %p122 = por %p120, %p121
      %p123 = scmp.ne.s32.totalorder %s111, %s112
      %p124 = scmp.eq.s32.totalorder %s18, 1
      %p125 = por %p123, %p124
      %p127 = scmp.ne.s32.totalorder %s112, %s126
      %p128 = scmp.eq.s32.totalorder %s18, 0
      %p129 = por %p127, %p128
      %s131 = sadd.s32 %s130, 1
      %p134 = scmp.eq.s32.totalorder %s12, 1
      %p135 = scmp.ne.s32.totalorder %s130, %s132
      %p136 = scmp.eq.s32.totalorder %s12, 0
      %p137 = por %p135, %p136
      %p138 = scmp.ne.s32.totalorder %s130, %s132
      %p139 = scmp.eq.s32.totalorder %s17, 1
      %p140 = por %p138, %p139
      %p141 = scmp.ne.s32.totalorder %s132, %s133
      %p142 = scmp.eq.s32.totalorder %s17, 0
      %p143 = por %p141, %p142
      %p144 = scmp.ne.s32.totalorder %s132, %s133
      %p145 = scmp.eq.s32.totalorder %s18, 1
      %p146 = por %p144, %p145
      %p148 = scmp.ne.s32.totalorder %s133, %s147
      %p149 = scmp.eq.s32.totalorder %s18, 0
      %p150 = por %p148, %p149
      %s151 = ssub.s32 %s12, %s19
      %p152 = scmp.eq.s32.totalorder %s151, 0
      %s154 = sadd.s32 %s153, 1
      %s155 = scalar_select %p152, %s153, %s154
      %p158 = pneg %p152
      %p159 = scmp.eq.s32.totalorder %s12, 1
      %p160 = por %p158, %p159
      %p161 = scmp.ne.s32.totalorder %s153, %s156
      %p162 = scmp.eq.s32.totalorder %s12, 0
      %p163 = por %p161, %p162
      %p164 = scmp.ne.s32.totalorder %s153, %s156
      %p165 = scmp.eq.s32.totalorder %s17, 1
      %p166 = por %p164, %p165
      %p167 = scmp.ne.s32.totalorder %s156, %s157
      %p168 = scmp.eq.s32.totalorder %s17, 0
      %p169 = por %p167, %p168
      %p170 = scmp.ne.s32.totalorder %s156, %s157
      %p171 = scmp.eq.s32.totalorder %s18, 1
      %p172 = por %p170, %p171
      %p174 = scmp.ne.s32.totalorder %s157, %s173
      %p175 = scmp.eq.s32.totalorder %s18, 0
      %p176 = por %p174, %p175
      %p177 = scmp.le.s32.totalorder 1, %s12
      %p178 = scmp.lt.s32.totalorder %s12, 3
      %p179 = pnand %p177, %p178
      %p180 = pneg %p179
      // Predicated region
      $region9: #{hetero_gat_forward.4} parent=5 // pred_check
        _
      $region10: #{hetero_gat_forward.4} parent=5 // pred_check_branch
        %182 = sbr.rel (%p179) target = $region12
      $region11: #{hetero_gat_forward.4} parent=5 // pred_region
        %s183 = ssub.s32 %s12, 1
        // Predicated region
        $region13: #{hetero_gat_forward.4} parent=11 // pred_check
          %p184 = pneg %p33
        $region14: #{hetero_gat_forward.4} parent=11 // pred_check_branch
          %186 = sbr.rel (%p184) target = $region16
        $region15: #{hetero_gat_forward.4} parent=11 // pred_region
          _
        $region16: #{hetero_gat_forward.4} parent=11 // pred_fallthru
          _
        // Predicated region
        $region17: #{hetero_gat_forward.4} parent=11 // pred_check
          %p187 = pneg %p80
        $region18: #{hetero_gat_forward.4} parent=11 // pred_check_branch
          %189 = sbr.rel (%p187) target = $region20
        $region19: #{hetero_gat_forward.4} parent=11 // pred_region
          _
        $region20: #{hetero_gat_forward.4} parent=11 // pred_fallthru
          _
        // Predicated region
        $region21: #{hetero_gat_forward.4} parent=11 // pred_check
          %p190 = pneg %p101
        $region22: #{hetero_gat_forward.4} parent=11 // pred_check_branch
          %192 = sbr.rel (%p190) target = $region24
        $region23: #{hetero_gat_forward.4} parent=11 // pred_region
          _
        $region24: #{hetero_gat_forward.4} parent=11 // pred_fallthru
          _
        // Predicated region
        $region25: #{hetero_gat_forward.4} parent=11 // pred_check
          %p193 = pneg %p122
        $region26: #{hetero_gat_forward.4} parent=11 // pred_check_branch
          %195 = sbr.rel (%p193) target = $region28
        $region27: #{hetero_gat_forward.4} parent=11 // pred_region
          _
        $region28: #{hetero_gat_forward.4} parent=11 // pred_fallthru
          _
        // Predicated region
        $region29: #{hetero_gat_forward.4} parent=11 // pred_check
          %p196 = pneg %p143
        $region30: #{hetero_gat_forward.4} parent=11 // pred_check_branch
          %198 = sbr.rel (%p196) target = $region32
        $region31: #{hetero_gat_forward.4} parent=11 // pred_region
          _
        $region32: #{hetero_gat_forward.4} parent=11 // pred_fallthru
          _
      $region12: #{hetero_gat_forward.4} parent=5 // pred_fallthru
        _
      %p199 = scmp.lt.s32.totalorder %s12, 2
      // Predicated region
      $region33: #{hetero_gat_forward.4} parent=5 // pred_check
        %p200 = pneg %p199
      $region34: #{hetero_gat_forward.4} parent=5 // pred_check_branch
        %202 = sbr.rel (%p200) target = $region36
      $region35: #{hetero_gat_forward.4} parent=5 // pred_region
        // Predicated region
        $region37: #{hetero_gat_forward.4} parent=35 // pred_check
          %p203 = pneg %p53
        $region38: #{hetero_gat_forward.4} parent=35 // pred_check_branch
          %205 = sbr.rel (%p203) target = $region40
        $region39: #{hetero_gat_forward.4} parent=35 // pred_region
          %s206 = sand.u32 %s43, 1
          %s207 = sand.u32 %s43, 1
          %s208 = smul.addr %s207, 16
          %s209 = scalar_lea.vmem [#allocation2], %s208
          %s210 = smul.addr %s12, 8
          %s211 = scalar_lea.vmem %s1, %s210
          // Predicated region
          $region41: #{hetero_gat_forward.4} parent=39 // pred_check
            _
          $region42: #{hetero_gat_forward.4} parent=39 // pred_check_branch
            %213 = sbr.rel (0) target = $region44
          $region43: #{hetero_gat_forward.4} parent=39 // pred_region
            // Predicated region
            $region45: #{hetero_gat_forward.4} parent=43 // pred_check
              _
            $region46: #{hetero_gat_forward.4} parent=43 // pred_check_branch
              %215 = sbr.rel (0) target = $region48
            $region47: #{hetero_gat_forward.4} parent=43 // pred_region
              // Predicated region
              $region60: #{hetero_gat_forward.4} parent=47 // pred_check
                _
              $region61: #{hetero_gat_forward.4} parent=47 // pred_check_branch
                %233 = sbr.rel (0) target = $region63
              $region62: #{hetero_gat_forward.4} parent=47 // pred_region
                loop: start=0, step=1, limit=1
                $region64: #{hetero_gat_forward.4} parent=62 // loop_pre_header
                  _
                $region65: #{hetero_gat_forward.4} parent=62 // loop_header
                  %s235 = sphi 0, %s239
                  %p236 = scmp.ge.s32.totalorder %s235, 1
                  %s240 = sphi %s211, %s211
                  %s241 = sphi %s209, %s209
                $region66: #{hetero_gat_forward.4} parent=62 // loop_header_branch
                  %238 = sbr.rel (%p236) target = $region70
                $region67: #{hetero_gat_forward.4} parent=62 // loop_body
                  %v242 = vld [vmem:[%s240] sm:$0xff]
                  %243 = vst [vmem:[%s241] sm:$0xff] %v242
                  %v244 = vld [vmem:[%s240 + $0x10] sm:$0xff]
                  %245 = vst [vmem:[%s241 + $0x8] sm:$0xff] %v244
                $region68: #{hetero_gat_forward.4} parent=62 // loop_footer
                  %s239 = sadd.s32 1, %s235
                $region69: #{hetero_gat_forward.4} parent=62 // loop_footer_branch
                  %234 = sbr.rel target = $region65
                $region70: #{hetero_gat_forward.4} parent=62 // loop_exit
                  _
              $region63: #{hetero_gat_forward.4} parent=47 // pred_fallthru
                _
              // Predicated region
              $region71: #{hetero_gat_forward.4} parent=47 // pred_check
                _
              $region72: #{hetero_gat_forward.4} parent=47 // pred_check_branch
                %247 = sbr.rel target = $region74
              $region73: #{hetero_gat_forward.4} parent=47 // pred_region
                _
              $region74: #{hetero_gat_forward.4} parent=47 // pred_fallthru
                _
            $region48: #{hetero_gat_forward.4} parent=43 // pred_fallthru
              _
            // Predicated region
            $region49: #{hetero_gat_forward.4} parent=43 // pred_check
              _
            $region50: #{hetero_gat_forward.4} parent=43 // pred_check_branch
              %217 = sbr.rel target = $region52
            $region51: #{hetero_gat_forward.4} parent=43 // pred_region
              %s219 = ssub.s32 256, 1
              loop: start=0, step=1, limit=1
              $region53: #{hetero_gat_forward.4} parent=51 // loop_pre_header
                _
              $region54: #{hetero_gat_forward.4} parent=51 // loop_header
                %s221 = sphi 0, %s225
                %p222 = scmp.ge.s32.totalorder %s221, 1
                %s226 = sphi %s211, %s211
                %s227 = sphi %s209, %s209
              $region55: #{hetero_gat_forward.4} parent=51 // loop_header_branch
                %224 = sbr.rel (%p222) target = $region59
              $region56: #{hetero_gat_forward.4} parent=51 // loop_body
                %v228 = vld [vmem:[%s226] sm:%s219]
                %229 = vst [vmem:[%s227] sm:%s219] %v228
                %v230 = vld [vmem:[%s226 + $0x10] sm:%s219]
                %231 = vst [vmem:[%s227 + $0x8] sm:%s219] %v230
              $region57: #{hetero_gat_forward.4} parent=51 // loop_footer
                %s225 = sadd.s32 1, %s221
              $region58: #{hetero_gat_forward.4} parent=51 // loop_footer_branch
                %220 = sbr.rel target = $region54
              $region59: #{hetero_gat_forward.4} parent=51 // loop_exit
                _
            $region52: #{hetero_gat_forward.4} parent=43 // pred_fallthru
              _
          $region44: #{hetero_gat_forward.4} parent=39 // pred_fallthru
            _
          %248 = vnop
        $region40: #{hetero_gat_forward.4} parent=35 // pred_fallthru
          _
      $region36: #{hetero_gat_forward.4} parent=5 // pred_fallthru
        _
      %p249 = scmp.le.s32.totalorder 1, %s12
      %p250 = scmp.lt.s32.totalorder %s12, 3
      %p251 = pnand %p249, %p250
      %p252 = pneg %p251
      // Predicated region
      $region75: #{hetero_gat_forward.4} parent=5 // pred_check
        _
      $region76: #{hetero_gat_forward.4} parent=5 // pred_check_branch
        %254 = sbr.rel (%p251) target = $region78
      $region77: #{hetero_gat_forward.4} parent=5 // pred_region
        %s255 = ssub.s32 %s12, 1
        %s256 = sand.u32 %s46, 1
        %s257 = sand.u32 %s46, 1
        %s258 = smul.addr %s257, 16
        %s259 = scalar_lea.vmem [#allocation2], %s258
        // Predicated region
        $region79: #{hetero_gat_forward.4} parent=77 // pred_check
          %p260 = pneg %p59
        $region80: #{hetero_gat_forward.4} parent=77 // pred_check_branch
          %262 = sbr.rel (%p260) target = $region82
        $region81: #{hetero_gat_forward.4} parent=77 // pred_region
          _
        $region82: #{hetero_gat_forward.4} parent=77 // pred_fallthru
          _
        %p263 = pneg %p33
        %p264 = pneg %p30
        %s265 = sand.u32 %s46, 1
        %s266 = sand.u32 %s46, 1
        %s267 = smul.addr %s266, 16
        %s268 = scalar_lea.vmem [#allocation2], %s267
        %p269 = pneg %p59
        %p270 = pneg %p56
        %p271 = pneg %p80
        %p272 = pneg %p77
        %p273 = pneg %p101
        %p274 = pneg %p98
        %p275 = pneg %p122
        %p276 = pneg %p119
        %p277 = pneg %p143
        %p278 = pneg %p140
        %p279 = pneg %p169
        %p280 = pneg %p166
        %s281 = smul.u32 4, %s17
        %p282 = scmp.lt.s32.totalorder %s281, 7
        %s283 = scalar_select %p282, %s281, 7
        %s284 = smul.addr %s283, 8
        %s285 = scalar_lea.vmem %s6, %s284
        %s286 = smul.u32 4, %s17
        %p287 = scmp.lt.s32.totalorder %s286, 7
        %s288 = scalar_select %p287, %s286, 7
        %s289 = smul.addr %s288, 8
        %s290 = scalar_lea.vmem %s6, %s289
        %s291 = smul.u32 4, %s17
        %s292 = smul.u32 %s17, 32
        %v293 = vld [vmem:[%s0] sm:$0xff]
        %v294 = vld [vmem:[%s0 + $0x8] sm:$0xff]
        %v295 = vld [vmem:[%s0 + $0x10] sm:$0xff]
        %v296 = vld [vmem:[%s0 + $0x18] sm:$0xff]
        %v297 = vld [vmem:[%s0 + $0x20] sm:$0xff]
        %v298 = vld [vmem:[%s0 + $0x28] sm:$0xff]
        %v299 = vld [vmem:[%s0 + $0x30] sm:$0xff]
        %v300 = vld [vmem:[%s0 + $0x38] sm:$0xff]
        %s301 = scalar_lea.vmem %s0, %s292
        %v302 = vld [vmem:[%s301] sm:$0xff]
        %v303 = vld [vmem:[%s301 + $0x8] sm:$0xff]
        %v304 = vld [vmem:[%s301 + $0x10] sm:$0xff]
        %v305 = vld [vmem:[%s301 + $0x18] sm:$0xff]
        %vm306 = vcmask 261120
        %307 = vst.msk [vmem:[%s290] sm:$0xff] %vm306, 0.0
        %308 = vst.msk [vmem:[%s290 + $0x8] sm:$0xff] %vm306, 0.0
        %309 = vst.msk [vmem:[%s290 + $0x10] sm:$0xff] %vm306, 0.0
        %310 = vst.msk [vmem:[%s290 + $0x18] sm:$0xff] %vm306, 0.0
        %v311 = vld [vmem:[%s259] sm:$0xff]
        %v312 = vunpack.c.0.s8 %v311
        %v313 = vunpack.c.1.s8 %v311
        %v314 = vunpack.c.2.s8 %v311
        %v315 = vunpack.c.3.s8 %v311
        %vm316 = vcmp.gt.s32.totalorder %v312, 0
        %vm317 = vcmp.gt.s32.totalorder %v313, 0
        %vm318 = vcmp.gt.s32.totalorder %v314, 0
        %vm319 = vcmp.gt.s32.totalorder %v315, 0
        %v320 = vld [vmem:[%s2] sm:$0xff]
        %v321 = vld [vmem:[%s2 + $0x8] sm:$0xff]
        %v322 = vld [vmem:[%s2 + $0x10] sm:$0xff]
        %v323 = vld [vmem:[%s2 + $0x18] sm:$0xff]
        %v324 = vld [vmem:[%s2 + $0x20] sm:$0xff]
        %v325 = vld [vmem:[%s2 + $0x28] sm:$0xff]
        %v326 = vld [vmem:[%s2 + $0x30] sm:$0xff]
        %v327 = vld [vmem:[%s2 + $0x38] sm:$0xff]
        %vm328 = vcmask 523264
        %v330 = vsel %vm328, %v293, 0
        %v333 = vsel %vm328, %v294, 0
        %v336 = vsel %vm328, %v295, 0
        %v339 = vsel %vm328, %v296, 0
        %v342 = vsel %vm328, %v297, 0
        %v345 = vsel %vm328, %v298, 0
        %v348 = vsel %vm328, %v299, 0
        %v351 = vsel %vm328, %v300, 0
        %353 = vmatprep.subr.mxu0 0.0
        %354 = vmatpush1.msra.mxu0 0.0
        %355 = vmatprep.subr.mxu0 0.0
        %356 = vmatpush1.msra.mxu0 0.0
        %357 = vmatprep.subr.mxu0 0.0
        %358 = vmatpush1.msra.mxu0 0.0
        %359 = vmatprep.subr.mxu0 0.0
        %360 = vmatpush1.msra.mxu0 0.0
        %361 = vmatprep.subr.mxu0 0.0
        %362 = vmatpush1.msra.mxu0 0.0
        %363 = vmatprep.subr.mxu0 0.0
        %364 = vmatpush1.msra.mxu0 0.0
        %365 = vmatprep.subr.mxu0 0.0
        %366 = vmatpush1.msra.mxu0 0.0
        %367 = vmatprep.subr.mxu0 0.0
        %368 = vmatpush1.msra.mxu0 0.0
        %369 = vmatprep.subr.mxu0 0.0
        %370 = vmatpush1.msra.mxu0 %v327
        %371 = vmatprep.subr.mxu0 0.0
        %372 = vmatpush1.msra.mxu0 %v326
        %373 = vmatprep.subr.mxu0 0.0
        %374 = vmatpush1.msra.mxu0 %v325
        %375 = vmatprep.subr.mxu0 0.0
        %376 = vmatpush1.msra.mxu0 %v324
        %377 = vmatprep.subr.mxu0 0.0
        %378 = vmatpush1.msra.mxu0 %v323
        %379 = vmatprep.subr.mxu0 0.0
        %380 = vmatpush1.msra.mxu0 %v322
        %381 = vmatprep.subr.mxu0 0.0
        %382 = vmatpush1.msra.mxu0 %v321
        %383 = vmatprep.subr.mxu0 0.0
        %384 = vmatpush1.msra.mxu0 %v320
        %385 = vmatprep.subr.mxu0 0.0
        %386 = vmatpush2.msra.mxu0 0.0
        %387 = vmatprep.subr.mxu0 0.0
        %388 = vmatpush2.msra.mxu0 0.0
        %389 = vmatprep.subr.mxu0 0.0
        %390 = vmatpush2.msra.mxu0 0.0
        %391 = vmatprep.subr.mxu0 0.0
        %392 = vmatpush2.msra.mxu0 0.0
        %393 = vmatprep.subr.mxu0 0.0
        %394 = vmatpush2.msra.mxu0 0.0
        %395 = vmatprep.subr.mxu0 0.0
        %396 = vmatpush2.msra.mxu0 0.0
        %397 = vmatprep.subr.mxu0 0.0
        %398 = vmatpush2.msra.mxu0 0.0
        %399 = vmatprep.subr.mxu0 0.0
        %400 = vmatpush2.msra.mxu0 0.0
        %401 = vmatprep.subr.mxu0 0.0
        %402 = vmatpush2.msra.mxu0 0.0
        %403 = vmatprep.subr.mxu0 0.0
        %404 = vmatpush2.msra.mxu0 0.0
        %405 = vmatprep.subr.mxu0 0.0
        %406 = vmatpush2.msra.mxu0 0.0
        %407 = vmatprep.subr.mxu0 0.0
        %408 = vmatpush2.msra.mxu0 0.0
        %409 = vmatprep.subr.mxu0 0.0
        %410 = vmatpush2.msra.mxu0 0.0
        %411 = vmatprep.subr.mxu0 0.0
        %412 = vmatpush2.msra.mxu0 0.0
        %413 = vmatprep.subr.mxu0 0.0
        %414 = vmatpush2.msra.mxu0 0.0
        %415 = vmatprep.subr.mxu0 0.0
        %416 = vmatpush2.msra.mxu0 0.0
        %417 = vmatprep.mubr.f32.mxu0 0.0
        %418 = vmatmul.mubr.f32.gmra.mxu0 %v330
        %v419 = vpop.f32.mrf.mxu0
        %v420 = vadd.f32 0.0, %v419
        %v421 = vpop.f32.mrf.mxu0
        %422 = vmatprep.mubr.f32.mxu0 0.0
        %423 = vmatmul.mubr.f32.gmra.mxu0 %v333
        %v424 = vpop.f32.mrf.mxu0
        %v425 = vadd.f32 0.0, %v424
        %v426 = vpop.f32.mrf.mxu0
        %427 = vmatprep.mubr.f32.mxu0 0.0
        %428 = vmatmul.mubr.f32.gmra.mxu0 %v336
        %v429 = vpop.f32.mrf.mxu0
        %v430 = vadd.f32 0.0, %v429
        %v431 = vpop.f32.mrf.mxu0
        %432 = vmatprep.mubr.f32.mxu0 0.0
        %433 = vmatmul.mubr.f32.gmra.mxu0 %v339
        %v434 = vpop.f32.mrf.mxu0
        %v435 = vadd.f32 0.0, %v434
        %v436 = vpop.f32.mrf.mxu0
        %437 = vmatprep.mubr.f32.mxu0 0.0
        %438 = vmatmul.mubr.f32.gmra.mxu0 %v342
        %v439 = vpop.f32.mrf.mxu0
        %v440 = vadd.f32 0.0, %v439
        %v441 = vpop.f32.mrf.mxu0
        %442 = vmatprep.mubr.f32.mxu0 0.0
        %443 = vmatmul.mubr.f32.gmra.mxu0 %v345
        %v444 = vpop.f32.mrf.mxu0
        %v445 = vadd.f32 0.0, %v444
        %v446 = vpop.f32.mrf.mxu0
        %447 = vmatprep.mubr.f32.mxu0 0.0
        %448 = vmatmul.mubr.f32.gmra.mxu0 %v348
        %v449 = vpop.f32.mrf.mxu0
        %v450 = vadd.f32 0.0, %v449
        %v451 = vpop.f32.mrf.mxu0
        %452 = vmatprep.mubr.f32.mxu0 0.0
        %453 = vmatmul.mubr.f32.gmra.mxu0 %v351
        %v454 = vpop.f32.mrf.mxu0
        %v455 = vadd.f32 0.0, %v454
        %v456 = vpop.f32.mrf.mxu0
        %457 = vdwg.mxu0
        %v459 = vsel %vm328, %v302, 0
        %v462 = vsel %vm328, %v303, 0
        %v465 = vsel %vm328, %v304, 0
        %v468 = vsel %vm328, %v305, 0
        %470 = vmatprep.subr.mxu0 0.0
        %471 = vmatpush1.msra.mxu0 0.0
        %472 = vmatprep.subr.mxu0 0.0
        %473 = vmatpush1.msra.mxu0 0.0
        %474 = vmatprep.subr.mxu0 0.0
        %475 = vmatpush1.msra.mxu0 0.0
        %476 = vmatprep.subr.mxu0 0.0
        %477 = vmatpush1.msra.mxu0 0.0
        %478 = vmatprep.subr.mxu0 0.0
        %479 = vmatpush1.msra.mxu0 0.0
        %480 = vmatprep.subr.mxu0 0.0
        %481 = vmatpush1.msra.mxu0 0.0
        %482 = vmatprep.subr.mxu0 0.0
        %483 = vmatpush1.msra.mxu0 0.0
        %484 = vmatprep.subr.mxu0 0.0
        %485 = vmatpush1.msra.mxu0 0.0
        %486 = vmatprep.subr.mxu0 0.0
        %487 = vmatpush1.msra.mxu0 %v327
        %488 = vmatprep.subr.mxu0 0.0
        %489 = vmatpush1.msra.mxu0 %v326
        %490 = vmatprep.subr.mxu0 0.0
        %491 = vmatpush1.msra.mxu0 %v325
        %492 = vmatprep.subr.mxu0 0.0
        %493 = vmatpush1.msra.mxu0 %v324
        %494 = vmatprep.subr.mxu0 0.0
        %495 = vmatpush1.msra.mxu0 %v323
        %496 = vmatprep.subr.mxu0 0.0
        %497 = vmatpush1.msra.mxu0 %v322
        %498 = vmatprep.subr.mxu0 0.0
        %499 = vmatpush1.msra.mxu0 %v321
        %500 = vmatprep.subr.mxu0 0.0
        %501 = vmatpush1.msra.mxu0 %v320
        %502 = vmatprep.subr.mxu0 0.0
        %503 = vmatpush2.msra.mxu0 0.0
        %504 = vmatprep.subr.mxu0 0.0
        %505 = vmatpush2.msra.mxu0 0.0
        %506 = vmatprep.subr.mxu0 0.0
        %507 = vmatpush2.msra.mxu0 0.0
        %508 = vmatprep.subr.mxu0 0.0
        %509 = vmatpush2.msra.mxu0 0.0
        %510 = vmatprep.subr.mxu0 0.0
        %511 = vmatpush2.msra.mxu0 0.0
        %512 = vmatprep.subr.mxu0 0.0
        %513 = vmatpush2.msra.mxu0 0.0
        %514 = vmatprep.subr.mxu0 0.0
        %515 = vmatpush2.msra.mxu0 0.0
        %516 = vmatprep.subr.mxu0 0.0
        %517 = vmatpush2.msra.mxu0 0.0
        %518 = vmatprep.subr.mxu0 0.0
        %519 = vmatpush2.msra.mxu0 0.0
        %520 = vmatprep.subr.mxu0 0.0
        %521 = vmatpush2.msra.mxu0 0.0
        %522 = vmatprep.subr.mxu0 0.0
        %523 = vmatpush2.msra.mxu0 0.0
        %524 = vmatprep.subr.mxu0 0.0
        %525 = vmatpush2.msra.mxu0 0.0
        %526 = vmatprep.subr.mxu0 0.0
        %527 = vmatpush2.msra.mxu0 0.0
        %528 = vmatprep.subr.mxu0 0.0
        %529 = vmatpush2.msra.mxu0 0.0
        %530 = vmatprep.subr.mxu0 0.0
        %531 = vmatpush2.msra.mxu0 0.0
        %532 = vmatprep.subr.mxu0 0.0
        %533 = vmatpush2.msra.mxu0 0.0
        %534 = vmatprep.mubr.f32.mxu0 0.0
        %535 = vmatmul.mubr.f32.gmra.mxu0 %v459
        %v536 = vpop.f32.mrf.mxu0
        %v537 = vadd.f32 0.0, %v536
        %v538 = vpop.f32.mrf.mxu0
        %539 = vmatprep.mubr.f32.mxu0 0.0
        %540 = vmatmul.mubr.f32.gmra.mxu0 %v462
        %v541 = vpop.f32.mrf.mxu0
        %v542 = vadd.f32 0.0, %v541
        %v543 = vpop.f32.mrf.mxu0
        %544 = vmatprep.mubr.f32.mxu0 0.0
        %545 = vmatmul.mubr.f32.gmra.mxu0 %v465
        %v546 = vpop.f32.mrf.mxu0
        %v547 = vadd.f32 0.0, %v546
        %v548 = vpop.f32.mrf.mxu0
        %549 = vmatprep.mubr.f32.mxu0 0.0
        %550 = vmatmul.mubr.f32.gmra.mxu0 %v468
        %v551 = vpop.f32.mrf.mxu0
        %v552 = vadd.f32 0.0, %v551
        %v553 = vpop.f32.mrf.mxu0
        %554 = vdwg.mxu0
        %v555 = vld [vmem:[%s3] sm:$0x3]
        %v557 = vsel %vm306, %v555, 0
        %v560 = vsel %vm306, %v420, 0
        %v563 = vsel %vm306, %v425, 0
        %v566 = vsel %vm306, %v430, 0
        %v569 = vsel %vm306, %v435, 0
        %v572 = vsel %vm306, %v440, 0
        %v575 = vsel %vm306, %v445, 0
        %v578 = vsel %vm306, %v450, 0
        %v581 = vsel %vm306, %v455, 0
        %583 = vmatprep.subr.mxu0 0.0
        %584 = vmatpush1.xpose.msra.mxu0 0.0
        %585 = vmatprep.subr.mxu0 0.0
        %586 = vmatpush1.xpose.msra.mxu0 0.0
        %587 = vmatprep.subr.mxu0 0.0
        %588 = vmatpush1.xpose.msra.mxu0 0.0
        %589 = vmatprep.subr.mxu0 0.0
        %590 = vmatpush1.xpose.msra.mxu0 0.0
        %591 = vmatprep.subr.mxu0 0.0
        %592 = vmatpush1.xpose.msra.mxu0 0.0
        %593 = vmatprep.subr.mxu0 0.0
        %594 = vmatpush1.xpose.msra.mxu0 0.0
        %595 = vmatprep.subr.mxu0 0.0
        %596 = vmatpush1.xpose.msra.mxu0 0.0
        %597 = vmatprep.subr.mxu0 0.0
        %598 = vmatpush1.xpose.msra.mxu0 0.0
        %599 = vmatprep.subr.mxu0 0.0
        %600 = vmatpush1.xpose.msra.mxu0 %v581
        %601 = vmatprep.subr.mxu0 0.0
        %602 = vmatpush1.xpose.msra.mxu0 %v578
        %603 = vmatprep.subr.mxu0 0.0
        %604 = vmatpush1.xpose.msra.mxu0 %v575
        %605 = vmatprep.subr.mxu0 0.0
        %606 = vmatpush1.xpose.msra.mxu0 %v572
        %607 = vmatprep.subr.mxu0 0.0
        %608 = vmatpush1.xpose.msra.mxu0 %v569
        %609 = vmatprep.subr.mxu0 0.0
        %610 = vmatpush1.xpose.msra.mxu0 %v566
        %611 = vmatprep.subr.mxu0 0.0
        %612 = vmatpush1.xpose.msra.mxu0 %v563
        %613 = vmatprep.subr.mxu0 0.0
        %614 = vmatpush1.xpose.msra.mxu0 %v560
        %615 = vmatprep.subr.mxu0 0.0
        %616 = vmatpush2.xpose.msra.mxu0 0.0
        %617 = vmatprep.subr.mxu0 0.0
        %618 = vmatpush2.xpose.msra.mxu0 0.0
        %619 = vmatprep.subr.mxu0 0.0
        %620 = vmatpush2.xpose.msra.mxu0 0.0
        %621 = vmatprep.subr.mxu0 0.0
        %622 = vmatpush2.xpose.msra.mxu0 0.0
        %623 = vmatprep.subr.mxu0 0.0
        %624 = vmatpush2.xpose.msra.mxu0 0.0
        %625 = vmatprep.subr.mxu0 0.0
        %626 = vmatpush2.xpose.msra.mxu0 0.0
        %627 = vmatprep.subr.mxu0 0.0
        %628 = vmatpush2.xpose.msra.mxu0 0.0
        %629 = vmatprep.subr.mxu0 0.0
        %630 = vmatpush2.xpose.msra.mxu0 0.0
        %631 = vmatprep.subr.mxu0 0.0
        %632 = vmatpush2.xpose.msra.mxu0 0.0
        %633 = vmatprep.subr.mxu0 0.0
        %634 = vmatpush2.xpose.msra.mxu0 0.0
        %635 = vmatprep.subr.mxu0 0.0
        %636 = vmatpush2.xpose.msra.mxu0 0.0
        %637 = vmatprep.subr.mxu0 0.0
        %638 = vmatpush2.xpose.msra.mxu0 0.0
        %639 = vmatprep.subr.mxu0 0.0
        %640 = vmatpush2.xpose.msra.mxu0 0.0
        %641 = vmatprep.subr.mxu0 0.0
        %642 = vmatpush2.xpose.msra.mxu0 0.0
        %643 = vmatprep.subr.mxu0 0.0
        %644 = vmatpush2.xpose.msra.mxu0 0.0
        %645 = vmatprep.subr.mxu0 0.0
        %646 = vmatpush2.xpose.msra.mxu0 0.0
        %647 = vmatprep.mubr.f32.mxu0 0.0
        %648 = vmatmul.mubr.f32.gmra.mxu0 %v557
        %v649 = vpop.f32.mrf.mxu0
        %v650 = vadd.f32 0.0, %v649
        %v651 = vpop.f32.mrf.mxu0
        %652 = vdwg.mxu0
        %v653 = vld [vmem:[%s4] sm:$0x3]
        %v655 = vsel %vm306, %v537, 0
        %v658 = vsel %vm306, %v542, 0
        %v661 = vsel %vm306, %v547, 0
        %v664 = vsel %vm306, %v552, 0
        %v667 = vsel %vm306, %v653, 0
        %669 = vmatprep.subr.mxu0 0.0
        %670 = vmatpush1.xpose.msra.mxu0 0.0
        %671 = vmatprep.subr.mxu0 0.0
        %672 = vmatpush1.xpose.msra.mxu0 0.0
        %673 = vmatprep.subr.mxu0 0.0
        %674 = vmatpush1.xpose.msra.mxu0 0.0
        %675 = vmatprep.subr.mxu0 0.0
        %676 = vmatpush1.xpose.msra.mxu0 0.0
        %677 = vmatprep.subr.mxu0 0.0
        %678 = vmatpush1.xpose.msra.mxu0 0.0
        %679 = vmatprep.subr.mxu0 0.0
        %680 = vmatpush1.xpose.msra.mxu0 0.0
        %681 = vmatprep.subr.mxu0 0.0
        %682 = vmatpush1.xpose.msra.mxu0 0.0
        %683 = vmatprep.subr.mxu0 0.0
        %684 = vmatpush1.xpose.msra.mxu0 0.0
        %685 = vmatprep.subr.mxu0 0.0
        %686 = vmatpush1.xpose.msra.mxu0 0.0
        %687 = vmatprep.subr.mxu0 0.0
        %688 = vmatpush1.xpose.msra.mxu0 0.0
        %689 = vmatprep.subr.mxu0 0.0
        %690 = vmatpush1.xpose.msra.mxu0 0.0
        %691 = vmatprep.subr.mxu0 0.0
        %692 = vmatpush1.xpose.msra.mxu0 0.0
        %693 = vmatprep.subr.mxu0 0.0
        %694 = vmatpush1.xpose.msra.mxu0 0.0
        %695 = vmatprep.subr.mxu0 0.0
        %696 = vmatpush1.xpose.msra.mxu0 0.0
        %697 = vmatprep.subr.mxu0 0.0
        %698 = vmatpush1.xpose.msra.mxu0 0.0
        %699 = vmatprep.subr.mxu0 0.0
        %700 = vmatpush1.xpose.msra.mxu0 %v667
        %701 = vmatprep.subr.mxu0 0.0
        %702 = vmatpush2.xpose.msra.mxu0 0.0
        %703 = vmatprep.subr.mxu0 0.0
        %704 = vmatpush2.xpose.msra.mxu0 0.0
        %705 = vmatprep.subr.mxu0 0.0
        %706 = vmatpush2.xpose.msra.mxu0 0.0
        %707 = vmatprep.subr.mxu0 0.0
        %708 = vmatpush2.xpose.msra.mxu0 0.0
        %709 = vmatprep.subr.mxu0 0.0
        %710 = vmatpush2.xpose.msra.mxu0 0.0
        %711 = vmatprep.subr.mxu0 0.0
        %712 = vmatpush2.xpose.msra.mxu0 0.0
        %713 = vmatprep.subr.mxu0 0.0
        %714 = vmatpush2.xpose.msra.mxu0 0.0
        %715 = vmatprep.subr.mxu0 0.0
        %716 = vmatpush2.xpose.msra.mxu0 0.0
        %717 = vmatprep.subr.mxu0 0.0
        %718 = vmatpush2.xpose.msra.mxu0 0.0
        %719 = vmatprep.subr.mxu0 0.0
        %720 = vmatpush2.xpose.msra.mxu0 0.0
        %721 = vmatprep.subr.mxu0 0.0
        %722 = vmatpush2.xpose.msra.mxu0 0.0
        %723 = vmatprep.subr.mxu0 0.0
        %724 = vmatpush2.xpose.msra.mxu0 0.0
        %725 = vmatprep.subr.mxu0 0.0
        %726 = vmatpush2.xpose.msra.mxu0 0.0
        %727 = vmatprep.subr.mxu0 0.0
        %728 = vmatpush2.xpose.msra.mxu0 0.0
        %729 = vmatprep.subr.mxu0 0.0
        %730 = vmatpush2.xpose.msra.mxu0 0.0
        %731 = vmatprep.subr.mxu0 0.0
        %732 = vmatpush2.xpose.msra.mxu0 0.0
        %733 = vmatprep.mubr.f32.mxu0 0.0
        %734 = vmatmul.mubr.f32.gmra.mxu0 %v655
        %v735 = vpop.f32.mrf.mxu0
        %v736 = vadd.f32 0.0, %v735
        %v737 = vpop.f32.mrf.mxu0
        %738 = vmatprep.mubr.f32.mxu0 0.0
        %739 = vmatmul.mubr.f32.gmra.mxu0 %v658
        %v740 = vpop.f32.mrf.mxu0
        %v741 = vadd.f32 0.0, %v740
        %v742 = vpop.f32.mrf.mxu0
        %743 = vmatprep.mubr.f32.mxu0 0.0
        %744 = vmatmul.mubr.f32.gmra.mxu0 %v661
        %v745 = vpop.f32.mrf.mxu0
        %v746 = vadd.f32 0.0, %v745
        %v747 = vpop.f32.mrf.mxu0
        %748 = vmatprep.mubr.f32.mxu0 0.0
        %749 = vmatmul.mubr.f32.gmra.mxu0 %v664
        %v750 = vpop.f32.mrf.mxu0
        %v751 = vadd.f32 0.0, %v750
        %v752 = vpop.f32.mrf.mxu0
        %753 = vdwg.mxu0
        %755 = vset.pattern.permute.xlu0 0
        %756 = vperm.xlu0 %755, %v736
        %v757 = vpop.permute.xlu0 %756
        %760 = vset.pattern.permute.xlu0 0
        %761 = vperm.xlu0 %760, %v741
        %v762 = vpop.permute.xlu0 %761
        %765 = vset.pattern.permute.xlu0 0
        %766 = vperm.xlu0 %765, %v746
        %v767 = vpop.permute.xlu0 %766
        %770 = vset.pattern.permute.xlu0 0
        %771 = vperm.xlu0 %770, %v751
        %v772 = vpop.permute.xlu0 %771
        %v774 = vlaneseq
        %v775 = vshrl.u32 %v774, 7
        %v776 = vsub.s32 0, %v775
        %v777 = vrot.slane %v650, %v776
        %v778 = vadd.f32 %v757, %v777
        %v779 = vadd.f32 %v762, %v777
        %v780 = vadd.f32 %v767, %v777
        %v781 = vadd.f32 %v772, %v777
        %v782 = vmul.f32 %v778, 0.2
        %v783 = vmul.f32 %v779, 0.2
        %v784 = vmul.f32 %v780, 0.2
        %v785 = vmul.f32 %v781, 0.2
        %v786 = vmax.f32 %v778, %v782
        %v787 = vmax.f32 %v779, %v783
        %v788 = vmax.f32 %v780, %v784
        %v789 = vmax.f32 %v781, %v785
        %v790 = vsel %vm316, %v786, -1e+30
        %v791 = vsel %vm317, %v787, -1e+30
        %v792 = vsel %vm318, %v788, -1e+30
        %v793 = vsel %vm319, %v789, -1e+30
        %v794 = vsel %vm328, %v790, -inf
        %795 = vmax.xlane.f32.xlu0 %v794
        %v796 = vpop.xlane.xlu0 %795
        %v797 = vsel %vm328, %v791, -inf
        %798 = vmax.xlane.f32.xlu0 %v797
        %v799 = vpop.xlane.xlu0 %798
        %v800 = vsel %vm328, %v792, -inf
        %801 = vmax.xlane.f32.xlu0 %v800
        %v802 = vpop.xlane.xlu0 %801
        %v803 = vsel %vm328, %v793, -inf
        %804 = vmax.xlane.f32.xlu0 %v803
        %v805 = vpop.xlane.xlu0 %804
        %v806 = vsub.f32 %v790, %v796
        %v807 = vsub.f32 %v791, %v799
        %v808 = vsub.f32 %v792, %v802
        %v809 = vsub.f32 %v793, %v805
        %v810 = vmul.f32 %v806, 1.442695
        %v811 = vpow.pop %v810
        %v812 = vmul.f32 %v807, 1.442695
        %v813 = vpow.pop %v812
        %v814 = vmul.f32 %v808, 1.442695
        %v815 = vpow.pop %v814
        %v816 = vmul.f32 %v809, 1.442695
        %v817 = vpow.pop %v816
        %v818 = vsel %vm328, %v811, 0.0
        %819 = vadd.xlane.f32.xlu0 %v818
        %v820 = vpop.xlane.xlu0 %819
        %v821 = vsel %vm328, %v813, 0.0
        %822 = vadd.xlane.f32.xlu0 %v821
        %v823 = vpop.xlane.xlu0 %822
        %v824 = vsel %vm328, %v815, 0.0
        %825 = vadd.xlane.f32.xlu0 %v824
        %v826 = vpop.xlane.xlu0 %825
        %v827 = vsel %vm328, %v817, 0.0
        %828 = vadd.xlane.f32.xlu0 %v827
        %v829 = vpop.xlane.xlu0 %828
        %v830 = vrcp.pop %v820
        %v831 = vrcp.pop %v823
        %v832 = vrcp.pop %v826
        %v833 = vrcp.pop %v829
        %v835 = vsel %vm328, %v811, 0
        %v838 = vsel %vm328, %v813, 0
        %v841 = vsel %vm328, %v815, 0
        %v844 = vsel %vm328, %v817, 0
        %846 = vmatprep.subr.mxu0 0.0
        %847 = vmatpush1.msra.mxu0 0.0
        %848 = vmatprep.subr.mxu0 0.0
        %849 = vmatpush1.msra.mxu0 0.0
        %850 = vmatprep.subr.mxu0 0.0
        %851 = vmatpush1.msra.mxu0 0.0
        %852 = vmatprep.subr.mxu0 0.0
        %853 = vmatpush1.msra.mxu0 0.0
        %854 = vmatprep.subr.mxu0 0.0
        %855 = vmatpush1.msra.mxu0 0.0
        %856 = vmatprep.subr.mxu0 0.0
        %857 = vmatpush1.msra.mxu0 0.0
        %858 = vmatprep.subr.mxu0 0.0
        %859 = vmatpush1.msra.mxu0 0.0
        %860 = vmatprep.subr.mxu0 0.0
        %861 = vmatpush1.msra.mxu0 0.0
        %862 = vmatprep.subr.mxu0 0.0
        %863 = vmatpush1.msra.mxu0 %v455
        %864 = vmatprep.subr.mxu0 0.0
        %865 = vmatpush1.msra.mxu0 %v450
        %866 = vmatprep.subr.mxu0 0.0
        %867 = vmatpush1.msra.mxu0 %v445
        %868 = vmatprep.subr.mxu0 0.0
        %869 = vmatpush1.msra.mxu0 %v440
        %870 = vmatprep.subr.mxu0 0.0
        %871 = vmatpush1.msra.mxu0 %v435
        %872 = vmatprep.subr.mxu0 0.0
        %873 = vmatpush1.msra.mxu0 %v430
        %874 = vmatprep.subr.mxu0 0.0
        %875 = vmatpush1.msra.mxu0 %v425
        %876 = vmatprep.subr.mxu0 0.0
        %877 = vmatpush1.msra.mxu0 %v420
        %878 = vmatprep.subr.mxu0 0.0
        %879 = vmatpush2.msra.mxu0 0.0
        %880 = vmatprep.subr.mxu0 0.0
        %881 = vmatpush2.msra.mxu0 0.0
        %882 = vmatprep.subr.mxu0 0.0
        %883 = vmatpush2.msra.mxu0 0.0
        %884 = vmatprep.subr.mxu0 0.0
        %885 = vmatpush2.msra.mxu0 0.0
        %886 = vmatprep.subr.mxu0 0.0
        %887 = vmatpush2.msra.mxu0 0.0
        %888 = vmatprep.subr.mxu0 0.0
        %889 = vmatpush2.msra.mxu0 0.0
        %890 = vmatprep.subr.mxu0 0.0
        %891 = vmatpush2.msra.mxu0 0.0
        %892 = vmatprep.subr.mxu0 0.0
        %893 = vmatpush2.msra.mxu0 0.0
        %894 = vmatprep.subr.mxu0 0.0
        %895 = vmatpush2.msra.mxu0 0.0
        %896 = vmatprep.subr.mxu0 0.0
        %897 = vmatpush2.msra.mxu0 0.0
        %898 = vmatprep.subr.mxu0 0.0
        %899 = vmatpush2.msra.mxu0 0.0
        %900 = vmatprep.subr.mxu0 0.0
        %901 = vmatpush2.msra.mxu0 0.0
        %902 = vmatprep.subr.mxu0 0.0
        %903 = vmatpush2.msra.mxu0 0.0
        %904 = vmatprep.subr.mxu0 0.0
        %905 = vmatpush2.msra.mxu0 0.0
        %906 = vmatprep.subr.mxu0 0.0
        %907 = vmatpush2.msra.mxu0 0.0
        %908 = vmatprep.subr.mxu0 0.0
        %909 = vmatpush2.msra.mxu0 0.0
        %910 = vmatprep.mubr.f32.mxu0 0.0
        %911 = vmatmul.mubr.f32.gmra.mxu0 %v835
        %v912 = vpop.f32.mrf.mxu0
        %v913 = vadd.f32 0.0, %v912
        %v914 = vpop.f32.mrf.mxu0
        %915 = vmatprep.mubr.f32.mxu0 0.0
        %916 = vmatmul.mubr.f32.gmra.mxu0 %v838
        %v917 = vpop.f32.mrf.mxu0
        %v918 = vadd.f32 0.0, %v917
        %v919 = vpop.f32.mrf.mxu0
        %920 = vmatprep.mubr.f32.mxu0 0.0
        %921 = vmatmul.mubr.f32.gmra.mxu0 %v841
        %v922 = vpop.f32.mrf.mxu0
        %v923 = vadd.f32 0.0, %v922
        %v924 = vpop.f32.mrf.mxu0
        %925 = vmatprep.mubr.f32.mxu0 0.0
        %926 = vmatmul.mubr.f32.gmra.mxu0 %v844
        %v927 = vpop.f32.mrf.mxu0
        %v928 = vadd.f32 0.0, %v927
        %v929 = vpop.f32.mrf.mxu0
        %930 = vdwg.mxu0
        %v931 = vld [vmem:[%s290] sm:$0xff]
        %v932 = vld [vmem:[%s290 + $0x8] sm:$0xff]
        %v933 = vld [vmem:[%s290 + $0x10] sm:$0xff]
        %v934 = vld [vmem:[%s290 + $0x18] sm:$0xff]
        %v935 = vmul.f32 %v913, %v830
        %v936 = vmul.f32 %v918, %v831
        %v937 = vmul.f32 %v923, %v832
        %v938 = vmul.f32 %v928, %v833
        %v939 = vadd.f32 %v931, %v935
        %v940 = vadd.f32 %v932, %v936
        %v941 = vadd.f32 %v933, %v937
        %v942 = vadd.f32 %v934, %v938
        %vm943 = vcmask 130048
        %944 = vst.msk [vmem:[%s290] sm:$0xff] %vm943, %v939
        %945 = vst.msk [vmem:[%s290 + $0x8] sm:$0xff] %vm943, %v940
        %946 = vst.msk [vmem:[%s290 + $0x10] sm:$0xff] %vm943, %v941
        %947 = vst.msk [vmem:[%s290 + $0x18] sm:$0xff] %vm943, %v942
        %948 = vset.pattern.permute.xlu0 1
        %949 = vperm.xlu0 %948, %v736
        %v950 = vpop.permute.xlu0 %949
        %952 = vset.pattern.permute.xlu0 1
        %953 = vperm.xlu0 %952, %v741
        %v954 = vpop.permute.xlu0 %953
        %956 = vset.pattern.permute.xlu0 1
        %957 = vperm.xlu0 %956, %v746
        %v958 = vpop.permute.xlu0 %957
        %960 = vset.pattern.permute.xlu0 1
        %961 = vperm.xlu0 %960, %v751
        %v962 = vpop.permute.xlu0 %961
        %v964 = vlaneseq
        %v965 = vshrl.u32 %v964, 7
        %v966 = vsub.s32 1, %v965
        %v967 = vrot.slane %v650, %v966
        %v968 = vadd.f32 %v950, %v967
        %v969 = vadd.f32 %v954, %v967
        %v970 = vadd.f32 %v958, %v967
        %v971 = vadd.f32 %v962, %v967
        %v972 = vmul.f32 %v968, 0.2
        %v973 = vmul.f32 %v969, 0.2
        %v974 = vmul.f32 %v970, 0.2
        %v975 = vmul.f32 %v971, 0.2
        %v976 = vmax.f32 %v968, %v972
        %v977 = vmax.f32 %v969, %v973
        %v978 = vmax.f32 %v970, %v974
        %v979 = vmax.f32 %v971, %v975
        %v980 = vsel %vm316, %v976, -1e+30
        %v981 = vsel %vm317, %v977, -1e+30
        %v982 = vsel %vm318, %v978, -1e+30
        %v983 = vsel %vm319, %v979, -1e+30
        %v984 = vsel %vm328, %v980, -inf
        %985 = vmax.xlane.f32.xlu0 %v984
        %v986 = vpop.xlane.xlu0 %985
        %v987 = vsel %vm328, %v981, -inf
        %988 = vmax.xlane.f32.xlu0 %v987
        %v989 = vpop.xlane.xlu0 %988
        %v990 = vsel %vm328, %v982, -inf
        %991 = vmax.xlane.f32.xlu0 %v990
        %v992 = vpop.xlane.xlu0 %991
        %v993 = vsel %vm328, %v983, -inf
        %994 = vmax.xlane.f32.xlu0 %v993
        %v995 = vpop.xlane.xlu0 %994
        %v996 = vsub.f32 %v980, %v986
        %v997 = vsub.f32 %v981, %v989
        %v998 = vsub.f32 %v982, %v992
        %v999 = vsub.f32 %v983, %v995
        %v1000 = vmul.f32 %v996, 1.442695
        %v1001 = vpow.pop %v1000
        %v1002 = vmul.f32 %v997, 1.442695
        %v1003 = vpow.pop %v1002
        %v1004 = vmul.f32 %v998, 1.442695
        %v1005 = vpow.pop %v1004
        %v1006 = vmul.f32 %v999, 1.442695
        %v1007 = vpow.pop %v1006
        %v1008 = vsel %vm328, %v1001, 0.0
        %1009 = vadd.xlane.f32.xlu0 %v1008
        %v1010 = vpop.xlane.xlu0 %1009
        %v1011 = vsel %vm328, %v1003, 0.0
        %1012 = vadd.xlane.f32.xlu0 %v1011
        %v1013 = vpop.xlane.xlu0 %1012
        %v1014 = vsel %vm328, %v1005, 0.0
        %1015 = vadd.xlane.f32.xlu0 %v1014
        %v1016 = vpop.xlane.xlu0 %1015
        %v1017 = vsel %vm328, %v1007, 0.0
        %1018 = vadd.xlane.f32.xlu0 %v1017
        %v1019 = vpop.xlane.xlu0 %1018
        %v1020 = vrcp.pop %v1010
        %v1021 = vrcp.pop %v1013
        %v1022 = vrcp.pop %v1016
        %v1023 = vrcp.pop %v1019
        %1024 = vrot.lane.b32.xlu0 %v420, 112
        %v1025 = vpop.permute.xlu0 %1024
        %1026 = vrot.lane.b32.xlu0 %v425, 112
        %v1027 = vpop.permute.xlu0 %1026
        %1028 = vrot.lane.b32.xlu0 %v430, 112
        %v1029 = vpop.permute.xlu0 %1028
        %1030 = vrot.lane.b32.xlu0 %v435, 112
        %v1031 = vpop.permute.xlu0 %1030
        %1032 = vrot.lane.b32.xlu0 %v440, 112
        %v1033 = vpop.permute.xlu0 %1032
        %1034 = vrot.lane.b32.xlu0 %v445, 112
        %v1035 = vpop.permute.xlu0 %1034
        %1036 = vrot.lane.b32.xlu0 %v450, 112
        %v1037 = vpop.permute.xlu0 %1036
        %1038 = vrot.lane.b32.xlu0 %v455, 112
        %v1039 = vpop.permute.xlu0 %1038
        %v1049 = vsel %vm328, %v1001, 0
        %v1052 = vsel %vm328, %v1003, 0
        %v1055 = vsel %vm328, %v1005, 0
        %v1058 = vsel %vm328, %v1007, 0
        %1060 = vmatprep.subr.mxu0 0.0
        %1061 = vmatpush1.msra.mxu0 0.0
        %1062 = vmatprep.subr.mxu0 0.0
        %1063 = vmatpush1.msra.mxu0 0.0
        %1064 = vmatprep.subr.mxu0 0.0
        %1065 = vmatpush1.msra.mxu0 0.0
        %1066 = vmatprep.subr.mxu0 0.0
        %1067 = vmatpush1.msra.mxu0 0.0
        %1068 = vmatprep.subr.mxu0 0.0
        %1069 = vmatpush1.msra.mxu0 0.0
        %1070 = vmatprep.subr.mxu0 0.0
        %1071 = vmatpush1.msra.mxu0 0.0
        %1072 = vmatprep.subr.mxu0 0.0
        %1073 = vmatpush1.msra.mxu0 0.0
        %1074 = vmatprep.subr.mxu0 0.0
        %1075 = vmatpush1.msra.mxu0 0.0
        %1076 = vmatprep.subr.mxu0 0.0
        %1077 = vmatpush1.msra.mxu0 %v1039
        %1078 = vmatprep.subr.mxu0 0.0
        %1079 = vmatpush1.msra.mxu0 %v1037
        %1080 = vmatprep.subr.mxu0 0.0
        %1081 = vmatpush1.msra.mxu0 %v1035
        %1082 = vmatprep.subr.mxu0 0.0
        %1083 = vmatpush1.msra.mxu0 %v1033
        %1084 = vmatprep.subr.mxu0 0.0
        %1085 = vmatpush1.msra.mxu0 %v1031
        %1086 = vmatprep.subr.mxu0 0.0
        %1087 = vmatpush1.msra.mxu0 %v1029
        %1088 = vmatprep.subr.mxu0 0.0
        %1089 = vmatpush1.msra.mxu0 %v1027
        %1090 = vmatprep.subr.mxu0 0.0
        %1091 = vmatpush1.msra.mxu0 %v1025
        %1092 = vmatprep.subr.mxu0 0.0
        %1093 = vmatpush2.msra.mxu0 0.0
        %1094 = vmatprep.subr.mxu0 0.0
        %1095 = vmatpush2.msra.mxu0 0.0
        %1096 = vmatprep.subr.mxu0 0.0
        %1097 = vmatpush2.msra.mxu0 0.0
        %1098 = vmatprep.subr.mxu0 0.0
        %1099 = vmatpush2.msra.mxu0 0.0
        %1100 = vmatprep.subr.mxu0 0.0
        %1101 = vmatpush2.msra.mxu0 0.0
        %1102 = vmatprep.subr.mxu0 0.0
        %1103 = vmatpush2.msra.mxu0 0.0
        %1104 = vmatprep.subr.mxu0 0.0
        %1105 = vmatpush2.msra.mxu0 0.0
        %1106 = vmatprep.subr.mxu0 0.0
        %1107 = vmatpush2.msra.mxu0 0.0
        %1108 = vmatprep.subr.mxu0 0.0
        %1109 = vmatpush2.msra.mxu0 0.0
        %1110 = vmatprep.subr.mxu0 0.0
        %1111 = vmatpush2.msra.mxu0 0.0
        %1112 = vmatprep.subr.mxu0 0.0
        %1113 = vmatpush2.msra.mxu0 0.0
        %1114 = vmatprep.subr.mxu0 0.0
        %1115 = vmatpush2.msra.mxu0 0.0
        %1116 = vmatprep.subr.mxu0 0.0
        %1117 = vmatpush2.msra.mxu0 0.0
        %1118 = vmatprep.subr.mxu0 0.0
        %1119 = vmatpush2.msra.mxu0 0.0
        %1120 = vmatprep.subr.mxu0 0.0
        %1121 = vmatpush2.msra.mxu0 0.0
        %1122 = vmatprep.subr.mxu0 0.0
        %1123 = vmatpush2.msra.mxu0 0.0
        %1124 = vmatprep.mubr.f32.mxu0 0.0
        %1125 = vmatmul.mubr.f32.gmra.mxu0 %v1049
        %v1126 = vpop.f32.mrf.mxu0
        %v1127 = vadd.f32 0.0, %v1126
        %v1128 = vpop.f32.mrf.mxu0
        %1129 = vmatprep.mubr.f32.mxu0 0.0
        %1130 = vmatmul.mubr.f32.gmra.mxu0 %v1052
        %v1131 = vpop.f32.mrf.mxu0
        %v1132 = vadd.f32 0.0, %v1131
        %v1133 = vpop.f32.mrf.mxu0
        %1134 = vmatprep.mubr.f32.mxu0 0.0
        %1135 = vmatmul.mubr.f32.gmra.mxu0 %v1055
        %v1136 = vpop.f32.mrf.mxu0
        %v1137 = vadd.f32 0.0, %v1136
        %v1138 = vpop.f32.mrf.mxu0
        %1139 = vmatprep.mubr.f32.mxu0 0.0
        %1140 = vmatmul.mubr.f32.gmra.mxu0 %v1058
        %v1141 = vpop.f32.mrf.mxu0
        %v1142 = vadd.f32 0.0, %v1141
        %v1143 = vpop.f32.mrf.mxu0
        %1144 = vdwg.mxu0
        %v1145 = vld [vmem:[%s290] sm:$0xff]
        %v1146 = vld [vmem:[%s290 + $0x8] sm:$0xff]
        %v1147 = vld [vmem:[%s290 + $0x10] sm:$0xff]
        %v1148 = vld [vmem:[%s290 + $0x18] sm:$0xff]
        %v1149 = vmul.f32 %v1127, %v1020
        %v1150 = vmul.f32 %v1132, %v1021
        %v1151 = vmul.f32 %v1137, %v1022
        %v1152 = vmul.f32 %v1142, %v1023
        %1157 = vrot.lane.b32.xlu0 %v1149, 16
        %v1158 = vpop.permute.xlu0 %1157
        %1159 = vrot.lane.b32.xlu0 %v1150, 16
        %v1160 = vpop.permute.xlu0 %1159
        %1161 = vrot.lane.b32.xlu0 %v1151, 16
        %v1162 = vpop.permute.xlu0 %1161
        %1163 = vrot.lane.b32.xlu0 %v1152, 16
        %v1164 = vpop.permute.xlu0 %1163
        %v1169 = vadd.f32 %v1145, %v1158
        %v1170 = vadd.f32 %v1146, %v1160
        %v1171 = vadd.f32 %v1147, %v1162
        %v1172 = vadd.f32 %v1148, %v1164
        %vm1173 = vcmask 261248
        %1174 = vst.msk [vmem:[%s290] sm:$0xff] %vm1173, %v1169
        %1175 = vst.msk [vmem:[%s290 + $0x8] sm:$0xff] %vm1173, %v1170
        %1176 = vst.msk [vmem:[%s290 + $0x10] sm:$0xff] %vm1173, %v1171
        %1177 = vst.msk [vmem:[%s290 + $0x18] sm:$0xff] %vm1173, %v1172
        %s1178 = scalar_lea.vmem %s259, 8 [#allocation2]
        %v1179 = vld [vmem:[%s1178] sm:$0xff]
        %v1180 = vunpack.c.0.s8 %v1179
        %v1181 = vunpack.c.1.s8 %v1179
        %v1182 = vunpack.c.2.s8 %v1179
        %v1183 = vunpack.c.3.s8 %v1179
        %vm1184 = vcmp.gt.s32.totalorder %v1180, 0
        %vm1185 = vcmp.gt.s32.totalorder %v1181, 0
        %vm1186 = vcmp.gt.s32.totalorder %v1182, 0
        %vm1187 = vcmp.gt.s32.totalorder %v1183, 0
        %s1188 = scalar_lea.vmem %s2, 64
        %v1189 = vld [vmem:[%s1188] sm:$0xff]
        %v1190 = vld [vmem:[%s1188 + $0x8] sm:$0xff]
        %v1191 = vld [vmem:[%s1188 + $0x10] sm:$0xff]
        %v1192 = vld [vmem:[%s1188 + $0x18] sm:$0xff]
        %v1193 = vld [vmem:[%s1188 + $0x20] sm:$0xff]
        %v1194 = vld [vmem:[%s1188 + $0x28] sm:$0xff]
        %v1195 = vld [vmem:[%s1188 + $0x30] sm:$0xff]
        %v1196 = vld [vmem:[%s1188 + $0x38] sm:$0xff]
        %1197 = vmatprep.subr.mxu0 0.0
        %1198 = vmatpush1.msra.mxu0 0.0
        %1199 = vmatprep.subr.mxu0 0.0
        %1200 = vmatpush1.msra.mxu0 0.0
        %1201 = vmatprep.subr.mxu0 0.0
        %1202 = vmatpush1.msra.mxu0 0.0
        %1203 = vmatprep.subr.mxu0 0.0
        %1204 = vmatpush1.msra.mxu0 0.0
        %1205 = vmatprep.subr.mxu0 0.0
        %1206 = vmatpush1.msra.mxu0 0.0
        %1207 = vmatprep.subr.mxu0 0.0
        %1208 = vmatpush1.msra.mxu0 0.0
        %1209 = vmatprep.subr.mxu0 0.0
        %1210 = vmatpush1.msra.mxu0 0.0
        %1211 = vmatprep.subr.mxu0 0.0
        %1212 = vmatpush1.msra.mxu0 0.0
        %1213 = vmatprep.subr.mxu0 0.0
        %1214 = vmatpush1.msra.mxu0 %v1196
        %1215 = vmatprep.subr.mxu0 0.0
        %1216 = vmatpush1.msra.mxu0 %v1195
        %1217 = vmatprep.subr.mxu0 0.0
        %1218 = vmatpush1.msra.mxu0 %v1194
        %1219 = vmatprep.subr.mxu0 0.0
        %1220 = vmatpush1.msra.mxu0 %v1193
        %1221 = vmatprep.subr.mxu0 0.0
        %1222 = vmatpush1.msra.mxu0 %v1192
        %1223 = vmatprep.subr.mxu0 0.0
        %1224 = vmatpush1.msra.mxu0 %v1191
        %1225 = vmatprep.subr.mxu0 0.0
        %1226 = vmatpush1.msra.mxu0 %v1190
        %1227 = vmatprep.subr.mxu0 0.0
        %1228 = vmatpush1.msra.mxu0 %v1189
        %1229 = vmatprep.subr.mxu0 0.0
        %1230 = vmatpush2.msra.mxu0 0.0
        %1231 = vmatprep.subr.mxu0 0.0
        %1232 = vmatpush2.msra.mxu0 0.0
        %1233 = vmatprep.subr.mxu0 0.0
        %1234 = vmatpush2.msra.mxu0 0.0
        %1235 = vmatprep.subr.mxu0 0.0
        %1236 = vmatpush2.msra.mxu0 0.0
        %1237 = vmatprep.subr.mxu0 0.0
        %1238 = vmatpush2.msra.mxu0 0.0
        %1239 = vmatprep.subr.mxu0 0.0
        %1240 = vmatpush2.msra.mxu0 0.0
        %1241 = vmatprep.subr.mxu0 0.0
        %1242 = vmatpush2.msra.mxu0 0.0
        %1243 = vmatprep.subr.mxu0 0.0
        %1244 = vmatpush2.msra.mxu0 0.0
        %1245 = vmatprep.subr.mxu0 0.0
        %1246 = vmatpush2.msra.mxu0 0.0
        %1247 = vmatprep.subr.mxu0 0.0
        %1248 = vmatpush2.msra.mxu0 0.0
        %1249 = vmatprep.subr.mxu0 0.0
        %1250 = vmatpush2.msra.mxu0 0.0
        %1251 = vmatprep.subr.mxu0 0.0
        %1252 = vmatpush2.msra.mxu0 0.0
        %1253 = vmatprep.subr.mxu0 0.0
        %1254 = vmatpush2.msra.mxu0 0.0
        %1255 = vmatprep.subr.mxu0 0.0
        %1256 = vmatpush2.msra.mxu0 0.0
        %1257 = vmatprep.subr.mxu0 0.0
        %1258 = vmatpush2.msra.mxu0 0.0
        %1259 = vmatprep.subr.mxu0 0.0
        %1260 = vmatpush2.msra.mxu0 0.0
        %1261 = vmatprep.mubr.f32.mxu0 0.0
        %1262 = vmatmul.mubr.f32.gmra.mxu0 %v330
        %v1263 = vpop.f32.mrf.mxu0
        %v1264 = vadd.f32 0.0, %v1263
        %v1265 = vpop.f32.mrf.mxu0
        %1266 = vmatprep.mubr.f32.mxu0 0.0
        %1267 = vmatmul.mubr.f32.gmra.mxu0 %v333
        %v1268 = vpop.f32.mrf.mxu0
        %v1269 = vadd.f32 0.0, %v1268
        %v1270 = vpop.f32.mrf.mxu0
        %1271 = vmatprep.mubr.f32.mxu0 0.0
        %1272 = vmatmul.mubr.f32.gmra.mxu0 %v336
        %v1273 = vpop.f32.mrf.mxu0
        %v1274 = vadd.f32 0.0, %v1273
        %v1275 = vpop.f32.mrf.mxu0
        %1276 = vmatprep.mubr.f32.mxu0 0.0
        %1277 = vmatmul.mubr.f32.gmra.mxu0 %v339
        %v1278 = vpop.f32.mrf.mxu0
        %v1279 = vadd.f32 0.0, %v1278
        %v1280 = vpop.f32.mrf.mxu0
        %1281 = vmatprep.mubr.f32.mxu0 0.0
        %1282 = vmatmul.mubr.f32.gmra.mxu0 %v342
        %v1283 = vpop.f32.mrf.mxu0
        %v1284 = vadd.f32 0.0, %v1283
        %v1285 = vpop.f32.mrf.mxu0
        %1286 = vmatprep.mubr.f32.mxu0 0.0
        %1287 = vmatmul.mubr.f32.gmra.mxu0 %v345
        %v1288 = vpop.f32.mrf.mxu0
        %v1289 = vadd.f32 0.0, %v1288
        %v1290 = vpop.f32.mrf.mxu0
        %1291 = vmatprep.mubr.f32.mxu0 0.0
        %1292 = vmatmul.mubr.f32.gmra.mxu0 %v348
        %v1293 = vpop.f32.mrf.mxu0
        %v1294 = vadd.f32 0.0, %v1293
        %v1295 = vpop.f32.mrf.mxu0
        %1296 = vmatprep.mubr.f32.mxu0 0.0
        %1297 = vmatmul.mubr.f32.gmra.mxu0 %v351
        %v1298 = vpop.f32.mrf.mxu0
        %v1299 = vadd.f32 0.0, %v1298
        %v1300 = vpop.f32.mrf.mxu0
        %1301 = vdwg.mxu0
        %1302 = vmatprep.subr.mxu0 0.0
        %1303 = vmatpush1.msra.mxu0 0.0
        %1304 = vmatprep.subr.mxu0 0.0
        %1305 = vmatpush1.msra.mxu0 0.0
        %1306 = vmatprep.subr.mxu0 0.0
        %1307 = vmatpush1.msra.mxu0 0.0
        %1308 = vmatprep.subr.mxu0 0.0
        %1309 = vmatpush1.msra.mxu0 0.0
        %1310 = vmatprep.subr.mxu0 0.0
        %1311 = vmatpush1.msra.mxu0 0.0
        %1312 = vmatprep.subr.mxu0 0.0
        %1313 = vmatpush1.msra.mxu0 0.0
        %1314 = vmatprep.subr.mxu0 0.0
        %1315 = vmatpush1.msra.mxu0 0.0
        %1316 = vmatprep.subr.mxu0 0.0
        %1317 = vmatpush1.msra.mxu0 0.0
        %1318 = vmatprep.subr.mxu0 0.0
        %1319 = vmatpush1.msra.mxu0 %v1196
        %1320 = vmatprep.subr.mxu0 0.0
        %1321 = vmatpush1.msra.mxu0 %v1195
        %1322 = vmatprep.subr.mxu0 0.0
        %1323 = vmatpush1.msra.mxu0 %v1194
        %1324 = vmatprep.subr.mxu0 0.0
        %1325 = vmatpush1.msra.mxu0 %v1193
        %1326 = vmatprep.subr.mxu0 0.0
        %1327 = vmatpush1.msra.mxu0 %v1192
        %1328 = vmatprep.subr.mxu0 0.0
        %1329 = vmatpush1.msra.mxu0 %v1191
        %1330 = vmatprep.subr.mxu0 0.0
        %1331 = vmatpush1.msra.mxu0 %v1190
        %1332 = vmatprep.subr.mxu0 0.0
        %1333 = vmatpush1.msra.mxu0 %v1189
        %1334 = vmatprep.subr.mxu0 0.0
        %1335 = vmatpush2.msra.mxu0 0.0
        %1336 = vmatprep.subr.mxu0 0.0
        %1337 = vmatpush2.msra.mxu0 0.0
        %1338 = vmatprep.subr.mxu0 0.0
        %1339 = vmatpush2.msra.mxu0 0.0
        %1340 = vmatprep.subr.mxu0 0.0
        %1341 = vmatpush2.msra.mxu0 0.0
        %1342 = vmatprep.subr.mxu0 0.0
        %1343 = vmatpush2.msra.mxu0 0.0
        %1344 = vmatprep.subr.mxu0 0.0
        %1345 = vmatpush2.msra.mxu0 0.0
        %1346 = vmatprep.subr.mxu0 0.0
        %1347 = vmatpush2.msra.mxu0 0.0
        %1348 = vmatprep.subr.mxu0 0.0
        %1349 = vmatpush2.msra.mxu0 0.0
        %1350 = vmatprep.subr.mxu0 0.0
        %1351 = vmatpush2.msra.mxu0 0.0
        %1352 = vmatprep.subr.mxu0 0.0
        %1353 = vmatpush2.msra.mxu0 0.0
        %1354 = vmatprep.subr.mxu0 0.0
        %1355 = vmatpush2.msra.mxu0 0.0
        %1356 = vmatprep.subr.mxu0 0.0
        %1357 = vmatpush2.msra.mxu0 0.0
        %1358 = vmatprep.subr.mxu0 0.0
        %1359 = vmatpush2.msra.mxu0 0.0
        %1360 = vmatprep.subr.mxu0 0.0
        %1361 = vmatpush2.msra.mxu0 0.0
        %1362 = vmatprep.subr.mxu0 0.0
        %1363 = vmatpush2.msra.mxu0 0.0
        %1364 = vmatprep.subr.mxu0 0.0
        %1365 = vmatpush2.msra.mxu0 0.0
        %1366 = vmatprep.mubr.f32.mxu0 0.0
        %1367 = vmatmul.mubr.f32.gmra.mxu0 %v459
        %v1368 = vpop.f32.mrf.mxu0
        %v1369 = vadd.f32 0.0, %v1368
        %v1370 = vpop.f32.mrf.mxu0
        %1371 = vmatprep.mubr.f32.mxu0 0.0
        %1372 = vmatmul.mubr.f32.gmra.mxu0 %v462
        %v1373 = vpop.f32.mrf.mxu0
        %v1374 = vadd.f32 0.0, %v1373
        %v1375 = vpop.f32.mrf.mxu0
        %1376 = vmatprep.mubr.f32.mxu0 0.0
        %1377 = vmatmul.mubr.f32.gmra.mxu0 %v465
        %v1378 = vpop.f32.mrf.mxu0
        %v1379 = vadd.f32 0.0, %v1378
        %v1380 = vpop.f32.mrf.mxu0
        %1381 = vmatprep.mubr.f32.mxu0 0.0
        %1382 = vmatmul.mubr.f32.gmra.mxu0 %v468
        %v1383 = vpop.f32.mrf.mxu0
        %v1384 = vadd.f32 0.0, %v1383
        %v1385 = vpop.f32.mrf.mxu0
        %1386 = vdwg.mxu0
        %s1387 = scalar_lea.vmem %s3, 2
        %v1388 = vld [vmem:[%s1387] sm:$0x3]
        %v1390 = vsel %vm306, %v1388, 0
        %v1393 = vsel %vm306, %v1264, 0
        %v1396 = vsel %vm306, %v1269, 0
        %v1399 = vsel %vm306, %v1274, 0
        %v1402 = vsel %vm306, %v1279, 0
        %v1405 = vsel %vm306, %v1284, 0
        %v1408 = vsel %vm306, %v1289, 0
        %v1411 = vsel %vm306, %v1294, 0
        %v1414 = vsel %vm306, %v1299, 0
        %1416 = vmatprep.subr.mxu0 0.0
        %1417 = vmatpush1.xpose.msra.mxu0 0.0
        %1418 = vmatprep.subr.mxu0 0.0
        %1419 = vmatpush1.xpose.msra.mxu0 0.0
        %1420 = vmatprep.subr.mxu0 0.0
        %1421 = vmatpush1.xpose.msra.mxu0 0.0
        %1422 = vmatprep.subr.mxu0 0.0
        %1423 = vmatpush1.xpose.msra.mxu0 0.0
        %1424 = vmatprep.subr.mxu0 0.0
        %1425 = vmatpush1.xpose.msra.mxu0 0.0
        %1426 = vmatprep.subr.mxu0 0.0
        %1427 = vmatpush1.xpose.msra.mxu0 0.0
        %1428 = vmatprep.subr.mxu0 0.0
        %1429 = vmatpush1.xpose.msra.mxu0 0.0
        %1430 = vmatprep.subr.mxu0 0.0
        %1431 = vmatpush1.xpose.msra.mxu0 0.0
        %1432 = vmatprep.subr.mxu0 0.0
        %1433 = vmatpush1.xpose.msra.mxu0 %v1414
        %1434 = vmatprep.subr.mxu0 0.0
        %1435 = vmatpush1.xpose.msra.mxu0 %v1411
        %1436 = vmatprep.subr.mxu0 0.0
        %1437 = vmatpush1.xpose.msra.mxu0 %v1408
        %1438 = vmatprep.subr.mxu0 0.0
        %1439 = vmatpush1.xpose.msra.mxu0 %v1405
        %1440 = vmatprep.subr.mxu0 0.0
        %1441 = vmatpush1.xpose.msra.mxu0 %v1402
        %1442 = vmatprep.subr.mxu0 0.0
        %1443 = vmatpush1.xpose.msra.mxu0 %v1399
        %1444 = vmatprep.subr.mxu0 0.0
        %1445 = vmatpush1.xpose.msra.mxu0 %v1396
        %1446 = vmatprep.subr.mxu0 0.0
        %1447 = vmatpush1.xpose.msra.mxu0 %v1393
        %1448 = vmatprep.subr.mxu0 0.0
        %1449 = vmatpush2.xpose.msra.mxu0 0.0
        %1450 = vmatprep.subr.mxu0 0.0
        %1451 = vmatpush2.xpose.msra.mxu0 0.0
        %1452 = vmatprep.subr.mxu0 0.0
        %1453 = vmatpush2.xpose.msra.mxu0 0.0
        %1454 = vmatprep.subr.mxu0 0.0
        %1455 = vmatpush2.xpose.msra.mxu0 0.0
        %1456 = vmatprep.subr.mxu0 0.0
        %1457 = vmatpush2.xpose.msra.mxu0 0.0
        %1458 = vmatprep.subr.mxu0 0.0
        %1459 = vmatpush2.xpose.msra.mxu0 0.0
        %1460 = vmatprep.subr.mxu0 0.0
        %1461 = vmatpush2.xpose.msra.mxu0 0.0
        %1462 = vmatprep.subr.mxu0 0.0
        %1463 = vmatpush2.xpose.msra.mxu0 0.0
        %1464 = vmatprep.subr.mxu0 0.0
        %1465 = vmatpush2.xpose.msra.mxu0 0.0
        %1466 = vmatprep.subr.mxu0 0.0
        %1467 = vmatpush2.xpose.msra.mxu0 0.0
        %1468 = vmatprep.subr.mxu0 0.0
        %1469 = vmatpush2.xpose.msra.mxu0 0.0
        %1470 = vmatprep.subr.mxu0 0.0
        %1471 = vmatpush2.xpose.msra.mxu0 0.0
        %1472 = vmatprep.subr.mxu0 0.0
        %1473 = vmatpush2.xpose.msra.mxu0 0.0
        %1474 = vmatprep.subr.mxu0 0.0
        %1475 = vmatpush2.xpose.msra.mxu0 0.0
        %1476 = vmatprep.subr.mxu0 0.0
        %1477 = vmatpush2.xpose.msra.mxu0 0.0
        %1478 = vmatprep.subr.mxu0 0.0
        %1479 = vmatpush2.xpose.msra.mxu0 0.0
        %1480 = vmatprep.mubr.f32.mxu0 0.0
        %1481 = vmatmul.mubr.f32.gmra.mxu0 %v1390
        %v1482 = vpop.f32.mrf.mxu0
        %v1483 = vadd.f32 0.0, %v1482
        %v1484 = vpop.f32.mrf.mxu0
        %1485 = vdwg.mxu0
        %s1486 = scalar_lea.vmem %s4, 2
        %v1487 = vld [vmem:[%s1486] sm:$0x3]
        %v1489 = vsel %vm306, %v1369, 0
        %v1492 = vsel %vm306, %v1374, 0
        %v1495 = vsel %vm306, %v1379, 0
        %v1498 = vsel %vm306, %v1384, 0
        %v1501 = vsel %vm306, %v1487, 0
        %1503 = vmatprep.subr.mxu0 0.0
        %1504 = vmatpush1.xpose.msra.mxu0 0.0
        %1505 = vmatprep.subr.mxu0 0.0
        %1506 = vmatpush1.xpose.msra.mxu0 0.0
        %1507 = vmatprep.subr.mxu0 0.0
        %1508 = vmatpush1.xpose.msra.mxu0 0.0
        %1509 = vmatprep.subr.mxu0 0.0
        %1510 = vmatpush1.xpose.msra.mxu0 0.0
        %1511 = vmatprep.subr.mxu0 0.0
        %1512 = vmatpush1.xpose.msra.mxu0 0.0
        %1513 = vmatprep.subr.mxu0 0.0
        %1514 = vmatpush1.xpose.msra.mxu0 0.0
        %1515 = vmatprep.subr.mxu0 0.0
        %1516 = vmatpush1.xpose.msra.mxu0 0.0
        %1517 = vmatprep.subr.mxu0 0.0
        %1518 = vmatpush1.xpose.msra.mxu0 0.0
        %1519 = vmatprep.subr.mxu0 0.0
        %1520 = vmatpush1.xpose.msra.mxu0 0.0
        %1521 = vmatprep.subr.mxu0 0.0
        %1522 = vmatpush1.xpose.msra.mxu0 0.0
        %1523 = vmatprep.subr.mxu0 0.0
        %1524 = vmatpush1.xpose.msra.mxu0 0.0
        %1525 = vmatprep.subr.mxu0 0.0
        %1526 = vmatpush1.xpose.msra.mxu0 0.0
        %1527 = vmatprep.subr.mxu0 0.0
        %1528 = vmatpush1.xpose.msra.mxu0 0.0
        %1529 = vmatprep.subr.mxu0 0.0
        %1530 = vmatpush1.xpose.msra.mxu0 0.0
        %1531 = vmatprep.subr.mxu0 0.0
        %1532 = vmatpush1.xpose.msra.mxu0 0.0
        %1533 = vmatprep.subr.mxu0 0.0
        %1534 = vmatpush1.xpose.msra.mxu0 %v1501
        %1535 = vmatprep.subr.mxu0 0.0
        %1536 = vmatpush2.xpose.msra.mxu0 0.0
        %1537 = vmatprep.subr.mxu0 0.0
        %1538 = vmatpush2.xpose.msra.mxu0 0.0
        %1539 = vmatprep.subr.mxu0 0.0
        %1540 = vmatpush2.xpose.msra.mxu0 0.0
        %1541 = vmatprep.subr.mxu0 0.0
        %1542 = vmatpush2.xpose.msra.mxu0 0.0
        %1543 = vmatprep.subr.mxu0 0.0
        %1544 = vmatpush2.xpose.msra.mxu0 0.0
        %1545 = vmatprep.subr.mxu0 0.0
        %1546 = vmatpush2.xpose.msra.mxu0 0.0
        %1547 = vmatprep.subr.mxu0 0.0
        %1548 = vmatpush2.xpose.msra.mxu0 0.0
        %1549 = vmatprep.subr.mxu0 0.0
        %1550 = vmatpush2.xpose.msra.mxu0 0.0
        %1551 = vmatprep.subr.mxu0 0.0
        %1552 = vmatpush2.xpose.msra.mxu0 0.0
        %1553 = vmatprep.subr.mxu0 0.0
        %1554 = vmatpush2.xpose.msra.mxu0 0.0
        %1555 = vmatprep.subr.mxu0 0.0
        %1556 = vmatpush2.xpose.msra.mxu0 0.0
        %1557 = vmatprep.subr.mxu0 0.0
        %1558 = vmatpush2.xpose.msra.mxu0 0.0
        %1559 = vmatprep.subr.mxu0 0.0
        %1560 = vmatpush2.xpose.msra.mxu0 0.0
        %1561 = vmatprep.subr.mxu0 0.0
        %1562 = vmatpush2.xpose.msra.mxu0 0.0
        %1563 = vmatprep.subr.mxu0 0.0
        %1564 = vmatpush2.xpose.msra.mxu0 0.0
        %1565 = vmatprep.subr.mxu0 0.0
        %1566 = vmatpush2.xpose.msra.mxu0 0.0
        %1567 = vmatprep.mubr.f32.mxu0 0.0
        %1568 = vmatmul.mubr.f32.gmra.mxu0 %v1489
        %v1569 = vpop.f32.mrf.mxu0
        %v1570 = vadd.f32 0.0, %v1569
        %v1571 = vpop.f32.mrf.mxu0
        %1572 = vmatprep.mubr.f32.mxu0 0.0
        %1573 = vmatmul.mubr.f32.gmra.mxu0 %v1492
        %v1574 = vpop.f32.mrf.mxu0
        %v1575 = vadd.f32 0.0, %v1574
        %v1576 = vpop.f32.mrf.mxu0
        %1577 = vmatprep.mubr.f32.mxu0 0.0
        %1578 = vmatmul.mubr.f32.gmra.mxu0 %v1495
        %v1579 = vpop.f32.mrf.mxu0
        %v1580 = vadd.f32 0.0, %v1579
        %v1581 = vpop.f32.mrf.mxu0
        %1582 = vmatprep.mubr.f32.mxu0 0.0
        %1583 = vmatmul.mubr.f32.gmra.mxu0 %v1498
        %v1584 = vpop.f32.mrf.mxu0
        %v1585 = vadd.f32 0.0, %v1584
        %v1586 = vpop.f32.mrf.mxu0
        %1587 = vdwg.mxu0
        %1589 = vset.pattern.permute.xlu0 0
        %1590 = vperm.xlu0 %1589, %v1570
        %v1591 = vpop.permute.xlu0 %1590
        %1594 = vset.pattern.permute.xlu0 0
        %1595 = vperm.xlu0 %1594, %v1575
        %v1596 = vpop.permute.xlu0 %1595
        %1599 = vset.pattern.permute.xlu0 0
        %1600 = vperm.xlu0 %1599, %v1580
        %v1601 = vpop.permute.xlu0 %1600
        %1604 = vset.pattern.permute.xlu0 0
        %1605 = vperm.xlu0 %1604, %v1585
        %v1606 = vpop.permute.xlu0 %1605
        %v1608 = vlaneseq
        %v1609 = vshrl.u32 %v1608, 7
        %v1610 = vsub.s32 0, %v1609
        %v1611 = vrot.slane %v1483, %v1610
        %v1612 = vadd.f32 %v1591, %v1611
        %v1613 = vadd.f32 %v1596, %v1611
        %v1614 = vadd.f32 %v1601, %v1611
        %v1615 = vadd.f32 %v1606, %v1611
        %v1616 = vmul.f32 %v1612, 0.2
        %v1617 = vmul.f32 %v1613, 0.2
        %v1618 = vmul.f32 %v1614, 0.2
        %v1619 = vmul.f32 %v1615, 0.2
        %v1620 = vmax.f32 %v1612, %v1616
        %v1621 = vmax.f32 %v1613, %v1617
        %v1622 = vmax.f32 %v1614, %v1618
        %v1623 = vmax.f32 %v1615, %v1619
        %v1624 = vsel %vm1184, %v1620, -1e+30
        %v1625 = vsel %vm1185, %v1621, -1e+30
        %v1626 = vsel %vm1186, %v1622, -1e+30
        %v1627 = vsel %vm1187, %v1623, -1e+30
        %v1628 = vsel %vm328, %v1624, -inf
        %1629 = vmax.xlane.f32.xlu0 %v1628
        %v1630 = vpop.xlane.xlu0 %1629
        %v1631 = vsel %vm328, %v1625, -inf
        %1632 = vmax.xlane.f32.xlu0 %v1631
        %v1633 = vpop.xlane.xlu0 %1632
        %v1634 = vsel %vm328, %v1626, -inf
        %1635 = vmax.xlane.f32.xlu0 %v1634
        %v1636 = vpop.xlane.xlu0 %1635
        %v1637 = vsel %vm328, %v1627, -inf
        %1638 = vmax.xlane.f32.xlu0 %v1637
        %v1639 = vpop.xlane.xlu0 %1638
        %v1640 = vsub.f32 %v1624, %v1630
        %v1641 = vsub.f32 %v1625, %v1633
        %v1642 = vsub.f32 %v1626, %v1636
        %v1643 = vsub.f32 %v1627, %v1639
        %v1644 = vmul.f32 %v1640, 1.442695
        %v1645 = vpow.pop %v1644
        %v1646 = vmul.f32 %v1641, 1.442695
        %v1647 = vpow.pop %v1646
        %v1648 = vmul.f32 %v1642, 1.442695
        %v1649 = vpow.pop %v1648
        %v1650 = vmul.f32 %v1643, 1.442695
        %v1651 = vpow.pop %v1650
        %v1652 = vsel %vm328, %v1645, 0.0
        %1653 = vadd.xlane.f32.xlu0 %v1652
        %v1654 = vpop.xlane.xlu0 %1653
        %v1655 = vsel %vm328, %v1647, 0.0
        %1656 = vadd.xlane.f32.xlu0 %v1655
        %v1657 = vpop.xlane.xlu0 %1656
        %v1658 = vsel %vm328, %v1649, 0.0
        %1659 = vadd.xlane.f32.xlu0 %v1658
        %v1660 = vpop.xlane.xlu0 %1659
        %v1661 = vsel %vm328, %v1651, 0.0
        %1662 = vadd.xlane.f32.xlu0 %v1661
        %v1663 = vpop.xlane.xlu0 %1662
        %v1664 = vrcp.pop %v1654
        %v1665 = vrcp.pop %v1657
        %v1666 = vrcp.pop %v1660
        %v1667 = vrcp.pop %v1663
        %v1669 = vsel %vm328, %v1645, 0
        %v1672 = vsel %vm328, %v1647, 0
        %v1675 = vsel %vm328, %v1649, 0
        %v1678 = vsel %vm328, %v1651, 0
        %1680 = vmatprep.subr.mxu0 0.0
        %1681 = vmatpush1.msra.mxu0 0.0
        %1682 = vmatprep.subr.mxu0 0.0
        %1683 = vmatpush1.msra.mxu0 0.0
        %1684 = vmatprep.subr.mxu0 0.0
        %1685 = vmatpush1.msra.mxu0 0.0
        %1686 = vmatprep.subr.mxu0 0.0
        %1687 = vmatpush1.msra.mxu0 0.0
        %1688 = vmatprep.subr.mxu0 0.0
        %1689 = vmatpush1.msra.mxu0 0.0
        %1690 = vmatprep.subr.mxu0 0.0
        %1691 = vmatpush1.msra.mxu0 0.0
        %1692 = vmatprep.subr.mxu0 0.0
        %1693 = vmatpush1.msra.mxu0 0.0
        %1694 = vmatprep.subr.mxu0 0.0
        %1695 = vmatpush1.msra.mxu0 0.0
        %1696 = vmatprep.subr.mxu0 0.0
        %1697 = vmatpush1.msra.mxu0 %v1299
        %1698 = vmatprep.subr.mxu0 0.0
        %1699 = vmatpush1.msra.mxu0 %v1294
        %1700 = vmatprep.subr.mxu0 0.0
        %1701 = vmatpush1.msra.mxu0 %v1289
        %1702 = vmatprep.subr.mxu0 0.0
        %1703 = vmatpush1.msra.mxu0 %v1284
        %1704 = vmatprep.subr.mxu0 0.0
        %1705 = vmatpush1.msra.mxu0 %v1279
        %1706 = vmatprep.subr.mxu0 0.0
        %1707 = vmatpush1.msra.mxu0 %v1274
        %1708 = vmatprep.subr.mxu0 0.0
        %1709 = vmatpush1.msra.mxu0 %v1269
        %1710 = vmatprep.subr.mxu0 0.0
        %1711 = vmatpush1.msra.mxu0 %v1264
        %1712 = vmatprep.subr.mxu0 0.0
        %1713 = vmatpush2.msra.mxu0 0.0
        %1714 = vmatprep.subr.mxu0 0.0
        %1715 = vmatpush2.msra.mxu0 0.0
        %1716 = vmatprep.subr.mxu0 0.0
        %1717 = vmatpush2.msra.mxu0 0.0
        %1718 = vmatprep.subr.mxu0 0.0
        %1719 = vmatpush2.msra.mxu0 0.0
        %1720 = vmatprep.subr.mxu0 0.0
        %1721 = vmatpush2.msra.mxu0 0.0
        %1722 = vmatprep.subr.mxu0 0.0
        %1723 = vmatpush2.msra.mxu0 0.0
        %1724 = vmatprep.subr.mxu0 0.0
        %1725 = vmatpush2.msra.mxu0 0.0
        %1726 = vmatprep.subr.mxu0 0.0
        %1727 = vmatpush2.msra.mxu0 0.0
        %1728 = vmatprep.subr.mxu0 0.0
        %1729 = vmatpush2.msra.mxu0 0.0
        %1730 = vmatprep.subr.mxu0 0.0
        %1731 = vmatpush2.msra.mxu0 0.0
        %1732 = vmatprep.subr.mxu0 0.0
        %1733 = vmatpush2.msra.mxu0 0.0
        %1734 = vmatprep.subr.mxu0 0.0
        %1735 = vmatpush2.msra.mxu0 0.0
        %1736 = vmatprep.subr.mxu0 0.0
        %1737 = vmatpush2.msra.mxu0 0.0
        %1738 = vmatprep.subr.mxu0 0.0
        %1739 = vmatpush2.msra.mxu0 0.0
        %1740 = vmatprep.subr.mxu0 0.0
        %1741 = vmatpush2.msra.mxu0 0.0
        %1742 = vmatprep.subr.mxu0 0.0
        %1743 = vmatpush2.msra.mxu0 0.0
        %1744 = vmatprep.mubr.f32.mxu0 0.0
        %1745 = vmatmul.mubr.f32.gmra.mxu0 %v1669
        %v1746 = vpop.f32.mrf.mxu0
        %v1747 = vadd.f32 0.0, %v1746
        %v1748 = vpop.f32.mrf.mxu0
        %1749 = vmatprep.mubr.f32.mxu0 0.0
        %1750 = vmatmul.mubr.f32.gmra.mxu0 %v1672
        %v1751 = vpop.f32.mrf.mxu0
        %v1752 = vadd.f32 0.0, %v1751
        %v1753 = vpop.f32.mrf.mxu0
        %1754 = vmatprep.mubr.f32.mxu0 0.0
        %1755 = vmatmul.mubr.f32.gmra.mxu0 %v1675
        %v1756 = vpop.f32.mrf.mxu0
        %v1757 = vadd.f32 0.0, %v1756
        %v1758 = vpop.f32.mrf.mxu0
        %1759 = vmatprep.mubr.f32.mxu0 0.0
        %1760 = vmatmul.mubr.f32.gmra.mxu0 %v1678
        %v1761 = vpop.f32.mrf.mxu0
        %v1762 = vadd.f32 0.0, %v1761
        %v1763 = vpop.f32.mrf.mxu0
        %1764 = vdwg.mxu0
        %v1765 = vld [vmem:[%s290] sm:$0xff]
        %v1766 = vld [vmem:[%s290 + $0x8] sm:$0xff]
        %v1767 = vld [vmem:[%s290 + $0x10] sm:$0xff]
        %v1768 = vld [vmem:[%s290 + $0x18] sm:$0xff]
        %v1769 = vmul.f32 %v1747, %v1664
        %v1770 = vmul.f32 %v1752, %v1665
        %v1771 = vmul.f32 %v1757, %v1666
        %v1772 = vmul.f32 %v1762, %v1667
        %v1773 = vadd.f32 %v1765, %v1769
        %v1774 = vadd.f32 %v1766, %v1770
        %v1775 = vadd.f32 %v1767, %v1771
        %v1776 = vadd.f32 %v1768, %v1772
        %1777 = vst.msk [vmem:[%s290] sm:$0xff] %vm943, %v1773
        %1778 = vst.msk [vmem:[%s290 + $0x8] sm:$0xff] %vm943, %v1774
        %1779 = vst.msk [vmem:[%s290 + $0x10] sm:$0xff] %vm943, %v1775
        %1780 = vst.msk [vmem:[%s290 + $0x18] sm:$0xff] %vm943, %v1776
        %1781 = vset.pattern.permute.xlu0 1
        %1782 = vperm.xlu0 %1781, %v1570
        %v1783 = vpop.permute.xlu0 %1782
        %1785 = vset.pattern.permute.xlu0 1
        %1786 = vperm.xlu0 %1785, %v1575
        %v1787 = vpop.permute.xlu0 %1786
        %1789 = vset.pattern.permute.xlu0 1
        %1790 = vperm.xlu0 %1789, %v1580
        %v1791 = vpop.permute.xlu0 %1790
        %1793 = vset.pattern.permute.xlu0 1
        %1794 = vperm.xlu0 %1793, %v1585
        %v1795 = vpop.permute.xlu0 %1794
        %v1797 = vlaneseq
        %v1798 = vshrl.u32 %v1797, 7
        %v1799 = vsub.s32 1, %v1798
        %v1800 = vrot.slane %v1483, %v1799
        %v1801 = vadd.f32 %v1783, %v1800
        %v1802 = vadd.f32 %v1787, %v1800
        %v1803 = vadd.f32 %v1791, %v1800
        %v1804 = vadd.f32 %v1795, %v1800
        %v1805 = vmul.f32 %v1801, 0.2
        %v1806 = vmul.f32 %v1802, 0.2
        %v1807 = vmul.f32 %v1803, 0.2
        %v1808 = vmul.f32 %v1804, 0.2
        %v1809 = vmax.f32 %v1801, %v1805
        %v1810 = vmax.f32 %v1802, %v1806
        %v1811 = vmax.f32 %v1803, %v1807
        %v1812 = vmax.f32 %v1804, %v1808
        %v1813 = vsel %vm1184, %v1809, -1e+30
        %v1814 = vsel %vm1185, %v1810, -1e+30
        %v1815 = vsel %vm1186, %v1811, -1e+30
        %v1816 = vsel %vm1187, %v1812, -1e+30
        %v1817 = vsel %vm328, %v1813, -inf
        %1818 = vmax.xlane.f32.xlu0 %v1817
        %v1819 = vpop.xlane.xlu0 %1818
        %v1820 = vsel %vm328, %v1814, -inf
        %1821 = vmax.xlane.f32.xlu0 %v1820
        %v1822 = vpop.xlane.xlu0 %1821
        %v1823 = vsel %vm328, %v1815, -inf
        %1824 = vmax.xlane.f32.xlu0 %v1823
        %v1825 = vpop.xlane.xlu0 %1824
        %v1826 = vsel %vm328, %v1816, -inf
        %1827 = vmax.xlane.f32.xlu0 %v1826
        %v1828 = vpop.xlane.xlu0 %1827
        %v1829 = vsub.f32 %v1813, %v1819
        %v1830 = vsub.f32 %v1814, %v1822
        %v1831 = vsub.f32 %v1815, %v1825
        %v1832 = vsub.f32 %v1816, %v1828
        %v1833 = vmul.f32 %v1829, 1.442695
        %v1834 = vpow.pop %v1833
        %v1835 = vmul.f32 %v1830, 1.442695
        %v1836 = vpow.pop %v1835
        %v1837 = vmul.f32 %v1831, 1.442695
        %v1838 = vpow.pop %v1837
        %v1839 = vmul.f32 %v1832, 1.442695
        %v1840 = vpow.pop %v1839
        %v1841 = vsel %vm328, %v1834, 0.0
        %1842 = vadd.xlane.f32.xlu0 %v1841
        %v1843 = vpop.xlane.xlu0 %1842
        %v1844 = vsel %vm328, %v1836, 0.0
        %1845 = vadd.xlane.f32.xlu0 %v1844
        %v1846 = vpop.xlane.xlu0 %1845
        %v1847 = vsel %vm328, %v1838, 0.0
        %1848 = vadd.xlane.f32.xlu0 %v1847
        %v1849 = vpop.xlane.xlu0 %1848
        %v1850 = vsel %vm328, %v1840, 0.0
        %1851 = vadd.xlane.f32.xlu0 %v1850
        %v1852 = vpop.xlane.xlu0 %1851
        %v1853 = vrcp.pop %v1843
        %v1854 = vrcp.pop %v1846
        %v1855 = vrcp.pop %v1849
        %v1856 = vrcp.pop %v1852
        %1857 = vrot.lane.b32.xlu0 %v1264, 112
        %v1858 = vpop.permute.xlu0 %1857
        %1859 = vrot.lane.b32.xlu0 %v1269, 112
        %v1860 = vpop.permute.xlu0 %1859
        %1861 = vrot.lane.b32.xlu0 %v1274, 112
        %v1862 = vpop.permute.xlu0 %1861
        %1863 = vrot.lane.b32.xlu0 %v1279, 112
        %v1864 = vpop.permute.xlu0 %1863
        %1865 = vrot.lane.b32.xlu0 %v1284, 112
        %v1866 = vpop.permute.xlu0 %1865
        %1867 = vrot.lane.b32.xlu0 %v1289, 112
        %v1868 = vpop.permute.xlu0 %1867
        %1869 = vrot.lane.b32.xlu0 %v1294, 112
        %v1870 = vpop.permute.xlu0 %1869
        %1871 = vrot.lane.b32.xlu0 %v1299, 112
        %v1872 = vpop.permute.xlu0 %1871
        %v1882 = vsel %vm328, %v1834, 0
        %v1885 = vsel %vm328, %v1836, 0
        %v1888 = vsel %vm328, %v1838, 0
        %v1891 = vsel %vm328, %v1840, 0
        %1893 = vmatprep.subr.mxu0 0.0
        %1894 = vmatpush1.msra.mxu0 0.0
        %1895 = vmatprep.subr.mxu0 0.0
        %1896 = vmatpush1.msra.mxu0 0.0
        %1897 = vmatprep.subr.mxu0 0.0
        %1898 = vmatpush1.msra.mxu0 0.0
        %1899 = vmatprep.subr.mxu0 0.0
        %1900 = vmatpush1.msra.mxu0 0.0
        %1901 = vmatprep.subr.mxu0 0.0
        %1902 = vmatpush1.msra.mxu0 0.0
        %1903 = vmatprep.subr.mxu0 0.0
        %1904 = vmatpush1.msra.mxu0 0.0
        %1905 = vmatprep.subr.mxu0 0.0
        %1906 = vmatpush1.msra.mxu0 0.0
        %1907 = vmatprep.subr.mxu0 0.0
        %1908 = vmatpush1.msra.mxu0 0.0
        %1909 = vmatprep.subr.mxu0 0.0
        %1910 = vmatpush1.msra.mxu0 %v1872
        %1911 = vmatprep.subr.mxu0 0.0
        %1912 = vmatpush1.msra.mxu0 %v1870
        %1913 = vmatprep.subr.mxu0 0.0
        %1914 = vmatpush1.msra.mxu0 %v1868
        %1915 = vmatprep.subr.mxu0 0.0
        %1916 = vmatpush1.msra.mxu0 %v1866
        %1917 = vmatprep.subr.mxu0 0.0
        %1918 = vmatpush1.msra.mxu0 %v1864
        %1919 = vmatprep.subr.mxu0 0.0
        %1920 = vmatpush1.msra.mxu0 %v1862
        %1921 = vmatprep.subr.mxu0 0.0
        %1922 = vmatpush1.msra.mxu0 %v1860
        %1923 = vmatprep.subr.mxu0 0.0
        %1924 = vmatpush1.msra.mxu0 %v1858
        %1925 = vmatprep.subr.mxu0 0.0
        %1926 = vmatpush2.msra.mxu0 0.0
        %1927 = vmatprep.subr.mxu0 0.0
        %1928 = vmatpush2.msra.mxu0 0.0
        %1929 = vmatprep.subr.mxu0 0.0
        %1930 = vmatpush2.msra.mxu0 0.0
        %1931 = vmatprep.subr.mxu0 0.0
        %1932 = vmatpush2.msra.mxu0 0.0
        %1933 = vmatprep.subr.mxu0 0.0
        %1934 = vmatpush2.msra.mxu0 0.0
        %1935 = vmatprep.subr.mxu0 0.0
        %1936 = vmatpush2.msra.mxu0 0.0
        %1937 = vmatprep.subr.mxu0 0.0
        %1938 = vmatpush2.msra.mxu0 0.0
        %1939 = vmatprep.subr.mxu0 0.0
        %1940 = vmatpush2.msra.mxu0 0.0
        %1941 = vmatprep.subr.mxu0 0.0
        %1942 = vmatpush2.msra.mxu0 0.0
        %1943 = vmatprep.subr.mxu0 0.0
        %1944 = vmatpush2.msra.mxu0 0.0
        %1945 = vmatprep.subr.mxu0 0.0
        %1946 = vmatpush2.msra.mxu0 0.0
        %1947 = vmatprep.subr.mxu0 0.0
        %1948 = vmatpush2.msra.mxu0 0.0
        %1949 = vmatprep.subr.mxu0 0.0
        %1950 = vmatpush2.msra.mxu0 0.0
        %1951 = vmatprep.subr.mxu0 0.0
        %1952 = vmatpush2.msra.mxu0 0.0
        %1953 = vmatprep.subr.mxu0 0.0
        %1954 = vmatpush2.msra.mxu0 0.0
        %1955 = vmatprep.subr.mxu0 0.0
        %1956 = vmatpush2.msra.mxu0 0.0
        %1957 = vmatprep.mubr.f32.mxu0 0.0
        %1958 = vmatmul.mubr.f32.gmra.mxu0 %v1882
        %v1959 = vpop.f32.mrf.mxu0
        %v1960 = vadd.f32 0.0, %v1959
        %v1961 = vpop.f32.mrf.mxu0
        %1962 = vmatprep.mubr.f32.mxu0 0.0
        %1963 = vmatmul.mubr.f32.gmra.mxu0 %v1885
        %v1964 = vpop.f32.mrf.mxu0
        %v1965 = vadd.f32 0.0, %v1964
        %v1966 = vpop.f32.mrf.mxu0
        %1967 = vmatprep.mubr.f32.mxu0 0.0
        %1968 = vmatmul.mubr.f32.gmra.mxu0 %v1888
        %v1969 = vpop.f32.mrf.mxu0
        %v1970 = vadd.f32 0.0, %v1969
        %v1971 = vpop.f32.mrf.mxu0
        %1972 = vmatprep.mubr.f32.mxu0 0.0
        %1973 = vmatmul.mubr.f32.gmra.mxu0 %v1891
        %v1974 = vpop.f32.mrf.mxu0
        %v1975 = vadd.f32 0.0, %v1974
        %v1976 = vpop.f32.mrf.mxu0
        %1977 = vdwg.mxu0
        %v1978 = vld [vmem:[%s290] sm:$0xff]
        %v1979 = vld [vmem:[%s290 + $0x8] sm:$0xff]
        %v1980 = vld [vmem:[%s290 + $0x10] sm:$0xff]
        %v1981 = vld [vmem:[%s290 + $0x18] sm:$0xff]
        %v1982 = vmul.f32 %v1960, %v1853
        %v1983 = vmul.f32 %v1965, %v1854
        %v1984 = vmul.f32 %v1970, %v1855
        %v1985 = vmul.f32 %v1975, %v1856
        %1990 = vrot.lane.b32.xlu0 %v1982, 16
        %v1991 = vpop.permute.xlu0 %1990
        %1992 = vrot.lane.b32.xlu0 %v1983, 16
        %v1993 = vpop.permute.xlu0 %1992
        %1994 = vrot.lane.b32.xlu0 %v1984, 16
        %v1995 = vpop.permute.xlu0 %1994
        %1996 = vrot.lane.b32.xlu0 %v1985, 16
        %v1997 = vpop.permute.xlu0 %1996
        %v2002 = vadd.f32 %v1978, %v1991
        %v2003 = vadd.f32 %v1979, %v1993
        %v2004 = vadd.f32 %v1980, %v1995
        %v2005 = vadd.f32 %v1981, %v1997
        %2006 = vst.msk [vmem:[%s290] sm:$0xff] %vm1173, %v2002
        %2007 = vst.msk [vmem:[%s290 + $0x8] sm:$0xff] %vm1173, %v2003
        %2008 = vst.msk [vmem:[%s290 + $0x10] sm:$0xff] %vm1173, %v2004
        %2009 = vst.msk [vmem:[%s290 + $0x18] sm:$0xff] %vm1173, %v2005
        %v2010 = vld [vmem:[%s290] sm:$0xff]
        %v2011 = vld [vmem:[%s290 + $0x8] sm:$0xff]
        %v2012 = vld [vmem:[%s290 + $0x10] sm:$0xff]
        %v2013 = vld [vmem:[%s290 + $0x18] sm:$0xff]
        %v2014 = vld [vmem:[%s5] sm:$0x1]
        %v2016 = vlaneseq
        %v2017 = vshrl.u32 %v2016, 7
        %v2018 = vsub.s32 0, %v2017
        %v2019 = vrot.slane %v2014, %v2018
        %v2021 = vadd.f32 %v2010, %v2019
        %v2022 = vadd.f32 %v2011, %v2019
        %v2023 = vadd.f32 %v2012, %v2019
        %v2024 = vadd.f32 %v2013, %v2019
        %2025 = vst.msk [vmem:[%s290] sm:$0xff] %vm306, %v2021
        %2026 = vst.msk [vmem:[%s290 + $0x8] sm:$0xff] %vm306, %v2022
        %2027 = vst.msk [vmem:[%s290 + $0x10] sm:$0xff] %vm306, %v2023
        %2028 = vst.msk [vmem:[%s290 + $0x18] sm:$0xff] %vm306, %v2024
        %s2029 = smul.u32 4, %s17
        %p2030 = scmp.lt.s32.totalorder %s2029, 7
        %s2031 = scalar_select %p2030, %s2029, 7
        %s2032 = smul.addr %s2031, 8
        %s2033 = scalar_lea.vmem %s6, %s2032
        // Predicated region
        $region83: #{hetero_gat_forward.4} parent=77 // pred_check
          %p2034 = pneg %p166
        $region84: #{hetero_gat_forward.4} parent=77 // pred_check_branch
          %2036 = sbr.rel (%p2034) target = $region86
        $region85: #{hetero_gat_forward.4} parent=77 // pred_region
          %s2037 = smul.u32 4, %s17
        $region86: #{hetero_gat_forward.4} parent=77 // pred_fallthru
          _
      $region78: #{hetero_gat_forward.4} parent=5 // pred_fallthru
        _
      %p2038 = scmp.le.s32.totalorder 2, %s12
      // Predicated region
      $region87: #{hetero_gat_forward.4} parent=5 // pred_check
        %p2039 = pneg %p2038
      $region88: #{hetero_gat_forward.4} parent=5 // pred_check_branch
        %2041 = sbr.rel (%p2039) target = $region90
      $region89: #{hetero_gat_forward.4} parent=5 // pred_region
        %s2042 = ssub.s32 %s12, 2
        // Predicated region
        $region91: #{hetero_gat_forward.4} parent=89 // pred_check
          %p2043 = pneg %p172
        $region92: #{hetero_gat_forward.4} parent=89 // pred_check_branch
          %2045 = sbr.rel (%p2043) target = $region94
        $region93: #{hetero_gat_forward.4} parent=89 // pred_region
          %s2046 = smul.u32 4, %s18
          %p2047 = scmp.lt.s32.totalorder %s2046, 7
          %s2048 = scalar_select %p2047, %s2046, 7
          %s2049 = smul.addr %s2048, 8
          %s2050 = scalar_lea.vmem %s6, %s2049
        $region94: #{hetero_gat_forward.4} parent=89 // pred_fallthru
          _
      $region90: #{hetero_gat_forward.4} parent=5 // pred_fallthru
        _
    $region6: #{hetero_gat_forward.4} parent=1 // loop_footer
      %s16 = sadd.s32 1, %s12
    $region7: #{hetero_gat_forward.4} parent=1 // loop_footer_branch
      %11 = sbr.rel target = $region3
    $region8: #{hetero_gat_forward.4} parent=1 // loop_exit
      _

// kernel: hetero_gat_forward.3
$region0: #{hetero_gat_forward.3}
  #allocation0 [shape = 'u32[]', space=smem, size = 0x4, offset = 0x4, fixed_abs, tag = 'smem constant byte address 0x4 - core index']
  #allocation1 [shape = 'u32[144,128]{1,0:T(1,128)}', space=vmem, size = 0x12000, scoped, tag = 'internal scratch']
  %s0 = inlined_call_operand.vmem [shape: f32[64,8], index: 0, kind: input, shape index: {}]
  %s1 = inlined_call_operand.vmem [shape: s8[2,64,64], index: 1, kind: input, shape index: {}]
  %s2 = inlined_call_operand.vmem [shape: f32[2,8,64], index: 2, kind: input, shape index: {}]
  %s3 = inlined_call_operand.vmem [shape: f32[2,2,64], index: 3, kind: input, shape index: {}]
  %s4 = inlined_call_operand.vmem [shape: f32[2,2,64], index: 4, kind: input, shape index: {}]
  %s5 = inlined_call_operand.vmem [shape: f32[1,64], index: 5, kind: input, shape index: {}]
  %s6 = inlined_call_operand.vmem [shape: f32[64,64], index: 6, kind: output, shape index: {}]
  %s7 = sld [smem:[#allocation0]]
  $region95: #{hetero_gat_forward.3} parent=0
    _
  %s9 = ssub.s32 1, %s7
  %s10 = scalar_select 0, %s9, %s7
  $region1: #{hetero_gat_forward.3} parent=0
    #allocation2 [shape = 'u8[16384]{0}', space=vmem, size = 0x4000, scoped, tag = 'input window, operand 1']
    loop: start=0, step=1, limit=4
    $region2: #{hetero_gat_forward.3} parent=1 // loop_pre_header
      _
    $region3: #{hetero_gat_forward.3} parent=1 // loop_header
      %s12 = sphi 0, %s16
      %p13 = scmp.ge.s32.totalorder %s12, 4
      %s20 = sphi 0, %s20
      %s22 = sphi 0, %s20
      %s23 = sphi 0, %s22
      %s37 = sphi 0, %s23
      %s43 = sphi 0, %s45
      %s46 = sphi 0, %s43
      %s47 = sphi 0, %s46
      %s63 = sphi 0, %s47
      %s67 = sphi 0, %s67
      %s69 = sphi 0, %s67
      %s70 = sphi 0, %s69
      %s84 = sphi 0, %s70
      %s88 = sphi 0, %s88
      %s90 = sphi 0, %s88
      %s91 = sphi 0, %s90
      %s105 = sphi 0, %s91
      %s109 = sphi 0, %s109
      %s111 = sphi 0, %s109
      %s112 = sphi 0, %s111
      %s126 = sphi 0, %s112
      %s130 = sphi 0, %s130
      %s132 = sphi 0, %s130
      %s133 = sphi 0, %s132
      %s147 = sphi 0, %s133
      %s153 = sphi 0, %s155
      %s156 = sphi 0, %s153
      %s157 = sphi 0, %s156
      %s173 = sphi 0, %s157
    $region4: #{hetero_gat_forward.3} parent=1 // loop_header_branch
      %15 = sbr.rel (%p13) target = $region8
    $region5: #{hetero_gat_forward.3} parent=1 // loop_body
      %s17 = ssub.s32 %s12, 1
      %s18 = ssub.s32 %s12, 2
      %s19 = sadd.s32 %s12, 1
      %s21 = sadd.s32 %s20, 1
      %p24 = scmp.eq.s32.totalorder %s12, 1
      %p25 = scmp.ne.s32.totalorder %s20, %s22
      %p26 = scmp.eq.s32.totalorder %s12, 0
      %p27 = por %p25, %p26
      %p28 = scmp.ne.s32.totalorder %s20, %s22
      %p29 = scmp.eq.s32.totalorder %s17, 1
      %p30 = por %p28, %p29
      %p31 = scmp.ne.s32.totalorder %s22, %s23
      %p32 = scmp.eq.s32.totalorder %s17, 0
      %p33 = por %p31, %p32
      %p34 = scmp.ne.s32.totalorder %s22, %s23
      %p35 = scmp.eq.s32.totalorder %s18, 1
      %p36 = por %p34, %p35
      %p38 = scmp.ne.s32.totalorder %s23, %s37
      %p39 = scmp.eq.s32.totalorder %s18, 0
      %p40 = por %p38, %p39
      %s41 = ssub.s32 %s12, %s19
      %p42 = scmp.eq.s32.totalorder %s41, 0
      %s44 = sadd.s32 %s43, 1
      %s45 = scalar_select %p42, %s43, %s44
      %p48 = pneg %p42
      %p49 = scmp.eq.s32.totalorder %s12, 1
      %p50 = por %p48, %p49
      %p51 = scmp.ne.s32.totalorder %s43, %s46
      %p52 = scmp.eq.s32.totalorder %s12, 0
      %p53 = por %p51, %p52
      %p54 = scmp.ne.s32.totalorder %s43, %s46
      %p55 = scmp.eq.s32.totalorder %s17, 1
      %p56 = por %p54, %p55
      %p57 = scmp.ne.s32.totalorder %s46, %s47
      %p58 = scmp.eq.s32.totalorder %s17, 0
      %p59 = por %p57, %p58
      %p60 = scmp.ne.s32.totalorder %s46, %s47
      %p61 = scmp.eq.s32.totalorder %s18, 1
      %p62 = por %p60, %p61
      %p64 = scmp.ne.s32.totalorder %s47, %s63
      %p65 = scmp.eq.s32.totalorder %s18, 0
      %p66 = por %p64, %p65
      %s68 = sadd.s32 %s67, 1
      %p71 = scmp.eq.s32.totalorder %s12, 1
      %p72 = scmp.ne.s32.totalorder %s67, %s69
      %p73 = scmp.eq.s32.totalorder %s12, 0
      %p74 = por %p72, %p73
      %p75 = scmp.ne.s32.totalorder %s67, %s69
      %p76 = scmp.eq.s32.totalorder %s17, 1
      %p77 = por %p75, %p76
      %p78 = scmp.ne.s32.totalorder %s69, %s70
      %p79 = scmp.eq.s32.totalorder %s17, 0
      %p80 = por %p78, %p79
      %p81 = scmp.ne.s32.totalorder %s69, %s70
      %p82 = scmp.eq.s32.totalorder %s18, 1
      %p83 = por %p81, %p82
      %p85 = scmp.ne.s32.totalorder %s70, %s84
      %p86 = scmp.eq.s32.totalorder %s18, 0
      %p87 = por %p85, %p86
      %s89 = sadd.s32 %s88, 1
      %p92 = scmp.eq.s32.totalorder %s12, 1
      %p93 = scmp.ne.s32.totalorder %s88, %s90
      %p94 = scmp.eq.s32.totalorder %s12, 0
      %p95 = por %p93, %p94
      %p96 = scmp.ne.s32.totalorder %s88, %s90
      %p97 = scmp.eq.s32.totalorder %s17, 1
      %p98 = por %p96, %p97
      %p99 = scmp.ne.s32.totalorder %s90, %s91
      %p100 = scmp.eq.s32.totalorder %s17, 0
      %p101 = por %p99, %p100
      %p102 = scmp.ne.s32.totalorder %s90, %s91
      %p103 = scmp.eq.s32.totalorder %s18, 1
      %p104 = por %p102, %p103
      %p106 = scmp.ne.s32.totalorder %s91, %s105
      %p107 = scmp.eq.s32.totalorder %s18, 0
      %p108 = por %p106, %p107
      %s110 = sadd.s32 %s109, 1
      %p113 = scmp.eq.s32.totalorder %s12, 1
      %p114 = scmp.ne.s32.totalorder %s109, %s111
      %p115 = scmp.eq.s32.totalorder %s12, 0
      %p116 = por %p114, %p115
      %p117 = scmp.ne.s32.totalorder %s109, %s111
      %p118 = scmp.eq.s32.totalorder %s17, 1
      %p119 = por %p117, %p118
      %p120 = scmp.ne.s32.totalorder %s111, %s112
      %p121 = scmp.eq.s32.totalorder %s17, 0
      %p122 = por %p120, %p121
      %p123 = scmp.ne.s32.totalorder %s111, %s112
      %p124 = scmp.eq.s32.totalorder %s18, 1
      %p125 = por %p123, %p124
      %p127 = scmp.ne.s32.totalorder %s112, %s126
      %p128 = scmp.eq.s32.totalorder %s18, 0
      %p129 = por %p127, %p128
      %s131 = sadd.s32 %s130, 1
      %p134 = scmp.eq.s32.totalorder %s12, 1
      %p135 = scmp.ne.s32.totalorder %s130, %s132
      %p136 = scmp.eq.s32.totalorder %s12, 0
      %p137 = por %p135, %p136
      %p138 = scmp.ne.s32.totalorder %s130, %s132
      %p139 = scmp.eq.s32.totalorder %s17, 1
      %p140 = por %p138, %p139
      %p141 = scmp.ne.s32.totalorder %s132, %s133
      %p142 = scmp.eq.s32.totalorder %s17, 0
      %p143 = por %p141, %p142
      %p144 = scmp.ne.s32.totalorder %s132, %s133
      %p145 = scmp.eq.s32.totalorder %s18, 1
      %p146 = por %p144, %p145
      %p148 = scmp.ne.s32.totalorder %s133, %s147
      %p149 = scmp.eq.s32.totalorder %s18, 0
      %p150 = por %p148, %p149
      %s151 = ssub.s32 %s12, %s19
      %p152 = scmp.eq.s32.totalorder %s151, 0
      %s154 = sadd.s32 %s153, 1
      %s155 = scalar_select %p152, %s153, %s154
      %p158 = pneg %p152
      %p159 = scmp.eq.s32.totalorder %s12, 1
      %p160 = por %p158, %p159
      %p161 = scmp.ne.s32.totalorder %s153, %s156
      %p162 = scmp.eq.s32.totalorder %s12, 0
      %p163 = por %p161, %p162
      %p164 = scmp.ne.s32.totalorder %s153, %s156
      %p165 = scmp.eq.s32.totalorder %s17, 1
      %p166 = por %p164, %p165
      %p167 = scmp.ne.s32.totalorder %s156, %s157
      %p168 = scmp.eq.s32.totalorder %s17, 0
      %p169 = por %p167, %p168
      %p170 = scmp.ne.s32.totalorder %s156, %s157
      %p171 = scmp.eq.s32.totalorder %s18, 1
      %p172 = por %p170, %p171
      %p174 = scmp.ne.s32.totalorder %s157, %s173
      %p175 = scmp.eq.s32.totalorder %s18, 0
      %p176 = por %p174, %p175
      %p177 = scmp.le.s32.totalorder 1, %s12
      %p178 = scmp.lt.s32.totalorder %s12, 3
      %p179 = pnand %p177, %p178
      %p180 = pneg %p179
      // Predicated region
      $region9: #{hetero_gat_forward.3} parent=5 // pred_check
        _
      $region10: #{hetero_gat_forward.3} parent=5 // pred_check_branch
        %182 = sbr.rel (%p179) target = $region12
      $region11: #{hetero_gat_forward.3} parent=5 // pred_region
        %s183 = ssub.s32 %s12, 1
        // Predicated region
        $region13: #{hetero_gat_forward.3} parent=11 // pred_check
          %p184 = pneg %p33
        $region14: #{hetero_gat_forward.3} parent=11 // pred_check_branch
          %186 = sbr.rel (%p184) target = $region16
        $region15: #{hetero_gat_forward.3} parent=11 // pred_region
          _
        $region16: #{hetero_gat_forward.3} parent=11 // pred_fallthru
          _
        // Predicated region
        $region17: #{hetero_gat_forward.3} parent=11 // pred_check
          %p187 = pneg %p80
        $region18: #{hetero_gat_forward.3} parent=11 // pred_check_branch
          %189 = sbr.rel (%p187) target = $region20
        $region19: #{hetero_gat_forward.3} parent=11 // pred_region
          _
        $region20: #{hetero_gat_forward.3} parent=11 // pred_fallthru
          _
        // Predicated region
        $region21: #{hetero_gat_forward.3} parent=11 // pred_check
          %p190 = pneg %p101
        $region22: #{hetero_gat_forward.3} parent=11 // pred_check_branch
          %192 = sbr.rel (%p190) target = $region24
        $region23: #{hetero_gat_forward.3} parent=11 // pred_region
          _
        $region24: #{hetero_gat_forward.3} parent=11 // pred_fallthru
          _
        // Predicated region
        $region25: #{hetero_gat_forward.3} parent=11 // pred_check
          %p193 = pneg %p122
        $region26: #{hetero_gat_forward.3} parent=11 // pred_check_branch
          %195 = sbr.rel (%p193) target = $region28
        $region27: #{hetero_gat_forward.3} parent=11 // pred_region
          _
        $region28: #{hetero_gat_forward.3} parent=11 // pred_fallthru
          _
        // Predicated region
        $region29: #{hetero_gat_forward.3} parent=11 // pred_check
          %p196 = pneg %p143
        $region30: #{hetero_gat_forward.3} parent=11 // pred_check_branch
          %198 = sbr.rel (%p196) target = $region32
        $region31: #{hetero_gat_forward.3} parent=11 // pred_region
          _
        $region32: #{hetero_gat_forward.3} parent=11 // pred_fallthru
          _
      $region12: #{hetero_gat_forward.3} parent=5 // pred_fallthru
        _
      %p199 = scmp.lt.s32.totalorder %s12, 2
      // Predicated region
      $region33: #{hetero_gat_forward.3} parent=5 // pred_check
        %p200 = pneg %p199
      $region34: #{hetero_gat_forward.3} parent=5 // pred_check_branch
        %202 = sbr.rel (%p200) target = $region36
      $region35: #{hetero_gat_forward.3} parent=5 // pred_region
        // Predicated region
        $region37: #{hetero_gat_forward.3} parent=35 // pred_check
          %p203 = pneg %p53
        $region38: #{hetero_gat_forward.3} parent=35 // pred_check_branch
          %205 = sbr.rel (%p203) target = $region40
        $region39: #{hetero_gat_forward.3} parent=35 // pred_region
          %s206 = sand.u32 %s43, 1
          %s207 = sand.u32 %s43, 1
          %s208 = smul.addr %s207, 16
          %s209 = scalar_lea.vmem [#allocation2], %s208
          %s210 = smul.addr %s12, 8
          %s211 = scalar_lea.vmem %s1, %s210
          // Predicated region
          $region41: #{hetero_gat_forward.3} parent=39 // pred_check
            _
          $region42: #{hetero_gat_forward.3} parent=39 // pred_check_branch
            %213 = sbr.rel (0) target = $region44
          $region43: #{hetero_gat_forward.3} parent=39 // pred_region
            // Predicated region
            $region45: #{hetero_gat_forward.3} parent=43 // pred_check
              _
            $region46: #{hetero_gat_forward.3} parent=43 // pred_check_branch
              %215 = sbr.rel (0) target = $region48
            $region47: #{hetero_gat_forward.3} parent=43 // pred_region
              // Predicated region
              $region60: #{hetero_gat_forward.3} parent=47 // pred_check
                _
              $region61: #{hetero_gat_forward.3} parent=47 // pred_check_branch
                %233 = sbr.rel (0) target = $region63
              $region62: #{hetero_gat_forward.3} parent=47 // pred_region
                loop: start=0, step=1, limit=1
                $region64: #{hetero_gat_forward.3} parent=62 // loop_pre_header
                  _
                $region65: #{hetero_gat_forward.3} parent=62 // loop_header
                  %s235 = sphi 0, %s239
                  %p236 = scmp.ge.s32.totalorder %s235, 1
                  %s240 = sphi %s211, %s211
                  %s241 = sphi %s209, %s209
                $region66: #{hetero_gat_forward.3} parent=62 // loop_header_branch
                  %238 = sbr.rel (%p236) target = $region70
                $region67: #{hetero_gat_forward.3} parent=62 // loop_body
                  %v242 = vld [vmem:[%s240] sm:$0xff]
                  %243 = vst [vmem:[%s241] sm:$0xff] %v242
                  %v244 = vld [vmem:[%s240 + $0x10] sm:$0xff]
                  %245 = vst [vmem:[%s241 + $0x8] sm:$0xff] %v244
                $region68: #{hetero_gat_forward.3} parent=62 // loop_footer
                  %s239 = sadd.s32 1, %s235
                $region69: #{hetero_gat_forward.3} parent=62 // loop_footer_branch
                  %234 = sbr.rel target = $region65
                $region70: #{hetero_gat_forward.3} parent=62 // loop_exit
                  _
              $region63: #{hetero_gat_forward.3} parent=47 // pred_fallthru
                _
              // Predicated region
              $region71: #{hetero_gat_forward.3} parent=47 // pred_check
                _
              $region72: #{hetero_gat_forward.3} parent=47 // pred_check_branch
                %247 = sbr.rel target = $region74
              $region73: #{hetero_gat_forward.3} parent=47 // pred_region
                _
              $region74: #{hetero_gat_forward.3} parent=47 // pred_fallthru
                _
            $region48: #{hetero_gat_forward.3} parent=43 // pred_fallthru
              _
            // Predicated region
            $region49: #{hetero_gat_forward.3} parent=43 // pred_check
              _
            $region50: #{hetero_gat_forward.3} parent=43 // pred_check_branch
              %217 = sbr.rel target = $region52
            $region51: #{hetero_gat_forward.3} parent=43 // pred_region
              %s219 = ssub.s32 256, 1
              loop: start=0, step=1, limit=1
              $region53: #{hetero_gat_forward.3} parent=51 // loop_pre_header
                _
              $region54: #{hetero_gat_forward.3} parent=51 // loop_header
                %s221 = sphi 0, %s225
                %p222 = scmp.ge.s32.totalorder %s221, 1
                %s226 = sphi %s211, %s211
                %s227 = sphi %s209, %s209
              $region55: #{hetero_gat_forward.3} parent=51 // loop_header_branch
                %224 = sbr.rel (%p222) target = $region59
              $region56: #{hetero_gat_forward.3} parent=51 // loop_body
                %v228 = vld [vmem:[%s226] sm:%s219]
                %229 = vst [vmem:[%s227] sm:%s219] %v228
                %v230 = vld [vmem:[%s226 + $0x10] sm:%s219]
                %231 = vst [vmem:[%s227 + $0x8] sm:%s219] %v230
              $region57: #{hetero_gat_forward.3} parent=51 // loop_footer
                %s225 = sadd.s32 1, %s221
              $region58: #{hetero_gat_forward.3} parent=51 // loop_footer_branch
                %220 = sbr.rel target = $region54
              $region59: #{hetero_gat_forward.3} parent=51 // loop_exit
                _
            $region52: #{hetero_gat_forward.3} parent=43 // pred_fallthru
              _
          $region44: #{hetero_gat_forward.3} parent=39 // pred_fallthru
            _
          %248 = vnop
        $region40: #{hetero_gat_forward.3} parent=35 // pred_fallthru
          _
      $region36: #{hetero_gat_forward.3} parent=5 // pred_fallthru
        _
      %p249 = scmp.le.s32.totalorder 1, %s12
      %p250 = scmp.lt.s32.totalorder %s12, 3
      %p251 = pnand %p249, %p250
      %p252 = pneg %p251
      // Predicated region
      $region75: #{hetero_gat_forward.3} parent=5 // pred_check
        _
      $region76: #{hetero_gat_forward.3} parent=5 // pred_check_branch
        %254 = sbr.rel (%p251) target = $region78
      $region77: #{hetero_gat_forward.3} parent=5 // pred_region
        %s255 = ssub.s32 %s12, 1
        %s256 = sand.u32 %s46, 1
        %s257 = sand.u32 %s46, 1
        %s258 = smul.addr %s257, 16
        %s259 = scalar_lea.vmem [#allocation2], %s258
        // Predicated region
        $region79: #{hetero_gat_forward.3} parent=77 // pred_check
          %p260 = pneg %p59
        $region80: #{hetero_gat_forward.3} parent=77 // pred_check_branch
          %262 = sbr.rel (%p260) target = $region82
        $region81: #{hetero_gat_forward.3} parent=77 // pred_region
          _
        $region82: #{hetero_gat_forward.3} parent=77 // pred_fallthru
          _
        %p263 = pneg %p33
        %p264 = pneg %p30
        %s265 = sand.u32 %s46, 1
        %s266 = sand.u32 %s46, 1
        %s267 = smul.addr %s266, 16
        %s268 = scalar_lea.vmem [#allocation2], %s267
        %p269 = pneg %p59
        %p270 = pneg %p56
        %p271 = pneg %p80
        %p272 = pneg %p77
        %p273 = pneg %p101
        %p274 = pneg %p98
        %p275 = pneg %p122
        %p276 = pneg %p119
        %p277 = pneg %p143
        %p278 = pneg %p140
        %p279 = pneg %p169
        %p280 = pneg %p166
        %s281 = smul.u32 4, %s17
        %p282 = scmp.lt.s32.totalorder %s281, 7
        %s283 = scalar_select %p282, %s281, 7
        %s284 = smul.addr %s283, 8
        %s285 = scalar_lea.vmem %s6, %s284
        %s286 = smul.u32 4, %s17
        %p287 = scmp.lt.s32.totalorder %s286, 7
        %s288 = scalar_select %p287, %s286, 7
        %s289 = smul.addr %s288, 8
        %s290 = scalar_lea.vmem %s6, %s289
        %s291 = smul.u32 4, %s17
        %s292 = smul.u32 %s17, 32
        %v293 = vld [vmem:[%s0] sm:$0xff]
        %v294 = vld [vmem:[%s0 + $0x8] sm:$0xff]
        %v295 = vld [vmem:[%s0 + $0x10] sm:$0xff]
        %v296 = vld [vmem:[%s0 + $0x18] sm:$0xff]
        %v297 = vld [vmem:[%s0 + $0x20] sm:$0xff]
        %v298 = vld [vmem:[%s0 + $0x28] sm:$0xff]
        %v299 = vld [vmem:[%s0 + $0x30] sm:$0xff]
        %v300 = vld [vmem:[%s0 + $0x38] sm:$0xff]
        %s301 = scalar_lea.vmem %s0, %s292
        %v302 = vld [vmem:[%s301] sm:$0xff]
        %v303 = vld [vmem:[%s301 + $0x8] sm:$0xff]
        %v304 = vld [vmem:[%s301 + $0x10] sm:$0xff]
        %v305 = vld [vmem:[%s301 + $0x18] sm:$0xff]
        %vm306 = vcmask 523264
        %307 = vst.msk [vmem:[%s290] sm:$0xff] %vm306, 0.0
        %308 = vst.msk [vmem:[%s290 + $0x8] sm:$0xff] %vm306, 0.0
        %309 = vst.msk [vmem:[%s290 + $0x10] sm:$0xff] %vm306, 0.0
        %310 = vst.msk [vmem:[%s290 + $0x18] sm:$0xff] %vm306, 0.0
        %v311 = vld [vmem:[%s259] sm:$0xff]
        %v312 = vunpack.c.0.s8 %v311
        %v313 = vunpack.c.1.s8 %v311
        %v314 = vunpack.c.2.s8 %v311
        %v315 = vunpack.c.3.s8 %v311
        %vm316 = vcmp.gt.s32.totalorder %v312, 0
        %vm317 = vcmp.gt.s32.totalorder %v313, 0
        %vm318 = vcmp.gt.s32.totalorder %v314, 0
        %vm319 = vcmp.gt.s32.totalorder %v315, 0
        %v320 = vld [vmem:[%s2] sm:$0xff]
        %vm321 = vcmask 64512
        %v323 = vsel %vm321, %v293, 0
        %v326 = vsel %vm321, %v294, 0
        %v329 = vsel %vm321, %v295, 0
        %v332 = vsel %vm321, %v296, 0
        %v335 = vsel %vm321, %v297, 0
        %v338 = vsel %vm321, %v298, 0
        %v341 = vsel %vm321, %v299, 0
        %v344 = vsel %vm321, %v300, 0
        %346 = vmatprep.subr.mxu0 0.0
        %347 = vmatpush1.msra.mxu0 0.0
        %348 = vmatprep.subr.mxu0 0.0
        %349 = vmatpush1.msra.mxu0 0.0
        %350 = vmatprep.subr.mxu0 0.0
        %351 = vmatpush1.msra.mxu0 0.0
        %352 = vmatprep.subr.mxu0 0.0
        %353 = vmatpush1.msra.mxu0 0.0
        %354 = vmatprep.subr.mxu0 0.0
        %355 = vmatpush1.msra.mxu0 0.0
        %356 = vmatprep.subr.mxu0 0.0
        %357 = vmatpush1.msra.mxu0 0.0
        %358 = vmatprep.subr.mxu0 0.0
        %359 = vmatpush1.msra.mxu0 0.0
        %360 = vmatprep.subr.mxu0 0.0
        %361 = vmatpush1.msra.mxu0 0.0
        %362 = vmatprep.subr.mxu0 0.0
        %363 = vmatpush1.msra.mxu0 0.0
        %364 = vmatprep.subr.mxu0 0.0
        %365 = vmatpush1.msra.mxu0 0.0
        %366 = vmatprep.subr.mxu0 0.0
        %367 = vmatpush1.msra.mxu0 0.0
        %368 = vmatprep.subr.mxu0 0.0
        %369 = vmatpush1.msra.mxu0 0.0
        %370 = vmatprep.subr.mxu0 0.0
        %371 = vmatpush1.msra.mxu0 0.0
        %372 = vmatprep.subr.mxu0 0.0
        %373 = vmatpush1.msra.mxu0 0.0
        %374 = vmatprep.subr.mxu0 0.0
        %375 = vmatpush1.msra.mxu0 0.0
        %376 = vmatprep.subr.mxu0 0.0
        %377 = vmatpush1.msra.mxu0 %v320
        %378 = vmatprep.subr.mxu0 0.0
        %379 = vmatpush2.msra.mxu0 0.0
        %380 = vmatprep.subr.mxu0 0.0
        %381 = vmatpush2.msra.mxu0 0.0
        %382 = vmatprep.subr.mxu0 0.0
        %383 = vmatpush2.msra.mxu0 0.0
        %384 = vmatprep.subr.mxu0 0.0
        %385 = vmatpush2.msra.mxu0 0.0
        %386 = vmatprep.subr.mxu0 0.0
        %387 = vmatpush2.msra.mxu0 0.0
        %388 = vmatprep.subr.mxu0 0.0
        %389 = vmatpush2.msra.mxu0 0.0
        %390 = vmatprep.subr.mxu0 0.0
        %391 = vmatpush2.msra.mxu0 0.0
        %392 = vmatprep.subr.mxu0 0.0
        %393 = vmatpush2.msra.mxu0 0.0
        %394 = vmatprep.subr.mxu0 0.0
        %395 = vmatpush2.msra.mxu0 0.0
        %396 = vmatprep.subr.mxu0 0.0
        %397 = vmatpush2.msra.mxu0 0.0
        %398 = vmatprep.subr.mxu0 0.0
        %399 = vmatpush2.msra.mxu0 0.0
        %400 = vmatprep.subr.mxu0 0.0
        %401 = vmatpush2.msra.mxu0 0.0
        %402 = vmatprep.subr.mxu0 0.0
        %403 = vmatpush2.msra.mxu0 0.0
        %404 = vmatprep.subr.mxu0 0.0
        %405 = vmatpush2.msra.mxu0 0.0
        %406 = vmatprep.subr.mxu0 0.0
        %407 = vmatpush2.msra.mxu0 0.0
        %408 = vmatprep.subr.mxu0 0.0
        %409 = vmatpush2.msra.mxu0 0.0
        %410 = vmatprep.mubr.f32.mxu0 0.0
        %411 = vmatmul.mubr.f32.gmra.mxu0 %v323
        %v412 = vpop.f32.mrf.mxu0
        %v413 = vadd.f32 0.0, %v412
        %v414 = vpop.f32.mrf.mxu0
        %415 = vmatprep.mubr.f32.mxu0 0.0
        %416 = vmatmul.mubr.f32.gmra.mxu0 %v326
        %v417 = vpop.f32.mrf.mxu0
        %v418 = vadd.f32 0.0, %v417
        %v419 = vpop.f32.mrf.mxu0
        %420 = vmatprep.mubr.f32.mxu0 0.0
        %421 = vmatmul.mubr.f32.gmra.mxu0 %v329
        %v422 = vpop.f32.mrf.mxu0
        %v423 = vadd.f32 0.0, %v422
        %v424 = vpop.f32.mrf.mxu0
        %425 = vmatprep.mubr.f32.mxu0 0.0
        %426 = vmatmul.mubr.f32.gmra.mxu0 %v332
        %v427 = vpop.f32.mrf.mxu0
        %v428 = vadd.f32 0.0, %v427
        %v429 = vpop.f32.mrf.mxu0
        %430 = vmatprep.mubr.f32.mxu0 0.0
        %431 = vmatmul.mubr.f32.gmra.mxu0 %v335
        %v432 = vpop.f32.mrf.mxu0
        %v433 = vadd.f32 0.0, %v432
        %v434 = vpop.f32.mrf.mxu0
        %435 = vmatprep.mubr.f32.mxu0 0.0
        %436 = vmatmul.mubr.f32.gmra.mxu0 %v338
        %v437 = vpop.f32.mrf.mxu0
        %v438 = vadd.f32 0.0, %v437
        %v439 = vpop.f32.mrf.mxu0
        %440 = vmatprep.mubr.f32.mxu0 0.0
        %441 = vmatmul.mubr.f32.gmra.mxu0 %v341
        %v442 = vpop.f32.mrf.mxu0
        %v443 = vadd.f32 0.0, %v442
        %v444 = vpop.f32.mrf.mxu0
        %445 = vmatprep.mubr.f32.mxu0 0.0
        %446 = vmatmul.mubr.f32.gmra.mxu0 %v344
        %v447 = vpop.f32.mrf.mxu0
        %v448 = vadd.f32 0.0, %v447
        %v449 = vpop.f32.mrf.mxu0
        %450 = vdwg.mxu0
        %v452 = vsel %vm321, %v302, 0
        %v455 = vsel %vm321, %v303, 0
        %v458 = vsel %vm321, %v304, 0
        %v461 = vsel %vm321, %v305, 0
        %463 = vmatprep.subr.mxu0 0.0
        %464 = vmatpush1.msra.mxu0 0.0
        %465 = vmatprep.subr.mxu0 0.0
        %466 = vmatpush1.msra.mxu0 0.0
        %467 = vmatprep.subr.mxu0 0.0
        %468 = vmatpush1.msra.mxu0 0.0
        %469 = vmatprep.subr.mxu0 0.0
        %470 = vmatpush1.msra.mxu0 0.0
        %471 = vmatprep.subr.mxu0 0.0
        %472 = vmatpush1.msra.mxu0 0.0
        %473 = vmatprep.subr.mxu0 0.0
        %474 = vmatpush1.msra.mxu0 0.0
        %475 = vmatprep.subr.mxu0 0.0
        %476 = vmatpush1.msra.mxu0 0.0
        %477 = vmatprep.subr.mxu0 0.0
        %478 = vmatpush1.msra.mxu0 0.0
        %479 = vmatprep.subr.mxu0 0.0
        %480 = vmatpush1.msra.mxu0 0.0
        %481 = vmatprep.subr.mxu0 0.0
        %482 = vmatpush1.msra.mxu0 0.0
        %483 = vmatprep.subr.mxu0 0.0
        %484 = vmatpush1.msra.mxu0 0.0
        %485 = vmatprep.subr.mxu0 0.0
        %486 = vmatpush1.msra.mxu0 0.0
        %487 = vmatprep.subr.mxu0 0.0
        %488 = vmatpush1.msra.mxu0 0.0
        %489 = vmatprep.subr.mxu0 0.0
        %490 = vmatpush1.msra.mxu0 0.0
        %491 = vmatprep.subr.mxu0 0.0
        %492 = vmatpush1.msra.mxu0 0.0
        %493 = vmatprep.subr.mxu0 0.0
        %494 = vmatpush1.msra.mxu0 %v320
        %495 = vmatprep.subr.mxu0 0.0
        %496 = vmatpush2.msra.mxu0 0.0
        %497 = vmatprep.subr.mxu0 0.0
        %498 = vmatpush2.msra.mxu0 0.0
        %499 = vmatprep.subr.mxu0 0.0
        %500 = vmatpush2.msra.mxu0 0.0
        %501 = vmatprep.subr.mxu0 0.0
        %502 = vmatpush2.msra.mxu0 0.0
        %503 = vmatprep.subr.mxu0 0.0
        %504 = vmatpush2.msra.mxu0 0.0
        %505 = vmatprep.subr.mxu0 0.0
        %506 = vmatpush2.msra.mxu0 0.0
        %507 = vmatprep.subr.mxu0 0.0
        %508 = vmatpush2.msra.mxu0 0.0
        %509 = vmatprep.subr.mxu0 0.0
        %510 = vmatpush2.msra.mxu0 0.0
        %511 = vmatprep.subr.mxu0 0.0
        %512 = vmatpush2.msra.mxu0 0.0
        %513 = vmatprep.subr.mxu0 0.0
        %514 = vmatpush2.msra.mxu0 0.0
        %515 = vmatprep.subr.mxu0 0.0
        %516 = vmatpush2.msra.mxu0 0.0
        %517 = vmatprep.subr.mxu0 0.0
        %518 = vmatpush2.msra.mxu0 0.0
        %519 = vmatprep.subr.mxu0 0.0
        %520 = vmatpush2.msra.mxu0 0.0
        %521 = vmatprep.subr.mxu0 0.0
        %522 = vmatpush2.msra.mxu0 0.0
        %523 = vmatprep.subr.mxu0 0.0
        %524 = vmatpush2.msra.mxu0 0.0
        %525 = vmatprep.subr.mxu0 0.0
        %526 = vmatpush2.msra.mxu0 0.0
        %527 = vmatprep.mubr.f32.mxu0 0.0
        %528 = vmatmul.mubr.f32.gmra.mxu0 %v452
        %v529 = vpop.f32.mrf.mxu0
        %v530 = vadd.f32 0.0, %v529
        %v531 = vpop.f32.mrf.mxu0
        %532 = vmatprep.mubr.f32.mxu0 0.0
        %533 = vmatmul.mubr.f32.gmra.mxu0 %v455
        %v534 = vpop.f32.mrf.mxu0
        %v535 = vadd.f32 0.0, %v534
        %v536 = vpop.f32.mrf.mxu0
        %537 = vmatprep.mubr.f32.mxu0 0.0
        %538 = vmatmul.mubr.f32.gmra.mxu0 %v458
        %v539 = vpop.f32.mrf.mxu0
        %v540 = vadd.f32 0.0, %v539
        %v541 = vpop.f32.mrf.mxu0
        %542 = vmatprep.mubr.f32.mxu0 0.0
        %543 = vmatmul.mubr.f32.gmra.mxu0 %v461
        %v544 = vpop.f32.mrf.mxu0
        %v545 = vadd.f32 0.0, %v544
        %v546 = vpop.f32.mrf.mxu0
        %547 = vdwg.mxu0
        %v548 = vld [vmem:[%s3] sm:$0x3]
        %v550 = vsel %vm306, %v548, 0
        %v553 = vsel %vm306, %v413, 0
        %v556 = vsel %vm306, %v418, 0
        %v559 = vsel %vm306, %v423, 0
        %v562 = vsel %vm306, %v428, 0
        %v565 = vsel %vm306, %v433, 0
        %v568 = vsel %vm306, %v438, 0
        %v571 = vsel %vm306, %v443, 0
        %v574 = vsel %vm306, %v448, 0
        %576 = vmatprep.subr.mxu0 0.0
        %577 = vmatpush1.xpose.msra.mxu0 0.0
        %578 = vmatprep.subr.mxu0 0.0
        %579 = vmatpush1.xpose.msra.mxu0 0.0
        %580 = vmatprep.subr.mxu0 0.0
        %581 = vmatpush1.xpose.msra.mxu0 0.0
        %582 = vmatprep.subr.mxu0 0.0
        %583 = vmatpush1.xpose.msra.mxu0 0.0
        %584 = vmatprep.subr.mxu0 0.0
        %585 = vmatpush1.xpose.msra.mxu0 0.0
        %586 = vmatprep.subr.mxu0 0.0
        %587 = vmatpush1.xpose.msra.mxu0 0.0
        %588 = vmatprep.subr.mxu0 0.0
        %589 = vmatpush1.xpose.msra.mxu0 0.0
        %590 = vmatprep.subr.mxu0 0.0
        %591 = vmatpush1.xpose.msra.mxu0 0.0
        %592 = vmatprep.subr.mxu0 0.0
        %593 = vmatpush1.xpose.msra.mxu0 %v574
        %594 = vmatprep.subr.mxu0 0.0
        %595 = vmatpush1.xpose.msra.mxu0 %v571
        %596 = vmatprep.subr.mxu0 0.0
        %597 = vmatpush1.xpose.msra.mxu0 %v568
        %598 = vmatprep.subr.mxu0 0.0
        %599 = vmatpush1.xpose.msra.mxu0 %v565
        %600 = vmatprep.subr.mxu0 0.0
        %601 = vmatpush1.xpose.msra.mxu0 %v562
        %602 = vmatprep.subr.mxu0 0.0
        %603 = vmatpush1.xpose.msra.mxu0 %v559
        %604 = vmatprep.subr.mxu0 0.0
        %605 = vmatpush1.xpose.msra.mxu0 %v556
        %606 = vmatprep.subr.mxu0 0.0
        %607 = vmatpush1.xpose.msra.mxu0 %v553
        %608 = vmatprep.subr.mxu0 0.0
        %609 = vmatpush2.xpose.msra.mxu0 0.0
        %610 = vmatprep.subr.mxu0 0.0
        %611 = vmatpush2.xpose.msra.mxu0 0.0
        %612 = vmatprep.subr.mxu0 0.0
        %613 = vmatpush2.xpose.msra.mxu0 0.0
        %614 = vmatprep.subr.mxu0 0.0
        %615 = vmatpush2.xpose.msra.mxu0 0.0
        %616 = vmatprep.subr.mxu0 0.0
        %617 = vmatpush2.xpose.msra.mxu0 0.0
        %618 = vmatprep.subr.mxu0 0.0
        %619 = vmatpush2.xpose.msra.mxu0 0.0
        %620 = vmatprep.subr.mxu0 0.0
        %621 = vmatpush2.xpose.msra.mxu0 0.0
        %622 = vmatprep.subr.mxu0 0.0
        %623 = vmatpush2.xpose.msra.mxu0 0.0
        %624 = vmatprep.subr.mxu0 0.0
        %625 = vmatpush2.xpose.msra.mxu0 0.0
        %626 = vmatprep.subr.mxu0 0.0
        %627 = vmatpush2.xpose.msra.mxu0 0.0
        %628 = vmatprep.subr.mxu0 0.0
        %629 = vmatpush2.xpose.msra.mxu0 0.0
        %630 = vmatprep.subr.mxu0 0.0
        %631 = vmatpush2.xpose.msra.mxu0 0.0
        %632 = vmatprep.subr.mxu0 0.0
        %633 = vmatpush2.xpose.msra.mxu0 0.0
        %634 = vmatprep.subr.mxu0 0.0
        %635 = vmatpush2.xpose.msra.mxu0 0.0
        %636 = vmatprep.subr.mxu0 0.0
        %637 = vmatpush2.xpose.msra.mxu0 0.0
        %638 = vmatprep.subr.mxu0 0.0
        %639 = vmatpush2.xpose.msra.mxu0 0.0
        %640 = vmatprep.mubr.f32.mxu0 0.0
        %641 = vmatmul.mubr.f32.gmra.mxu0 %v550
        %v642 = vpop.f32.mrf.mxu0
        %v643 = vadd.f32 0.0, %v642
        %v644 = vpop.f32.mrf.mxu0
        %645 = vdwg.mxu0
        %v646 = vld [vmem:[%s4] sm:$0x3]
        %v648 = vsel %vm306, %v530, 0
        %v651 = vsel %vm306, %v535, 0
        %v654 = vsel %vm306, %v540, 0
        %v657 = vsel %vm306, %v545, 0
        %v660 = vsel %vm306, %v646, 0
        %662 = vmatprep.subr.mxu0 0.0
        %663 = vmatpush1.xpose.msra.mxu0 0.0
        %664 = vmatprep.subr.mxu0 0.0
        %665 = vmatpush1.xpose.msra.mxu0 0.0
        %666 = vmatprep.subr.mxu0 0.0
        %667 = vmatpush1.xpose.msra.mxu0 0.0
        %668 = vmatprep.subr.mxu0 0.0
        %669 = vmatpush1.xpose.msra.mxu0 0.0
        %670 = vmatprep.subr.mxu0 0.0
        %671 = vmatpush1.xpose.msra.mxu0 0.0
        %672 = vmatprep.subr.mxu0 0.0
        %673 = vmatpush1.xpose.msra.mxu0 0.0
        %674 = vmatprep.subr.mxu0 0.0
        %675 = vmatpush1.xpose.msra.mxu0 0.0
        %676 = vmatprep.subr.mxu0 0.0
        %677 = vmatpush1.xpose.msra.mxu0 0.0
        %678 = vmatprep.subr.mxu0 0.0
        %679 = vmatpush1.xpose.msra.mxu0 0.0
        %680 = vmatprep.subr.mxu0 0.0
        %681 = vmatpush1.xpose.msra.mxu0 0.0
        %682 = vmatprep.subr.mxu0 0.0
        %683 = vmatpush1.xpose.msra.mxu0 0.0
        %684 = vmatprep.subr.mxu0 0.0
        %685 = vmatpush1.xpose.msra.mxu0 0.0
        %686 = vmatprep.subr.mxu0 0.0
        %687 = vmatpush1.xpose.msra.mxu0 0.0
        %688 = vmatprep.subr.mxu0 0.0
        %689 = vmatpush1.xpose.msra.mxu0 0.0
        %690 = vmatprep.subr.mxu0 0.0
        %691 = vmatpush1.xpose.msra.mxu0 0.0
        %692 = vmatprep.subr.mxu0 0.0
        %693 = vmatpush1.xpose.msra.mxu0 %v660
        %694 = vmatprep.subr.mxu0 0.0
        %695 = vmatpush2.xpose.msra.mxu0 0.0
        %696 = vmatprep.subr.mxu0 0.0
        %697 = vmatpush2.xpose.msra.mxu0 0.0
        %698 = vmatprep.subr.mxu0 0.0
        %699 = vmatpush2.xpose.msra.mxu0 0.0
        %700 = vmatprep.subr.mxu0 0.0
        %701 = vmatpush2.xpose.msra.mxu0 0.0
        %702 = vmatprep.subr.mxu0 0.0
        %703 = vmatpush2.xpose.msra.mxu0 0.0
        %704 = vmatprep.subr.mxu0 0.0
        %705 = vmatpush2.xpose.msra.mxu0 0.0
        %706 = vmatprep.subr.mxu0 0.0
        %707 = vmatpush2.xpose.msra.mxu0 0.0
        %708 = vmatprep.subr.mxu0 0.0
        %709 = vmatpush2.xpose.msra.mxu0 0.0
        %710 = vmatprep.subr.mxu0 0.0
        %711 = vmatpush2.xpose.msra.mxu0 0.0
        %712 = vmatprep.subr.mxu0 0.0
        %713 = vmatpush2.xpose.msra.mxu0 0.0
        %714 = vmatprep.subr.mxu0 0.0
        %715 = vmatpush2.xpose.msra.mxu0 0.0
        %716 = vmatprep.subr.mxu0 0.0
        %717 = vmatpush2.xpose.msra.mxu0 0.0
        %718 = vmatprep.subr.mxu0 0.0
        %719 = vmatpush2.xpose.msra.mxu0 0.0
        %720 = vmatprep.subr.mxu0 0.0
        %721 = vmatpush2.xpose.msra.mxu0 0.0
        %722 = vmatprep.subr.mxu0 0.0
        %723 = vmatpush2.xpose.msra.mxu0 0.0
        %724 = vmatprep.subr.mxu0 0.0
        %725 = vmatpush2.xpose.msra.mxu0 0.0
        %726 = vmatprep.mubr.f32.mxu0 0.0
        %727 = vmatmul.mubr.f32.gmra.mxu0 %v648
        %v728 = vpop.f32.mrf.mxu0
        %v729 = vadd.f32 0.0, %v728
        %v730 = vpop.f32.mrf.mxu0
        %731 = vmatprep.mubr.f32.mxu0 0.0
        %732 = vmatmul.mubr.f32.gmra.mxu0 %v651
        %v733 = vpop.f32.mrf.mxu0
        %v734 = vadd.f32 0.0, %v733
        %v735 = vpop.f32.mrf.mxu0
        %736 = vmatprep.mubr.f32.mxu0 0.0
        %737 = vmatmul.mubr.f32.gmra.mxu0 %v654
        %v738 = vpop.f32.mrf.mxu0
        %v739 = vadd.f32 0.0, %v738
        %v740 = vpop.f32.mrf.mxu0
        %741 = vmatprep.mubr.f32.mxu0 0.0
        %742 = vmatmul.mubr.f32.gmra.mxu0 %v657
        %v743 = vpop.f32.mrf.mxu0
        %v744 = vadd.f32 0.0, %v743
        %v745 = vpop.f32.mrf.mxu0
        %746 = vdwg.mxu0
        %748 = vset.pattern.permute.xlu0 0
        %749 = vperm.xlu0 %748, %v729
        %v750 = vpop.permute.xlu0 %749
        %753 = vset.pattern.permute.xlu0 0
        %754 = vperm.xlu0 %753, %v734
        %v755 = vpop.permute.xlu0 %754
        %758 = vset.pattern.permute.xlu0 0
        %759 = vperm.xlu0 %758, %v739
        %v760 = vpop.permute.xlu0 %759
        %763 = vset.pattern.permute.xlu0 0
        %764 = vperm.xlu0 %763, %v744
        %v765 = vpop.permute.xlu0 %764
        %v767 = vlaneseq
        %v768 = vshrl.u32 %v767, 7
        %v769 = vsub.s32 0, %v768
        %v770 = vrot.slane %v643, %v769
        %v771 = vadd.f32 %v750, %v770
        %v772 = vadd.f32 %v755, %v770
        %v773 = vadd.f32 %v760, %v770
        %v774 = vadd.f32 %v765, %v770
        %v775 = vmul.f32 %v771, 0.2
        %v776 = vmul.f32 %v772, 0.2
        %v777 = vmul.f32 %v773, 0.2
        %v778 = vmul.f32 %v774, 0.2
        %v779 = vmax.f32 %v771, %v775
        %v780 = vmax.f32 %v772, %v776
        %v781 = vmax.f32 %v773, %v777
        %v782 = vmax.f32 %v774, %v778
        %v783 = vsel %vm316, %v779, -1e+30
        %v784 = vsel %vm317, %v780, -1e+30
        %v785 = vsel %vm318, %v781, -1e+30
        %v786 = vsel %vm319, %v782, -1e+30
        %v787 = vsel %vm306, %v783, -inf
        %788 = vmax.xlane.f32.xlu0 %v787
        %v789 = vpop.xlane.xlu0 %788
        %v790 = vsel %vm306, %v784, -inf
        %791 = vmax.xlane.f32.xlu0 %v790
        %v792 = vpop.xlane.xlu0 %791
        %v793 = vsel %vm306, %v785, -inf
        %794 = vmax.xlane.f32.xlu0 %v793
        %v795 = vpop.xlane.xlu0 %794
        %v796 = vsel %vm306, %v786, -inf
        %797 = vmax.xlane.f32.xlu0 %v796
        %v798 = vpop.xlane.xlu0 %797
        %v799 = vsub.f32 %v783, %v789
        %v800 = vsub.f32 %v784, %v792
        %v801 = vsub.f32 %v785, %v795
        %v802 = vsub.f32 %v786, %v798
        %v803 = vmul.f32 %v799, 1.442695
        %v804 = vpow.pop %v803
        %v805 = vmul.f32 %v800, 1.442695
        %v806 = vpow.pop %v805
        %v807 = vmul.f32 %v801, 1.442695
        %v808 = vpow.pop %v807
        %v809 = vmul.f32 %v802, 1.442695
        %v810 = vpow.pop %v809
        %v811 = vsel %vm306, %v804, 0.0
        %812 = vadd.xlane.f32.xlu0 %v811
        %v813 = vpop.xlane.xlu0 %812
        %v814 = vsel %vm306, %v806, 0.0
        %815 = vadd.xlane.f32.xlu0 %v814
        %v816 = vpop.xlane.xlu0 %815
        %v817 = vsel %vm306, %v808, 0.0
        %818 = vadd.xlane.f32.xlu0 %v817
        %v819 = vpop.xlane.xlu0 %818
        %v820 = vsel %vm306, %v810, 0.0
        %821 = vadd.xlane.f32.xlu0 %v820
        %v822 = vpop.xlane.xlu0 %821
        %v823 = vrcp.pop %v813
        %v824 = vrcp.pop %v816
        %v825 = vrcp.pop %v819
        %v826 = vrcp.pop %v822
        %v828 = vsel %vm306, %v804, 0
        %v831 = vsel %vm306, %v806, 0
        %v834 = vsel %vm306, %v808, 0
        %v837 = vsel %vm306, %v810, 0
        %839 = vmatprep.subr.mxu0 0.0
        %840 = vmatpush1.msra.mxu0 0.0
        %841 = vmatprep.subr.mxu0 0.0
        %842 = vmatpush1.msra.mxu0 0.0
        %843 = vmatprep.subr.mxu0 0.0
        %844 = vmatpush1.msra.mxu0 0.0
        %845 = vmatprep.subr.mxu0 0.0
        %846 = vmatpush1.msra.mxu0 0.0
        %847 = vmatprep.subr.mxu0 0.0
        %848 = vmatpush1.msra.mxu0 0.0
        %849 = vmatprep.subr.mxu0 0.0
        %850 = vmatpush1.msra.mxu0 0.0
        %851 = vmatprep.subr.mxu0 0.0
        %852 = vmatpush1.msra.mxu0 0.0
        %853 = vmatprep.subr.mxu0 0.0
        %854 = vmatpush1.msra.mxu0 0.0
        %855 = vmatprep.subr.mxu0 0.0
        %856 = vmatpush1.msra.mxu0 %v448
        %857 = vmatprep.subr.mxu0 0.0
        %858 = vmatpush1.msra.mxu0 %v443
        %859 = vmatprep.subr.mxu0 0.0
        %860 = vmatpush1.msra.mxu0 %v438
        %861 = vmatprep.subr.mxu0 0.0
        %862 = vmatpush1.msra.mxu0 %v433
        %863 = vmatprep.subr.mxu0 0.0
        %864 = vmatpush1.msra.mxu0 %v428
        %865 = vmatprep.subr.mxu0 0.0
        %866 = vmatpush1.msra.mxu0 %v423
        %867 = vmatprep.subr.mxu0 0.0
        %868 = vmatpush1.msra.mxu0 %v418
        %869 = vmatprep.subr.mxu0 0.0
        %870 = vmatpush1.msra.mxu0 %v413
        %871 = vmatprep.subr.mxu0 0.0
        %872 = vmatpush2.msra.mxu0 0.0
        %873 = vmatprep.subr.mxu0 0.0
        %874 = vmatpush2.msra.mxu0 0.0
        %875 = vmatprep.subr.mxu0 0.0
        %876 = vmatpush2.msra.mxu0 0.0
        %877 = vmatprep.subr.mxu0 0.0
        %878 = vmatpush2.msra.mxu0 0.0
        %879 = vmatprep.subr.mxu0 0.0
        %880 = vmatpush2.msra.mxu0 0.0
        %881 = vmatprep.subr.mxu0 0.0
        %882 = vmatpush2.msra.mxu0 0.0
        %883 = vmatprep.subr.mxu0 0.0
        %884 = vmatpush2.msra.mxu0 0.0
        %885 = vmatprep.subr.mxu0 0.0
        %886 = vmatpush2.msra.mxu0 0.0
        %887 = vmatprep.subr.mxu0 0.0
        %888 = vmatpush2.msra.mxu0 0.0
        %889 = vmatprep.subr.mxu0 0.0
        %890 = vmatpush2.msra.mxu0 0.0
        %891 = vmatprep.subr.mxu0 0.0
        %892 = vmatpush2.msra.mxu0 0.0
        %893 = vmatprep.subr.mxu0 0.0
        %894 = vmatpush2.msra.mxu0 0.0
        %895 = vmatprep.subr.mxu0 0.0
        %896 = vmatpush2.msra.mxu0 0.0
        %897 = vmatprep.subr.mxu0 0.0
        %898 = vmatpush2.msra.mxu0 0.0
        %899 = vmatprep.subr.mxu0 0.0
        %900 = vmatpush2.msra.mxu0 0.0
        %901 = vmatprep.subr.mxu0 0.0
        %902 = vmatpush2.msra.mxu0 0.0
        %903 = vmatprep.mubr.f32.mxu0 0.0
        %904 = vmatmul.mubr.f32.gmra.mxu0 %v828
        %v905 = vpop.f32.mrf.mxu0
        %v906 = vadd.f32 0.0, %v905
        %v907 = vpop.f32.mrf.mxu0
        %908 = vmatprep.mubr.f32.mxu0 0.0
        %909 = vmatmul.mubr.f32.gmra.mxu0 %v831
        %v910 = vpop.f32.mrf.mxu0
        %v911 = vadd.f32 0.0, %v910
        %v912 = vpop.f32.mrf.mxu0
        %913 = vmatprep.mubr.f32.mxu0 0.0
        %914 = vmatmul.mubr.f32.gmra.mxu0 %v834
        %v915 = vpop.f32.mrf.mxu0
        %v916 = vadd.f32 0.0, %v915
        %v917 = vpop.f32.mrf.mxu0
        %918 = vmatprep.mubr.f32.mxu0 0.0
        %919 = vmatmul.mubr.f32.gmra.mxu0 %v837
        %v920 = vpop.f32.mrf.mxu0
        %v921 = vadd.f32 0.0, %v920
        %v922 = vpop.f32.mrf.mxu0
        %923 = vdwg.mxu0
        %v924 = vld [vmem:[%s290] sm:$0xff]
        %v925 = vld [vmem:[%s290 + $0x8] sm:$0xff]
        %v926 = vld [vmem:[%s290 + $0x10] sm:$0xff]
        %v927 = vld [vmem:[%s290 + $0x18] sm:$0xff]
        %v928 = vmul.f32 %v906, %v823
        %v929 = vmul.f32 %v911, %v824
        %v930 = vmul.f32 %v916, %v825
        %v931 = vmul.f32 %v921, %v826
        %v932 = vadd.f32 %v924, %v928
        %v933 = vadd.f32 %v925, %v929
        %v934 = vadd.f32 %v926, %v930
        %v935 = vadd.f32 %v927, %v931
        %vm936 = vcmask 261120
        %937 = vst.msk [vmem:[%s290] sm:$0xff] %vm936, %v932
        %938 = vst.msk [vmem:[%s290 + $0x8] sm:$0xff] %vm936, %v933
        %939 = vst.msk [vmem:[%s290 + $0x10] sm:$0xff] %vm936, %v934
        %940 = vst.msk [vmem:[%s290 + $0x18] sm:$0xff] %vm936, %v935
        %941 = vset.pattern.permute.xlu0 1
        %942 = vperm.xlu0 %941, %v729
        %v943 = vpop.permute.xlu0 %942
        %945 = vset.pattern.permute.xlu0 1
        %946 = vperm.xlu0 %945, %v734
        %v947 = vpop.permute.xlu0 %946
        %949 = vset.pattern.permute.xlu0 1
        %950 = vperm.xlu0 %949, %v739
        %v951 = vpop.permute.xlu0 %950
        %953 = vset.pattern.permute.xlu0 1
        %954 = vperm.xlu0 %953, %v744
        %v955 = vpop.permute.xlu0 %954
        %v957 = vlaneseq
        %v958 = vshrl.u32 %v957, 7
        %v959 = vsub.s32 1, %v958
        %v960 = vrot.slane %v643, %v959
        %v961 = vadd.f32 %v943, %v960
        %v962 = vadd.f32 %v947, %v960
        %v963 = vadd.f32 %v951, %v960
        %v964 = vadd.f32 %v955, %v960
        %v965 = vmul.f32 %v961, 0.2
        %v966 = vmul.f32 %v962, 0.2
        %v967 = vmul.f32 %v963, 0.2
        %v968 = vmul.f32 %v964, 0.2
        %v969 = vmax.f32 %v961, %v965
        %v970 = vmax.f32 %v962, %v966
        %v971 = vmax.f32 %v963, %v967
        %v972 = vmax.f32 %v964, %v968
        %v973 = vsel %vm316, %v969, -1e+30
        %v974 = vsel %vm317, %v970, -1e+30
        %v975 = vsel %vm318, %v971, -1e+30
        %v976 = vsel %vm319, %v972, -1e+30
        %v977 = vsel %vm306, %v973, -inf
        %978 = vmax.xlane.f32.xlu0 %v977
        %v979 = vpop.xlane.xlu0 %978
        %v980 = vsel %vm306, %v974, -inf
        %981 = vmax.xlane.f32.xlu0 %v980
        %v982 = vpop.xlane.xlu0 %981
        %v983 = vsel %vm306, %v975, -inf
        %984 = vmax.xlane.f32.xlu0 %v983
        %v985 = vpop.xlane.xlu0 %984
        %v986 = vsel %vm306, %v976, -inf
        %987 = vmax.xlane.f32.xlu0 %v986
        %v988 = vpop.xlane.xlu0 %987
        %v989 = vsub.f32 %v973, %v979
        %v990 = vsub.f32 %v974, %v982
        %v991 = vsub.f32 %v975, %v985
        %v992 = vsub.f32 %v976, %v988
        %v993 = vmul.f32 %v989, 1.442695
        %v994 = vpow.pop %v993
        %v995 = vmul.f32 %v990, 1.442695
        %v996 = vpow.pop %v995
        %v997 = vmul.f32 %v991, 1.442695
        %v998 = vpow.pop %v997
        %v999 = vmul.f32 %v992, 1.442695
        %v1000 = vpow.pop %v999
        %v1001 = vsel %vm306, %v994, 0.0
        %1002 = vadd.xlane.f32.xlu0 %v1001
        %v1003 = vpop.xlane.xlu0 %1002
        %v1004 = vsel %vm306, %v996, 0.0
        %1005 = vadd.xlane.f32.xlu0 %v1004
        %v1006 = vpop.xlane.xlu0 %1005
        %v1007 = vsel %vm306, %v998, 0.0
        %1008 = vadd.xlane.f32.xlu0 %v1007
        %v1009 = vpop.xlane.xlu0 %1008
        %v1010 = vsel %vm306, %v1000, 0.0
        %1011 = vadd.xlane.f32.xlu0 %v1010
        %v1012 = vpop.xlane.xlu0 %1011
        %v1013 = vrcp.pop %v1003
        %v1014 = vrcp.pop %v1006
        %v1015 = vrcp.pop %v1009
        %v1016 = vrcp.pop %v1012
        %1017 = vrot.lane.b32.xlu0 %v413, 96
        %v1018 = vpop.permute.xlu0 %1017
        %1019 = vrot.lane.b32.xlu0 %v418, 96
        %v1020 = vpop.permute.xlu0 %1019
        %1021 = vrot.lane.b32.xlu0 %v423, 96
        %v1022 = vpop.permute.xlu0 %1021
        %1023 = vrot.lane.b32.xlu0 %v428, 96
        %v1024 = vpop.permute.xlu0 %1023
        %1025 = vrot.lane.b32.xlu0 %v433, 96
        %v1026 = vpop.permute.xlu0 %1025
        %1027 = vrot.lane.b32.xlu0 %v438, 96
        %v1028 = vpop.permute.xlu0 %1027
        %1029 = vrot.lane.b32.xlu0 %v443, 96
        %v1030 = vpop.permute.xlu0 %1029
        %1031 = vrot.lane.b32.xlu0 %v448, 96
        %v1032 = vpop.permute.xlu0 %1031
        %v1042 = vsel %vm306, %v994, 0
        %v1045 = vsel %vm306, %v996, 0
        %v1048 = vsel %vm306, %v998, 0
        %v1051 = vsel %vm306, %v1000, 0
        %1053 = vmatprep.subr.mxu0 0.0
        %1054 = vmatpush1.msra.mxu0 0.0
        %1055 = vmatprep.subr.mxu0 0.0
        %1056 = vmatpush1.msra.mxu0 0.0
        %1057 = vmatprep.subr.mxu0 0.0
        %1058 = vmatpush1.msra.mxu0 0.0
        %1059 = vmatprep.subr.mxu0 0.0
        %1060 = vmatpush1.msra.mxu0 0.0
        %1061 = vmatprep.subr.mxu0 0.0
        %1062 = vmatpush1.msra.mxu0 0.0
        %1063 = vmatprep.subr.mxu0 0.0
        %1064 = vmatpush1.msra.mxu0 0.0
        %1065 = vmatprep.subr.mxu0 0.0
        %1066 = vmatpush1.msra.mxu0 0.0
        %1067 = vmatprep.subr.mxu0 0.0
        %1068 = vmatpush1.msra.mxu0 0.0
        %1069 = vmatprep.subr.mxu0 0.0
        %1070 = vmatpush1.msra.mxu0 %v1032
        %1071 = vmatprep.subr.mxu0 0.0
        %1072 = vmatpush1.msra.mxu0 %v1030
        %1073 = vmatprep.subr.mxu0 0.0
        %1074 = vmatpush1.msra.mxu0 %v1028
        %1075 = vmatprep.subr.mxu0 0.0
        %1076 = vmatpush1.msra.mxu0 %v1026
        %1077 = vmatprep.subr.mxu0 0.0
        %1078 = vmatpush1.msra.mxu0 %v1024
        %1079 = vmatprep.subr.mxu0 0.0
        %1080 = vmatpush1.msra.mxu0 %v1022
        %1081 = vmatprep.subr.mxu0 0.0
        %1082 = vmatpush1.msra.mxu0 %v1020
        %1083 = vmatprep.subr.mxu0 0.0
        %1084 = vmatpush1.msra.mxu0 %v1018
        %1085 = vmatprep.subr.mxu0 0.0
        %1086 = vmatpush2.msra.mxu0 0.0
        %1087 = vmatprep.subr.mxu0 0.0
        %1088 = vmatpush2.msra.mxu0 0.0
        %1089 = vmatprep.subr.mxu0 0.0
        %1090 = vmatpush2.msra.mxu0 0.0
        %1091 = vmatprep.subr.mxu0 0.0
        %1092 = vmatpush2.msra.mxu0 0.0
        %1093 = vmatprep.subr.mxu0 0.0
        %1094 = vmatpush2.msra.mxu0 0.0
        %1095 = vmatprep.subr.mxu0 0.0
        %1096 = vmatpush2.msra.mxu0 0.0
        %1097 = vmatprep.subr.mxu0 0.0
        %1098 = vmatpush2.msra.mxu0 0.0
        %1099 = vmatprep.subr.mxu0 0.0
        %1100 = vmatpush2.msra.mxu0 0.0
        %1101 = vmatprep.subr.mxu0 0.0
        %1102 = vmatpush2.msra.mxu0 0.0
        %1103 = vmatprep.subr.mxu0 0.0
        %1104 = vmatpush2.msra.mxu0 0.0
        %1105 = vmatprep.subr.mxu0 0.0
        %1106 = vmatpush2.msra.mxu0 0.0
        %1107 = vmatprep.subr.mxu0 0.0
        %1108 = vmatpush2.msra.mxu0 0.0
        %1109 = vmatprep.subr.mxu0 0.0
        %1110 = vmatpush2.msra.mxu0 0.0
        %1111 = vmatprep.subr.mxu0 0.0
        %1112 = vmatpush2.msra.mxu0 0.0
        %1113 = vmatprep.subr.mxu0 0.0
        %1114 = vmatpush2.msra.mxu0 0.0
        %1115 = vmatprep.subr.mxu0 0.0
        %1116 = vmatpush2.msra.mxu0 0.0
        %1117 = vmatprep.mubr.f32.mxu0 0.0
        %1118 = vmatmul.mubr.f32.gmra.mxu0 %v1042
        %v1119 = vpop.f32.mrf.mxu0
        %v1120 = vadd.f32 0.0, %v1119
        %v1121 = vpop.f32.mrf.mxu0
        %1122 = vmatprep.mubr.f32.mxu0 0.0
        %1123 = vmatmul.mubr.f32.gmra.mxu0 %v1045
        %v1124 = vpop.f32.mrf.mxu0
        %v1125 = vadd.f32 0.0, %v1124
        %v1126 = vpop.f32.mrf.mxu0
        %1127 = vmatprep.mubr.f32.mxu0 0.0
        %1128 = vmatmul.mubr.f32.gmra.mxu0 %v1048
        %v1129 = vpop.f32.mrf.mxu0
        %v1130 = vadd.f32 0.0, %v1129
        %v1131 = vpop.f32.mrf.mxu0
        %1132 = vmatprep.mubr.f32.mxu0 0.0
        %1133 = vmatmul.mubr.f32.gmra.mxu0 %v1051
        %v1134 = vpop.f32.mrf.mxu0
        %v1135 = vadd.f32 0.0, %v1134
        %v1136 = vpop.f32.mrf.mxu0
        %1137 = vdwg.mxu0
        %v1138 = vld [vmem:[%s290] sm:$0xff]
        %v1139 = vld [vmem:[%s290 + $0x8] sm:$0xff]
        %v1140 = vld [vmem:[%s290 + $0x10] sm:$0xff]
        %v1141 = vld [vmem:[%s290 + $0x18] sm:$0xff]
        %v1142 = vmul.f32 %v1120, %v1013
        %v1143 = vmul.f32 %v1125, %v1014
        %v1144 = vmul.f32 %v1130, %v1015
        %v1145 = vmul.f32 %v1135, %v1016
        %1150 = vrot.lane.b32.xlu0 %v1142, 32
        %v1151 = vpop.permute.xlu0 %1150
        %1152 = vrot.lane.b32.xlu0 %v1143, 32
        %v1153 = vpop.permute.xlu0 %1152
        %1154 = vrot.lane.b32.xlu0 %v1144, 32
        %v1155 = vpop.permute.xlu0 %1154
        %1156 = vrot.lane.b32.xlu0 %v1145, 32
        %v1157 = vpop.permute.xlu0 %1156
        %v1162 = vadd.f32 %v1138, %v1151
        %v1163 = vadd.f32 %v1139, %v1153
        %v1164 = vadd.f32 %v1140, %v1155
        %v1165 = vadd.f32 %v1141, %v1157
        %vm1166 = vcmask 523520
        %1167 = vst.msk [vmem:[%s290] sm:$0xff] %vm1166, %v1162
        %1168 = vst.msk [vmem:[%s290 + $0x8] sm:$0xff] %vm1166, %v1163
        %1169 = vst.msk [vmem:[%s290 + $0x10] sm:$0xff] %vm1166, %v1164
        %1170 = vst.msk [vmem:[%s290 + $0x18] sm:$0xff] %vm1166, %v1165
        %s1171 = scalar_lea.vmem %s259, 8 [#allocation2]
        %v1172 = vld [vmem:[%s1171] sm:$0xff]
        %v1173 = vunpack.c.0.s8 %v1172
        %v1174 = vunpack.c.1.s8 %v1172
        %v1175 = vunpack.c.2.s8 %v1172
        %v1176 = vunpack.c.3.s8 %v1172
        %vm1177 = vcmp.gt.s32.totalorder %v1173, 0
        %vm1178 = vcmp.gt.s32.totalorder %v1174, 0
        %vm1179 = vcmp.gt.s32.totalorder %v1175, 0
        %vm1180 = vcmp.gt.s32.totalorder %v1176, 0
        %s1181 = scalar_lea.vmem %s2, 8
        %v1182 = vld [vmem:[%s1181] sm:$0xff]
        %1183 = vmatprep.subr.mxu0 0.0
        %1184 = vmatpush1.msra.mxu0 0.0
        %1185 = vmatprep.subr.mxu0 0.0
        %1186 = vmatpush1.msra.mxu0 0.0
        %1187 = vmatprep.subr.mxu0 0.0
        %1188 = vmatpush1.msra.mxu0 0.0
        %1189 = vmatprep.subr.mxu0 0.0
        %1190 = vmatpush1.msra.mxu0 0.0
        %1191 = vmatprep.subr.mxu0 0.0
        %1192 = vmatpush1.msra.mxu0 0.0
        %1193 = vmatprep.subr.mxu0 0.0
        %1194 = vmatpush1.msra.mxu0 0.0
        %1195 = vmatprep.subr.mxu0 0.0
        %1196 = vmatpush1.msra.mxu0 0.0
        %1197 = vmatprep.subr.mxu0 0.0
        %1198 = vmatpush1.msra.mxu0 0.0
        %1199 = vmatprep.subr.mxu0 0.0
        %1200 = vmatpush1.msra.mxu0 0.0
        %1201 = vmatprep.subr.mxu0 0.0
        %1202 = vmatpush1.msra.mxu0 0.0
        %1203 = vmatprep.subr.mxu0 0.0
        %1204 = vmatpush1.msra.mxu0 0.0
        %1205 = vmatprep.subr.mxu0 0.0
        %1206 = vmatpush1.msra.mxu0 0.0
        %1207 = vmatprep.subr.mxu0 0.0
        %1208 = vmatpush1.msra.mxu0 0.0
        %1209 = vmatprep.subr.mxu0 0.0
        %1210 = vmatpush1.msra.mxu0 0.0
        %1211 = vmatprep.subr.mxu0 0.0
        %1212 = vmatpush1.msra.mxu0 0.0
        %1213 = vmatprep.subr.mxu0 0.0
        %1214 = vmatpush1.msra.mxu0 %v1182
        %1215 = vmatprep.subr.mxu0 0.0
        %1216 = vmatpush2.msra.mxu0 0.0
        %1217 = vmatprep.subr.mxu0 0.0
        %1218 = vmatpush2.msra.mxu0 0.0
        %1219 = vmatprep.subr.mxu0 0.0
        %1220 = vmatpush2.msra.mxu0 0.0
        %1221 = vmatprep.subr.mxu0 0.0
        %1222 = vmatpush2.msra.mxu0 0.0
        %1223 = vmatprep.subr.mxu0 0.0
        %1224 = vmatpush2.msra.mxu0 0.0
        %1225 = vmatprep.subr.mxu0 0.0
        %1226 = vmatpush2.msra.mxu0 0.0
        %1227 = vmatprep.subr.mxu0 0.0
        %1228 = vmatpush2.msra.mxu0 0.0
        %1229 = vmatprep.subr.mxu0 0.0
        %1230 = vmatpush2.msra.mxu0 0.0
        %1231 = vmatprep.subr.mxu0 0.0
        %1232 = vmatpush2.msra.mxu0 0.0
        %1233 = vmatprep.subr.mxu0 0.0
        %1234 = vmatpush2.msra.mxu0 0.0
        %1235 = vmatprep.subr.mxu0 0.0
        %1236 = vmatpush2.msra.mxu0 0.0
        %1237 = vmatprep.subr.mxu0 0.0
        %1238 = vmatpush2.msra.mxu0 0.0
        %1239 = vmatprep.subr.mxu0 0.0
        %1240 = vmatpush2.msra.mxu0 0.0
        %1241 = vmatprep.subr.mxu0 0.0
        %1242 = vmatpush2.msra.mxu0 0.0
        %1243 = vmatprep.subr.mxu0 0.0
        %1244 = vmatpush2.msra.mxu0 0.0
        %1245 = vmatprep.subr.mxu0 0.0
        %1246 = vmatpush2.msra.mxu0 0.0
        %1247 = vmatprep.mubr.f32.mxu0 0.0
        %1248 = vmatmul.mubr.f32.gmra.mxu0 %v323
        %v1249 = vpop.f32.mrf.mxu0
        %v1250 = vadd.f32 0.0, %v1249
        %v1251 = vpop.f32.mrf.mxu0
        %1252 = vmatprep.mubr.f32.mxu0 0.0
        %1253 = vmatmul.mubr.f32.gmra.mxu0 %v326
        %v1254 = vpop.f32.mrf.mxu0
        %v1255 = vadd.f32 0.0, %v1254
        %v1256 = vpop.f32.mrf.mxu0
        %1257 = vmatprep.mubr.f32.mxu0 0.0
        %1258 = vmatmul.mubr.f32.gmra.mxu0 %v329
        %v1259 = vpop.f32.mrf.mxu0
        %v1260 = vadd.f32 0.0, %v1259
        %v1261 = vpop.f32.mrf.mxu0
        %1262 = vmatprep.mubr.f32.mxu0 0.0
        %1263 = vmatmul.mubr.f32.gmra.mxu0 %v332
        %v1264 = vpop.f32.mrf.mxu0
        %v1265 = vadd.f32 0.0, %v1264
        %v1266 = vpop.f32.mrf.mxu0
        %1267 = vmatprep.mubr.f32.mxu0 0.0
        %1268 = vmatmul.mubr.f32.gmra.mxu0 %v335
        %v1269 = vpop.f32.mrf.mxu0
        %v1270 = vadd.f32 0.0, %v1269
        %v1271 = vpop.f32.mrf.mxu0
        %1272 = vmatprep.mubr.f32.mxu0 0.0
        %1273 = vmatmul.mubr.f32.gmra.mxu0 %v338
        %v1274 = vpop.f32.mrf.mxu0
        %v1275 = vadd.f32 0.0, %v1274
        %v1276 = vpop.f32.mrf.mxu0
        %1277 = vmatprep.mubr.f32.mxu0 0.0
        %1278 = vmatmul.mubr.f32.gmra.mxu0 %v341
        %v1279 = vpop.f32.mrf.mxu0
        %v1280 = vadd.f32 0.0, %v1279
        %v1281 = vpop.f32.mrf.mxu0
        %1282 = vmatprep.mubr.f32.mxu0 0.0
        %1283 = vmatmul.mubr.f32.gmra.mxu0 %v344
        %v1284 = vpop.f32.mrf.mxu0
        %v1285 = vadd.f32 0.0, %v1284
        %v1286 = vpop.f32.mrf.mxu0
        %1287 = vdwg.mxu0
        %1288 = vmatprep.subr.mxu0 0.0
        %1289 = vmatpush1.msra.mxu0 0.0
        %1290 = vmatprep.subr.mxu0 0.0
        %1291 = vmatpush1.msra.mxu0 0.0
        %1292 = vmatprep.subr.mxu0 0.0
        %1293 = vmatpush1.msra.mxu0 0.0
        %1294 = vmatprep.subr.mxu0 0.0
        %1295 = vmatpush1.msra.mxu0 0.0
        %1296 = vmatprep.subr.mxu0 0.0
        %1297 = vmatpush1.msra.mxu0 0.0
        %1298 = vmatprep.subr.mxu0 0.0
        %1299 = vmatpush1.msra.mxu0 0.0
        %1300 = vmatprep.subr.mxu0 0.0
        %1301 = vmatpush1.msra.mxu0 0.0
        %1302 = vmatprep.subr.mxu0 0.0
        %1303 = vmatpush1.msra.mxu0 0.0
        %1304 = vmatprep.subr.mxu0 0.0
        %1305 = vmatpush1.msra.mxu0 0.0
        %1306 = vmatprep.subr.mxu0 0.0
        %1307 = vmatpush1.msra.mxu0 0.0
        %1308 = vmatprep.subr.mxu0 0.0
        %1309 = vmatpush1.msra.mxu0 0.0
        %1310 = vmatprep.subr.mxu0 0.0
        %1311 = vmatpush1.msra.mxu0 0.0
        %1312 = vmatprep.subr.mxu0 0.0
        %1313 = vmatpush1.msra.mxu0 0.0
        %1314 = vmatprep.subr.mxu0 0.0
        %1315 = vmatpush1.msra.mxu0 0.0
        %1316 = vmatprep.subr.mxu0 0.0
        %1317 = vmatpush1.msra.mxu0 0.0
        %1318 = vmatprep.subr.mxu0 0.0
        %1319 = vmatpush1.msra.mxu0 %v1182
        %1320 = vmatprep.subr.mxu0 0.0
        %1321 = vmatpush2.msra.mxu0 0.0
        %1322 = vmatprep.subr.mxu0 0.0
        %1323 = vmatpush2.msra.mxu0 0.0
        %1324 = vmatprep.subr.mxu0 0.0
        %1325 = vmatpush2.msra.mxu0 0.0
        %1326 = vmatprep.subr.mxu0 0.0
        %1327 = vmatpush2.msra.mxu0 0.0
        %1328 = vmatprep.subr.mxu0 0.0
        %1329 = vmatpush2.msra.mxu0 0.0
        %1330 = vmatprep.subr.mxu0 0.0
        %1331 = vmatpush2.msra.mxu0 0.0
        %1332 = vmatprep.subr.mxu0 0.0
        %1333 = vmatpush2.msra.mxu0 0.0
        %1334 = vmatprep.subr.mxu0 0.0
        %1335 = vmatpush2.msra.mxu0 0.0
        %1336 = vmatprep.subr.mxu0 0.0
        %1337 = vmatpush2.msra.mxu0 0.0
        %1338 = vmatprep.subr.mxu0 0.0
        %1339 = vmatpush2.msra.mxu0 0.0
        %1340 = vmatprep.subr.mxu0 0.0
        %1341 = vmatpush2.msra.mxu0 0.0
        %1342 = vmatprep.subr.mxu0 0.0
        %1343 = vmatpush2.msra.mxu0 0.0
        %1344 = vmatprep.subr.mxu0 0.0
        %1345 = vmatpush2.msra.mxu0 0.0
        %1346 = vmatprep.subr.mxu0 0.0
        %1347 = vmatpush2.msra.mxu0 0.0
        %1348 = vmatprep.subr.mxu0 0.0
        %1349 = vmatpush2.msra.mxu0 0.0
        %1350 = vmatprep.subr.mxu0 0.0
        %1351 = vmatpush2.msra.mxu0 0.0
        %1352 = vmatprep.mubr.f32.mxu0 0.0
        %1353 = vmatmul.mubr.f32.gmra.mxu0 %v452
        %v1354 = vpop.f32.mrf.mxu0
        %v1355 = vadd.f32 0.0, %v1354
        %v1356 = vpop.f32.mrf.mxu0
        %1357 = vmatprep.mubr.f32.mxu0 0.0
        %1358 = vmatmul.mubr.f32.gmra.mxu0 %v455
        %v1359 = vpop.f32.mrf.mxu0
        %v1360 = vadd.f32 0.0, %v1359
        %v1361 = vpop.f32.mrf.mxu0
        %1362 = vmatprep.mubr.f32.mxu0 0.0
        %1363 = vmatmul.mubr.f32.gmra.mxu0 %v458
        %v1364 = vpop.f32.mrf.mxu0
        %v1365 = vadd.f32 0.0, %v1364
        %v1366 = vpop.f32.mrf.mxu0
        %1367 = vmatprep.mubr.f32.mxu0 0.0
        %1368 = vmatmul.mubr.f32.gmra.mxu0 %v461
        %v1369 = vpop.f32.mrf.mxu0
        %v1370 = vadd.f32 0.0, %v1369
        %v1371 = vpop.f32.mrf.mxu0
        %1372 = vdwg.mxu0
        %s1373 = scalar_lea.vmem %s3, 2
        %v1374 = vld [vmem:[%s1373] sm:$0x3]
        %v1376 = vsel %vm306, %v1374, 0
        %v1379 = vsel %vm306, %v1250, 0
        %v1382 = vsel %vm306, %v1255, 0
        %v1385 = vsel %vm306, %v1260, 0
        %v1388 = vsel %vm306, %v1265, 0
        %v1391 = vsel %vm306, %v1270, 0
        %v1394 = vsel %vm306, %v1275, 0
        %v1397 = vsel %vm306, %v1280, 0
        %v1400 = vsel %vm306, %v1285, 0
        %1402 = vmatprep.subr.mxu0 0.0
        %1403 = vmatpush1.xpose.msra.mxu0 0.0
        %1404 = vmatprep.subr.mxu0 0.0
        %1405 = vmatpush1.xpose.msra.mxu0 0.0
        %1406 = vmatprep.subr.mxu0 0.0
        %1407 = vmatpush1.xpose.msra.mxu0 0.0
        %1408 = vmatprep.subr.mxu0 0.0
        %1409 = vmatpush1.xpose.msra.mxu0 0.0
        %1410 = vmatprep.subr.mxu0 0.0
        %1411 = vmatpush1.xpose.msra.mxu0 0.0
        %1412 = vmatprep.subr.mxu0 0.0
        %1413 = vmatpush1.xpose.msra.mxu0 0.0
        %1414 = vmatprep.subr.mxu0 0.0
        %1415 = vmatpush1.xpose.msra.mxu0 0.0
        %1416 = vmatprep.subr.mxu0 0.0
        %1417 = vmatpush1.xpose.msra.mxu0 0.0
        %1418 = vmatprep.subr.mxu0 0.0
        %1419 = vmatpush1.xpose.msra.mxu0 %v1400
        %1420 = vmatprep.subr.mxu0 0.0
        %1421 = vmatpush1.xpose.msra.mxu0 %v1397
        %1422 = vmatprep.subr.mxu0 0.0
        %1423 = vmatpush1.xpose.msra.mxu0 %v1394
        %1424 = vmatprep.subr.mxu0 0.0
        %1425 = vmatpush1.xpose.msra.mxu0 %v1391
        %1426 = vmatprep.subr.mxu0 0.0
        %1427 = vmatpush1.xpose.msra.mxu0 %v1388
        %1428 = vmatprep.subr.mxu0 0.0
        %1429 = vmatpush1.xpose.msra.mxu0 %v1385
        %1430 = vmatprep.subr.mxu0 0.0
        %1431 = vmatpush1.xpose.msra.mxu0 %v1382
        %1432 = vmatprep.subr.mxu0 0.0
        %1433 = vmatpush1.xpose.msra.mxu0 %v1379
        %1434 = vmatprep.subr.mxu0 0.0
        %1435 = vmatpush2.xpose.msra.mxu0 0.0
        %1436 = vmatprep.subr.mxu0 0.0
        %1437 = vmatpush2.xpose.msra.mxu0 0.0
        %1438 = vmatprep.subr.mxu0 0.0
        %1439 = vmatpush2.xpose.msra.mxu0 0.0
        %1440 = vmatprep.subr.mxu0 0.0
        %1441 = vmatpush2.xpose.msra.mxu0 0.0
        %1442 = vmatprep.subr.mxu0 0.0
        %1443 = vmatpush2.xpose.msra.mxu0 0.0
        %1444 = vmatprep.subr.mxu0 0.0
        %1445 = vmatpush2.xpose.msra.mxu0 0.0
        %1446 = vmatprep.subr.mxu0 0.0
        %1447 = vmatpush2.xpose.msra.mxu0 0.0
        %1448 = vmatprep.subr.mxu0 0.0
        %1449 = vmatpush2.xpose.msra.mxu0 0.0
        %1450 = vmatprep.subr.mxu0 0.0
        %1451 = vmatpush2.xpose.msra.mxu0 0.0
        %1452 = vmatprep.subr.mxu0 0.0
        %1453 = vmatpush2.xpose.msra.mxu0 0.0
        %1454 = vmatprep.subr.mxu0 0.0
        %1455 = vmatpush2.xpose.msra.mxu0 0.0
        %1456 = vmatprep.subr.mxu0 0.0
        %1457 = vmatpush2.xpose.msra.mxu0 0.0
        %1458 = vmatprep.subr.mxu0 0.0
        %1459 = vmatpush2.xpose.msra.mxu0 0.0
        %1460 = vmatprep.subr.mxu0 0.0
        %1461 = vmatpush2.xpose.msra.mxu0 0.0
        %1462 = vmatprep.subr.mxu0 0.0
        %1463 = vmatpush2.xpose.msra.mxu0 0.0
        %1464 = vmatprep.subr.mxu0 0.0
        %1465 = vmatpush2.xpose.msra.mxu0 0.0
        %1466 = vmatprep.mubr.f32.mxu0 0.0
        %1467 = vmatmul.mubr.f32.gmra.mxu0 %v1376
        %v1468 = vpop.f32.mrf.mxu0
        %v1469 = vadd.f32 0.0, %v1468
        %v1470 = vpop.f32.mrf.mxu0
        %1471 = vdwg.mxu0
        %s1472 = scalar_lea.vmem %s4, 2
        %v1473 = vld [vmem:[%s1472] sm:$0x3]
        %v1475 = vsel %vm306, %v1355, 0
        %v1478 = vsel %vm306, %v1360, 0
        %v1481 = vsel %vm306, %v1365, 0
        %v1484 = vsel %vm306, %v1370, 0
        %v1487 = vsel %vm306, %v1473, 0
        %1489 = vmatprep.subr.mxu0 0.0
        %1490 = vmatpush1.xpose.msra.mxu0 0.0
        %1491 = vmatprep.subr.mxu0 0.0
        %1492 = vmatpush1.xpose.msra.mxu0 0.0
        %1493 = vmatprep.subr.mxu0 0.0
        %1494 = vmatpush1.xpose.msra.mxu0 0.0
        %1495 = vmatprep.subr.mxu0 0.0
        %1496 = vmatpush1.xpose.msra.mxu0 0.0
        %1497 = vmatprep.subr.mxu0 0.0
        %1498 = vmatpush1.xpose.msra.mxu0 0.0
        %1499 = vmatprep.subr.mxu0 0.0
        %1500 = vmatpush1.xpose.msra.mxu0 0.0
        %1501 = vmatprep.subr.mxu0 0.0
        %1502 = vmatpush1.xpose.msra.mxu0 0.0
        %1503 = vmatprep.subr.mxu0 0.0
        %1504 = vmatpush1.xpose.msra.mxu0 0.0
        %1505 = vmatprep.subr.mxu0 0.0
        %1506 = vmatpush1.xpose.msra.mxu0 0.0
        %1507 = vmatprep.subr.mxu0 0.0
        %1508 = vmatpush1.xpose.msra.mxu0 0.0
        %1509 = vmatprep.subr.mxu0 0.0
        %1510 = vmatpush1.xpose.msra.mxu0 0.0
        %1511 = vmatprep.subr.mxu0 0.0
        %1512 = vmatpush1.xpose.msra.mxu0 0.0
        %1513 = vmatprep.subr.mxu0 0.0
        %1514 = vmatpush1.xpose.msra.mxu0 0.0
        %1515 = vmatprep.subr.mxu0 0.0
        %1516 = vmatpush1.xpose.msra.mxu0 0.0
        %1517 = vmatprep.subr.mxu0 0.0
        %1518 = vmatpush1.xpose.msra.mxu0 0.0
        %1519 = vmatprep.subr.mxu0 0.0
        %1520 = vmatpush1.xpose.msra.mxu0 %v1487
        %1521 = vmatprep.subr.mxu0 0.0
        %1522 = vmatpush2.xpose.msra.mxu0 0.0
        %1523 = vmatprep.subr.mxu0 0.0
        %1524 = vmatpush2.xpose.msra.mxu0 0.0
        %1525 = vmatprep.subr.mxu0 0.0
        %1526 = vmatpush2.xpose.msra.mxu0 0.0
        %1527 = vmatprep.subr.mxu0 0.0
        %1528 = vmatpush2.xpose.msra.mxu0 0.0
        %1529 = vmatprep.subr.mxu0 0.0
        %1530 = vmatpush2.xpose.msra.mxu0 0.0
        %1531 = vmatprep.subr.mxu0 0.0
        %1532 = vmatpush2.xpose.msra.mxu0 0.0
        %1533 = vmatprep.subr.mxu0 0.0
        %1534 = vmatpush2.xpose.msra.mxu0 0.0
        %1535 = vmatprep.subr.mxu0 0.0
        %1536 = vmatpush2.xpose.msra.mxu0 0.0
        %1537 = vmatprep.subr.mxu0 0.0
        %1538 = vmatpush2.xpose.msra.mxu0 0.0
        %1539 = vmatprep.subr.mxu0 0.0
        %1540 = vmatpush2.xpose.msra.mxu0 0.0
        %1541 = vmatprep.subr.mxu0 0.0
        %1542 = vmatpush2.xpose.msra.mxu0 0.0
        %1543 = vmatprep.subr.mxu0 0.0
        %1544 = vmatpush2.xpose.msra.mxu0 0.0
        %1545 = vmatprep.subr.mxu0 0.0
        %1546 = vmatpush2.xpose.msra.mxu0 0.0
        %1547 = vmatprep.subr.mxu0 0.0
        %1548 = vmatpush2.xpose.msra.mxu0 0.0
        %1549 = vmatprep.subr.mxu0 0.0
        %1550 = vmatpush2.xpose.msra.mxu0 0.0
        %1551 = vmatprep.subr.mxu0 0.0
        %1552 = vmatpush2.xpose.msra.mxu0 0.0
        %1553 = vmatprep.mubr.f32.mxu0 0.0
        %1554 = vmatmul.mubr.f32.gmra.mxu0 %v1475
        %v1555 = vpop.f32.mrf.mxu0
        %v1556 = vadd.f32 0.0, %v1555
        %v1557 = vpop.f32.mrf.mxu0
        %1558 = vmatprep.mubr.f32.mxu0 0.0
        %1559 = vmatmul.mubr.f32.gmra.mxu0 %v1478
        %v1560 = vpop.f32.mrf.mxu0
        %v1561 = vadd.f32 0.0, %v1560
        %v1562 = vpop.f32.mrf.mxu0
        %1563 = vmatprep.mubr.f32.mxu0 0.0
        %1564 = vmatmul.mubr.f32.gmra.mxu0 %v1481
        %v1565 = vpop.f32.mrf.mxu0
        %v1566 = vadd.f32 0.0, %v1565
        %v1567 = vpop.f32.mrf.mxu0
        %1568 = vmatprep.mubr.f32.mxu0 0.0
        %1569 = vmatmul.mubr.f32.gmra.mxu0 %v1484
        %v1570 = vpop.f32.mrf.mxu0
        %v1571 = vadd.f32 0.0, %v1570
        %v1572 = vpop.f32.mrf.mxu0
        %1573 = vdwg.mxu0
        %1575 = vset.pattern.permute.xlu0 0
        %1576 = vperm.xlu0 %1575, %v1556
        %v1577 = vpop.permute.xlu0 %1576
        %1580 = vset.pattern.permute.xlu0 0
        %1581 = vperm.xlu0 %1580, %v1561
        %v1582 = vpop.permute.xlu0 %1581
        %1585 = vset.pattern.permute.xlu0 0
        %1586 = vperm.xlu0 %1585, %v1566
        %v1587 = vpop.permute.xlu0 %1586
        %1590 = vset.pattern.permute.xlu0 0
        %1591 = vperm.xlu0 %1590, %v1571
        %v1592 = vpop.permute.xlu0 %1591
        %v1594 = vlaneseq
        %v1595 = vshrl.u32 %v1594, 7
        %v1596 = vsub.s32 0, %v1595
        %v1597 = vrot.slane %v1469, %v1596
        %v1598 = vadd.f32 %v1577, %v1597
        %v1599 = vadd.f32 %v1582, %v1597
        %v1600 = vadd.f32 %v1587, %v1597
        %v1601 = vadd.f32 %v1592, %v1597
        %v1602 = vmul.f32 %v1598, 0.2
        %v1603 = vmul.f32 %v1599, 0.2
        %v1604 = vmul.f32 %v1600, 0.2
        %v1605 = vmul.f32 %v1601, 0.2
        %v1606 = vmax.f32 %v1598, %v1602
        %v1607 = vmax.f32 %v1599, %v1603
        %v1608 = vmax.f32 %v1600, %v1604
        %v1609 = vmax.f32 %v1601, %v1605
        %v1610 = vsel %vm1177, %v1606, -1e+30
        %v1611 = vsel %vm1178, %v1607, -1e+30
        %v1612 = vsel %vm1179, %v1608, -1e+30
        %v1613 = vsel %vm1180, %v1609, -1e+30
        %v1614 = vsel %vm306, %v1610, -inf
        %1615 = vmax.xlane.f32.xlu0 %v1614
        %v1616 = vpop.xlane.xlu0 %1615
        %v1617 = vsel %vm306, %v1611, -inf
        %1618 = vmax.xlane.f32.xlu0 %v1617
        %v1619 = vpop.xlane.xlu0 %1618
        %v1620 = vsel %vm306, %v1612, -inf
        %1621 = vmax.xlane.f32.xlu0 %v1620
        %v1622 = vpop.xlane.xlu0 %1621
        %v1623 = vsel %vm306, %v1613, -inf
        %1624 = vmax.xlane.f32.xlu0 %v1623
        %v1625 = vpop.xlane.xlu0 %1624
        %v1626 = vsub.f32 %v1610, %v1616
        %v1627 = vsub.f32 %v1611, %v1619
        %v1628 = vsub.f32 %v1612, %v1622
        %v1629 = vsub.f32 %v1613, %v1625
        %v1630 = vmul.f32 %v1626, 1.442695
        %v1631 = vpow.pop %v1630
        %v1632 = vmul.f32 %v1627, 1.442695
        %v1633 = vpow.pop %v1632
        %v1634 = vmul.f32 %v1628, 1.442695
        %v1635 = vpow.pop %v1634
        %v1636 = vmul.f32 %v1629, 1.442695
        %v1637 = vpow.pop %v1636
        %v1638 = vsel %vm306, %v1631, 0.0
        %1639 = vadd.xlane.f32.xlu0 %v1638
        %v1640 = vpop.xlane.xlu0 %1639
        %v1641 = vsel %vm306, %v1633, 0.0
        %1642 = vadd.xlane.f32.xlu0 %v1641
        %v1643 = vpop.xlane.xlu0 %1642
        %v1644 = vsel %vm306, %v1635, 0.0
        %1645 = vadd.xlane.f32.xlu0 %v1644
        %v1646 = vpop.xlane.xlu0 %1645
        %v1647 = vsel %vm306, %v1637, 0.0
        %1648 = vadd.xlane.f32.xlu0 %v1647
        %v1649 = vpop.xlane.xlu0 %1648
        %v1650 = vrcp.pop %v1640
        %v1651 = vrcp.pop %v1643
        %v1652 = vrcp.pop %v1646
        %v1653 = vrcp.pop %v1649
        %v1655 = vsel %vm306, %v1631, 0
        %v1658 = vsel %vm306, %v1633, 0
        %v1661 = vsel %vm306, %v1635, 0
        %v1664 = vsel %vm306, %v1637, 0
        %1666 = vmatprep.subr.mxu0 0.0
        %1667 = vmatpush1.msra.mxu0 0.0
        %1668 = vmatprep.subr.mxu0 0.0
        %1669 = vmatpush1.msra.mxu0 0.0
        %1670 = vmatprep.subr.mxu0 0.0
        %1671 = vmatpush1.msra.mxu0 0.0
        %1672 = vmatprep.subr.mxu0 0.0
        %1673 = vmatpush1.msra.mxu0 0.0
        %1674 = vmatprep.subr.mxu0 0.0
        %1675 = vmatpush1.msra.mxu0 0.0
        %1676 = vmatprep.subr.mxu0 0.0
        %1677 = vmatpush1.msra.mxu0 0.0
        %1678 = vmatprep.subr.mxu0 0.0
        %1679 = vmatpush1.msra.mxu0 0.0
        %1680 = vmatprep.subr.mxu0 0.0
        %1681 = vmatpush1.msra.mxu0 0.0
        %1682 = vmatprep.subr.mxu0 0.0
        %1683 = vmatpush1.msra.mxu0 %v1285
        %1684 = vmatprep.subr.mxu0 0.0
        %1685 = vmatpush1.msra.mxu0 %v1280
        %1686 = vmatprep.subr.mxu0 0.0
        %1687 = vmatpush1.msra.mxu0 %v1275
        %1688 = vmatprep.subr.mxu0 0.0
        %1689 = vmatpush1.msra.mxu0 %v1270
        %1690 = vmatprep.subr.mxu0 0.0
        %1691 = vmatpush1.msra.mxu0 %v1265
        %1692 = vmatprep.subr.mxu0 0.0
        %1693 = vmatpush1.msra.mxu0 %v1260
        %1694 = vmatprep.subr.mxu0 0.0
        %1695 = vmatpush1.msra.mxu0 %v1255
        %1696 = vmatprep.subr.mxu0 0.0
        %1697 = vmatpush1.msra.mxu0 %v1250
        %1698 = vmatprep.subr.mxu0 0.0
        %1699 = vmatpush2.msra.mxu0 0.0
        %1700 = vmatprep.subr.mxu0 0.0
        %1701 = vmatpush2.msra.mxu0 0.0
        %1702 = vmatprep.subr.mxu0 0.0
        %1703 = vmatpush2.msra.mxu0 0.0
        %1704 = vmatprep.subr.mxu0 0.0
        %1705 = vmatpush2.msra.mxu0 0.0
        %1706 = vmatprep.subr.mxu0 0.0
        %1707 = vmatpush2.msra.mxu0 0.0
        %1708 = vmatprep.subr.mxu0 0.0
        %1709 = vmatpush2.msra.mxu0 0.0
        %1710 = vmatprep.subr.mxu0 0.0
        %1711 = vmatpush2.msra.mxu0 0.0
        %1712 = vmatprep.subr.mxu0 0.0
        %1713 = vmatpush2.msra.mxu0 0.0
        %1714 = vmatprep.subr.mxu0 0.0
        %1715 = vmatpush2.msra.mxu0 0.0
        %1716 = vmatprep.subr.mxu0 0.0
        %1717 = vmatpush2.msra.mxu0 0.0
        %1718 = vmatprep.subr.mxu0 0.0
        %1719 = vmatpush2.msra.mxu0 0.0
        %1720 = vmatprep.subr.mxu0 0.0
        %1721 = vmatpush2.msra.mxu0 0.0
        %1722 = vmatprep.subr.mxu0 0.0
        %1723 = vmatpush2.msra.mxu0 0.0
        %1724 = vmatprep.subr.mxu0 0.0
        %1725 = vmatpush2.msra.mxu0 0.0
        %1726 = vmatprep.subr.mxu0 0.0
        %1727 = vmatpush2.msra.mxu0 0.0
        %1728 = vmatprep.subr.mxu0 0.0
        %1729 = vmatpush2.msra.mxu0 0.0
        %1730 = vmatprep.mubr.f32.mxu0 0.0
        %1731 = vmatmul.mubr.f32.gmra.mxu0 %v1655
        %v1732 = vpop.f32.mrf.mxu0
        %v1733 = vadd.f32 0.0, %v1732
        %v1734 = vpop.f32.mrf.mxu0
        %1735 = vmatprep.mubr.f32.mxu0 0.0
        %1736 = vmatmul.mubr.f32.gmra.mxu0 %v1658
        %v1737 = vpop.f32.mrf.mxu0
        %v1738 = vadd.f32 0.0, %v1737
        %v1739 = vpop.f32.mrf.mxu0
        %1740 = vmatprep.mubr.f32.mxu0 0.0
        %1741 = vmatmul.mubr.f32.gmra.mxu0 %v1661
        %v1742 = vpop.f32.mrf.mxu0
        %v1743 = vadd.f32 0.0, %v1742
        %v1744 = vpop.f32.mrf.mxu0
        %1745 = vmatprep.mubr.f32.mxu0 0.0
        %1746 = vmatmul.mubr.f32.gmra.mxu0 %v1664
        %v1747 = vpop.f32.mrf.mxu0
        %v1748 = vadd.f32 0.0, %v1747
        %v1749 = vpop.f32.mrf.mxu0
        %1750 = vdwg.mxu0
        %v1751 = vld [vmem:[%s290] sm:$0xff]
        %v1752 = vld [vmem:[%s290 + $0x8] sm:$0xff]
        %v1753 = vld [vmem:[%s290 + $0x10] sm:$0xff]
        %v1754 = vld [vmem:[%s290 + $0x18] sm:$0xff]
        %v1755 = vmul.f32 %v1733, %v1650
        %v1756 = vmul.f32 %v1738, %v1651
        %v1757 = vmul.f32 %v1743, %v1652
        %v1758 = vmul.f32 %v1748, %v1653
        %v1759 = vadd.f32 %v1751, %v1755
        %v1760 = vadd.f32 %v1752, %v1756
        %v1761 = vadd.f32 %v1753, %v1757
        %v1762 = vadd.f32 %v1754, %v1758
        %1763 = vst.msk [vmem:[%s290] sm:$0xff] %vm936, %v1759
        %1764 = vst.msk [vmem:[%s290 + $0x8] sm:$0xff] %vm936, %v1760
        %1765 = vst.msk [vmem:[%s290 + $0x10] sm:$0xff] %vm936, %v1761
        %1766 = vst.msk [vmem:[%s290 + $0x18] sm:$0xff] %vm936, %v1762
        %1767 = vset.pattern.permute.xlu0 1
        %1768 = vperm.xlu0 %1767, %v1556
        %v1769 = vpop.permute.xlu0 %1768
        %1771 = vset.pattern.permute.xlu0 1
        %1772 = vperm.xlu0 %1771, %v1561
        %v1773 = vpop.permute.xlu0 %1772
        %1775 = vset.pattern.permute.xlu0 1
        %1776 = vperm.xlu0 %1775, %v1566
        %v1777 = vpop.permute.xlu0 %1776
        %1779 = vset.pattern.permute.xlu0 1
        %1780 = vperm.xlu0 %1779, %v1571
        %v1781 = vpop.permute.xlu0 %1780
        %v1783 = vlaneseq
        %v1784 = vshrl.u32 %v1783, 7
        %v1785 = vsub.s32 1, %v1784
        %v1786 = vrot.slane %v1469, %v1785
        %v1787 = vadd.f32 %v1769, %v1786
        %v1788 = vadd.f32 %v1773, %v1786
        %v1789 = vadd.f32 %v1777, %v1786
        %v1790 = vadd.f32 %v1781, %v1786
        %v1791 = vmul.f32 %v1787, 0.2
        %v1792 = vmul.f32 %v1788, 0.2
        %v1793 = vmul.f32 %v1789, 0.2
        %v1794 = vmul.f32 %v1790, 0.2
        %v1795 = vmax.f32 %v1787, %v1791
        %v1796 = vmax.f32 %v1788, %v1792
        %v1797 = vmax.f32 %v1789, %v1793
        %v1798 = vmax.f32 %v1790, %v1794
        %v1799 = vsel %vm1177, %v1795, -1e+30
        %v1800 = vsel %vm1178, %v1796, -1e+30
        %v1801 = vsel %vm1179, %v1797, -1e+30
        %v1802 = vsel %vm1180, %v1798, -1e+30
        %v1803 = vsel %vm306, %v1799, -inf
        %1804 = vmax.xlane.f32.xlu0 %v1803
        %v1805 = vpop.xlane.xlu0 %1804
        %v1806 = vsel %vm306, %v1800, -inf
        %1807 = vmax.xlane.f32.xlu0 %v1806
        %v1808 = vpop.xlane.xlu0 %1807
        %v1809 = vsel %vm306, %v1801, -inf
        %1810 = vmax.xlane.f32.xlu0 %v1809
        %v1811 = vpop.xlane.xlu0 %1810
        %v1812 = vsel %vm306, %v1802, -inf
        %1813 = vmax.xlane.f32.xlu0 %v1812
        %v1814 = vpop.xlane.xlu0 %1813
        %v1815 = vsub.f32 %v1799, %v1805
        %v1816 = vsub.f32 %v1800, %v1808
        %v1817 = vsub.f32 %v1801, %v1811
        %v1818 = vsub.f32 %v1802, %v1814
        %v1819 = vmul.f32 %v1815, 1.442695
        %v1820 = vpow.pop %v1819
        %v1821 = vmul.f32 %v1816, 1.442695
        %v1822 = vpow.pop %v1821
        %v1823 = vmul.f32 %v1817, 1.442695
        %v1824 = vpow.pop %v1823
        %v1825 = vmul.f32 %v1818, 1.442695
        %v1826 = vpow.pop %v1825
        %v1827 = vsel %vm306, %v1820, 0.0
        %1828 = vadd.xlane.f32.xlu0 %v1827
        %v1829 = vpop.xlane.xlu0 %1828
        %v1830 = vsel %vm306, %v1822, 0.0
        %1831 = vadd.xlane.f32.xlu0 %v1830
        %v1832 = vpop.xlane.xlu0 %1831
        %v1833 = vsel %vm306, %v1824, 0.0
        %1834 = vadd.xlane.f32.xlu0 %v1833
        %v1835 = vpop.xlane.xlu0 %1834
        %v1836 = vsel %vm306, %v1826, 0.0
        %1837 = vadd.xlane.f32.xlu0 %v1836
        %v1838 = vpop.xlane.xlu0 %1837
        %v1839 = vrcp.pop %v1829
        %v1840 = vrcp.pop %v1832
        %v1841 = vrcp.pop %v1835
        %v1842 = vrcp.pop %v1838
        %1843 = vrot.lane.b32.xlu0 %v1250, 96
        %v1844 = vpop.permute.xlu0 %1843
        %1845 = vrot.lane.b32.xlu0 %v1255, 96
        %v1846 = vpop.permute.xlu0 %1845
        %1847 = vrot.lane.b32.xlu0 %v1260, 96
        %v1848 = vpop.permute.xlu0 %1847
        %1849 = vrot.lane.b32.xlu0 %v1265, 96
        %v1850 = vpop.permute.xlu0 %1849
        %1851 = vrot.lane.b32.xlu0 %v1270, 96
        %v1852 = vpop.permute.xlu0 %1851
        %1853 = vrot.lane.b32.xlu0 %v1275, 96
        %v1854 = vpop.permute.xlu0 %1853
        %1855 = vrot.lane.b32.xlu0 %v1280, 96
        %v1856 = vpop.permute.xlu0 %1855
        %1857 = vrot.lane.b32.xlu0 %v1285, 96
        %v1858 = vpop.permute.xlu0 %1857
        %v1868 = vsel %vm306, %v1820, 0
        %v1871 = vsel %vm306, %v1822, 0
        %v1874 = vsel %vm306, %v1824, 0
        %v1877 = vsel %vm306, %v1826, 0
        %1879 = vmatprep.subr.mxu0 0.0
        %1880 = vmatpush1.msra.mxu0 0.0
        %1881 = vmatprep.subr.mxu0 0.0
        %1882 = vmatpush1.msra.mxu0 0.0
        %1883 = vmatprep.subr.mxu0 0.0
        %1884 = vmatpush1.msra.mxu0 0.0
        %1885 = vmatprep.subr.mxu0 0.0
        %1886 = vmatpush1.msra.mxu0 0.0
        %1887 = vmatprep.subr.mxu0 0.0
        %1888 = vmatpush1.msra.mxu0 0.0
        %1889 = vmatprep.subr.mxu0 0.0
        %1890 = vmatpush1.msra.mxu0 0.0
        %1891 = vmatprep.subr.mxu0 0.0
        %1892 = vmatpush1.msra.mxu0 0.0
        %1893 = vmatprep.subr.mxu0 0.0
        %1894 = vmatpush1.msra.mxu0 0.0
        %1895 = vmatprep.subr.mxu0 0.0
        %1896 = vmatpush1.msra.mxu0 %v1858
        %1897 = vmatprep.subr.mxu0 0.0
        %1898 = vmatpush1.msra.mxu0 %v1856
        %1899 = vmatprep.subr.mxu0 0.0
        %1900 = vmatpush1.msra.mxu0 %v1854
        %1901 = vmatprep.subr.mxu0 0.0
        %1902 = vmatpush1.msra.mxu0 %v1852
        %1903 = vmatprep.subr.mxu0 0.0
        %1904 = vmatpush1.msra.mxu0 %v1850
        %1905 = vmatprep.subr.mxu0 0.0
        %1906 = vmatpush1.msra.mxu0 %v1848
        %1907 = vmatprep.subr.mxu0 0.0
        %1908 = vmatpush1.msra.mxu0 %v1846
        %1909 = vmatprep.subr.mxu0 0.0
        %1910 = vmatpush1.msra.mxu0 %v1844
        %1911 = vmatprep.subr.mxu0 0.0
        %1912 = vmatpush2.msra.mxu0 0.0
        %1913 = vmatprep.subr.mxu0 0.0
        %1914 = vmatpush2.msra.mxu0 0.0
        %1915 = vmatprep.subr.mxu0 0.0
        %1916 = vmatpush2.msra.mxu0 0.0
        %1917 = vmatprep.subr.mxu0 0.0
        %1918 = vmatpush2.msra.mxu0 0.0
        %1919 = vmatprep.subr.mxu0 0.0
        %1920 = vmatpush2.msra.mxu0 0.0
        %1921 = vmatprep.subr.mxu0 0.0
        %1922 = vmatpush2.msra.mxu0 0.0
        %1923 = vmatprep.subr.mxu0 0.0
        %1924 = vmatpush2.msra.mxu0 0.0
        %1925 = vmatprep.subr.mxu0 0.0
        %1926 = vmatpush2.msra.mxu0 0.0
        %1927 = vmatprep.subr.mxu0 0.0
        %1928 = vmatpush2.msra.mxu0 0.0
        %1929 = vmatprep.subr.mxu0 0.0
        %1930 = vmatpush2.msra.mxu0 0.0
        %1931 = vmatprep.subr.mxu0 0.0
        %1932 = vmatpush2.msra.mxu0 0.0
        %1933 = vmatprep.subr.mxu0 0.0
        %1934 = vmatpush2.msra.mxu0 0.0
        %1935 = vmatprep.subr.mxu0 0.0
        %1936 = vmatpush2.msra.mxu0 0.0
        %1937 = vmatprep.subr.mxu0 0.0
        %1938 = vmatpush2.msra.mxu0 0.0
        %1939 = vmatprep.subr.mxu0 0.0
        %1940 = vmatpush2.msra.mxu0 0.0
        %1941 = vmatprep.subr.mxu0 0.0
        %1942 = vmatpush2.msra.mxu0 0.0
        %1943 = vmatprep.mubr.f32.mxu0 0.0
        %1944 = vmatmul.mubr.f32.gmra.mxu0 %v1868
        %v1945 = vpop.f32.mrf.mxu0
        %v1946 = vadd.f32 0.0, %v1945
        %v1947 = vpop.f32.mrf.mxu0
        %1948 = vmatprep.mubr.f32.mxu0 0.0
        %1949 = vmatmul.mubr.f32.gmra.mxu0 %v1871
        %v1950 = vpop.f32.mrf.mxu0
        %v1951 = vadd.f32 0.0, %v1950
        %v1952 = vpop.f32.mrf.mxu0
        %1953 = vmatprep.mubr.f32.mxu0 0.0
        %1954 = vmatmul.mubr.f32.gmra.mxu0 %v1874
        %v1955 = vpop.f32.mrf.mxu0
        %v1956 = vadd.f32 0.0, %v1955
        %v1957 = vpop.f32.mrf.mxu0
        %1958 = vmatprep.mubr.f32.mxu0 0.0
        %1959 = vmatmul.mubr.f32.gmra.mxu0 %v1877
        %v1960 = vpop.f32.mrf.mxu0
        %v1961 = vadd.f32 0.0, %v1960
        %v1962 = vpop.f32.mrf.mxu0
        %1963 = vdwg.mxu0
        %v1964 = vld [vmem:[%s290] sm:$0xff]
        %v1965 = vld [vmem:[%s290 + $0x8] sm:$0xff]
        %v1966 = vld [vmem:[%s290 + $0x10] sm:$0xff]
        %v1967 = vld [vmem:[%s290 + $0x18] sm:$0xff]
        %v1968 = vmul.f32 %v1946, %v1839
        %v1969 = vmul.f32 %v1951, %v1840
        %v1970 = vmul.f32 %v1956, %v1841
        %v1971 = vmul.f32 %v1961, %v1842
        %1976 = vrot.lane.b32.xlu0 %v1968, 32
        %v1977 = vpop.permute.xlu0 %1976
        %1978 = vrot.lane.b32.xlu0 %v1969, 32
        %v1979 = vpop.permute.xlu0 %1978
        %1980 = vrot.lane.b32.xlu0 %v1970, 32
        %v1981 = vpop.permute.xlu0 %1980
        %1982 = vrot.lane.b32.xlu0 %v1971, 32
        %v1983 = vpop.permute.xlu0 %1982
        %v1988 = vadd.f32 %v1964, %v1977
        %v1989 = vadd.f32 %v1965, %v1979
        %v1990 = vadd.f32 %v1966, %v1981
        %v1991 = vadd.f32 %v1967, %v1983
        %1992 = vst.msk [vmem:[%s290] sm:$0xff] %vm1166, %v1988
        %1993 = vst.msk [vmem:[%s290 + $0x8] sm:$0xff] %vm1166, %v1989
        %1994 = vst.msk [vmem:[%s290 + $0x10] sm:$0xff] %vm1166, %v1990
        %1995 = vst.msk [vmem:[%s290 + $0x18] sm:$0xff] %vm1166, %v1991
        %v1996 = vld [vmem:[%s290] sm:$0xff]
        %v1997 = vld [vmem:[%s290 + $0x8] sm:$0xff]
        %v1998 = vld [vmem:[%s290 + $0x10] sm:$0xff]
        %v1999 = vld [vmem:[%s290 + $0x18] sm:$0xff]
        %v2000 = vld [vmem:[%s5] sm:$0x1]
        %v2002 = vlaneseq
        %v2003 = vshrl.u32 %v2002, 7
        %v2004 = vsub.s32 0, %v2003
        %v2005 = vrot.slane %v2000, %v2004
        %v2007 = vadd.f32 %v1996, %v2005
        %v2008 = vadd.f32 %v1997, %v2005
        %v2009 = vadd.f32 %v1998, %v2005
        %v2010 = vadd.f32 %v1999, %v2005
        %v2011 = vmax.f32 %v2007, 0.0
        %v2012 = vmax.f32 %v2008, 0.0
        %v2013 = vmax.f32 %v2009, 0.0
        %v2014 = vmax.f32 %v2010, 0.0
        %2015 = vst.msk [vmem:[%s290] sm:$0xff] %vm306, %v2011
        %2016 = vst.msk [vmem:[%s290 + $0x8] sm:$0xff] %vm306, %v2012
        %2017 = vst.msk [vmem:[%s290 + $0x10] sm:$0xff] %vm306, %v2013
        %2018 = vst.msk [vmem:[%s290 + $0x18] sm:$0xff] %vm306, %v2014
        %s2019 = smul.u32 4, %s17
        %p2020 = scmp.lt.s32.totalorder %s2019, 7
        %s2021 = scalar_select %p2020, %s2019, 7
        %s2022 = smul.addr %s2021, 8
        %s2023 = scalar_lea.vmem %s6, %s2022
        // Predicated region
        $region83: #{hetero_gat_forward.3} parent=77 // pred_check
          %p2024 = pneg %p166
        $region84: #{hetero_gat_forward.3} parent=77 // pred_check_branch
          %2026 = sbr.rel (%p2024) target = $region86
        $region85: #{hetero_gat_forward.3} parent=77 // pred_region
          %s2027 = smul.u32 4, %s17
        $region86: #{hetero_gat_forward.3} parent=77 // pred_fallthru
          _
      $region78: #{hetero_gat_forward.3} parent=5 // pred_fallthru
        _
      %p2028 = scmp.le.s32.totalorder 2, %s12
      // Predicated region
      $region87: #{hetero_gat_forward.3} parent=5 // pred_check
        %p2029 = pneg %p2028
      $region88: #{hetero_gat_forward.3} parent=5 // pred_check_branch
        %2031 = sbr.rel (%p2029) target = $region90
      $region89: #{hetero_gat_forward.3} parent=5 // pred_region
        %s2032 = ssub.s32 %s12, 2
        // Predicated region
        $region91: #{hetero_gat_forward.3} parent=89 // pred_check
          %p2033 = pneg %p172
        $region92: #{hetero_gat_forward.3} parent=89 // pred_check_branch
          %2035 = sbr.rel (%p2033) target = $region94
        $region93: #{hetero_gat_forward.3} parent=89 // pred_region
          %s2036 = smul.u32 4, %s18
          %p2037 = scmp.lt.s32.totalorder %s2036, 7
          %s2038 = scalar_select %p2037, %s2036, 7
          %s2039 = smul.addr %s2038, 8
          %s2040 = scalar_lea.vmem %s6, %s2039
        $region94: #{hetero_gat_forward.3} parent=89 // pred_fallthru
          _
      $region90: #{hetero_gat_forward.3} parent=5 // pred_fallthru
        _
    $region6: #{hetero_gat_forward.3} parent=1 // loop_footer
      %s16 = sadd.s32 1, %s12
    $region7: #{hetero_gat_forward.3} parent=1 // loop_footer_branch
      %11 = sbr.rel target = $region3
    $region8: #{hetero_gat_forward.3} parent=1 // loop_exit
      _

// kernel: mul.29
$region0: #{mul.29}
  %s0 = inlined_call_operand.vmem [shape: f32[2,64], index: 0, kind: input, shape index: {}]
  %s1 = inlined_call_operand.vmem [shape: f32[2,2,32], index: 1, kind: output, shape index: {}]
  $region1: #{mul.29} parent=0
    #allocation0 [shape = 'u8[8192]{0}', space=vmem, size = 0x2000, scoped, tag = 'scoped mem for output reshape']
    #allocation1 [shape = 'u8[4096]{0}', space=vmem, size = 0x1000, scoped, tag = 'scoped mem for input reshape']
    %s3 = sshll.u32 1, 2
    %s4 = ssub.s32 %s3, 1
    %v5 = vld [vmem:[%s0] sm:%s4]
    %6 = vst [vmem:[#allocation1] sm:%s4] %v5
    %v7 = vld [vmem:[#allocation1] sm:$0x3]
    %vm8 = vcmask 261120
    %9 = vst.msk [vmem:[#allocation0] ss:$8 sm:$0x3] %vm8, %v7
    %v10 = vld [vmem:[#allocation1] sm:$0x3]
    %11 = vrot.lane.b32.xlu0 %v10, 96
    %v12 = vpop.permute.xlu0 %11
    %vm13 = vcmask 261120
    %s14 = scalar_lea.vmem [#allocation0], 1
    %15 = vst.msk [vmem:[%s14] ss:$8 sm:$0x3] %vm13, %v12
    %s17 = sshll.u32 1, 2
    %s18 = ssub.s32 %s17, 1
    %v20 = vld [vmem:[#allocation0] sm:%s18]
    %s21 = sshll.u32 1, 2
    %s22 = ssub.s32 %s21, 1
    %23 = vst [vmem:[%s1] sm:%s22] %v20
    %s24 = scalar_lea.vmem [#allocation0], 8
    %v25 = vld [vmem:[%s24] sm:%s18]
    %s26 = sshll.u32 1, 2
    %s27 = ssub.s32 %s26, 1
    %s28 = scalar_lea.vmem %s1, 2
    %29 = vst [vmem:[%s28] sm:%s27] %v25

// kernel: mul.43
$region0: #{mul.43}
  %s0 = inlined_call_operand.vmem [shape: f32[2,32], index: 0, kind: input, shape index: {}]
  %s1 = inlined_call_operand.vmem [shape: f32[2,2,16], index: 1, kind: output, shape index: {}]
  $region1: #{mul.43} parent=0
    #allocation0 [shape = 'u8[8192]{0}', space=vmem, size = 0x2000, scoped, tag = 'scoped mem for output reshape']
    #allocation1 [shape = 'u8[4096]{0}', space=vmem, size = 0x1000, scoped, tag = 'scoped mem for input reshape']
    %s3 = sshll.u32 1, 2
    %s4 = ssub.s32 %s3, 1
    %v5 = vld [vmem:[%s0] sm:%s4]
    %6 = vst [vmem:[#allocation1] sm:%s4] %v5
    %v7 = vld [vmem:[#allocation1] sm:$0x3]
    %vm8 = vcmask 130048
    %9 = vst.msk [vmem:[#allocation0] ss:$8 sm:$0x3] %vm8, %v7
    %v10 = vld [vmem:[#allocation1] sm:$0x3]
    %11 = vrot.lane.b32.xlu0 %v10, 112
    %v12 = vpop.permute.xlu0 %11
    %vm13 = vcmask 130048
    %s14 = scalar_lea.vmem [#allocation0], 1
    %15 = vst.msk [vmem:[%s14] ss:$8 sm:$0x3] %vm13, %v12
    %s17 = sshll.u32 1, 2
    %s18 = ssub.s32 %s17, 1
    %v20 = vld [vmem:[#allocation0] sm:%s18]
    %s21 = sshll.u32 1, 2
    %s22 = ssub.s32 %s21, 1
    %23 = vst [vmem:[%s1] sm:%s22] %v20
    %s24 = scalar_lea.vmem [#allocation0], 8
    %v25 = vld [vmem:[%s24] sm:%s18]
    %s26 = sshll.u32 1, 2
    %s27 = ssub.s32 %s26, 1
    %s28 = scalar_lea.vmem %s1, 2
    %29 = vst [vmem:[%s28] sm:%s27] %v25

// kernel: hetero_gat_forward.5
$region0: #{hetero_gat_forward.5}
  #allocation0 [shape = 'u32[]', space=smem, size = 0x4, offset = 0x4, fixed_abs, tag = 'smem constant byte address 0x4 - core index']
  #allocation1 [shape = 'u32[144,128]{1,0:T(1,128)}', space=vmem, size = 0x12000, scoped, tag = 'internal scratch']
  #allocation2 [shape = 'f32[1,1]{1,0:T(1,128)S(6)}', space=smem, size = 0x200, scoped, tag = 'scoped memory for hetero_gat_forward.5']
  %s0 = inlined_call_operand.vmem [shape: f32[64,32], index: 0, kind: input, shape index: {}]
  %s1 = inlined_call_operand.vmem [shape: f32[1,32], index: 1, kind: input, shape index: {}]
  %s2 = inlined_call_operand.<no memory space> [shape: f32[1,1], index: 2, kind: input, shape index: {}]
  %s3 = inlined_call_operand.vmem [shape: f32[64,64], index: 3, kind: output, shape index: {}]
  %s4 = sld [smem:[#allocation0]]
  $region45: #{hetero_gat_forward.5} parent=0
    _
  %s6 = ssub.s32 1, %s4
  %s7 = scalar_select 0, %s6, %s4
  %8 = sst [smem:[#allocation2]] %s2
  loop: start=0, step=1, limit=4
  $region2: #{hetero_gat_forward.5} parent=0 // loop_pre_header
    _
  $region3: #{hetero_gat_forward.5} parent=0 // loop_header
    %s10 = sphi 0, %s14
    %p11 = scmp.ge.s32.totalorder %s10, 4
    %s18 = sphi 0, %s18
    %s20 = sphi 0, %s18
    %s21 = sphi 0, %s20
    %s35 = sphi 0, %s21
    %s39 = sphi 0, %s39
    %s41 = sphi 0, %s39
    %s42 = sphi 0, %s41
    %s56 = sphi 0, %s42
    %s60 = sphi 0, %s60
    %s62 = sphi 0, %s60
    %s63 = sphi 0, %s62
    %s77 = sphi 0, %s63
    %s83 = sphi 0, %s85
    %s86 = sphi 0, %s83
    %s87 = sphi 0, %s86
    %s103 = sphi 0, %s87
  $region4: #{hetero_gat_forward.5} parent=0 // loop_header_branch
    %13 = sbr.rel (%p11) target = $region8
  $region5: #{hetero_gat_forward.5} parent=0 // loop_body
    %s15 = ssub.s32 %s10, 1
    %s16 = ssub.s32 %s10, 2
    %s17 = sadd.s32 %s10, 1
    %s19 = sadd.s32 %s18, 1
    %p22 = scmp.eq.s32.totalorder %s10, 1
    %p23 = scmp.ne.s32.totalorder %s18, %s20
    %p24 = scmp.eq.s32.totalorder %s10, 0
    %p25 = por %p23, %p24
    %p26 = scmp.ne.s32.totalorder %s18, %s20
    %p27 = scmp.eq.s32.totalorder %s15, 1
    %p28 = por %p26, %p27
    %p29 = scmp.ne.s32.totalorder %s20, %s21
    %p30 = scmp.eq.s32.totalorder %s15, 0
    %p31 = por %p29, %p30
    %p32 = scmp.ne.s32.totalorder %s20, %s21
    %p33 = scmp.eq.s32.totalorder %s16, 1
    %p34 = por %p32, %p33
    %p36 = scmp.ne.s32.totalorder %s21, %s35
    %p37 = scmp.eq.s32.totalorder %s16, 0
    %p38 = por %p36, %p37
    %s40 = sadd.s32 %s39, 1
    %p43 = scmp.eq.s32.totalorder %s10, 1
    %p44 = scmp.ne.s32.totalorder %s39, %s41
    %p45 = scmp.eq.s32.totalorder %s10, 0
    %p46 = por %p44, %p45
    %p47 = scmp.ne.s32.totalorder %s39, %s41
    %p48 = scmp.eq.s32.totalorder %s15, 1
    %p49 = por %p47, %p48
    %p50 = scmp.ne.s32.totalorder %s41, %s42
    %p51 = scmp.eq.s32.totalorder %s15, 0
    %p52 = por %p50, %p51
    %p53 = scmp.ne.s32.totalorder %s41, %s42
    %p54 = scmp.eq.s32.totalorder %s16, 1
    %p55 = por %p53, %p54
    %p57 = scmp.ne.s32.totalorder %s42, %s56
    %p58 = scmp.eq.s32.totalorder %s16, 0
    %p59 = por %p57, %p58
    %s61 = sadd.s32 %s60, 1
    %p64 = scmp.eq.s32.totalorder %s10, 1
    %p65 = scmp.ne.s32.totalorder %s60, %s62
    %p66 = scmp.eq.s32.totalorder %s10, 0
    %p67 = por %p65, %p66
    %p68 = scmp.ne.s32.totalorder %s60, %s62
    %p69 = scmp.eq.s32.totalorder %s15, 1
    %p70 = por %p68, %p69
    %p71 = scmp.ne.s32.totalorder %s62, %s63
    %p72 = scmp.eq.s32.totalorder %s15, 0
    %p73 = por %p71, %p72
    %p74 = scmp.ne.s32.totalorder %s62, %s63
    %p75 = scmp.eq.s32.totalorder %s16, 1
    %p76 = por %p74, %p75
    %p78 = scmp.ne.s32.totalorder %s63, %s77
    %p79 = scmp.eq.s32.totalorder %s16, 0
    %p80 = por %p78, %p79
    %s81 = ssub.s32 %s10, %s17
    %p82 = scmp.eq.s32.totalorder %s81, 0
    %s84 = sadd.s32 %s83, 1
    %s85 = scalar_select %p82, %s83, %s84
    %p88 = pneg %p82
    %p89 = scmp.eq.s32.totalorder %s10, 1
    %p90 = por %p88, %p89
    %p91 = scmp.ne.s32.totalorder %s83, %s86
    %p92 = scmp.eq.s32.totalorder %s10, 0
    %p93 = por %p91, %p92
    %p94 = scmp.ne.s32.totalorder %s83, %s86
    %p95 = scmp.eq.s32.totalorder %s15, 1
    %p96 = por %p94, %p95
    %p97 = scmp.ne.s32.totalorder %s86, %s87
    %p98 = scmp.eq.s32.totalorder %s15, 0
    %p99 = por %p97, %p98
    %p100 = scmp.ne.s32.totalorder %s86, %s87
    %p101 = scmp.eq.s32.totalorder %s16, 1
    %p102 = por %p100, %p101
    %p104 = scmp.ne.s32.totalorder %s87, %s103
    %p105 = scmp.eq.s32.totalorder %s16, 0
    %p106 = por %p104, %p105
    %p107 = scmp.le.s32.totalorder 1, %s10
    %p108 = scmp.lt.s32.totalorder %s10, 3
    %p109 = pnand %p107, %p108
    %p110 = pneg %p109
    // Predicated region
    $region9: #{hetero_gat_forward.5} parent=5 // pred_check
      _
    $region10: #{hetero_gat_forward.5} parent=5 // pred_check_branch
      %112 = sbr.rel (%p109) target = $region12
    $region11: #{hetero_gat_forward.5} parent=5 // pred_region
      %s113 = ssub.s32 %s10, 1
      // Predicated region
      $region13: #{hetero_gat_forward.5} parent=11 // pred_check
        %p114 = pneg %p31
      $region14: #{hetero_gat_forward.5} parent=11 // pred_check_branch
        %116 = sbr.rel (%p114) target = $region16
      $region15: #{hetero_gat_forward.5} parent=11 // pred_region
        _
      $region16: #{hetero_gat_forward.5} parent=11 // pred_fallthru
        _
      // Predicated region
      $region17: #{hetero_gat_forward.5} parent=11 // pred_check
        %p117 = pneg %p52
      $region18: #{hetero_gat_forward.5} parent=11 // pred_check_branch
        %119 = sbr.rel (%p117) target = $region20
      $region19: #{hetero_gat_forward.5} parent=11 // pred_region
        _
      $region20: #{hetero_gat_forward.5} parent=11 // pred_fallthru
        _
      // Predicated region
      $region21: #{hetero_gat_forward.5} parent=11 // pred_check
        %p120 = pneg %p73
      $region22: #{hetero_gat_forward.5} parent=11 // pred_check_branch
        %122 = sbr.rel (%p120) target = $region24
      $region23: #{hetero_gat_forward.5} parent=11 // pred_region
        _
      $region24: #{hetero_gat_forward.5} parent=11 // pred_fallthru
        _
    $region12: #{hetero_gat_forward.5} parent=5 // pred_fallthru
      _
    %p123 = scmp.lt.s32.totalorder %s10, 2
    // Predicated region
    $region25: #{hetero_gat_forward.5} parent=5 // pred_check
      %p124 = pneg %p123
    $region26: #{hetero_gat_forward.5} parent=5 // pred_check_branch
      %126 = sbr.rel (%p124) target = $region28
    $region27: #{hetero_gat_forward.5} parent=5 // pred_region
      _
    $region28: #{hetero_gat_forward.5} parent=5 // pred_fallthru
      _
    %p127 = scmp.le.s32.totalorder 1, %s10
    %p128 = scmp.lt.s32.totalorder %s10, 3
    %p129 = pnand %p127, %p128
    %p130 = pneg %p129
    // Predicated region
    $region29: #{hetero_gat_forward.5} parent=5 // pred_check
      _
    $region30: #{hetero_gat_forward.5} parent=5 // pred_check_branch
      %132 = sbr.rel (%p129) target = $region32
    $region31: #{hetero_gat_forward.5} parent=5 // pred_region
      %s133 = ssub.s32 %s10, 1
      %p134 = pneg %p31
      %p135 = pneg %p28
      %p136 = pneg %p52
      %p137 = pneg %p49
      %p138 = pneg %p73
      %p139 = pneg %p70
      %p140 = pneg %p99
      %p141 = pneg %p96
      %s142 = smul.u32 4, %s15
      %p143 = scmp.lt.s32.totalorder %s142, 7
      %s144 = scalar_select %p143, %s142, 7
      %s145 = smul.addr %s144, 8
      %s146 = scalar_lea.vmem %s3, %s145
      %s147 = smul.u32 4, %s15
      %p148 = scmp.lt.s32.totalorder %s147, 7
      %s149 = scalar_select %p148, %s147, 7
      %s150 = smul.addr %s149, 8
      %s151 = scalar_lea.vmem %s3, %s150
      %s152 = smul.u32 4, %s15
      %s153 = smul.u32 %s15, 32
      %s154 = scalar_lea.vmem %s0, %s153
      %v155 = vld [vmem:[%s154] sm:$0xff]
      %v156 = vld [vmem:[%s154 + $0x8] sm:$0xff]
      %v157 = vld [vmem:[%s154 + $0x10] sm:$0xff]
      %v158 = vld [vmem:[%s154 + $0x18] sm:$0xff]
      %v159 = vld [vmem:[%s1] sm:$0x1]
      %v161 = vlaneseq
      %v162 = vshrl.u32 %v161, 7
      %v163 = vsub.s32 0, %v162
      %v164 = vrot.slane %v159, %v163
      %v166 = vmul.f32 %v155, %v164
      %v167 = vmul.f32 %v156, %v164
      %v168 = vmul.f32 %v157, %v164
      %v169 = vmul.f32 %v158, %v164
      %vm170 = vcmask 261120
      %v171 = vsel %vm170, %v166, 0.0
      %172 = vadd.xlane.f32.xlu0 %v171
      %v173 = vpop.xlane.xlu0 %172
      %v174 = vsel %vm170, %v167, 0.0
      %175 = vadd.xlane.f32.xlu0 %v174
      %v176 = vpop.xlane.xlu0 %175
      %v177 = vsel %vm170, %v168, 0.0
      %178 = vadd.xlane.f32.xlu0 %v177
      %v179 = vpop.xlane.xlu0 %178
      %v180 = vsel %vm170, %v169, 0.0
      %181 = vadd.xlane.f32.xlu0 %v180
      %v182 = vpop.xlane.xlu0 %181
      %v183 = vld [vmem:[%s0] sm:$0xff]
      %v184 = vld [vmem:[%s0 + $0x8] sm:$0xff]
      %v185 = vld [vmem:[%s0 + $0x10] sm:$0xff]
      %v186 = vld [vmem:[%s0 + $0x18] sm:$0xff]
      %v187 = vld [vmem:[%s0 + $0x20] sm:$0xff]
      %v188 = vld [vmem:[%s0 + $0x28] sm:$0xff]
      %v189 = vld [vmem:[%s0 + $0x30] sm:$0xff]
      %v190 = vld [vmem:[%s0 + $0x38] sm:$0xff]
      %v191 = vsel %vm170, %v159, 0
      %v194 = vsel %vm170, %v183, 0
      %v197 = vsel %vm170, %v184, 0
      %v200 = vsel %vm170, %v185, 0
      %v203 = vsel %vm170, %v186, 0
      %v206 = vsel %vm170, %v187, 0
      %v209 = vsel %vm170, %v188, 0
      %v212 = vsel %vm170, %v189, 0
      %v215 = vsel %vm170, %v190, 0
      %217 = vmatprep.subr.mxu0 0.0
      %218 = vmatpush1.xpose.msra.mxu0 0.0
      %219 = vmatprep.subr.mxu0 0.0
      %220 = vmatpush1.xpose.msra.mxu0 0.0
      %221 = vmatprep.subr.mxu0 0.0
      %222 = vmatpush1.xpose.msra.mxu0 0.0
      %223 = vmatprep.subr.mxu0 0.0
      %224 = vmatpush1.xpose.msra.mxu0 0.0
      %225 = vmatprep.subr.mxu0 0.0
      %226 = vmatpush1.xpose.msra.mxu0 0.0
      %227 = vmatprep.subr.mxu0 0.0
      %228 = vmatpush1.xpose.msra.mxu0 0.0
      %229 = vmatprep.subr.mxu0 0.0
      %230 = vmatpush1.xpose.msra.mxu0 0.0
      %231 = vmatprep.subr.mxu0 0.0
      %232 = vmatpush1.xpose.msra.mxu0 0.0
      %233 = vmatprep.subr.mxu0 0.0
      %234 = vmatpush1.xpose.msra.mxu0 %v215
      %235 = vmatprep.subr.mxu0 0.0
      %236 = vmatpush1.xpose.msra.mxu0 %v212
      %237 = vmatprep.subr.mxu0 0.0
      %238 = vmatpush1.xpose.msra.mxu0 %v209
      %239 = vmatprep.subr.mxu0 0.0
      %240 = vmatpush1.xpose.msra.mxu0 %v206
      %241 = vmatprep.subr.mxu0 0.0
      %242 = vmatpush1.xpose.msra.mxu0 %v203
      %243 = vmatprep.subr.mxu0 0.0
      %244 = vmatpush1.xpose.msra.mxu0 %v200
      %245 = vmatprep.subr.mxu0 0.0
      %246 = vmatpush1.xpose.msra.mxu0 %v197
      %247 = vmatprep.subr.mxu0 0.0
      %248 = vmatpush1.xpose.msra.mxu0 %v194
      %249 = vmatprep.subr.mxu0 0.0
      %250 = vmatpush2.xpose.msra.mxu0 0.0
      %251 = vmatprep.subr.mxu0 0.0
      %252 = vmatpush2.xpose.msra.mxu0 0.0
      %253 = vmatprep.subr.mxu0 0.0
      %254 = vmatpush2.xpose.msra.mxu0 0.0
      %255 = vmatprep.subr.mxu0 0.0
      %256 = vmatpush2.xpose.msra.mxu0 0.0
      %257 = vmatprep.subr.mxu0 0.0
      %258 = vmatpush2.xpose.msra.mxu0 0.0
      %259 = vmatprep.subr.mxu0 0.0
      %260 = vmatpush2.xpose.msra.mxu0 0.0
      %261 = vmatprep.subr.mxu0 0.0
      %262 = vmatpush2.xpose.msra.mxu0 0.0
      %263 = vmatprep.subr.mxu0 0.0
      %264 = vmatpush2.xpose.msra.mxu0 0.0
      %265 = vmatprep.subr.mxu0 0.0
      %266 = vmatpush2.xpose.msra.mxu0 0.0
      %267 = vmatprep.subr.mxu0 0.0
      %268 = vmatpush2.xpose.msra.mxu0 0.0
      %269 = vmatprep.subr.mxu0 0.0
      %270 = vmatpush2.xpose.msra.mxu0 0.0
      %271 = vmatprep.subr.mxu0 0.0
      %272 = vmatpush2.xpose.msra.mxu0 0.0
      %273 = vmatprep.subr.mxu0 0.0
      %274 = vmatpush2.xpose.msra.mxu0 0.0
      %275 = vmatprep.subr.mxu0 0.0
      %276 = vmatpush2.xpose.msra.mxu0 0.0
      %277 = vmatprep.subr.mxu0 0.0
      %278 = vmatpush2.xpose.msra.mxu0 0.0
      %279 = vmatprep.subr.mxu0 0.0
      %280 = vmatpush2.xpose.msra.mxu0 0.0
      %281 = vmatprep.mubr.f32.mxu0 0.0
      %282 = vmatmul.mubr.f32.gmra.mxu0 %v191
      %v283 = vpop.f32.mrf.mxu0
      %v284 = vadd.f32 0.0, %v283
      %v285 = vpop.f32.mrf.mxu0
      %286 = vdwg.mxu0
      %v287 = vlaneseq
      %v288 = vshrl.u32 %v287, 7
      %v289 = vsub.s32 0, %v288
      %v290 = vrot.slane %v284, %v289
      %v291 = vadd.f32 %v173, %v290
      %v292 = vadd.f32 %v176, %v290
      %v293 = vadd.f32 %v179, %v290
      %v294 = vadd.f32 %v182, %v290
      %s295 = sld [smem:[#allocation2]]
      %v296 = vstv %s295
      %v297 = vadd.f32 %v291, %v296
      %v298 = vadd.f32 %v292, %v296
      %v299 = vadd.f32 %v293, %v296
      %v300 = vadd.f32 %v294, %v296
      %vm301 = vcmask 523264
      %302 = vst.msk [vmem:[%s151] sm:$0xff] %vm301, %v297
      %303 = vst.msk [vmem:[%s151 + $0x8] sm:$0xff] %vm301, %v298
      %304 = vst.msk [vmem:[%s151 + $0x10] sm:$0xff] %vm301, %v299
      %305 = vst.msk [vmem:[%s151 + $0x18] sm:$0xff] %vm301, %v300
      %s306 = smul.u32 4, %s15
      %p307 = scmp.lt.s32.totalorder %s306, 7
      %s308 = scalar_select %p307, %s306, 7
      %s309 = smul.addr %s308, 8
      %s310 = scalar_lea.vmem %s3, %s309
      // Predicated region
      $region33: #{hetero_gat_forward.5} parent=31 // pred_check
        %p311 = pneg %p96
      $region34: #{hetero_gat_forward.5} parent=31 // pred_check_branch
        %313 = sbr.rel (%p311) target = $region36
      $region35: #{hetero_gat_forward.5} parent=31 // pred_region
        %s314 = smul.u32 4, %s15
      $region36: #{hetero_gat_forward.5} parent=31 // pred_fallthru
        _
    $region32: #{hetero_gat_forward.5} parent=5 // pred_fallthru
      _
    %p315 = scmp.le.s32.totalorder 2, %s10
    // Predicated region
    $region37: #{hetero_gat_forward.5} parent=5 // pred_check
      %p316 = pneg %p315
    $region38: #{hetero_gat_forward.5} parent=5 // pred_check_branch
      %318 = sbr.rel (%p316) target = $region40
    $region39: #{hetero_gat_forward.5} parent=5 // pred_region
      %s319 = ssub.s32 %s10, 2
      // Predicated region
      $region41: #{hetero_gat_forward.5} parent=39 // pred_check
        %p320 = pneg %p102
      $region42: #{hetero_gat_forward.5} parent=39 // pred_check_branch
        %322 = sbr.rel (%p320) target = $region44
      $region43: #{hetero_gat_forward.5} parent=39 // pred_region
        %s323 = smul.u32 4, %s16
        %p324 = scmp.lt.s32.totalorder %s323, 7
        %s325 = scalar_select %p324, %s323, 7
        %s326 = smul.addr %s325, 8
        %s327 = scalar_lea.vmem %s3, %s326
      $region44: #{hetero_gat_forward.5} parent=39 // pred_fallthru
        _
    $region40: #{hetero_gat_forward.5} parent=5 // pred_fallthru
      _
  $region6: #{hetero_gat_forward.5} parent=0 // loop_footer
    %s14 = sadd.s32 1, %s10
  $region7: #{hetero_gat_forward.5} parent=0 // loop_footer_branch
    %9 = sbr.rel target = $region3
  $region8: #{hetero_gat_forward.5} parent=0 // loop_exit
    _

// kernel: hetero_gat_forward.3
$region0: #{hetero_gat_forward.3}
  #allocation0 [shape = 'u32[]', space=smem, size = 0x4, offset = 0x4, fixed_abs, tag = 'smem constant byte address 0x4 - core index']
  #allocation1 [shape = 'u32[144,128]{1,0:T(1,128)}', space=vmem, size = 0x12000, scoped, tag = 'internal scratch']
  %s0 = inlined_call_operand.vmem [shape: f32[64,8], index: 0, kind: input, shape index: {}]
  %s1 = inlined_call_operand.vmem [shape: s8[2,64,64], index: 1, kind: input, shape index: {}]
  %s2 = inlined_call_operand.vmem [shape: f32[2,8,64], index: 2, kind: input, shape index: {}]
  %s3 = inlined_call_operand.vmem [shape: f32[2,2,64], index: 3, kind: input, shape index: {}]
  %s4 = inlined_call_operand.vmem [shape: f32[2,2,64], index: 4, kind: input, shape index: {}]
  %s5 = inlined_call_operand.vmem [shape: f32[1,64], index: 5, kind: input, shape index: {}]
  %s6 = inlined_call_operand.vmem [shape: f32[64,64], index: 6, kind: output, shape index: {}]
  %s7 = sld [smem:[#allocation0]]
  $region95: #{hetero_gat_forward.3} parent=0
    _
  %s9 = ssub.s32 1, %s7
  %s10 = scalar_select 0, %s9, %s7
  $region1: #{hetero_gat_forward.3} parent=0
    #allocation2 [shape = 'u8[16384]{0}', space=vmem, size = 0x4000, scoped, tag = 'input window, operand 1']
    loop: start=0, step=1, limit=4
    $region2: #{hetero_gat_forward.3} parent=1 // loop_pre_header
      _
    $region3: #{hetero_gat_forward.3} parent=1 // loop_header
      %s12 = sphi 0, %s16
      %p13 = scmp.ge.s32.totalorder %s12, 4
      %s20 = sphi 0, %s20
      %s22 = sphi 0, %s20
      %s23 = sphi 0, %s22
      %s37 = sphi 0, %s23
      %s43 = sphi 0, %s45
      %s46 = sphi 0, %s43
      %s47 = sphi 0, %s46
      %s63 = sphi 0, %s47
      %s67 = sphi 0, %s67
      %s69 = sphi 0, %s67
      %s70 = sphi 0, %s69
      %s84 = sphi 0, %s70
      %s88 = sphi 0, %s88
      %s90 = sphi 0, %s88
      %s91 = sphi 0, %s90
      %s105 = sphi 0, %s91
      %s109 = sphi 0, %s109
      %s111 = sphi 0, %s109
      %s112 = sphi 0, %s111
      %s126 = sphi 0, %s112
      %s130 = sphi 0, %s130
      %s132 = sphi 0, %s130
      %s133 = sphi 0, %s132
      %s147 = sphi 0, %s133
      %s153 = sphi 0, %s155
      %s156 = sphi 0, %s153
      %s157 = sphi 0, %s156
      %s173 = sphi 0, %s157
    $region4: #{hetero_gat_forward.3} parent=1 // loop_header_branch
      %15 = sbr.rel (%p13) target = $region8
    $region5: #{hetero_gat_forward.3} parent=1 // loop_body
      %s17 = ssub.s32 %s12, 1
      %s18 = ssub.s32 %s12, 2
      %s19 = sadd.s32 %s12, 1
      %s21 = sadd.s32 %s20, 1
      %p24 = scmp.eq.s32.totalorder %s12, 1
      %p25 = scmp.ne.s32.totalorder %s20, %s22
      %p26 = scmp.eq.s32.totalorder %s12, 0
      %p27 = por %p25, %p26
      %p28 = scmp.ne.s32.totalorder %s20, %s22
      %p29 = scmp.eq.s32.totalorder %s17, 1
      %p30 = por %p28, %p29
      %p31 = scmp.ne.s32.totalorder %s22, %s23
      %p32 = scmp.eq.s32.totalorder %s17, 0
      %p33 = por %p31, %p32
      %p34 = scmp.ne.s32.totalorder %s22, %s23
      %p35 = scmp.eq.s32.totalorder %s18, 1
      %p36 = por %p34, %p35
      %p38 = scmp.ne.s32.totalorder %s23, %s37
      %p39 = scmp.eq.s32.totalorder %s18, 0
      %p40 = por %p38, %p39
      %s41 = ssub.s32 %s12, %s19
      %p42 = scmp.eq.s32.totalorder %s41, 0
      %s44 = sadd.s32 %s43, 1
      %s45 = scalar_select %p42, %s43, %s44
      %p48 = pneg %p42
      %p49 = scmp.eq.s32.totalorder %s12, 1
      %p50 = por %p48, %p49
      %p51 = scmp.ne.s32.totalorder %s43, %s46
      %p52 = scmp.eq.s32.totalorder %s12, 0
      %p53 = por %p51, %p52
      %p54 = scmp.ne.s32.totalorder %s43, %s46
      %p55 = scmp.eq.s32.totalorder %s17, 1
      %p56 = por %p54, %p55
      %p57 = scmp.ne.s32.totalorder %s46, %s47
      %p58 = scmp.eq.s32.totalorder %s17, 0
      %p59 = por %p57, %p58
      %p60 = scmp.ne.s32.totalorder %s46, %s47
      %p61 = scmp.eq.s32.totalorder %s18, 1
      %p62 = por %p60, %p61
      %p64 = scmp.ne.s32.totalorder %s47, %s63
      %p65 = scmp.eq.s32.totalorder %s18, 0
      %p66 = por %p64, %p65
      %s68 = sadd.s32 %s67, 1
      %p71 = scmp.eq.s32.totalorder %s12, 1
      %p72 = scmp.ne.s32.totalorder %s67, %s69
      %p73 = scmp.eq.s32.totalorder %s12, 0
      %p74 = por %p72, %p73
      %p75 = scmp.ne.s32.totalorder %s67, %s69
      %p76 = scmp.eq.s32.totalorder %s17, 1
      %p77 = por %p75, %p76
      %p78 = scmp.ne.s32.totalorder %s69, %s70
      %p79 = scmp.eq.s32.totalorder %s17, 0
      %p80 = por %p78, %p79
      %p81 = scmp.ne.s32.totalorder %s69, %s70
      %p82 = scmp.eq.s32.totalorder %s18, 1
      %p83 = por %p81, %p82
      %p85 = scmp.ne.s32.totalorder %s70, %s84
      %p86 = scmp.eq.s32.totalorder %s18, 0
      %p87 = por %p85, %p86
      %s89 = sadd.s32 %s88, 1
      %p92 = scmp.eq.s32.totalorder %s12, 1
      %p93 = scmp.ne.s32.totalorder %s88, %s90
      %p94 = scmp.eq.s32.totalorder %s12, 0
      %p95 = por %p93, %p94
      %p96 = scmp.ne.s32.totalorder %s88, %s90
      %p97 = scmp.eq.s32.totalorder %s17, 1
      %p98 = por %p96, %p97
      %p99 = scmp.ne.s32.totalorder %s90, %s91
      %p100 = scmp.eq.s32.totalorder %s17, 0
      %p101 = por %p99, %p100
      %p102 = scmp.ne.s32.totalorder %s90, %s91
      %p103 = scmp.eq.s32.totalorder %s18, 1
      %p104 = por %p102, %p103
      %p106 = scmp.ne.s32.totalorder %s91, %s105
      %p107 = scmp.eq.s32.totalorder %s18, 0
      %p108 = por %p106, %p107
      %s110 = sadd.s32 %s109, 1
      %p113 = scmp.eq.s32.totalorder %s12, 1
      %p114 = scmp.ne.s32.totalorder %s109, %s111
      %p115 = scmp.eq.s32.totalorder %s12, 0
      %p116 = por %p114, %p115
      %p117 = scmp.ne.s32.totalorder %s109, %s111
      %p118 = scmp.eq.s32.totalorder %s17, 1
      %p119 = por %p117, %p118
      %p120 = scmp.ne.s32.totalorder %s111, %s112
      %p121 = scmp.eq.s32.totalorder %s17, 0
      %p122 = por %p120, %p121
      %p123 = scmp.ne.s32.totalorder %s111, %s112
      %p124 = scmp.eq.s32.totalorder %s18, 1
      %p125 = por %p123, %p124
      %p127 = scmp.ne.s32.totalorder %s112, %s126
      %p128 = scmp.eq.s32.totalorder %s18, 0
      %p129 = por %p127, %p128
      %s131 = sadd.s32 %s130, 1
      %p134 = scmp.eq.s32.totalorder %s12, 1
      %p135 = scmp.ne.s32.totalorder %s130, %s132
      %p136 = scmp.eq.s32.totalorder %s12, 0
      %p137 = por %p135, %p136
      %p138 = scmp.ne.s32.totalorder %s130, %s132
      %p139 = scmp.eq.s32.totalorder %s17, 1
      %p140 = por %p138, %p139
      %p141 = scmp.ne.s32.totalorder %s132, %s133
      %p142 = scmp.eq.s32.totalorder %s17, 0
      %p143 = por %p141, %p142
      %p144 = scmp.ne.s32.totalorder %s132, %s133
      %p145 = scmp.eq.s32.totalorder %s18, 1
      %p146 = por %p144, %p145
      %p148 = scmp.ne.s32.totalorder %s133, %s147
      %p149 = scmp.eq.s32.totalorder %s18, 0
      %p150 = por %p148, %p149
      %s151 = ssub.s32 %s12, %s19
      %p152 = scmp.eq.s32.totalorder %s151, 0
      %s154 = sadd.s32 %s153, 1
      %s155 = scalar_select %p152, %s153, %s154
      %p158 = pneg %p152
      %p159 = scmp.eq.s32.totalorder %s12, 1
      %p160 = por %p158, %p159
      %p161 = scmp.ne.s32.totalorder %s153, %s156
      %p162 = scmp.eq.s32.totalorder %s12, 0
      %p163 = por %p161, %p162
      %p164 = scmp.ne.s32.totalorder %s153, %s156
      %p165 = scmp.eq.s32.totalorder %s17, 1
      %p166 = por %p164, %p165
      %p167 = scmp.ne.s32.totalorder %s156, %s157
      %p168 = scmp.eq.s32.totalorder %s17, 0
      %p169 = por %p167, %p168
      %p170 = scmp.ne.s32.totalorder %s156, %s157
      %p171 = scmp.eq.s32.totalorder %s18, 1
      %p172 = por %p170, %p171
      %p174 = scmp.ne.s32.totalorder %s157, %s173
      %p175 = scmp.eq.s32.totalorder %s18, 0
      %p176 = por %p174, %p175
      %p177 = scmp.le.s32.totalorder 1, %s12
      %p178 = scmp.lt.s32.totalorder %s12, 3
      %p179 = pnand %p177, %p178
      %p180 = pneg %p179
      // Predicated region
      $region9: #{hetero_gat_forward.3} parent=5 // pred_check
        _
      $region10: #{hetero_gat_forward.3} parent=5 // pred_check_branch
        %182 = sbr.rel (%p179) target = $region12
      $region11: #{hetero_gat_forward.3} parent=5 // pred_region
        %s183 = ssub.s32 %s12, 1
        // Predicated region
        $region13: #{hetero_gat_forward.3} parent=11 // pred_check
          %p184 = pneg %p33
        $region14: #{hetero_gat_forward.3} parent=11 // pred_check_branch
          %186 = sbr.rel (%p184) target = $region16
        $region15: #{hetero_gat_forward.3} parent=11 // pred_region
          _
        $region16: #{hetero_gat_forward.3} parent=11 // pred_fallthru
          _
        // Predicated region
        $region17: #{hetero_gat_forward.3} parent=11 // pred_check
          %p187 = pneg %p80
        $region18: #{hetero_gat_forward.3} parent=11 // pred_check_branch
          %189 = sbr.rel (%p187) target = $region20
        $region19: #{hetero_gat_forward.3} parent=11 // pred_region
          _
        $region20: #{hetero_gat_forward.3} parent=11 // pred_fallthru
          _
        // Predicated region
        $region21: #{hetero_gat_forward.3} parent=11 // pred_check
          %p190 = pneg %p101
        $region22: #{hetero_gat_forward.3} parent=11 // pred_check_branch
          %192 = sbr.rel (%p190) target = $region24
        $region23: #{hetero_gat_forward.3} parent=11 // pred_region
          _
        $region24: #{hetero_gat_forward.3} parent=11 // pred_fallthru
          _
        // Predicated region
        $region25: #{hetero_gat_forward.3} parent=11 // pred_check
          %p193 = pneg %p122
        $region26: #{hetero_gat_forward.3} parent=11 // pred_check_branch
          %195 = sbr.rel (%p193) target = $region28
        $region27: #{hetero_gat_forward.3} parent=11 // pred_region
          _
        $region28: #{hetero_gat_forward.3} parent=11 // pred_fallthru
          _
        // Predicated region
        $region29: #{hetero_gat_forward.3} parent=11 // pred_check
          %p196 = pneg %p143
        $region30: #{hetero_gat_forward.3} parent=11 // pred_check_branch
          %198 = sbr.rel (%p196) target = $region32
        $region31: #{hetero_gat_forward.3} parent=11 // pred_region
          _
        $region32: #{hetero_gat_forward.3} parent=11 // pred_fallthru
          _
      $region12: #{hetero_gat_forward.3} parent=5 // pred_fallthru
        _
      %p199 = scmp.lt.s32.totalorder %s12, 2
      // Predicated region
      $region33: #{hetero_gat_forward.3} parent=5 // pred_check
        %p200 = pneg %p199
      $region34: #{hetero_gat_forward.3} parent=5 // pred_check_branch
        %202 = sbr.rel (%p200) target = $region36
      $region35: #{hetero_gat_forward.3} parent=5 // pred_region
        // Predicated region
        $region37: #{hetero_gat_forward.3} parent=35 // pred_check
          %p203 = pneg %p53
        $region38: #{hetero_gat_forward.3} parent=35 // pred_check_branch
          %205 = sbr.rel (%p203) target = $region40
        $region39: #{hetero_gat_forward.3} parent=35 // pred_region
          %s206 = sand.u32 %s43, 1
          %s207 = sand.u32 %s43, 1
          %s208 = smul.addr %s207, 16
          %s209 = scalar_lea.vmem [#allocation2], %s208
          %s210 = smul.addr %s12, 8
          %s211 = scalar_lea.vmem %s1, %s210
          // Predicated region
          $region41: #{hetero_gat_forward.3} parent=39 // pred_check
            _
          $region42: #{hetero_gat_forward.3} parent=39 // pred_check_branch
            %213 = sbr.rel (0) target = $region44
          $region43: #{hetero_gat_forward.3} parent=39 // pred_region
            // Predicated region
            $region45: #{hetero_gat_forward.3} parent=43 // pred_check
              _
            $region46: #{hetero_gat_forward.3} parent=43 // pred_check_branch
              %215 = sbr.rel (0) target = $region48
            $region47: #{hetero_gat_forward.3} parent=43 // pred_region
              // Predicated region
              $region60: #{hetero_gat_forward.3} parent=47 // pred_check
                _
              $region61: #{hetero_gat_forward.3} parent=47 // pred_check_branch
                %233 = sbr.rel (0) target = $region63
              $region62: #{hetero_gat_forward.3} parent=47 // pred_region
                loop: start=0, step=1, limit=1
                $region64: #{hetero_gat_forward.3} parent=62 // loop_pre_header
                  _
                $region65: #{hetero_gat_forward.3} parent=62 // loop_header
                  %s235 = sphi 0, %s239
                  %p236 = scmp.ge.s32.totalorder %s235, 1
                  %s240 = sphi %s211, %s211
                  %s241 = sphi %s209, %s209
                $region66: #{hetero_gat_forward.3} parent=62 // loop_header_branch
                  %238 = sbr.rel (%p236) target = $region70
                $region67: #{hetero_gat_forward.3} parent=62 // loop_body
                  %v242 = vld [vmem:[%s240] sm:$0xff]
                  %243 = vst [vmem:[%s241] sm:$0xff] %v242
                  %v244 = vld [vmem:[%s240 + $0x10] sm:$0xff]
                  %245 = vst [vmem:[%s241 + $0x8] sm:$0xff] %v244
                $region68: #{hetero_gat_forward.3} parent=62 // loop_footer
                  %s239 = sadd.s32 1, %s235
                $region69: #{hetero_gat_forward.3} parent=62 // loop_footer_branch
                  %234 = sbr.rel target = $region65
                $region70: #{hetero_gat_forward.3} parent=62 // loop_exit
                  _
              $region63: #{hetero_gat_forward.3} parent=47 // pred_fallthru
                _
              // Predicated region
              $region71: #{hetero_gat_forward.3} parent=47 // pred_check
                _
              $region72: #{hetero_gat_forward.3} parent=47 // pred_check_branch
                %247 = sbr.rel target = $region74
              $region73: #{hetero_gat_forward.3} parent=47 // pred_region
                _
              $region74: #{hetero_gat_forward.3} parent=47 // pred_fallthru
                _
            $region48: #{hetero_gat_forward.3} parent=43 // pred_fallthru
              _
            // Predicated region
            $region49: #{hetero_gat_forward.3} parent=43 // pred_check
              _
            $region50: #{hetero_gat_forward.3} parent=43 // pred_check_branch
              %217 = sbr.rel target = $region52
            $region51: #{hetero_gat_forward.3} parent=43 // pred_region
              %s219 = ssub.s32 256, 1
              loop: start=0, step=1, limit=1
              $region53: #{hetero_gat_forward.3} parent=51 // loop_pre_header
                _
              $region54: #{hetero_gat_forward.3} parent=51 // loop_header
                %s221 = sphi 0, %s225
                %p222 = scmp.ge.s32.totalorder %s221, 1
                %s226 = sphi %s211, %s211
                %s227 = sphi %s209, %s209
              $region55: #{hetero_gat_forward.3} parent=51 // loop_header_branch
                %224 = sbr.rel (%p222) target = $region59
              $region56: #{hetero_gat_forward.3} parent=51 // loop_body
                %v228 = vld [vmem:[%s226] sm:%s219]
                %229 = vst [vmem:[%s227] sm:%s219] %v228
                %v230 = vld [vmem:[%s226 + $0x10] sm:%s219]
                %231 = vst [vmem:[%s227 + $0x8] sm:%s219] %v230
              $region57: #{hetero_gat_forward.3} parent=51 // loop_footer
                %s225 = sadd.s32 1, %s221
              $region58: #{hetero_gat_forward.3} parent=51 // loop_footer_branch
                %220 = sbr.rel target = $region54
              $region59: #{hetero_gat_forward.3} parent=51 // loop_exit
                _
            $region52: #{hetero_gat_forward.3} parent=43 // pred_fallthru
              _
          $region44: #{hetero_gat_forward.3} parent=39 // pred_fallthru
            _
          %248 = vnop
        $region40: #{hetero_gat_forward.3} parent=35 // pred_fallthru
          _
      $region36: #{hetero_gat_forward.3} parent=5 // pred_fallthru
        _
      %p249 = scmp.le.s32.totalorder 1, %s12
      %p250 = scmp.lt.s32.totalorder %s12, 3
      %p251 = pnand %p249, %p250
      %p252 = pneg %p251
      // Predicated region
      $region75: #{hetero_gat_forward.3} parent=5 // pred_check
        _
      $region76: #{hetero_gat_forward.3} parent=5 // pred_check_branch
        %254 = sbr.rel (%p251) target = $region78
      $region77: #{hetero_gat_forward.3} parent=5 // pred_region
        %s255 = ssub.s32 %s12, 1
        %s256 = sand.u32 %s46, 1
        %s257 = sand.u32 %s46, 1
        %s258 = smul.addr %s257, 16
        %s259 = scalar_lea.vmem [#allocation2], %s258
        // Predicated region
        $region79: #{hetero_gat_forward.3} parent=77 // pred_check
          %p260 = pneg %p59
        $region80: #{hetero_gat_forward.3} parent=77 // pred_check_branch
          %262 = sbr.rel (%p260) target = $region82
        $region81: #{hetero_gat_forward.3} parent=77 // pred_region
          _
        $region82: #{hetero_gat_forward.3} parent=77 // pred_fallthru
          _
        %p263 = pneg %p33
        %p264 = pneg %p30
        %s265 = sand.u32 %s46, 1
        %s266 = sand.u32 %s46, 1
        %s267 = smul.addr %s266, 16
        %s268 = scalar_lea.vmem [#allocation2], %s267
        %p269 = pneg %p59
        %p270 = pneg %p56
        %p271 = pneg %p80
        %p272 = pneg %p77
        %p273 = pneg %p101
        %p274 = pneg %p98
        %p275 = pneg %p122
        %p276 = pneg %p119
        %p277 = pneg %p143
        %p278 = pneg %p140
        %p279 = pneg %p169
        %p280 = pneg %p166
        %s281 = smul.u32 4, %s17
        %p282 = scmp.lt.s32.totalorder %s281, 7
        %s283 = scalar_select %p282, %s281, 7
        %s284 = smul.addr %s283, 8
        %s285 = scalar_lea.vmem %s6, %s284
        %s286 = smul.u32 4, %s17
        %p287 = scmp.lt.s32.totalorder %s286, 7
        %s288 = scalar_select %p287, %s286, 7
        %s289 = smul.addr %s288, 8
        %s290 = scalar_lea.vmem %s6, %s289
        %s291 = smul.u32 4, %s17
        %s292 = smul.u32 %s17, 32
        %v293 = vld [vmem:[%s0] sm:$0xff]
        %v294 = vld [vmem:[%s0 + $0x8] sm:$0xff]
        %v295 = vld [vmem:[%s0 + $0x10] sm:$0xff]
        %v296 = vld [vmem:[%s0 + $0x18] sm:$0xff]
        %v297 = vld [vmem:[%s0 + $0x20] sm:$0xff]
        %v298 = vld [vmem:[%s0 + $0x28] sm:$0xff]
        %v299 = vld [vmem:[%s0 + $0x30] sm:$0xff]
        %v300 = vld [vmem:[%s0 + $0x38] sm:$0xff]
        %s301 = scalar_lea.vmem %s0, %s292
        %v302 = vld [vmem:[%s301] sm:$0xff]
        %v303 = vld [vmem:[%s301 + $0x8] sm:$0xff]
        %v304 = vld [vmem:[%s301 + $0x10] sm:$0xff]
        %v305 = vld [vmem:[%s301 + $0x18] sm:$0xff]
        %vm306 = vcmask 523264
        %307 = vst.msk [vmem:[%s290] sm:$0xff] %vm306, 0.0
        %308 = vst.msk [vmem:[%s290 + $0x8] sm:$0xff] %vm306, 0.0
        %309 = vst.msk [vmem:[%s290 + $0x10] sm:$0xff] %vm306, 0.0
        %310 = vst.msk [vmem:[%s290 + $0x18] sm:$0xff] %vm306, 0.0
        %v311 = vld [vmem:[%s259] sm:$0xff]
        %v312 = vunpack.c.0.s8 %v311
        %v313 = vunpack.c.1.s8 %v311
        %v314 = vunpack.c.2.s8 %v311
        %v315 = vunpack.c.3.s8 %v311
        %vm316 = vcmp.gt.s32.totalorder %v312, 0
        %vm317 = vcmp.gt.s32.totalorder %v313, 0
        %vm318 = vcmp.gt.s32.totalorder %v314, 0
        %vm319 = vcmp.gt.s32.totalorder %v315, 0
        %v320 = vld [vmem:[%s2] sm:$0xff]
        %vm321 = vcmask 64512
        %v323 = vsel %vm321, %v293, 0
        %v326 = vsel %vm321, %v294, 0
        %v329 = vsel %vm321, %v295, 0
        %v332 = vsel %vm321, %v296, 0
        %v335 = vsel %vm321, %v297, 0
        %v338 = vsel %vm321, %v298, 0
        %v341 = vsel %vm321, %v299, 0
        %v344 = vsel %vm321, %v300, 0
        %346 = vmatprep.subr.mxu0 0.0
        %347 = vmatpush1.msra.mxu0 0.0
        %348 = vmatprep.subr.mxu0 0.0
        %349 = vmatpush1.msra.mxu0 0.0
        %350 = vmatprep.subr.mxu0 0.0
        %351 = vmatpush1.msra.mxu0 0.0
        %352 = vmatprep.subr.mxu0 0.0
        %353 = vmatpush1.msra.mxu0 0.0
        %354 = vmatprep.subr.mxu0 0.0
        %355 = vmatpush1.msra.mxu0 0.0
        %356 = vmatprep.subr.mxu0 0.0
        %357 = vmatpush1.msra.mxu0 0.0
        %358 = vmatprep.subr.mxu0 0.0
        %359 = vmatpush1.msra.mxu0 0.0
        %360 = vmatprep.subr.mxu0 0.0
        %361 = vmatpush1.msra.mxu0 0.0
        %362 = vmatprep.subr.mxu0 0.0
        %363 = vmatpush1.msra.mxu0 0.0
        %364 = vmatprep.subr.mxu0 0.0
        %365 = vmatpush1.msra.mxu0 0.0
        %366 = vmatprep.subr.mxu0 0.0
        %367 = vmatpush1.msra.mxu0 0.0
        %368 = vmatprep.subr.mxu0 0.0
        %369 = vmatpush1.msra.mxu0 0.0
        %370 = vmatprep.subr.mxu0 0.0
        %371 = vmatpush1.msra.mxu0 0.0
        %372 = vmatprep.subr.mxu0 0.0
        %373 = vmatpush1.msra.mxu0 0.0
        %374 = vmatprep.subr.mxu0 0.0
        %375 = vmatpush1.msra.mxu0 0.0
        %376 = vmatprep.subr.mxu0 0.0
        %377 = vmatpush1.msra.mxu0 %v320
        %378 = vmatprep.subr.mxu0 0.0
        %379 = vmatpush2.msra.mxu0 0.0
        %380 = vmatprep.subr.mxu0 0.0
        %381 = vmatpush2.msra.mxu0 0.0
        %382 = vmatprep.subr.mxu0 0.0
        %383 = vmatpush2.msra.mxu0 0.0
        %384 = vmatprep.subr.mxu0 0.0
        %385 = vmatpush2.msra.mxu0 0.0
        %386 = vmatprep.subr.mxu0 0.0
        %387 = vmatpush2.msra.mxu0 0.0
        %388 = vmatprep.subr.mxu0 0.0
        %389 = vmatpush2.msra.mxu0 0.0
        %390 = vmatprep.subr.mxu0 0.0
        %391 = vmatpush2.msra.mxu0 0.0
        %392 = vmatprep.subr.mxu0 0.0
        %393 = vmatpush2.msra.mxu0 0.0
        %394 = vmatprep.subr.mxu0 0.0
        %395 = vmatpush2.msra.mxu0 0.0
        %396 = vmatprep.subr.mxu0 0.0
        %397 = vmatpush2.msra.mxu0 0.0
        %398 = vmatprep.subr.mxu0 0.0
        %399 = vmatpush2.msra.mxu0 0.0
        %400 = vmatprep.subr.mxu0 0.0
        %401 = vmatpush2.msra.mxu0 0.0
        %402 = vmatprep.subr.mxu0 0.0
        %403 = vmatpush2.msra.mxu0 0.0
        %404 = vmatprep.subr.mxu0 0.0
        %405 = vmatpush2.msra.mxu0 0.0
        %406 = vmatprep.subr.mxu0 0.0
        %407 = vmatpush2.msra.mxu0 0.0
        %408 = vmatprep.subr.mxu0 0.0
        %409 = vmatpush2.msra.mxu0 0.0
        %410 = vmatprep.mubr.f32.mxu0 0.0
        %411 = vmatmul.mubr.f32.gmra.mxu0 %v323
        %v412 = vpop.f32.mrf.mxu0
        %v413 = vadd.f32 0.0, %v412
        %v414 = vpop.f32.mrf.mxu0
        %415 = vmatprep.mubr.f32.mxu0 0.0
        %416 = vmatmul.mubr.f32.gmra.mxu0 %v326
        %v417 = vpop.f32.mrf.mxu0
        %v418 = vadd.f32 0.0, %v417
        %v419 = vpop.f32.mrf.mxu0
        %420 = vmatprep.mubr.f32.mxu0 0.0
        %421 = vmatmul.mubr.f32.gmra.mxu0 %v329
        %v422 = vpop.f32.mrf.mxu0
        %v423 = vadd.f32 0.0, %v422
        %v424 = vpop.f32.mrf.mxu0
        %425 = vmatprep.mubr.f32.mxu0 0.0
        %426 = vmatmul.mubr.f32.gmra.mxu0 %v332
        %v427 = vpop.f32.mrf.mxu0
        %v428 = vadd.f32 0.0, %v427
        %v429 = vpop.f32.mrf.mxu0
        %430 = vmatprep.mubr.f32.mxu0 0.0
        %431 = vmatmul.mubr.f32.gmra.mxu0 %v335
        %v432 = vpop.f32.mrf.mxu0
        %v433 = vadd.f32 0.0, %v432
        %v434 = vpop.f32.mrf.mxu0
        %435 = vmatprep.mubr.f32.mxu0 0.0
        %436 = vmatmul.mubr.f32.gmra.mxu0 %v338
        %v437 = vpop.f32.mrf.mxu0
        %v438 = vadd.f32 0.0, %v437
        %v439 = vpop.f32.mrf.mxu0
        %440 = vmatprep.mubr.f32.mxu0 0.0
        %441 = vmatmul.mubr.f32.gmra.mxu0 %v341
        %v442 = vpop.f32.mrf.mxu0
        %v443 = vadd.f32 0.0, %v442
        %v444 = vpop.f32.mrf.mxu0
        %445 = vmatprep.mubr.f32.mxu0 0.0
        %446 = vmatmul.mubr.f32.gmra.mxu0 %v344
        %v447 = vpop.f32.mrf.mxu0
        %v448 = vadd.f32 0.0, %v447
        %v449 = vpop.f32.mrf.mxu0
        %450 = vdwg.mxu0
        %v452 = vsel %vm321, %v302, 0
        %v455 = vsel %vm321, %v303, 0
        %v458 = vsel %vm321, %v304, 0
        %v461 = vsel %vm321, %v305, 0
        %463 = vmatprep.subr.mxu0 0.0
        %464 = vmatpush1.msra.mxu0 0.0
        %465 = vmatprep.subr.mxu0 0.0
        %466 = vmatpush1.msra.mxu0 0.0
        %467 = vmatprep.subr.mxu0 0.0
        %468 = vmatpush1.msra.mxu0 0.0
        %469 = vmatprep.subr.mxu0 0.0
        %470 = vmatpush1.msra.mxu0 0.0
        %471 = vmatprep.subr.mxu0 0.0
        %472 = vmatpush1.msra.mxu0 0.0
        %473 = vmatprep.subr.mxu0 0.0
        %474 = vmatpush1.msra.mxu0 0.0
        %475 = vmatprep.subr.mxu0 0.0
        %476 = vmatpush1.msra.mxu0 0.0
        %477 = vmatprep.subr.mxu0 0.0
        %478 = vmatpush1.msra.mxu0 0.0
        %479 = vmatprep.subr.mxu0 0.0
        %480 = vmatpush1.msra.mxu0 0.0
        %481 = vmatprep.subr.mxu0 0.0
        %482 = vmatpush1.msra.mxu0 0.0
        %483 = vmatprep.subr.mxu0 0.0
        %484 = vmatpush1.msra.mxu0 0.0
        %485 = vmatprep.subr.mxu0 0.0
        %486 = vmatpush1.msra.mxu0 0.0
        %487 = vmatprep.subr.mxu0 0.0
        %488 = vmatpush1.msra.mxu0 0.0
        %489 = vmatprep.subr.mxu0 0.0
        %490 = vmatpush1.msra.mxu0 0.0
        %491 = vmatprep.subr.mxu0 0.0
        %492 = vmatpush1.msra.mxu0 0.0
        %493 = vmatprep.subr.mxu0 0.0
        %494 = vmatpush1.msra.mxu0 %v320
        %495 = vmatprep.subr.mxu0 0.0
        %496 = vmatpush2.msra.mxu0 0.0
        %497 = vmatprep.subr.mxu0 0.0
        %498 = vmatpush2.msra.mxu0 0.0
        %499 = vmatprep.subr.mxu0 0.0
        %500 = vmatpush2.msra.mxu0 0.0
        %501 = vmatprep.subr.mxu0 0.0
        %502 = vmatpush2.msra.mxu0 0.0
        %503 = vmatprep.subr.mxu0 0.0
        %504 = vmatpush2.msra.mxu0 0.0
        %505 = vmatprep.subr.mxu0 0.0
        %506 = vmatpush2.msra.mxu0 0.0
        %507 = vmatprep.subr.mxu0 0.0
        %508 = vmatpush2.msra.mxu0 0.0
        %509 = vmatprep.subr.mxu0 0.0
        %510 = vmatpush2.msra.mxu0 0.0
        %511 = vmatprep.subr.mxu0 0.0
        %512 = vmatpush2.msra.mxu0 0.0
        %513 = vmatprep.subr.mxu0 0.0
        %514 = vmatpush2.msra.mxu0 0.0
        %515 = vmatprep.subr.mxu0 0.0
        %516 = vmatpush2.msra.mxu0 0.0
        %517 = vmatprep.subr.mxu0 0.0
        %518 = vmatpush2.msra.mxu0 0.0
        %519 = vmatprep.subr.mxu0 0.0
        %520 = vmatpush2.msra.mxu0 0.0
        %521 = vmatprep.subr.mxu0 0.0
        %522 = vmatpush2.msra.mxu0 0.0
        %523 = vmatprep.subr.mxu0 0.0
        %524 = vmatpush2.msra.mxu0 0.0
        %525 = vmatprep.subr.mxu0 0.0
        %526 = vmatpush2.msra.mxu0 0.0
        %527 = vmatprep.mubr.f32.mxu0 0.0
        %528 = vmatmul.mubr.f32.gmra.mxu0 %v452
        %v529 = vpop.f32.mrf.mxu0
        %v530 = vadd.f32 0.0, %v529
        %v531 = vpop.f32.mrf.mxu0
        %532 = vmatprep.mubr.f32.mxu0 0.0
        %533 = vmatmul.mubr.f32.gmra.mxu0 %v455
        %v534 = vpop.f32.mrf.mxu0
        %v535 = vadd.f32 0.0, %v534
        %v536 = vpop.f32.mrf.mxu0
        %537 = vmatprep.mubr.f32.mxu0 0.0
        %538 = vmatmul.mubr.f32.gmra.mxu0 %v458
        %v539 = vpop.f32.mrf.mxu0
        %v540 = vadd.f32 0.0, %v539
        %v541 = vpop.f32.mrf.mxu0
        %542 = vmatprep.mubr.f32.mxu0 0.0
        %543 = vmatmul.mubr.f32.gmra.mxu0 %v461
        %v544 = vpop.f32.mrf.mxu0
        %v545 = vadd.f32 0.0, %v544
        %v546 = vpop.f32.mrf.mxu0
        %547 = vdwg.mxu0
        %v548 = vld [vmem:[%s3] sm:$0x3]
        %v550 = vsel %vm306, %v548, 0
        %v553 = vsel %vm306, %v413, 0
        %v556 = vsel %vm306, %v418, 0
        %v559 = vsel %vm306, %v423, 0
        %v562 = vsel %vm306, %v428, 0
        %v565 = vsel %vm306, %v433, 0
        %v568 = vsel %vm306, %v438, 0
        %v571 = vsel %vm306, %v443, 0
        %v574 = vsel %vm306, %v448, 0
        %576 = vmatprep.subr.mxu0 0.0
        %577 = vmatpush1.xpose.msra.mxu0 0.0
        %578 = vmatprep.subr.mxu0 0.0
        %579 = vmatpush1.xpose.msra.mxu0 0.0
        %580 = vmatprep.subr.mxu0 0.0
        %581 = vmatpush1.xpose.msra.mxu0 0.0
        %582 = vmatprep.subr.mxu0 0.0
        %583 = vmatpush1.xpose.msra.mxu0 0.0
        %584 = vmatprep.subr.mxu0 0.0
        %585 = vmatpush1.xpose.msra.mxu0 0.0
        %586 = vmatprep.subr.mxu0 0.0
        %587 = vmatpush1.xpose.msra.mxu0 0.0
        %588 = vmatprep.subr.mxu0 0.0
        %589 = vmatpush1.xpose.msra.mxu0 0.0
        %590 = vmatprep.subr.mxu0 0.0
        %591 = vmatpush1.xpose.msra.mxu0 0.0
        %592 = vmatprep.subr.mxu0 0.0
        %593 = vmatpush1.xpose.msra.mxu0 %v574
        %594 = vmatprep.subr.mxu0 0.0
        %595 = vmatpush1.xpose.msra.mxu0 %v571
        %596 = vmatprep.subr.mxu0 0.0
        %597 = vmatpush1.xpose.msra.mxu0 %v568
        %598 = vmatprep.subr.mxu0 0.0
        %599 = vmatpush1.xpose.msra.mxu0 %v565
        %600 = vmatprep.subr.mxu0 0.0
        %601 = vmatpush1.xpose.msra.mxu0 %v562
        %602 = vmatprep.subr.mxu0 0.0
        %603 = vmatpush1.xpose.msra.mxu0 %v559
        %604 = vmatprep.subr.mxu0 0.0
        %605 = vmatpush1.xpose.msra.mxu0 %v556
        %606 = vmatprep.subr.mxu0 0.0
        %607 = vmatpush1.xpose.msra.mxu0 %v553
        %608 = vmatprep.subr.mxu0 0.0
        %609 = vmatpush2.xpose.msra.mxu0 0.0
        %610 = vmatprep.subr.mxu0 0.0
        %611 = vmatpush2.xpose.msra.mxu0 0.0
        %612 = vmatprep.subr.mxu0 0.0
        %613 = vmatpush2.xpose.msra.mxu0 0.0
        %614 = vmatprep.subr.mxu0 0.0
        %615 = vmatpush2.xpose.msra.mxu0 0.0
        %616 = vmatprep.subr.mxu0 0.0
        %617 = vmatpush2.xpose.msra.mxu0 0.0
        %618 = vmatprep.subr.mxu0 0.0
        %619 = vmatpush2.xpose.msra.mxu0 0.0
        %620 = vmatprep.subr.mxu0 0.0
        %621 = vmatpush2.xpose.msra.mxu0 0.0
        %622 = vmatprep.subr.mxu0 0.0
        %623 = vmatpush2.xpose.msra.mxu0 0.0
        %624 = vmatprep.subr.mxu0 0.0
        %625 = vmatpush2.xpose.msra.mxu0 0.0
        %626 = vmatprep.subr.mxu0 0.0
        %627 = vmatpush2.xpose.msra.mxu0 0.0
        %628 = vmatprep.subr.mxu0 0.0
        %629 = vmatpush2.xpose.msra.mxu0 0.0
        %630 = vmatprep.subr.mxu0 0.0
        %631 = vmatpush2.xpose.msra.mxu0 0.0
        %632 = vmatprep.subr.mxu0 0.0
        %633 = vmatpush2.xpose.msra.mxu0 0.0
        %634 = vmatprep.subr.mxu0 0.0
        %635 = vmatpush2.xpose.msra.mxu0 0.0
        %636 = vmatprep.subr.mxu0 0.0
        %637 = vmatpush2.xpose.msra.mxu0 0.0
        %638 = vmatprep.subr.mxu0 0.0
        %639 = vmatpush2.xpose.msra.mxu0 0.0
        %640 = vmatprep.mubr.f32.mxu0 0.0
        %641 = vmatmul.mubr.f32.gmra.mxu0 %v550
        %v642 = vpop.f32.mrf.mxu0
        %v643 = vadd.f32 0.0, %v642
        %v644 = vpop.f32.mrf.mxu0
        %645 = vdwg.mxu0
        %v646 = vld [vmem:[%s4] sm:$0x3]
        %v648 = vsel %vm306, %v530, 0
        %v651 = vsel %vm306, %v535, 0
        %v654 = vsel %vm306, %v540, 0
        %v657 = vsel %vm306, %v545, 0
        %v660 = vsel %vm306, %v646, 0
        %662 = vmatprep.subr.mxu0 0.0
        %663 = vmatpush1.xpose.msra.mxu0 0.0
        %664 = vmatprep.subr.mxu0 0.0
        %665 = vmatpush1.xpose.msra.mxu0 0.0
        %666 = vmatprep.subr.mxu0 0.0
        %667 = vmatpush1.xpose.msra.mxu0 0.0
        %668 = vmatprep.subr.mxu0 0.0
        %669 = vmatpush1.xpose.msra.mxu0 0.0
        %670 = vmatprep.subr.mxu0 0.0
        %671 = vmatpush1.xpose.msra.mxu0 0.0
        %672 = vmatprep.subr.mxu0 0.0
        %673 = vmatpush1.xpose.msra.mxu0 0.0
        %674 = vmatprep.subr.mxu0 0.0
        %675 = vmatpush1.xpose.msra.mxu0 0.0
        %676 = vmatprep.subr.mxu0 0.0
        %677 = vmatpush1.xpose.msra.mxu0 0.0
        %678 = vmatprep.subr.mxu0 0.0
        %679 = vmatpush1.xpose.msra.mxu0 0.0
        %680 = vmatprep.subr.mxu0 0.0
        %681 = vmatpush1.xpose.msra.mxu0 0.0
        %682 = vmatprep.subr.mxu0 0.0
        %683 = vmatpush1.xpose.msra.mxu0 0.0
        %684 = vmatprep.subr.mxu0 0.0
        %685 = vmatpush1.xpose.msra.mxu0 0.0
        %686 = vmatprep.subr.mxu0 0.0
        %687 = vmatpush1.xpose.msra.mxu0 0.0
        %688 = vmatprep.subr.mxu0 0.0
        %689 = vmatpush1.xpose.msra.mxu0 0.0
        %690 = vmatprep.subr.mxu0 0.0
        %691 = vmatpush1.xpose.msra.mxu0 0.0
        %692 = vmatprep.subr.mxu0 0.0
        %693 = vmatpush1.xpose.msra.mxu0 %v660
        %694 = vmatprep.subr.mxu0 0.0
        %695 = vmatpush2.xpose.msra.mxu0 0.0
        %696 = vmatprep.subr.mxu0 0.0
        %697 = vmatpush2.xpose.msra.mxu0 0.0
        %698 = vmatprep.subr.mxu0 0.0
        %699 = vmatpush2.xpose.msra.mxu0 0.0
        %700 = vmatprep.subr.mxu0 0.0
        %701 = vmatpush2.xpose.msra.mxu0 0.0
        %702 = vmatprep.subr.mxu0 0.0
        %703 = vmatpush2.xpose.msra.mxu0 0.0
        %704 = vmatprep.subr.mxu0 0.0
        %705 = vmatpush2.xpose.msra.mxu0 0.0
        %706 = vmatprep.subr.mxu0 0.0
        %707 = vmatpush2.xpose.msra.mxu0 0.0
        %708 = vmatprep.subr.mxu0 0.0
        %709 = vmatpush2.xpose.msra.mxu0 0.0
        %710 = vmatprep.subr.mxu0 0.0
        %711 = vmatpush2.xpose.msra.mxu0 0.0
        %712 = vmatprep.subr.mxu0 0.0
        %713 = vmatpush2.xpose.msra.mxu0 0.0
        %714 = vmatprep.subr.mxu0 0.0
        %715 = vmatpush2.xpose.msra.mxu0 0.0
        %716 = vmatprep.subr.mxu0 0.0
        %717 = vmatpush2.xpose.msra.mxu0 0.0
        %718 = vmatprep.subr.mxu0 0.0
        %719 = vmatpush2.xpose.msra.mxu0 0.0
        %720 = vmatprep.subr.mxu0 0.0
        %721 = vmatpush2.xpose.msra.mxu0 0.0
        %722 = vmatprep.subr.mxu0 0.0
        %723 = vmatpush2.xpose.msra.mxu0 0.0
        %724 = vmatprep.subr.mxu0 0.0
        %725 = vmatpush2.xpose.msra.mxu0 0.0
        %726 = vmatprep.mubr.f32.mxu0 0.0
        %727 = vmatmul.mubr.f32.gmra.mxu0 %v648
        %v728 = vpop.f32.mrf.mxu0
        %v729 = vadd.f32 0.0, %v728
        %v730 = vpop.f32.mrf.mxu0
        %731 = vmatprep.mubr.f32.mxu0 0.0
        %732 = vmatmul.mubr.f32.gmra.mxu0 %v651
        %v733 = vpop.f32.mrf.mxu0
        %v734 = vadd.f32 0.0, %v733
        %v735 = vpop.f32.mrf.mxu0
        %736 = vmatprep.mubr.f32.mxu0 0.0
        %737 = vmatmul.mubr.f32.gmra.mxu0 %v654
        %v738 = vpop.f32.mrf.mxu0
        %v739 = vadd.f32 0.0, %v738
        %v740 = vpop.f32.mrf.mxu0
        %741 = vmatprep.mubr.f32.mxu0 0.0
        %742 = vmatmul.mubr.f32.gmra.mxu0 %v657
        %v743 = vpop.f32.mrf.mxu0
        %v744 = vadd.f32 0.0, %v743
        %v745 = vpop.f32.mrf.mxu0
        %746 = vdwg.mxu0
        %748 = vset.pattern.permute.xlu0 0
        %749 = vperm.xlu0 %748, %v729
        %v750 = vpop.permute.xlu0 %749
        %753 = vset.pattern.permute.xlu0 0
        %754 = vperm.xlu0 %753, %v734
        %v755 = vpop.permute.xlu0 %754
        %758 = vset.pattern.permute.xlu0 0
        %759 = vperm.xlu0 %758, %v739
        %v760 = vpop.permute.xlu0 %759
        %763 = vset.pattern.permute.xlu0 0
        %764 = vperm.xlu0 %763, %v744
        %v765 = vpop.permute.xlu0 %764
        %v767 = vlaneseq
        %v768 = vshrl.u32 %v767, 7
        %v769 = vsub.s32 0, %v768
        %v770 = vrot.slane %v643, %v769
        %v771 = vadd.f32 %v750, %v770
        %v772 = vadd.f32 %v755, %v770
        %v773 = vadd.f32 %v760, %v770
        %v774 = vadd.f32 %v765, %v770
        %v775 = vmul.f32 %v771, 0.2
        %v776 = vmul.f32 %v772, 0.2
        %v777 = vmul.f32 %v773, 0.2
        %v778 = vmul.f32 %v774, 0.2
        %v779 = vmax.f32 %v771, %v775
        %v780 = vmax.f32 %v772, %v776
        %v781 = vmax.f32 %v773, %v777
        %v782 = vmax.f32 %v774, %v778
        %v783 = vsel %vm316, %v779, -1e+30
        %v784 = vsel %vm317, %v780, -1e+30
        %v785 = vsel %vm318, %v781, -1e+30
        %v786 = vsel %vm319, %v782, -1e+30
        %v787 = vsel %vm306, %v783, -inf
        %788 = vmax.xlane.f32.xlu0 %v787
        %v789 = vpop.xlane.xlu0 %788
        %v790 = vsel %vm306, %v784, -inf
        %791 = vmax.xlane.f32.xlu0 %v790
        %v792 = vpop.xlane.xlu0 %791
        %v793 = vsel %vm306, %v785, -inf
        %794 = vmax.xlane.f32.xlu0 %v793
        %v795 = vpop.xlane.xlu0 %794
        %v796 = vsel %vm306, %v786, -inf
        %797 = vmax.xlane.f32.xlu0 %v796
        %v798 = vpop.xlane.xlu0 %797
        %v799 = vsub.f32 %v783, %v789
        %v800 = vsub.f32 %v784, %v792
        %v801 = vsub.f32 %v785, %v795
        %v802 = vsub.f32 %v786, %v798
        %v803 = vmul.f32 %v799, 1.442695
        %v804 = vpow.pop %v803
        %v805 = vmul.f32 %v800, 1.442695
        %v806 = vpow.pop %v805
        %v807 = vmul.f32 %v801, 1.442695
        %v808 = vpow.pop %v807
        %v809 = vmul.f32 %v802, 1.442695
        %v810 = vpow.pop %v809
        %v811 = vsel %vm306, %v804, 0.0
        %812 = vadd.xlane.f32.xlu0 %v811
        %v813 = vpop.xlane.xlu0 %812
        %v814 = vsel %vm306, %v806, 0.0
        %815 = vadd.xlane.f32.xlu0 %v814
        %v816 = vpop.xlane.xlu0 %815
        %v817 = vsel %vm306, %v808, 0.0
        %818 = vadd.xlane.f32.xlu0 %v817
        %v819 = vpop.xlane.xlu0 %818
        %v820 = vsel %vm306, %v810, 0.0
        %821 = vadd.xlane.f32.xlu0 %v820
        %v822 = vpop.xlane.xlu0 %821
        %v823 = vrcp.pop %v813
        %v824 = vrcp.pop %v816
        %v825 = vrcp.pop %v819
        %v826 = vrcp.pop %v822
        %v828 = vsel %vm306, %v804, 0
        %v831 = vsel %vm306, %v806, 0
        %v834 = vsel %vm306, %v808, 0
        %v837 = vsel %vm306, %v810, 0
        %839 = vmatprep.subr.mxu0 0.0
        %840 = vmatpush1.msra.mxu0 0.0
        %841 = vmatprep.subr.mxu0 0.0
        %842 = vmatpush1.msra.mxu0 0.0
        %843 = vmatprep.subr.mxu0 0.0
        %844 = vmatpush1.msra.mxu0 0.0
        %845 = vmatprep.subr.mxu0 0.0
        %846 = vmatpush1.msra.mxu0 0.0
        %847 = vmatprep.subr.mxu0 0.0
        %848 = vmatpush1.msra.mxu0 0.0
        %849 = vmatprep.subr.mxu0 0.0
        %850 = vmatpush1.msra.mxu0 0.0
        %851 = vmatprep.subr.mxu0 0.0
        %852 = vmatpush1.msra.mxu0 0.0
        %853 = vmatprep.subr.mxu0 0.0
        %854 = vmatpush1.msra.mxu0 0.0
        %855 = vmatprep.subr.mxu0 0.0
        %856 = vmatpush1.msra.mxu0 %v448
        %857 = vmatprep.subr.mxu0 0.0
        %858 = vmatpush1.msra.mxu0 %v443
        %859 = vmatprep.subr.mxu0 0.0
        %860 = vmatpush1.msra.mxu0 %v438
        %861 = vmatprep.subr.mxu0 0.0
        %862 = vmatpush1.msra.mxu0 %v433
        %863 = vmatprep.subr.mxu0 0.0
        %864 = vmatpush1.msra.mxu0 %v428
        %865 = vmatprep.subr.mxu0 0.0
        %866 = vmatpush1.msra.mxu0 %v423
        %867 = vmatprep.subr.mxu0 0.0
        %868 = vmatpush1.msra.mxu0 %v418
        %869 = vmatprep.subr.mxu0 0.0
        %870 = vmatpush1.msra.mxu0 %v413
        %871 = vmatprep.subr.mxu0 0.0
        %872 = vmatpush2.msra.mxu0 0.0
        %873 = vmatprep.subr.mxu0 0.0
        %874 = vmatpush2.msra.mxu0 0.0
        %875 = vmatprep.subr.mxu0 0.0
        %876 = vmatpush2.msra.mxu0 0.0
        %877 = vmatprep.subr.mxu0 0.0
        %878 = vmatpush2.msra.mxu0 0.0
        %879 = vmatprep.subr.mxu0 0.0
        %880 = vmatpush2.msra.mxu0 0.0
        %881 = vmatprep.subr.mxu0 0.0
        %882 = vmatpush2.msra.mxu0 0.0
        %883 = vmatprep.subr.mxu0 0.0
        %884 = vmatpush2.msra.mxu0 0.0
        %885 = vmatprep.subr.mxu0 0.0
        %886 = vmatpush2.msra.mxu0 0.0
        %887 = vmatprep.subr.mxu0 0.0
        %888 = vmatpush2.msra.mxu0 0.0
        %889 = vmatprep.subr.mxu0 0.0
        %890 = vmatpush2.msra.mxu0 0.0
        %891 = vmatprep.subr.mxu0 0.0
        %892 = vmatpush2.msra.mxu0 0.0
        %893 = vmatprep.subr.mxu0 0.0
        %894 = vmatpush2.msra.mxu0 0.0
        %895 = vmatprep.subr.mxu0 0.0
        %896 = vmatpush2.msra.mxu0 0.0
        %897 = vmatprep.subr.mxu0 0.0
        %898 = vmatpush2.msra.mxu0 0.0
        %899 = vmatprep.subr.mxu0 0.0
        %900 = vmatpush2.msra.mxu0 0.0
        %901 = vmatprep.subr.mxu0 0.0
        %902 = vmatpush2.msra.mxu0 0.0
        %903 = vmatprep.mubr.f32.mxu0 0.0
        %904 = vmatmul.mubr.f32.gmra.mxu0 %v828
        %v905 = vpop.f32.mrf.mxu0
        %v906 = vadd.f32 0.0, %v905
        %v907 = vpop.f32.mrf.mxu0
        %908 = vmatprep.mubr.f32.mxu0 0.0
        %909 = vmatmul.mubr.f32.gmra.mxu0 %v831
        %v910 = vpop.f32.mrf.mxu0
        %v911 = vadd.f32 0.0, %v910
        %v912 = vpop.f32.mrf.mxu0
        %913 = vmatprep.mubr.f32.mxu0 0.0
        %914 = vmatmul.mubr.f32.gmra.mxu0 %v834
        %v915 = vpop.f32.mrf.mxu0
        %v916 = vadd.f32 0.0, %v915
        %v917 = vpop.f32.mrf.mxu0
        %918 = vmatprep.mubr.f32.mxu0 0.0
        %919 = vmatmul.mubr.f32.gmra.mxu0 %v837
        %v920 = vpop.f32.mrf.mxu0
        %v921 = vadd.f32 0.0, %v920
        %v922 = vpop.f32.mrf.mxu0
        %923 = vdwg.mxu0
        %v924 = vld [vmem:[%s290] sm:$0xff]
        %v925 = vld [vmem:[%s290 + $0x8] sm:$0xff]
        %v926 = vld [vmem:[%s290 + $0x10] sm:$0xff]
        %v927 = vld [vmem:[%s290 + $0x18] sm:$0xff]
        %v928 = vmul.f32 %v906, %v823
        %v929 = vmul.f32 %v911, %v824
        %v930 = vmul.f32 %v916, %v825
        %v931 = vmul.f32 %v921, %v826
        %v932 = vadd.f32 %v924, %v928
        %v933 = vadd.f32 %v925, %v929
        %v934 = vadd.f32 %v926, %v930
        %v935 = vadd.f32 %v927, %v931
        %vm936 = vcmask 261120
        %937 = vst.msk [vmem:[%s290] sm:$0xff] %vm936, %v932
        %938 = vst.msk [vmem:[%s290 + $0x8] sm:$0xff] %vm936, %v933
        %939 = vst.msk [vmem:[%s290 + $0x10] sm:$0xff] %vm936, %v934
        %940 = vst.msk [vmem:[%s290 + $0x18] sm:$0xff] %vm936, %v935
        %941 = vset.pattern.permute.xlu0 1
        %942 = vperm.xlu0 %941, %v729
        %v943 = vpop.permute.xlu0 %942
        %945 = vset.pattern.permute.xlu0 1
        %946 = vperm.xlu0 %945, %v734
        %v947 = vpop.permute.xlu0 %946
        %949 = vset.pattern.permute.xlu0 1
        %950 = vperm.xlu0 %949, %v739
        %v951 = vpop.permute.xlu0 %950
        %953 = vset.pattern.permute.xlu0 1
        %954 = vperm.xlu0 %953, %v744
        %v955 = vpop.permute.xlu0 %954
        %v957 = vlaneseq
        %v958 = vshrl.u32 %v957, 7
        %v959 = vsub.s32 1, %v958
        %v960 = vrot.slane %v643, %v959
        %v961 = vadd.f32 %v943, %v960
        %v962 = vadd.f32 %v947, %v960
        %v963 = vadd.f32 %v951, %v960
        %v964 = vadd.f32 %v955, %v960
        %v965 = vmul.f32 %v961, 0.2
        %v966 = vmul.f32 %v962, 0.2
        %v967 = vmul.f32 %v963, 0.2
        %v968 = vmul.f32 %v964, 0.2
        %v969 = vmax.f32 %v961, %v965
        %v970 = vmax.f32 %v962, %v966
        %v971 = vmax.f32 %v963, %v967
        %v972 = vmax.f32 %v964, %v968
        %v973 = vsel %vm316, %v969, -1e+30
        %v974 = vsel %vm317, %v970, -1e+30
        %v975 = vsel %vm318, %v971, -1e+30
        %v976 = vsel %vm319, %v972, -1e+30
        %v977 = vsel %vm306, %v973, -inf
        %978 = vmax.xlane.f32.xlu0 %v977
        %v979 = vpop.xlane.xlu0 %978
        %v980 = vsel %vm306, %v974, -inf
        %981 = vmax.xlane.f32.xlu0 %v980
        %v982 = vpop.xlane.xlu0 %981
        %v983 = vsel %vm306, %v975, -inf
        %984 = vmax.xlane.f32.xlu0 %v983
        %v985 = vpop.xlane.xlu0 %984
        %v986 = vsel %vm306, %v976, -inf
        %987 = vmax.xlane.f32.xlu0 %v986
        %v988 = vpop.xlane.xlu0 %987
        %v989 = vsub.f32 %v973, %v979
        %v990 = vsub.f32 %v974, %v982
        %v991 = vsub.f32 %v975, %v985
        %v992 = vsub.f32 %v976, %v988
        %v993 = vmul.f32 %v989, 1.442695
        %v994 = vpow.pop %v993
        %v995 = vmul.f32 %v990, 1.442695
        %v996 = vpow.pop %v995
        %v997 = vmul.f32 %v991, 1.442695
        %v998 = vpow.pop %v997
        %v999 = vmul.f32 %v992, 1.442695
        %v1000 = vpow.pop %v999
        %v1001 = vsel %vm306, %v994, 0.0
        %1002 = vadd.xlane.f32.xlu0 %v1001
        %v1003 = vpop.xlane.xlu0 %1002
        %v1004 = vsel %vm306, %v996, 0.0
        %1005 = vadd.xlane.f32.xlu0 %v1004
        %v1006 = vpop.xlane.xlu0 %1005
        %v1007 = vsel %vm306, %v998, 0.0
        %1008 = vadd.xlane.f32.xlu0 %v1007
        %v1009 = vpop.xlane.xlu0 %1008
        %v1010 = vsel %vm306, %v1000, 0.0
        %1011 = vadd.xlane.f32.xlu0 %v1010
        %v1012 = vpop.xlane.xlu0 %1011
        %v1013 = vrcp.pop %v1003
        %v1014 = vrcp.pop %v1006
        %v1015 = vrcp.pop %v1009
        %v1016 = vrcp.pop %v1012
        %1017 = vrot.lane.b32.xlu0 %v413, 96
        %v1018 = vpop.permute.xlu0 %1017
        %1019 = vrot.lane.b32.xlu0 %v418, 96
        %v1020 = vpop.permute.xlu0 %1019
        %1021 = vrot.lane.b32.xlu0 %v423, 96
        %v1022 = vpop.permute.xlu0 %1021
        %1023 = vrot.lane.b32.xlu0 %v428, 96
        %v1024 = vpop.permute.xlu0 %1023
        %1025 = vrot.lane.b32.xlu0 %v433, 96
        %v1026 = vpop.permute.xlu0 %1025
        %1027 = vrot.lane.b32.xlu0 %v438, 96
        %v1028 = vpop.permute.xlu0 %1027
        %1029 = vrot.lane.b32.xlu0 %v443, 96
        %v1030 = vpop.permute.xlu0 %1029
        %1031 = vrot.lane.b32.xlu0 %v448, 96
        %v1032 = vpop.permute.xlu0 %1031
        %v1042 = vsel %vm306, %v994, 0
        %v1045 = vsel %vm306, %v996, 0
        %v1048 = vsel %vm306, %v998, 0
        %v1051 = vsel %vm306, %v1000, 0
        %1053 = vmatprep.subr.mxu0 0.0
        %1054 = vmatpush1.msra.mxu0 0.0
        %1055 = vmatprep.subr.mxu0 0.0
        %1056 = vmatpush1.msra.mxu0 0.0
        %1057 = vmatprep.subr.mxu0 0.0
        %1058 = vmatpush1.msra.mxu0 0.0
        %1059 = vmatprep.subr.mxu0 0.0
        %1060 = vmatpush1.msra.mxu0 0.0
        %1061 = vmatprep.subr.mxu0 0.0
        %1062 = vmatpush1.msra.mxu0 0.0
        %1063 = vmatprep.subr.mxu0 0.0
        %1064 = vmatpush1.msra.mxu0 0.0
        %1065 = vmatprep.subr.mxu0 0.0
        %1066 = vmatpush1.msra.mxu0 0.0
        %1067 = vmatprep.subr.mxu0 0.0
        %1068 = vmatpush1.msra.mxu0 0.0
        %1069 = vmatprep.subr.mxu0 0.0
        %1070 = vmatpush1.msra.mxu0 %v1032
        %1071 = vmatprep.subr.mxu0 0.0
        %1072 = vmatpush1.msra.mxu0 %v1030
        %1073 = vmatprep.subr.mxu0 0.0
        %1074 = vmatpush1.msra.mxu0 %v1028
        %1075 = vmatprep.subr.mxu0 0.0
        %1076 = vmatpush1.msra.mxu0 %v1026
        %1077 = vmatprep.subr.mxu0 0.0
        %1078 = vmatpush1.msra.mxu0 %v1024
        %1079 = vmatprep.subr.mxu0 0.0
        %1080 = vmatpush1.msra.mxu0 %v1022
        %1081 = vmatprep.subr.mxu0 0.0
        %1082 = vmatpush1.msra.mxu0 %v1020
        %1083 = vmatprep.subr.mxu0 0.0
        %1084 = vmatpush1.msra.mxu0 %v1018
        %1085 = vmatprep.subr.mxu0 0.0
        %1086 = vmatpush2.msra.mxu0 0.0
        %1087 = vmatprep.subr.mxu0 0.0
        %1088 = vmatpush2.msra.mxu0 0.0
        %1089 = vmatprep.subr.mxu0 0.0
        %1090 = vmatpush2.msra.mxu0 0.0
        %1091 = vmatprep.subr.mxu0 0.0
        %1092 = vmatpush2.msra.mxu0 0.0
        %1093 = vmatprep.subr.mxu0 0.0
        %1094 = vmatpush2.msra.mxu0 0.0
        %1095 = vmatprep.subr.mxu0 0.0
        %1096 = vmatpush2.msra.mxu0 0.0
        %1097 = vmatprep.subr.mxu0 0.0
        %1098 = vmatpush2.msra.mxu0 0.0
        %1099 = vmatprep.subr.mxu0 0.0
        %1100 = vmatpush2.msra.mxu0 0.0
        %1101 = vmatprep.subr.mxu0 0.0
        %1102 = vmatpush2.msra.mxu0 0.0
        %1103 = vmatprep.subr.mxu0 0.0
        %1104 = vmatpush2.msra.mxu0 0.0
        %1105 = vmatprep.subr.mxu0 0.0
        %1106 = vmatpush2.msra.mxu0 0.0
        %1107 = vmatprep.subr.mxu0 0.0
        %1108 = vmatpush2.msra.mxu0 0.0
        %1109 = vmatprep.subr.mxu0 0.0
        %1110 = vmatpush2.msra.mxu0 0.0
        %1111 = vmatprep.subr.mxu0 0.0
        %1112 = vmatpush2.msra.mxu0 0.0
        %1113 = vmatprep.subr.mxu0 0.0
        %1114 = vmatpush2.msra.mxu0 0.0
        %1115 = vmatprep.subr.mxu0 0.0
        %1116 = vmatpush2.msra.mxu0 0.0
        %1117 = vmatprep.mubr.f32.mxu0 0.0
        %1118 = vmatmul.mubr.f32.gmra.mxu0 %v1042
        %v1119 = vpop.f32.mrf.mxu0
        %v1120 = vadd.f32 0.0, %v1119
        %v1121 = vpop.f32.mrf.mxu0
        %1122 = vmatprep.mubr.f32.mxu0 0.0
        %1123 = vmatmul.mubr.f32.gmra.mxu0 %v1045
        %v1124 = vpop.f32.mrf.mxu0
        %v1125 = vadd.f32 0.0, %v1124
        %v1126 = vpop.f32.mrf.mxu0
        %1127 = vmatprep.mubr.f32.mxu0 0.0
        %1128 = vmatmul.mubr.f32.gmra.mxu0 %v1048
        %v1129 = vpop.f32.mrf.mxu0
        %v1130 = vadd.f32 0.0, %v1129
        %v1131 = vpop.f32.mrf.mxu0
        %1132 = vmatprep.mubr.f32.mxu0 0.0
        %1133 = vmatmul.mubr.f32.gmra.mxu0 %v1051
        %v1134 = vpop.f32.mrf.mxu0
        %v1135 = vadd.f32 0.0, %v1134
        %v1136 = vpop.f32.mrf.mxu0
        %1137 = vdwg.mxu0
        %v1138 = vld [vmem:[%s290] sm:$0xff]
        %v1139 = vld [vmem:[%s290 + $0x8] sm:$0xff]
        %v1140 = vld [vmem:[%s290 + $0x10] sm:$0xff]
        %v1141 = vld [vmem:[%s290 + $0x18] sm:$0xff]
        %v1142 = vmul.f32 %v1120, %v1013
        %v1143 = vmul.f32 %v1125, %v1014
        %v1144 = vmul.f32 %v1130, %v1015
        %v1145 = vmul.f32 %v1135, %v1016
        %1150 = vrot.lane.b32.xlu0 %v1142, 32
        %v1151 = vpop.permute.xlu0 %1150
        %1152 = vrot.lane.b32.xlu0 %v1143, 32
        %v1153 = vpop.permute.xlu0 %1152
        %1154 = vrot.lane.b32.xlu0 %v1144, 32
        %v1155 = vpop.permute.xlu0 %1154
        %1156 = vrot.lane.b32.xlu0 %v1145, 32
        %v1157 = vpop.permute.xlu0 %1156
        %v1162 = vadd.f32 %v1138, %v1151
        %v1163 = vadd.f32 %v1139, %v1153
        %v1164 = vadd.f32 %v1140, %v1155
        %v1165 = vadd.f32 %v1141, %v1157
        %vm1166 = vcmask 523520
        %1167 = vst.msk [vmem:[%s290] sm:$0xff] %vm1166, %v1162
        %1168 = vst.msk [vmem:[%s290 + $0x8] sm:$0xff] %vm1166, %v1163
        %1169 = vst.msk [vmem:[%s290 + $0x10] sm:$0xff] %vm1166, %v1164
        %1170 = vst.msk [vmem:[%s290 + $0x18] sm:$0xff] %vm1166, %v1165
        %s1171 = scalar_lea.vmem %s259, 8 [#allocation2]
        %v1172 = vld [vmem:[%s1171] sm:$0xff]
        %v1173 = vunpack.c.0.s8 %v1172
        %v1174 = vunpack.c.1.s8 %v1172
        %v1175 = vunpack.c.2.s8 %v1172
        %v1176 = vunpack.c.3.s8 %v1172
        %vm1177 = vcmp.gt.s32.totalorder %v1173, 0
        %vm1178 = vcmp.gt.s32.totalorder %v1174, 0
        %vm1179 = vcmp.gt.s32.totalorder %v1175, 0
        %vm1180 = vcmp.gt.s32.totalorder %v1176, 0
        %s1181 = scalar_lea.vmem %s2, 8
        %v1182 = vld [vmem:[%s1181] sm:$0xff]
        %1183 = vmatprep.subr.mxu0 0.0
        %1184 = vmatpush1.msra.mxu0 0.0
        %1185 = vmatprep.subr.mxu0 0.0
        %1186 = vmatpush1.msra.mxu0 0.0
        %1187 = vmatprep.subr.mxu0 0.0
        %1188 = vmatpush1.msra.mxu0 0.0
        %1189 = vmatprep.subr.mxu0 0.0
        %1190 = vmatpush1.msra.mxu0 0.0
        %1191 = vmatprep.subr.mxu0 0.0
        %1192 = vmatpush1.msra.mxu0 0.0
        %1193 = vmatprep.subr.mxu0 0.0
        %1194 = vmatpush1.msra.mxu0 0.0
        %1195 = vmatprep.subr.mxu0 0.0
        %1196 = vmatpush1.msra.mxu0 0.0
        %1197 = vmatprep.subr.mxu0 0.0
        %1198 = vmatpush1.msra.mxu0 0.0
        %1199 = vmatprep.subr.mxu0 0.0
        %1200 = vmatpush1.msra.mxu0 0.0
        %1201 = vmatprep.subr.mxu0 0.0
        %1202 = vmatpush1.msra.mxu0 0.0
        %1203 = vmatprep.subr.mxu0 0.0
        %1204 = vmatpush1.msra.mxu0 0.0
        %1205 = vmatprep.subr.mxu0 0.0
        %1206 = vmatpush1.msra.mxu0 0.0
        %1207 = vmatprep.subr.mxu0 0.0
        %1208 = vmatpush1.msra.mxu0 0.0
        %1209 = vmatprep.subr.mxu0 0.0
        %1210 = vmatpush1.msra.mxu0 0.0
        %1211 = vmatprep.subr.mxu0 0.0
        %1212 = vmatpush1.msra.mxu0 0.0
        %1213 = vmatprep.subr.mxu0 0.0
        %1214 = vmatpush1.msra.mxu0 %v1182
        %1215 = vmatprep.subr.mxu0 0.0
        %1216 = vmatpush2.msra.mxu0 0.0
        %1217 = vmatprep.subr.mxu0 0.0
        %1218 = vmatpush2.msra.mxu0 0.0
        %1219 = vmatprep.subr.mxu0 0.0
        %1220 = vmatpush2.msra.mxu0 0.0
        %1221 = vmatprep.subr.mxu0 0.0
        %1222 = vmatpush2.msra.mxu0 0.0
        %1223 = vmatprep.subr.mxu0 0.0
        %1224 = vmatpush2.msra.mxu0 0.0
        %1225 = vmatprep.subr.mxu0 0.0
        %1226 = vmatpush2.msra.mxu0 0.0
        %1227 = vmatprep.subr.mxu0 0.0
        %1228 = vmatpush2.msra.mxu0 0.0
        %1229 = vmatprep.subr.mxu0 0.0
        %1230 = vmatpush2.msra.mxu0 0.0
        %1231 = vmatprep.subr.mxu0 0.0
        %1232 = vmatpush2.msra.mxu0 0.0
        %1233 = vmatprep.subr.mxu0 0.0
        %1234 = vmatpush2.msra.mxu0 0.0
        %1235 = vmatprep.subr.mxu0 0.0
        %1236 = vmatpush2.msra.mxu0 0.0
        %1237 = vmatprep.subr.mxu0 0.0
        %1238 = vmatpush2.msra.mxu0 0.0
        %1239 = vmatprep.subr.mxu0 0.0
        %1240 = vmatpush2.msra.mxu0 0.0
        %1241 = vmatprep.subr.mxu0 0.0
        %1242 = vmatpush2.msra.mxu0 0.0
        %1243 = vmatprep.subr.mxu0 0.0
        %1244 = vmatpush2.msra.mxu0 0.0
        %1245 = vmatprep.subr.mxu0 0.0
        %1246 = vmatpush2.msra.mxu0 0.0
        %1247 = vmatprep.mubr.f32.mxu0 0.0
        %1248 = vmatmul.mubr.f32.gmra.mxu0 %v323
        %v1249 = vpop.f32.mrf.mxu0
        %v1250 = vadd.f32 0.0, %v1249
        %v1251 = vpop.f32.mrf.mxu0
        %1252 = vmatprep.mubr.f32.mxu0 0.0
        %1253 = vmatmul.mubr.f32.gmra.mxu0 %v326
        %v1254 = vpop.f32.mrf.mxu0
        %v1255 = vadd.f32 0.0, %v1254
        %v1256 = vpop.f32.mrf.mxu0
        %1257 = vmatprep.mubr.f32.mxu0 0.0
        %1258 = vmatmul.mubr.f32.gmra.mxu0 %v329
        %v1259 = vpop.f32.mrf.mxu0
        %v1260 = vadd.f32 0.0, %v1259
        %v1261 = vpop.f32.mrf.mxu0
        %1262 = vmatprep.mubr.f32.mxu0 0.0
        %1263 = vmatmul.mubr.f32.gmra.mxu0 %v332
        %v1264 = vpop.f32.mrf.mxu0
        %v1265 = vadd.f32 0.0, %v1264
        %v1266 = vpop.f32.mrf.mxu0
        %1267 = vmatprep.mubr.f32.mxu0 0.0
        %1268 = vmatmul.mubr.f32.gmra.mxu0 %v335
        %v1269 = vpop.f32.mrf.mxu0
        %v1270 = vadd.f32 0.0, %v1269
        %v1271 = vpop.f32.mrf.mxu0
        %1272 = vmatprep.mubr.f32.mxu0 0.0
        %1273 = vmatmul.mubr.f32.gmra.mxu0 %v338
        %v1274 = vpop.f32.mrf.mxu0
        %v1275 = vadd.f32 0.0, %v1274
        %v1276 = vpop.f32.mrf.mxu0
        %1277 = vmatprep.mubr.f32.mxu0 0.0
        %1278 = vmatmul.mubr.f32.gmra.mxu0 %v341
        %v1279 = vpop.f32.mrf.mxu0
        %v1280 = vadd.f32 0.0, %v1279
        %v1281 = vpop.f32.mrf.mxu0
        %1282 = vmatprep.mubr.f32.mxu0 0.0
        %1283 = vmatmul.mubr.f32.gmra.mxu0 %v344
        %v1284 = vpop.f32.mrf.mxu0
        %v1285 = vadd.f32 0.0, %v1284
        %v1286 = vpop.f32.mrf.mxu0
        %1287 = vdwg.mxu0
        %1288 = vmatprep.subr.mxu0 0.0
        %1289 = vmatpush1.msra.mxu0 0.0
        %1290 = vmatprep.subr.mxu0 0.0
        %1291 = vmatpush1.msra.mxu0 0.0
        %1292 = vmatprep.subr.mxu0 0.0
        %1293 = vmatpush1.msra.mxu0 0.0
        %1294 = vmatprep.subr.mxu0 0.0
        %1295 = vmatpush1.msra.mxu0 0.0
        %1296 = vmatprep.subr.mxu0 0.0
        %1297 = vmatpush1.msra.mxu0 0.0
        %1298 = vmatprep.subr.mxu0 0.0
        %1299 = vmatpush1.msra.mxu0 0.0
        %1300 = vmatprep.subr.mxu0 0.0
        %1301 = vmatpush1.msra.mxu0 0.0
        %1302 = vmatprep.subr.mxu0 0.0
        %1303 = vmatpush1.msra.mxu0 0.0
        %1304 = vmatprep.subr.mxu0 0.0
        %1305 = vmatpush1.msra.mxu0 0.0
        %1306 = vmatprep.subr.mxu0 0.0
        %1307 = vmatpush1.msra.mxu0 0.0
        %1308 = vmatprep.subr.mxu0 0.0
        %1309 = vmatpush1.msra.mxu0 0.0
        %1310 = vmatprep.subr.mxu0 0.0
        %1311 = vmatpush1.msra.mxu0 0.0
        %1312 = vmatprep.subr.mxu0 0.0
        %1313 = vmatpush1.msra.mxu0 0.0
        %1314 = vmatprep.subr.mxu0 0.0
        %1315 = vmatpush1.msra.mxu0 0.0
        %1316 = vmatprep.subr.mxu0 0.0
        %1317 = vmatpush1.msra.mxu0 0.0
        %1318 = vmatprep.subr.mxu0 0.0
        %1319 = vmatpush1.msra.mxu0 %v1182
        %1320 = vmatprep.subr.mxu0 0.0
        %1321 = vmatpush2.msra.mxu0 0.0
        %1322 = vmatprep.subr.mxu0 0.0
        %1323 = vmatpush2.msra.mxu0 0.0
        %1324 = vmatprep.subr.mxu0 0.0
        %1325 = vmatpush2.msra.mxu0 0.0
        %1326 = vmatprep.subr.mxu0 0.0
        %1327 = vmatpush2.msra.mxu0 0.0
        %1328 = vmatprep.subr.mxu0 0.0
        %1329 = vmatpush2.msra.mxu0 0.0
        %1330 = vmatprep.subr.mxu0 0.0
        %1331 = vmatpush2.msra.mxu0 0.0
        %1332 = vmatprep.subr.mxu0 0.0
        %1333 = vmatpush2.msra.mxu0 0.0
        %1334 = vmatprep.subr.mxu0 0.0
        %1335 = vmatpush2.msra.mxu0 0.0
        %1336 = vmatprep.subr.mxu0 0.0
        %1337 = vmatpush2.msra.mxu0 0.0
        %1338 = vmatprep.subr.mxu0 0.0
        %1339 = vmatpush2.msra.mxu0 0.0
        %1340 = vmatprep.subr.mxu0 0.0
        %1341 = vmatpush2.msra.mxu0 0.0
        %1342 = vmatprep.subr.mxu0 0.0
        %1343 = vmatpush2.msra.mxu0 0.0
        %1344 = vmatprep.subr.mxu0 0.0
        %1345 = vmatpush2.msra.mxu0 0.0
        %1346 = vmatprep.subr.mxu0 0.0
        %1347 = vmatpush2.msra.mxu0 0.0
        %1348 = vmatprep.subr.mxu0 0.0
        %1349 = vmatpush2.msra.mxu0 0.0
        %1350 = vmatprep.subr.mxu0 0.0
        %1351 = vmatpush2.msra.mxu0 0.0
        %1352 = vmatprep.mubr.f32.mxu0 0.0
        %1353 = vmatmul.mubr.f32.gmra.mxu0 %v452
        %v1354 = vpop.f32.mrf.mxu0
        %v1355 = vadd.f32 0.0, %v1354
        %v1356 = vpop.f32.mrf.mxu0
        %1357 = vmatprep.mubr.f32.mxu0 0.0
        %1358 = vmatmul.mubr.f32.gmra.mxu0 %v455
        %v1359 = vpop.f32.mrf.mxu0
        %v1360 = vadd.f32 0.0, %v1359
        %v1361 = vpop.f32.mrf.mxu0
        %1362 = vmatprep.mubr.f32.mxu0 0.0
        %1363 = vmatmul.mubr.f32.gmra.mxu0 %v458
        %v1364 = vpop.f32.mrf.mxu0
        %v1365 = vadd.f32 0.0, %v1364
        %v1366 = vpop.f32.mrf.mxu0
        %1367 = vmatprep.mubr.f32.mxu0 0.0
        %1368 = vmatmul.mubr.f32.gmra.mxu0 %v461
        %v1369 = vpop.f32.mrf.mxu0
        %v1370 = vadd.f32 0.0, %v1369
        %v1371 = vpop.f32.mrf.mxu0
        %1372 = vdwg.mxu0
        %s1373 = scalar_lea.vmem %s3, 2
        %v1374 = vld [vmem:[%s1373] sm:$0x3]
        %v1376 = vsel %vm306, %v1374, 0
        %v1379 = vsel %vm306, %v1250, 0
        %v1382 = vsel %vm306, %v1255, 0
        %v1385 = vsel %vm306, %v1260, 0
        %v1388 = vsel %vm306, %v1265, 0
        %v1391 = vsel %vm306, %v1270, 0
        %v1394 = vsel %vm306, %v1275, 0
        %v1397 = vsel %vm306, %v1280, 0
        %v1400 = vsel %vm306, %v1285, 0
        %1402 = vmatprep.subr.mxu0 0.0
        %1403 = vmatpush1.xpose.msra.mxu0 0.0
        %1404 = vmatprep.subr.mxu0 0.0
        %1405 = vmatpush1.xpose.msra.mxu0 0.0
        %1406 = vmatprep.subr.mxu0 0.0
        %1407 = vmatpush1.xpose.msra.mxu0 0.0
        %1408 = vmatprep.subr.mxu0 0.0
        %1409 = vmatpush1.xpose.msra.mxu0 0.0
        %1410 = vmatprep.subr.mxu0 0.0
        %1411 = vmatpush1.xpose.msra.mxu0 0.0
        %1412 = vmatprep.subr.mxu0 0.0
        %1413 = vmatpush1.xpose.msra.mxu0 0.0
        %1414 = vmatprep.subr.mxu0 0.0
        %1415 = vmatpush1.xpose.msra.mxu0 0.0
        %1416 = vmatprep.subr.mxu0 0.0
        %1417 = vmatpush1.xpose.msra.mxu0 0.0
        %1418 = vmatprep.subr.mxu0 0.0
        %1419 = vmatpush1.xpose.msra.mxu0 %v1400
        %1420 = vmatprep.subr.mxu0 0.0
        %1421 = vmatpush1.xpose.msra.mxu0 %v1397
        %1422 = vmatprep.subr.mxu0 0.0
        %1423 = vmatpush1.xpose.msra.mxu0 %v1394
        %1424 = vmatprep.subr.mxu0 0.0
        %1425 = vmatpush1.xpose.msra.mxu0 %v1391
        %1426 = vmatprep.subr.mxu0 0.0
        %1427 = vmatpush1.xpose.msra.mxu0 %v1388
        %1428 = vmatprep.subr.mxu0 0.0
        %1429 = vmatpush1.xpose.msra.mxu0 %v1385
        %1430 = vmatprep.subr.mxu0 0.0
        %1431 = vmatpush1.xpose.msra.mxu0 %v1382
        %1432 = vmatprep.subr.mxu0 0.0
        %1433 = vmatpush1.xpose.msra.mxu0 %v1379
        %1434 = vmatprep.subr.mxu0 0.0
        %1435 = vmatpush2.xpose.msra.mxu0 0.0
        %1436 = vmatprep.subr.mxu0 0.0
        %1437 = vmatpush2.xpose.msra.mxu0 0.0
        %1438 = vmatprep.subr.mxu0 0.0
        %1439 = vmatpush2.xpose.msra.mxu0 0.0
        %1440 = vmatprep.subr.mxu0 0.0
        %1441 = vmatpush2.xpose.msra.mxu0 0.0
        %1442 = vmatprep.subr.mxu0 0.0
        %1443 = vmatpush2.xpose.msra.mxu0 0.0
        %1444 = vmatprep.subr.mxu0 0.0
        %1445 = vmatpush2.xpose.msra.mxu0 0.0
        %1446 = vmatprep.subr.mxu0 0.0
        %1447 = vmatpush2.xpose.msra.mxu0 0.0
        %1448 = vmatprep.subr.mxu0 0.0
        %1449 = vmatpush2.xpose.msra.mxu0 0.0
        %1450 = vmatprep.subr.mxu0 0.0
        %1451 = vmatpush2.xpose.msra.mxu0 0.0
        %1452 = vmatprep.subr.mxu0 0.0
        %1453 = vmatpush2.xpose.msra.mxu0 0.0
        %1454 = vmatprep.subr.mxu0 0.0
        %1455 = vmatpush2.xpose.msra.mxu0 0.0
        %1456 = vmatprep.subr.mxu0 0.0
        %1457 = vmatpush2.xpose.msra.mxu0 0.0
        %1458 = vmatprep.subr.mxu0 0.0
        %1459 = vmatpush2.xpose.msra.mxu0 0.0
        %1460 = vmatprep.subr.mxu0 0.0
        %1461 = vmatpush2.xpose.msra.mxu0 0.0
        %1462 = vmatprep.subr.mxu0 0.0
        %1463 = vmatpush2.xpose.msra.mxu0 0.0
        %1464 = vmatprep.subr.mxu0 0.0
        %1465 = vmatpush2.xpose.msra.mxu0 0.0
        %1466 = vmatprep.mubr.f32.mxu0 0.0
        %1467 = vmatmul.mubr.f32.gmra.mxu0 %v1376
        %v1468 = vpop.f32.mrf.mxu0
        %v1469 = vadd.f32 0.0, %v1468
        %v1470 = vpop.f32.mrf.mxu0
        %1471 = vdwg.mxu0
        %s1472 = scalar_lea.vmem %s4, 2
        %v1473 = vld [vmem:[%s1472] sm:$0x3]
        %v1475 = vsel %vm306, %v1355, 0
        %v1478 = vsel %vm306, %v1360, 0
        %v1481 = vsel %vm306, %v1365, 0
        %v1484 = vsel %vm306, %v1370, 0
        %v1487 = vsel %vm306, %v1473, 0
        %1489 = vmatprep.subr.mxu0 0.0
        %1490 = vmatpush1.xpose.msra.mxu0 0.0
        %1491 = vmatprep.subr.mxu0 0.0
        %1492 = vmatpush1.xpose.msra.mxu0 0.0
        %1493 = vmatprep.subr.mxu0 0.0
        %1494 = vmatpush1.xpose.msra.mxu0 0.0
        %1495 = vmatprep.subr.mxu0 0.0
        %1496 = vmatpush1.xpose.msra.mxu0 0.0
        %1497 = vmatprep.subr.mxu0 0.0
        %1498 = vmatpush1.xpose.msra.mxu0 0.0
        %1499 = vmatprep.subr.mxu0 0.0
        %1500 = vmatpush1.xpose.msra.mxu0 0.0
        %1501 = vmatprep.subr.mxu0 0.0
        %1502 = vmatpush1.xpose.msra.mxu0 0.0
        %1503 = vmatprep.subr.mxu0 0.0
        %1504 = vmatpush1.xpose.msra.mxu0 0.0
        %1505 = vmatprep.subr.mxu0 0.0
        %1506 = vmatpush1.xpose.msra.mxu0 0.0
        %1507 = vmatprep.subr.mxu0 0.0
        %1508 = vmatpush1.xpose.msra.mxu0 0.0
        %1509 = vmatprep.subr.mxu0 0.0
        %1510 = vmatpush1.xpose.msra.mxu0 0.0
        %1511 = vmatprep.subr.mxu0 0.0
        %1512 = vmatpush1.xpose.msra.mxu0 0.0
        %1513 = vmatprep.subr.mxu0 0.0
        %1514 = vmatpush1.xpose.msra.mxu0 0.0
        %1515 = vmatprep.subr.mxu0 0.0
        %1516 = vmatpush1.xpose.msra.mxu0 0.0
        %1517 = vmatprep.subr.mxu0 0.0
        %1518 = vmatpush1.xpose.msra.mxu0 0.0
        %1519 = vmatprep.subr.mxu0 0.0
        %1520 = vmatpush1.xpose.msra.mxu0 %v1487
        %1521 = vmatprep.subr.mxu0 0.0
        %1522 = vmatpush2.xpose.msra.mxu0 0.0
        %1523 = vmatprep.subr.mxu0 0.0
        %1524 = vmatpush2.xpose.msra.mxu0 0.0
        %1525 = vmatprep.subr.mxu0 0.0
        %1526 = vmatpush2.xpose.msra.mxu0 0.0
        %1527 = vmatprep.subr.mxu0 0.0
        %1528 = vmatpush2.xpose.msra.mxu0 0.0
        %1529 = vmatprep.subr.mxu0 0.0
        %1530 = vmatpush2.xpose.msra.mxu0 0.0
        %1531 = vmatprep.subr.mxu0 0.0
        %1532 = vmatpush2.xpose.msra.mxu0 0.0
        %1533 = vmatprep.subr.mxu0 0.0
        %1534 = vmatpush2.xpose.msra.mxu0 0.0
        %1535 = vmatprep.subr.mxu0 0.0
        %1536 = vmatpush2.xpose.msra.mxu0 0.0
        %1537 = vmatprep.subr.mxu0 0.0
        %1538 = vmatpush2.xpose.msra.mxu0 0.0
        %1539 = vmatprep.subr.mxu0 0.0
        %1540 = vmatpush2.xpose.msra.mxu0 0.0
        %1541 = vmatprep.subr.mxu0 0.0
        %1542 = vmatpush2.xpose.msra.mxu0 0.0
        %1543 = vmatprep.subr.mxu0 0.0
        %1544 = vmatpush2.xpose.msra.mxu0 0.0
        %1545 = vmatprep.subr.mxu0 0.0
        %1546 = vmatpush2.xpose.msra.mxu0 0.0
        %1547 = vmatprep.subr.mxu0 0.0
        %1548 = vmatpush2.xpose.msra.mxu0 0.0
        %1549 = vmatprep.subr.mxu0 0.0
        %1550 = vmatpush2.xpose.msra.mxu0 0.0
        %1551 = vmatprep.subr.mxu0 0.0
        %1552 = vmatpush2.xpose.msra.mxu0 0.0
        %1553 = vmatprep.mubr.f32.mxu0 0.0
        %1554 = vmatmul.mubr.f32.gmra.mxu0 %v1475
        %v1555 = vpop.f32.mrf.mxu0
        %v1556 = vadd.f32 0.0, %v1555
        %v1557 = vpop.f32.mrf.mxu0
        %1558 = vmatprep.mubr.f32.mxu0 0.0
        %1559 = vmatmul.mubr.f32.gmra.mxu0 %v1478
        %v1560 = vpop.f32.mrf.mxu0
        %v1561 = vadd.f32 0.0, %v1560
        %v1562 = vpop.f32.mrf.mxu0
        %1563 = vmatprep.mubr.f32.mxu0 0.0
        %1564 = vmatmul.mubr.f32.gmra.mxu0 %v1481
        %v1565 = vpop.f32.mrf.mxu0
        %v1566 = vadd.f32 0.0, %v1565
        %v1567 = vpop.f32.mrf.mxu0
        %1568 = vmatprep.mubr.f32.mxu0 0.0
        %1569 = vmatmul.mubr.f32.gmra.mxu0 %v1484
        %v1570 = vpop.f32.mrf.mxu0
        %v1571 = vadd.f32 0.0, %v1570
        %v1572 = vpop.f32.mrf.mxu0
        %1573 = vdwg.mxu0
        %1575 = vset.pattern.permute.xlu0 0
        %1576 = vperm.xlu0 %1575, %v1556
        %v1577 = vpop.permute.xlu0 %1576
        %1580 = vset.pattern.permute.xlu0 0
        %1581 = vperm.xlu0 %1580, %v1561
        %v1582 = vpop.permute.xlu0 %1581
        %1585 = vset.pattern.permute.xlu0 0
        %1586 = vperm.xlu0 %1585, %v1566
        %v1587 = vpop.permute.xlu0 %1586
        %1590 = vset.pattern.permute.xlu0 0
        %1591 = vperm.xlu0 %1590, %v1571
        %v1592 = vpop.permute.xlu0 %1591
        %v1594 = vlaneseq
        %v1595 = vshrl.u32 %v1594, 7
        %v1596 = vsub.s32 0, %v1595
        %v1597 = vrot.slane %v1469, %v1596
        %v1598 = vadd.f32 %v1577, %v1597
        %v1599 = vadd.f32 %v1582, %v1597
        %v1600 = vadd.f32 %v1587, %v1597
        %v1601 = vadd.f32 %v1592, %v1597
        %v1602 = vmul.f32 %v1598, 0.2
        %v1603 = vmul.f32 %v1599, 0.2
        %v1604 = vmul.f32 %v1600, 0.2
        %v1605 = vmul.f32 %v1601, 0.2
        %v1606 = vmax.f32 %v1598, %v1602
        %v1607 = vmax.f32 %v1599, %v1603
        %v1608 = vmax.f32 %v1600, %v1604
        %v1609 = vmax.f32 %v1601, %v1605
        %v1610 = vsel %vm1177, %v1606, -1e+30
        %v1611 = vsel %vm1178, %v1607, -1e+30
        %v1612 = vsel %vm1179, %v1608, -1e+30
        %v1613 = vsel %vm1180, %v1609, -1e+30
        %v1614 = vsel %vm306, %v1610, -inf
        %1615 = vmax.xlane.f32.xlu0 %v1614
        %v1616 = vpop.xlane.xlu0 %1615
        %v1617 = vsel %vm306, %v1611, -inf
        %1618 = vmax.xlane.f32.xlu0 %v1617
        %v1619 = vpop.xlane.xlu0 %1618
        %v1620 = vsel %vm306, %v1612, -inf
        %1621 = vmax.xlane.f32.xlu0 %v1620
        %v1622 = vpop.xlane.xlu0 %1621
        %v1623 = vsel %vm306, %v1613, -inf
        %1624 = vmax.xlane.f32.xlu0 %v1623
        %v1625 = vpop.xlane.xlu0 %1624
        %v1626 = vsub.f32 %v1610, %v1616
        %v1627 = vsub.f32 %v1611, %v1619
        %v1628 = vsub.f32 %v1612, %v1622
        %v1629 = vsub.f32 %v1613, %v1625
        %v1630 = vmul.f32 %v1626, 1.442695
        %v1631 = vpow.pop %v1630
        %v1632 = vmul.f32 %v1627, 1.442695
        %v1633 = vpow.pop %v1632
        %v1634 = vmul.f32 %v1628, 1.442695
        %v1635 = vpow.pop %v1634
        %v1636 = vmul.f32 %v1629, 1.442695
        %v1637 = vpow.pop %v1636
        %v1638 = vsel %vm306, %v1631, 0.0
        %1639 = vadd.xlane.f32.xlu0 %v1638
        %v1640 = vpop.xlane.xlu0 %1639
        %v1641 = vsel %vm306, %v1633, 0.0
        %1642 = vadd.xlane.f32.xlu0 %v1641
        %v1643 = vpop.xlane.xlu0 %1642
        %v1644 = vsel %vm306, %v1635, 0.0
        %1645 = vadd.xlane.f32.xlu0 %v1644
        %v1646 = vpop.xlane.xlu0 %1645
        %v1647 = vsel %vm306, %v1637, 0.0
        %1648 = vadd.xlane.f32.xlu0 %v1647
        %v1649 = vpop.xlane.xlu0 %1648
        %v1650 = vrcp.pop %v1640
        %v1651 = vrcp.pop %v1643
        %v1652 = vrcp.pop %v1646
        %v1653 = vrcp.pop %v1649
        %v1655 = vsel %vm306, %v1631, 0
        %v1658 = vsel %vm306, %v1633, 0
        %v1661 = vsel %vm306, %v1635, 0
        %v1664 = vsel %vm306, %v1637, 0
        %1666 = vmatprep.subr.mxu0 0.0
        %1667 = vmatpush1.msra.mxu0 0.0
        %1668 = vmatprep.subr.mxu0 0.0
        %1669 = vmatpush1.msra.mxu0 0.0
        %1670 = vmatprep.subr.mxu0 0.0
        %1671 = vmatpush1.msra.mxu0 0.0
        %1672 = vmatprep.subr.mxu0 0.0
        %1673 = vmatpush1.msra.mxu0 0.0
        %1674 = vmatprep.subr.mxu0 0.0
        %1675 = vmatpush1.msra.mxu0 0.0
        %1676 = vmatprep.subr.mxu0 0.0
        %1677 = vmatpush1.msra.mxu0 0.0
        %1678 = vmatprep.subr.mxu0 0.0
        %1679 = vmatpush1.msra.mxu0 0.0
        %1680 = vmatprep.subr.mxu0 0.0
        %1681 = vmatpush1.msra.mxu0 0.0
        %1682 = vmatprep.subr.mxu0 0.0
        %1683 = vmatpush1.msra.mxu0 %v1285
        %1684 = vmatprep.subr.mxu0 0.0
        %1685 = vmatpush1.msra.mxu0 %v1280
        %1686 = vmatprep.subr.mxu0 0.0
        %1687 = vmatpush1.msra.mxu0 %v1275
        %1688 = vmatprep.subr.mxu0 0.0
        %1689 = vmatpush1.msra.mxu0 %v1270
        %1690 = vmatprep.subr.mxu0 0.0
        %1691 = vmatpush1.msra.mxu0 %v1265
        %1692 = vmatprep.subr.mxu0 0.0
        %1693 = vmatpush1.msra.mxu0 %v1260
        %1694 = vmatprep.subr.mxu0 0.0
        %1695 = vmatpush1.msra.mxu0 %v1255
        %1696 = vmatprep.subr.mxu0 0.0
        %1697 = vmatpush1.msra.mxu0 %v1250
        %1698 = vmatprep.subr.mxu0 0.0
        %1699 = vmatpush2.msra.mxu0 0.0
        %1700 = vmatprep.subr.mxu0 0.0
        %1701 = vmatpush2.msra.mxu0 0.0
        %1702 = vmatprep.subr.mxu0 0.0
        %1703 = vmatpush2.msra.mxu0 0.0
        %1704 = vmatprep.subr.mxu0 0.0
        %1705 = vmatpush2.msra.mxu0 0.0
        %1706 = vmatprep.subr.mxu0 0.0
        %1707 = vmatpush2.msra.mxu0 0.0
        %1708 = vmatprep.subr.mxu0 0.0
        %1709 = vmatpush2.msra.mxu0 0.0
        %1710 = vmatprep.subr.mxu0 0.0
        %1711 = vmatpush2.msra.mxu0 0.0
        %1712 = vmatprep.subr.mxu0 0.0
        %1713 = vmatpush2.msra.mxu0 0.0
        %1714 = vmatprep.subr.mxu0 0.0
        %1715 = vmatpush2.msra.mxu0 0.0
        %1716 = vmatprep.subr.mxu0 0.0
        %1717 = vmatpush2.msra.mxu0 0.0
        %1718 = vmatprep.subr.mxu0 0.0
        %1719 = vmatpush2.msra.mxu0 0.0
        %1720 = vmatprep.subr.mxu0 0.0
        %1721 = vmatpush2.msra.mxu0 0.0
        %1722 = vmatprep.subr.mxu0 0.0
        %1723 = vmatpush2.msra.mxu0 0.0
        %1724 = vmatprep.subr.mxu0 0.0
        %1725 = vmatpush2.msra.mxu0 0.0
        %1726 = vmatprep.subr.mxu0 0.0
        %1727 = vmatpush2.msra.mxu0 0.0
        %1728 = vmatprep.subr.mxu0 0.0
        %1729 = vmatpush2.msra.mxu0 0.0
        %1730 = vmatprep.mubr.f32.mxu0 0.0
        %1731 = vmatmul.mubr.f32.gmra.mxu0 %v1655
        %v1732 = vpop.f32.mrf.mxu0
        %v1733 = vadd.f32 0.0, %v1732
        %v1734 = vpop.f32.mrf.mxu0
        %1735 = vmatprep.mubr.f32.mxu0 0.0
        %1736 = vmatmul.mubr.f32.gmra.mxu0 %v1658
        %v1737 = vpop.f32.mrf.mxu0
        %v1738 = vadd.f32 0.0, %v1737
        %v1739 = vpop.f32.mrf.mxu0
        %1740 = vmatprep.mubr.f32.mxu0 0.0
        %1741 = vmatmul.mubr.f32.gmra.mxu0 %v1661
        %v1742 = vpop.f32.mrf.mxu0
        %v1743 = vadd.f32 0.0, %v1742
        %v1744 = vpop.f32.mrf.mxu0
        %1745 = vmatprep.mubr.f32.mxu0 0.0
        %1746 = vmatmul.mubr.f32.gmra.mxu0 %v1664
        %v1747 = vpop.f32.mrf.mxu0
        %v1748 = vadd.f32 0.0, %v1747
        %v1749 = vpop.f32.mrf.mxu0
        %1750 = vdwg.mxu0
        %v1751 = vld [vmem:[%s290] sm:$0xff]
        %v1752 = vld [vmem:[%s290 + $0x8] sm:$0xff]
        %v1753 = vld [vmem:[%s290 + $0x10] sm:$0xff]
        %v1754 = vld [vmem:[%s290 + $0x18] sm:$0xff]
        %v1755 = vmul.f32 %v1733, %v1650
        %v1756 = vmul.f32 %v1738, %v1651
        %v1757 = vmul.f32 %v1743, %v1652
        %v1758 = vmul.f32 %v1748, %v1653
        %v1759 = vadd.f32 %v1751, %v1755
        %v1760 = vadd.f32 %v1752, %v1756
        %v1761 = vadd.f32 %v1753, %v1757
        %v1762 = vadd.f32 %v1754, %v1758
        %1763 = vst.msk [vmem:[%s290] sm:$0xff] %vm936, %v1759
        %1764 = vst.msk [vmem:[%s290 + $0x8] sm:$0xff] %vm936, %v1760
        %1765 = vst.msk [vmem:[%s290 + $0x10] sm:$0xff] %vm936, %v1761
        %1766 = vst.msk [vmem:[%s290 + $0x18] sm:$0xff] %vm936, %v1762
        %1767 = vset.pattern.permute.xlu0 1
        %1768 = vperm.xlu0 %1767, %v1556
        %v1769 = vpop.permute.xlu0 %1768
        %1771 = vset.pattern.permute.xlu0 1
        %1772 = vperm.xlu0 %1771, %v1561
        %v1773 = vpop.permute.xlu0 %1772
        %1775 = vset.pattern.permute.xlu0 1
        %1776 = vperm.xlu0 %1775, %v1566
        %v1777 = vpop.permute.xlu0 %1776
        %1779 = vset.pattern.permute.xlu0 1
        %1780 = vperm.xlu0 %1779, %v1571
        %v1781 = vpop.permute.xlu0 %1780
        %v1783 = vlaneseq
        %v1784 = vshrl.u32 %v1783, 7
        %v1785 = vsub.s32 1, %v1784
        %v1786 = vrot.slane %v1469, %v1785
        %v1787 = vadd.f32 %v1769, %v1786
        %v1788 = vadd.f32 %v1773, %v1786
        %v1789 = vadd.f32 %v1777, %v1786
        %v1790 = vadd.f32 %v1781, %v1786
        %v1791 = vmul.f32 %v1787, 0.2
        %v1792 = vmul.f32 %v1788, 0.2
        %v1793 = vmul.f32 %v1789, 0.2
        %v1794 = vmul.f32 %v1790, 0.2
        %v1795 = vmax.f32 %v1787, %v1791
        %v1796 = vmax.f32 %v1788, %v1792
        %v1797 = vmax.f32 %v1789, %v1793
        %v1798 = vmax.f32 %v1790, %v1794
        %v1799 = vsel %vm1177, %v1795, -1e+30
        %v1800 = vsel %vm1178, %v1796, -1e+30
        %v1801 = vsel %vm1179, %v1797, -1e+30
        %v1802 = vsel %vm1180, %v1798, -1e+30
        %v1803 = vsel %vm306, %v1799, -inf
        %1804 = vmax.xlane.f32.xlu0 %v1803
        %v1805 = vpop.xlane.xlu0 %1804
        %v1806 = vsel %vm306, %v1800, -inf
        %1807 = vmax.xlane.f32.xlu0 %v1806
        %v1808 = vpop.xlane.xlu0 %1807
        %v1809 = vsel %vm306, %v1801, -inf
        %1810 = vmax.xlane.f32.xlu0 %v1809
        %v1811 = vpop.xlane.xlu0 %1810
        %v1812 = vsel %vm306, %v1802, -inf
        %1813 = vmax.xlane.f32.xlu0 %v1812
        %v1814 = vpop.xlane.xlu0 %1813
        %v1815 = vsub.f32 %v1799, %v1805
        %v1816 = vsub.f32 %v1800, %v1808
        %v1817 = vsub.f32 %v1801, %v1811
        %v1818 = vsub.f32 %v1802, %v1814
        %v1819 = vmul.f32 %v1815, 1.442695
        %v1820 = vpow.pop %v1819
        %v1821 = vmul.f32 %v1816, 1.442695
        %v1822 = vpow.pop %v1821
        %v1823 = vmul.f32 %v1817, 1.442695
        %v1824 = vpow.pop %v1823
        %v1825 = vmul.f32 %v1818, 1.442695
        %v1826 = vpow.pop %v1825
        %v1827 = vsel %vm306, %v1820, 0.0
        %1828 = vadd.xlane.f32.xlu0 %v1827
        %v1829 = vpop.xlane.xlu0 %1828
        %v1830 = vsel %vm306, %v1822, 0.0
        %1831 = vadd.xlane.f32.xlu0 %v1830
        %v1832 = vpop.xlane.xlu0 %1831
        %v1833 = vsel %vm306, %v1824, 0.0
        %1834 = vadd.xlane.f32.xlu0 %v1833
        %v1835 = vpop.xlane.xlu0 %1834
        %v1836 = vsel %vm306, %v1826, 0.0
        %1837 = vadd.xlane.f32.xlu0 %v1836
        %v1838 = vpop.xlane.xlu0 %1837
        %v1839 = vrcp.pop %v1829
        %v1840 = vrcp.pop %v1832
        %v1841 = vrcp.pop %v1835
        %v1842 = vrcp.pop %v1838
        %1843 = vrot.lane.b32.xlu0 %v1250, 96
        %v1844 = vpop.permute.xlu0 %1843
        %1845 = vrot.lane.b32.xlu0 %v1255, 96
        %v1846 = vpop.permute.xlu0 %1845
        %1847 = vrot.lane.b32.xlu0 %v1260, 96
        %v1848 = vpop.permute.xlu0 %1847
        %1849 = vrot.lane.b32.xlu0 %v1265, 96
        %v1850 = vpop.permute.xlu0 %1849
        %1851 = vrot.lane.b32.xlu0 %v1270, 96
        %v1852 = vpop.permute.xlu0 %1851
        %1853 = vrot.lane.b32.xlu0 %v1275, 96
        %v1854 = vpop.permute.xlu0 %1853
        %1855 = vrot.lane.b32.xlu0 %v1280, 96
        %v1856 = vpop.permute.xlu0 %1855
        %1857 = vrot.lane.b32.xlu0 %v1285, 96
        %v1858 = vpop.permute.xlu0 %1857
        %v1868 = vsel %vm306, %v1820, 0
        %v1871 = vsel %vm306, %v1822, 0
        %v1874 = vsel %vm306, %v1824, 0
        %v1877 = vsel %vm306, %v1826, 0
        %1879 = vmatprep.subr.mxu0 0.0
        %1880 = vmatpush1.msra.mxu0 0.0
        %1881 = vmatprep.subr.mxu0 0.0
        %1882 = vmatpush1.msra.mxu0 0.0
        %1883 = vmatprep.subr.mxu0 0.0
        %1884 = vmatpush1.msra.mxu0 0.0
        %1885 = vmatprep.subr.mxu0 0.0
        %1886 = vmatpush1.msra.mxu0 0.0
        %1887 = vmatprep.subr.mxu0 0.0
        %1888 = vmatpush1.msra.mxu0 0.0
        %1889 = vmatprep.subr.mxu0 0.0
        %1890 = vmatpush1.msra.mxu0 0.0
        %1891 = vmatprep.subr.mxu0 0.0
        %1892 = vmatpush1.msra.mxu0 0.0
        %1893 = vmatprep.subr.mxu0 0.0
        %1894 = vmatpush1.msra.mxu0 0.0
        %1895 = vmatprep.subr.mxu0 0.0
        %1896 = vmatpush1.msra.mxu0 %v1858
        %1897 = vmatprep.subr.mxu0 0.0
        %1898 = vmatpush1.msra.mxu0 %v1856
        %1899 = vmatprep.subr.mxu0 0.0
        %1900 = vmatpush1.msra.mxu0 %v1854
        %1901 = vmatprep.subr.mxu0 0.0
        %1902 = vmatpush1.msra.mxu0 %v1852
        %1903 = vmatprep.subr.mxu0 0.0
        %1904 = vmatpush1.msra.mxu0 %v1850
        %1905 = vmatprep.subr.mxu0 0.0
        %1906 = vmatpush1.msra.mxu0 %v1848
        %1907 = vmatprep.subr.mxu0 0.0
        %1908 = vmatpush1.msra.mxu0 %v1846
        %1909 = vmatprep.subr.mxu0 0.0
        %1910 = vmatpush1.msra.mxu0 %v1844
        %1911 = vmatprep.subr.mxu0 0.0
        %1912 = vmatpush2.msra.mxu0 0.0
        %1913 = vmatprep.subr.mxu0 0.0
        %1914 = vmatpush2.msra.mxu0 0.0
        %1915 = vmatprep.subr.mxu0 0.0
        %1916 = vmatpush2.msra.mxu0 0.0
        %1917 = vmatprep.subr.mxu0 0.0
        %1918 = vmatpush2.msra.mxu0 0.0
        %1919 = vmatprep.subr.mxu0 0.0
        %1920 = vmatpush2.msra.mxu0 0.0
        %1921 = vmatprep.subr.mxu0 0.0
        %1922 = vmatpush2.msra.mxu0 0.0
        %1923 = vmatprep.subr.mxu0 0.0
        %1924 = vmatpush2.msra.mxu0 0.0
        %1925 = vmatprep.subr.mxu0 0.0
        %1926 = vmatpush2.msra.mxu0 0.0
        %1927 = vmatprep.subr.mxu0 0.0
        %1928 = vmatpush2.msra.mxu0 0.0
        %1929 = vmatprep.subr.mxu0 0.0
        %1930 = vmatpush2.msra.mxu0 0.0
        %1931 = vmatprep.subr.mxu0 0.0
        %1932 = vmatpush2.msra.mxu0 0.0
        %1933 = vmatprep.subr.mxu0 0.0
        %1934 = vmatpush2.msra.mxu0 0.0
        %1935 = vmatprep.subr.mxu0 0.0
        %1936 = vmatpush2.msra.mxu0 0.0
        %1937 = vmatprep.subr.mxu0 0.0
        %1938 = vmatpush2.msra.mxu0 0.0
        %1939 = vmatprep.subr.mxu0 0.0
        %1940 = vmatpush2.msra.mxu0 0.0
        %1941 = vmatprep.subr.mxu0 0.0
        %1942 = vmatpush2.msra.mxu0 0.0
        %1943 = vmatprep.mubr.f32.mxu0 0.0
        %1944 = vmatmul.mubr.f32.gmra.mxu0 %v1868
        %v1945 = vpop.f32.mrf.mxu0
        %v1946 = vadd.f32 0.0, %v1945
        %v1947 = vpop.f32.mrf.mxu0
        %1948 = vmatprep.mubr.f32.mxu0 0.0
        %1949 = vmatmul.mubr.f32.gmra.mxu0 %v1871
        %v1950 = vpop.f32.mrf.mxu0
        %v1951 = vadd.f32 0.0, %v1950
        %v1952 = vpop.f32.mrf.mxu0
        %1953 = vmatprep.mubr.f32.mxu0 0.0
        %1954 = vmatmul.mubr.f32.gmra.mxu0 %v1874
        %v1955 = vpop.f32.mrf.mxu0
        %v1956 = vadd.f32 0.0, %v1955
        %v1957 = vpop.f32.mrf.mxu0
        %1958 = vmatprep.mubr.f32.mxu0 0.0
        %1959 = vmatmul.mubr.f32.gmra.mxu0 %v1877
        %v1960 = vpop.f32.mrf.mxu0
        %v1961 = vadd.f32 0.0, %v1960
        %v1962 = vpop.f32.mrf.mxu0
        %1963 = vdwg.mxu0
        %v1964 = vld [vmem:[%s290] sm:$0xff]
        %v1965 = vld [vmem:[%s290 + $0x8] sm:$0xff]
        %v1966 = vld [vmem:[%s290 + $0x10] sm:$0xff]
        %v1967 = vld [vmem:[%s290 + $0x18] sm:$0xff]
        %v1968 = vmul.f32 %v1946, %v1839
        %v1969 = vmul.f32 %v1951, %v1840
        %v1970 = vmul.f32 %v1956, %v1841
        %v1971 = vmul.f32 %v1961, %v1842
        %1976 = vrot.lane.b32.xlu0 %v1968, 32
        %v1977 = vpop.permute.xlu0 %1976
        %1978 = vrot.lane.b32.xlu0 %v1969, 32
        %v1979 = vpop.permute.xlu0 %1978
        %1980 = vrot.lane.b32.xlu0 %v1970, 32
        %v1981 = vpop.permute.xlu0 %1980
        %1982 = vrot.lane.b32.xlu0 %v1971, 32
        %v1983 = vpop.permute.xlu0 %1982
        %v1988 = vadd.f32 %v1964, %v1977
        %v1989 = vadd.f32 %v1965, %v1979
        %v1990 = vadd.f32 %v1966, %v1981
        %v1991 = vadd.f32 %v1967, %v1983
        %1992 = vst.msk [vmem:[%s290] sm:$0xff] %vm1166, %v1988
        %1993 = vst.msk [vmem:[%s290 + $0x8] sm:$0xff] %vm1166, %v1989
        %1994 = vst.msk [vmem:[%s290 + $0x10] sm:$0xff] %vm1166, %v1990
        %1995 = vst.msk [vmem:[%s290 + $0x18] sm:$0xff] %vm1166, %v1991
        %v1996 = vld [vmem:[%s290] sm:$0xff]
        %v1997 = vld [vmem:[%s290 + $0x8] sm:$0xff]
        %v1998 = vld [vmem:[%s290 + $0x10] sm:$0xff]
        %v1999 = vld [vmem:[%s290 + $0x18] sm:$0xff]
        %v2000 = vld [vmem:[%s5] sm:$0x1]
        %v2002 = vlaneseq
        %v2003 = vshrl.u32 %v2002, 7
        %v2004 = vsub.s32 0, %v2003
        %v2005 = vrot.slane %v2000, %v2004
        %v2007 = vadd.f32 %v1996, %v2005
        %v2008 = vadd.f32 %v1997, %v2005
        %v2009 = vadd.f32 %v1998, %v2005
        %v2010 = vadd.f32 %v1999, %v2005
        %v2011 = vmax.f32 %v2007, 0.0
        %v2012 = vmax.f32 %v2008, 0.0
        %v2013 = vmax.f32 %v2009, 0.0
        %v2014 = vmax.f32 %v2010, 0.0
        %2015 = vst.msk [vmem:[%s290] sm:$0xff] %vm306, %v2011
        %2016 = vst.msk [vmem:[%s290 + $0x8] sm:$0xff] %vm306, %v2012
        %2017 = vst.msk [vmem:[%s290 + $0x10] sm:$0xff] %vm306, %v2013
        %2018 = vst.msk [vmem:[%s290 + $0x18] sm:$0xff] %vm306, %v2014
        %s2019 = smul.u32 4, %s17
        %p2020 = scmp.lt.s32.totalorder %s2019, 7
        %s2021 = scalar_select %p2020, %s2019, 7
        %s2022 = smul.addr %s2021, 8
        %s2023 = scalar_lea.vmem %s6, %s2022
        // Predicated region
        $region83: #{hetero_gat_forward.3} parent=77 // pred_check
          %p2024 = pneg %p166
        $region84: #{hetero_gat_forward.3} parent=77 // pred_check_branch
          %2026 = sbr.rel (%p2024) target = $region86
        $region85: #{hetero_gat_forward.3} parent=77 // pred_region
          %s2027 = smul.u32 4, %s17
        $region86: #{hetero_gat_forward.3} parent=77 // pred_fallthru
          _
      $region78: #{hetero_gat_forward.3} parent=5 // pred_fallthru
        _
      %p2028 = scmp.le.s32.totalorder 2, %s12
      // Predicated region
      $region87: #{hetero_gat_forward.3} parent=5 // pred_check
        %p2029 = pneg %p2028
      $region88: #{hetero_gat_forward.3} parent=5 // pred_check_branch
        %2031 = sbr.rel (%p2029) target = $region90
      $region89: #{hetero_gat_forward.3} parent=5 // pred_region
        %s2032 = ssub.s32 %s12, 2
        // Predicated region
        $region91: #{hetero_gat_forward.3} parent=89 // pred_check
          %p2033 = pneg %p172
        $region92: #{hetero_gat_forward.3} parent=89 // pred_check_branch
          %2035 = sbr.rel (%p2033) target = $region94
        $region93: #{hetero_gat_forward.3} parent=89 // pred_region
          %s2036 = smul.u32 4, %s18
          %p2037 = scmp.lt.s32.totalorder %s2036, 7
          %s2038 = scalar_select %p2037, %s2036, 7
          %s2039 = smul.addr %s2038, 8
          %s2040 = scalar_lea.vmem %s6, %s2039
        $region94: #{hetero_gat_forward.3} parent=89 // pred_fallthru
          _
      $region90: #{hetero_gat_forward.3} parent=5 // pred_fallthru
        _
    $region6: #{hetero_gat_forward.3} parent=1 // loop_footer
      %s16 = sadd.s32 1, %s12
    $region7: #{hetero_gat_forward.3} parent=1 // loop_footer_branch
      %11 = sbr.rel target = $region3
    $region8: #{hetero_gat_forward.3} parent=1 // loop_exit
      _

// kernel: hetero_gat_forward.4
$region0: #{hetero_gat_forward.4}
  #allocation0 [shape = 'u32[]', space=smem, size = 0x4, offset = 0x4, fixed_abs, tag = 'smem constant byte address 0x4 - core index']
  #allocation1 [shape = 'u32[144,128]{1,0:T(1,128)}', space=vmem, size = 0x12000, scoped, tag = 'internal scratch']
  %s0 = inlined_call_operand.vmem [shape: f32[64,64], index: 0, kind: input, shape index: {}]
  %s1 = inlined_call_operand.vmem [shape: s8[2,64,64], index: 1, kind: input, shape index: {}]
  %s2 = inlined_call_operand.vmem [shape: f32[2,64,32], index: 2, kind: input, shape index: {}]
  %s3 = inlined_call_operand.vmem [shape: f32[2,2,32], index: 3, kind: input, shape index: {}]
  %s4 = inlined_call_operand.vmem [shape: f32[2,2,32], index: 4, kind: input, shape index: {}]
  %s5 = inlined_call_operand.vmem [shape: f32[1,32], index: 5, kind: input, shape index: {}]
  %s6 = inlined_call_operand.vmem [shape: f32[64,32], index: 6, kind: output, shape index: {}]
  %s7 = sld [smem:[#allocation0]]
  $region95: #{hetero_gat_forward.4} parent=0
    _
  %s9 = ssub.s32 1, %s7
  %s10 = scalar_select 0, %s9, %s7
  $region1: #{hetero_gat_forward.4} parent=0
    #allocation2 [shape = 'u8[16384]{0}', space=vmem, size = 0x4000, scoped, tag = 'input window, operand 1']
    loop: start=0, step=1, limit=4
    $region2: #{hetero_gat_forward.4} parent=1 // loop_pre_header
      _
    $region3: #{hetero_gat_forward.4} parent=1 // loop_header
      %s12 = sphi 0, %s16
      %p13 = scmp.ge.s32.totalorder %s12, 4
      %s20 = sphi 0, %s20
      %s22 = sphi 0, %s20
      %s23 = sphi 0, %s22
      %s37 = sphi 0, %s23
      %s43 = sphi 0, %s45
      %s46 = sphi 0, %s43
      %s47 = sphi 0, %s46
      %s63 = sphi 0, %s47
      %s67 = sphi 0, %s67
      %s69 = sphi 0, %s67
      %s70 = sphi 0, %s69
      %s84 = sphi 0, %s70
      %s88 = sphi 0, %s88
      %s90 = sphi 0, %s88
      %s91 = sphi 0, %s90
      %s105 = sphi 0, %s91
      %s109 = sphi 0, %s109
      %s111 = sphi 0, %s109
      %s112 = sphi 0, %s111
      %s126 = sphi 0, %s112
      %s130 = sphi 0, %s130
      %s132 = sphi 0, %s130
      %s133 = sphi 0, %s132
      %s147 = sphi 0, %s133
      %s153 = sphi 0, %s155
      %s156 = sphi 0, %s153
      %s157 = sphi 0, %s156
      %s173 = sphi 0, %s157
    $region4: #{hetero_gat_forward.4} parent=1 // loop_header_branch
      %15 = sbr.rel (%p13) target = $region8
    $region5: #{hetero_gat_forward.4} parent=1 // loop_body
      %s17 = ssub.s32 %s12, 1
      %s18 = ssub.s32 %s12, 2
      %s19 = sadd.s32 %s12, 1
      %s21 = sadd.s32 %s20, 1
      %p24 = scmp.eq.s32.totalorder %s12, 1
      %p25 = scmp.ne.s32.totalorder %s20, %s22
      %p26 = scmp.eq.s32.totalorder %s12, 0
      %p27 = por %p25, %p26
      %p28 = scmp.ne.s32.totalorder %s20, %s22
      %p29 = scmp.eq.s32.totalorder %s17, 1
      %p30 = por %p28, %p29
      %p31 = scmp.ne.s32.totalorder %s22, %s23
      %p32 = scmp.eq.s32.totalorder %s17, 0
      %p33 = por %p31, %p32
      %p34 = scmp.ne.s32.totalorder %s22, %s23
      %p35 = scmp.eq.s32.totalorder %s18, 1
      %p36 = por %p34, %p35
      %p38 = scmp.ne.s32.totalorder %s23, %s37
      %p39 = scmp.eq.s32.totalorder %s18, 0
      %p40 = por %p38, %p39
      %s41 = ssub.s32 %s12, %s19
      %p42 = scmp.eq.s32.totalorder %s41, 0
      %s44 = sadd.s32 %s43, 1
      %s45 = scalar_select %p42, %s43, %s44
      %p48 = pneg %p42
      %p49 = scmp.eq.s32.totalorder %s12, 1
      %p50 = por %p48, %p49
      %p51 = scmp.ne.s32.totalorder %s43, %s46
      %p52 = scmp.eq.s32.totalorder %s12, 0
      %p53 = por %p51, %p52
      %p54 = scmp.ne.s32.totalorder %s43, %s46
      %p55 = scmp.eq.s32.totalorder %s17, 1
      %p56 = por %p54, %p55
      %p57 = scmp.ne.s32.totalorder %s46, %s47
      %p58 = scmp.eq.s32.totalorder %s17, 0
      %p59 = por %p57, %p58
      %p60 = scmp.ne.s32.totalorder %s46, %s47
      %p61 = scmp.eq.s32.totalorder %s18, 1
      %p62 = por %p60, %p61
      %p64 = scmp.ne.s32.totalorder %s47, %s63
      %p65 = scmp.eq.s32.totalorder %s18, 0
      %p66 = por %p64, %p65
      %s68 = sadd.s32 %s67, 1
      %p71 = scmp.eq.s32.totalorder %s12, 1
      %p72 = scmp.ne.s32.totalorder %s67, %s69
      %p73 = scmp.eq.s32.totalorder %s12, 0
      %p74 = por %p72, %p73
      %p75 = scmp.ne.s32.totalorder %s67, %s69
      %p76 = scmp.eq.s32.totalorder %s17, 1
      %p77 = por %p75, %p76
      %p78 = scmp.ne.s32.totalorder %s69, %s70
      %p79 = scmp.eq.s32.totalorder %s17, 0
      %p80 = por %p78, %p79
      %p81 = scmp.ne.s32.totalorder %s69, %s70
      %p82 = scmp.eq.s32.totalorder %s18, 1
      %p83 = por %p81, %p82
      %p85 = scmp.ne.s32.totalorder %s70, %s84
      %p86 = scmp.eq.s32.totalorder %s18, 0
      %p87 = por %p85, %p86
      %s89 = sadd.s32 %s88, 1
      %p92 = scmp.eq.s32.totalorder %s12, 1
      %p93 = scmp.ne.s32.totalorder %s88, %s90
      %p94 = scmp.eq.s32.totalorder %s12, 0
      %p95 = por %p93, %p94
      %p96 = scmp.ne.s32.totalorder %s88, %s90
      %p97 = scmp.eq.s32.totalorder %s17, 1
      %p98 = por %p96, %p97
      %p99 = scmp.ne.s32.totalorder %s90, %s91
      %p100 = scmp.eq.s32.totalorder %s17, 0
      %p101 = por %p99, %p100
      %p102 = scmp.ne.s32.totalorder %s90, %s91
      %p103 = scmp.eq.s32.totalorder %s18, 1
      %p104 = por %p102, %p103
      %p106 = scmp.ne.s32.totalorder %s91, %s105
      %p107 = scmp.eq.s32.totalorder %s18, 0
      %p108 = por %p106, %p107
      %s110 = sadd.s32 %s109, 1
      %p113 = scmp.eq.s32.totalorder %s12, 1
      %p114 = scmp.ne.s32.totalorder %s109, %s111
      %p115 = scmp.eq.s32.totalorder %s12, 0
      %p116 = por %p114, %p115
      %p117 = scmp.ne.s32.totalorder %s109, %s111
      %p118 = scmp.eq.s32.totalorder %s17, 1
      %p119 = por %p117, %p118
      %p120 = scmp.ne.s32.totalorder %s111, %s112
      %p121 = scmp.eq.s32.totalorder %s17, 0
      %p122 = por %p120, %p121
      %p123 = scmp.ne.s32.totalorder %s111, %s112
      %p124 = scmp.eq.s32.totalorder %s18, 1
      %p125 = por %p123, %p124
      %p127 = scmp.ne.s32.totalorder %s112, %s126
      %p128 = scmp.eq.s32.totalorder %s18, 0
      %p129 = por %p127, %p128
      %s131 = sadd.s32 %s130, 1
      %p134 = scmp.eq.s32.totalorder %s12, 1
      %p135 = scmp.ne.s32.totalorder %s130, %s132
      %p136 = scmp.eq.s32.totalorder %s12, 0
      %p137 = por %p135, %p136
      %p138 = scmp.ne.s32.totalorder %s130, %s132
      %p139 = scmp.eq.s32.totalorder %s17, 1
      %p140 = por %p138, %p139
      %p141 = scmp.ne.s32.totalorder %s132, %s133
      %p142 = scmp.eq.s32.totalorder %s17, 0
      %p143 = por %p141, %p142
      %p144 = scmp.ne.s32.totalorder %s132, %s133
      %p145 = scmp.eq.s32.totalorder %s18, 1
      %p146 = por %p144, %p145
      %p148 = scmp.ne.s32.totalorder %s133, %s147
      %p149 = scmp.eq.s32.totalorder %s18, 0
      %p150 = por %p148, %p149
      %s151 = ssub.s32 %s12, %s19
      %p152 = scmp.eq.s32.totalorder %s151, 0
      %s154 = sadd.s32 %s153, 1
      %s155 = scalar_select %p152, %s153, %s154
      %p158 = pneg %p152
      %p159 = scmp.eq.s32.totalorder %s12, 1
      %p160 = por %p158, %p159
      %p161 = scmp.ne.s32.totalorder %s153, %s156
      %p162 = scmp.eq.s32.totalorder %s12, 0
      %p163 = por %p161, %p162
      %p164 = scmp.ne.s32.totalorder %s153, %s156
      %p165 = scmp.eq.s32.totalorder %s17, 1
      %p166 = por %p164, %p165
      %p167 = scmp.ne.s32.totalorder %s156, %s157
      %p168 = scmp.eq.s32.totalorder %s17, 0
      %p169 = por %p167, %p168
      %p170 = scmp.ne.s32.totalorder %s156, %s157
      %p171 = scmp.eq.s32.totalorder %s18, 1
      %p172 = por %p170, %p171
      %p174 = scmp.ne.s32.totalorder %s157, %s173
      %p175 = scmp.eq.s32.totalorder %s18, 0
      %p176 = por %p174, %p175
      %p177 = scmp.le.s32.totalorder 1, %s12
      %p178 = scmp.lt.s32.totalorder %s12, 3
      %p179 = pnand %p177, %p178
      %p180 = pneg %p179
      // Predicated region
      $region9: #{hetero_gat_forward.4} parent=5 // pred_check
        _
      $region10: #{hetero_gat_forward.4} parent=5 // pred_check_branch
        %182 = sbr.rel (%p179) target = $region12
      $region11: #{hetero_gat_forward.4} parent=5 // pred_region
        %s183 = ssub.s32 %s12, 1
        // Predicated region
        $region13: #{hetero_gat_forward.4} parent=11 // pred_check
          %p184 = pneg %p33
        $region14: #{hetero_gat_forward.4} parent=11 // pred_check_branch
          %186 = sbr.rel (%p184) target = $region16
        $region15: #{hetero_gat_forward.4} parent=11 // pred_region
          _
        $region16: #{hetero_gat_forward.4} parent=11 // pred_fallthru
          _
        // Predicated region
        $region17: #{hetero_gat_forward.4} parent=11 // pred_check
          %p187 = pneg %p80
        $region18: #{hetero_gat_forward.4} parent=11 // pred_check_branch
          %189 = sbr.rel (%p187) target = $region20
        $region19: #{hetero_gat_forward.4} parent=11 // pred_region
          _
        $region20: #{hetero_gat_forward.4} parent=11 // pred_fallthru
          _
        // Predicated region
        $region21: #{hetero_gat_forward.4} parent=11 // pred_check
          %p190 = pneg %p101
        $region22: #{hetero_gat_forward.4} parent=11 // pred_check_branch
          %192 = sbr.rel (%p190) target = $region24
        $region23: #{hetero_gat_forward.4} parent=11 // pred_region
          _
        $region24: #{hetero_gat_forward.4} parent=11 // pred_fallthru
          _
        // Predicated region
        $region25: #{hetero_gat_forward.4} parent=11 // pred_check
          %p193 = pneg %p122
        $region26: #{hetero_gat_forward.4} parent=11 // pred_check_branch
          %195 = sbr.rel (%p193) target = $region28
        $region27: #{hetero_gat_forward.4} parent=11 // pred_region
          _
        $region28: #{hetero_gat_forward.4} parent=11 // pred_fallthru
          _
        // Predicated region
        $region29: #{hetero_gat_forward.4} parent=11 // pred_check
          %p196 = pneg %p143
        $region30: #{hetero_gat_forward.4} parent=11 // pred_check_branch
          %198 = sbr.rel (%p196) target = $region32
        $region31: #{hetero_gat_forward.4} parent=11 // pred_region
          _
        $region32: #{hetero_gat_forward.4} parent=11 // pred_fallthru
          _
      $region12: #{hetero_gat_forward.4} parent=5 // pred_fallthru
        _
      %p199 = scmp.lt.s32.totalorder %s12, 2
      // Predicated region
      $region33: #{hetero_gat_forward.4} parent=5 // pred_check
        %p200 = pneg %p199
      $region34: #{hetero_gat_forward.4} parent=5 // pred_check_branch
        %202 = sbr.rel (%p200) target = $region36
      $region35: #{hetero_gat_forward.4} parent=5 // pred_region
        // Predicated region
        $region37: #{hetero_gat_forward.4} parent=35 // pred_check
          %p203 = pneg %p53
        $region38: #{hetero_gat_forward.4} parent=35 // pred_check_branch
          %205 = sbr.rel (%p203) target = $region40
        $region39: #{hetero_gat_forward.4} parent=35 // pred_region
          %s206 = sand.u32 %s43, 1
          %s207 = sand.u32 %s43, 1
          %s208 = smul.addr %s207, 16
          %s209 = scalar_lea.vmem [#allocation2], %s208
          %s210 = smul.addr %s12, 8
          %s211 = scalar_lea.vmem %s1, %s210
          // Predicated region
          $region41: #{hetero_gat_forward.4} parent=39 // pred_check
            _
          $region42: #{hetero_gat_forward.4} parent=39 // pred_check_branch
            %213 = sbr.rel (0) target = $region44
          $region43: #{hetero_gat_forward.4} parent=39 // pred_region
            // Predicated region
            $region45: #{hetero_gat_forward.4} parent=43 // pred_check
              _
            $region46: #{hetero_gat_forward.4} parent=43 // pred_check_branch
              %215 = sbr.rel (0) target = $region48
            $region47: #{hetero_gat_forward.4} parent=43 // pred_region
              // Predicated region
              $region60: #{hetero_gat_forward.4} parent=47 // pred_check
                _
              $region61: #{hetero_gat_forward.4} parent=47 // pred_check_branch
                %233 = sbr.rel (0) target = $region63
              $region62: #{hetero_gat_forward.4} parent=47 // pred_region
                loop: start=0, step=1, limit=1
                $region64: #{hetero_gat_forward.4} parent=62 // loop_pre_header
                  _
                $region65: #{hetero_gat_forward.4} parent=62 // loop_header
                  %s235 = sphi 0, %s239
                  %p236 = scmp.ge.s32.totalorder %s235, 1
                  %s240 = sphi %s211, %s211
                  %s241 = sphi %s209, %s209
                $region66: #{hetero_gat_forward.4} parent=62 // loop_header_branch
                  %238 = sbr.rel (%p236) target = $region70
                $region67: #{hetero_gat_forward.4} parent=62 // loop_body
                  %v242 = vld [vmem:[%s240] sm:$0xff]
                  %243 = vst [vmem:[%s241] sm:$0xff] %v242
                  %v244 = vld [vmem:[%s240 + $0x10] sm:$0xff]
                  %245 = vst [vmem:[%s241 + $0x8] sm:$0xff] %v244
                $region68: #{hetero_gat_forward.4} parent=62 // loop_footer
                  %s239 = sadd.s32 1, %s235
                $region69: #{hetero_gat_forward.4} parent=62 // loop_footer_branch
                  %234 = sbr.rel target = $region65
                $region70: #{hetero_gat_forward.4} parent=62 // loop_exit
                  _
              $region63: #{hetero_gat_forward.4} parent=47 // pred_fallthru
                _
              // Predicated region
              $region71: #{hetero_gat_forward.4} parent=47 // pred_check
                _
              $region72: #{hetero_gat_forward.4} parent=47 // pred_check_branch
                %247 = sbr.rel target = $region74
              $region73: #{hetero_gat_forward.4} parent=47 // pred_region
                _
              $region74: #{hetero_gat_forward.4} parent=47 // pred_fallthru
                _
            $region48: #{hetero_gat_forward.4} parent=43 // pred_fallthru
              _
            // Predicated region
            $region49: #{hetero_gat_forward.4} parent=43 // pred_check
              _
            $region50: #{hetero_gat_forward.4} parent=43 // pred_check_branch
              %217 = sbr.rel target = $region52
            $region51: #{hetero_gat_forward.4} parent=43 // pred_region
              %s219 = ssub.s32 256, 1
              loop: start=0, step=1, limit=1
              $region53: #{hetero_gat_forward.4} parent=51 // loop_pre_header
                _
              $region54: #{hetero_gat_forward.4} parent=51 // loop_header
                %s221 = sphi 0, %s225
                %p222 = scmp.ge.s32.totalorder %s221, 1
                %s226 = sphi %s211, %s211
                %s227 = sphi %s209, %s209
              $region55: #{hetero_gat_forward.4} parent=51 // loop_header_branch
                %224 = sbr.rel (%p222) target = $region59
              $region56: #{hetero_gat_forward.4} parent=51 // loop_body
                %v228 = vld [vmem:[%s226] sm:%s219]
                %229 = vst [vmem:[%s227] sm:%s219] %v228
                %v230 = vld [vmem:[%s226 + $0x10] sm:%s219]
                %231 = vst [vmem:[%s227 + $0x8] sm:%s219] %v230
              $region57: #{hetero_gat_forward.4} parent=51 // loop_footer
                %s225 = sadd.s32 1, %s221
              $region58: #{hetero_gat_forward.4} parent=51 // loop_footer_branch
                %220 = sbr.rel target = $region54
              $region59: #{hetero_gat_forward.4} parent=51 // loop_exit
                _
            $region52: #{hetero_gat_forward.4} parent=43 // pred_fallthru
              _
          $region44: #{hetero_gat_forward.4} parent=39 // pred_fallthru
            _
          %248 = vnop
        $region40: #{hetero_gat_forward.4} parent=35 // pred_fallthru
          _
      $region36: #{hetero_gat_forward.4} parent=5 // pred_fallthru
        _
      %p249 = scmp.le.s32.totalorder 1, %s12
      %p250 = scmp.lt.s32.totalorder %s12, 3
      %p251 = pnand %p249, %p250
      %p252 = pneg %p251
      // Predicated region
      $region75: #{hetero_gat_forward.4} parent=5 // pred_check
        _
      $region76: #{hetero_gat_forward.4} parent=5 // pred_check_branch
        %254 = sbr.rel (%p251) target = $region78
      $region77: #{hetero_gat_forward.4} parent=5 // pred_region
        %s255 = ssub.s32 %s12, 1
        %s256 = sand.u32 %s46, 1
        %s257 = sand.u32 %s46, 1
        %s258 = smul.addr %s257, 16
        %s259 = scalar_lea.vmem [#allocation2], %s258
        // Predicated region
        $region79: #{hetero_gat_forward.4} parent=77 // pred_check
          %p260 = pneg %p59
        $region80: #{hetero_gat_forward.4} parent=77 // pred_check_branch
          %262 = sbr.rel (%p260) target = $region82
        $region81: #{hetero_gat_forward.4} parent=77 // pred_region
          _
        $region82: #{hetero_gat_forward.4} parent=77 // pred_fallthru
          _
        %p263 = pneg %p33
        %p264 = pneg %p30
        %s265 = sand.u32 %s46, 1
        %s266 = sand.u32 %s46, 1
        %s267 = smul.addr %s266, 16
        %s268 = scalar_lea.vmem [#allocation2], %s267
        %p269 = pneg %p59
        %p270 = pneg %p56
        %p271 = pneg %p80
        %p272 = pneg %p77
        %p273 = pneg %p101
        %p274 = pneg %p98
        %p275 = pneg %p122
        %p276 = pneg %p119
        %p277 = pneg %p143
        %p278 = pneg %p140
        %p279 = pneg %p169
        %p280 = pneg %p166
        %s281 = smul.u32 4, %s17
        %p282 = scmp.lt.s32.totalorder %s281, 7
        %s283 = scalar_select %p282, %s281, 7
        %s284 = smul.addr %s283, 8
        %s285 = scalar_lea.vmem %s6, %s284
        %s286 = smul.u32 4, %s17
        %p287 = scmp.lt.s32.totalorder %s286, 7
        %s288 = scalar_select %p287, %s286, 7
        %s289 = smul.addr %s288, 8
        %s290 = scalar_lea.vmem %s6, %s289
        %s291 = smul.u32 4, %s17
        %s292 = smul.u32 %s17, 32
        %v293 = vld [vmem:[%s0] sm:$0xff]
        %v294 = vld [vmem:[%s0 + $0x8] sm:$0xff]
        %v295 = vld [vmem:[%s0 + $0x10] sm:$0xff]
        %v296 = vld [vmem:[%s0 + $0x18] sm:$0xff]
        %v297 = vld [vmem:[%s0 + $0x20] sm:$0xff]
        %v298 = vld [vmem:[%s0 + $0x28] sm:$0xff]
        %v299 = vld [vmem:[%s0 + $0x30] sm:$0xff]
        %v300 = vld [vmem:[%s0 + $0x38] sm:$0xff]
        %s301 = scalar_lea.vmem %s0, %s292
        %v302 = vld [vmem:[%s301] sm:$0xff]
        %v303 = vld [vmem:[%s301 + $0x8] sm:$0xff]
        %v304 = vld [vmem:[%s301 + $0x10] sm:$0xff]
        %v305 = vld [vmem:[%s301 + $0x18] sm:$0xff]
        %vm306 = vcmask 261120
        %307 = vst.msk [vmem:[%s290] sm:$0xff] %vm306, 0.0
        %308 = vst.msk [vmem:[%s290 + $0x8] sm:$0xff] %vm306, 0.0
        %309 = vst.msk [vmem:[%s290 + $0x10] sm:$0xff] %vm306, 0.0
        %310 = vst.msk [vmem:[%s290 + $0x18] sm:$0xff] %vm306, 0.0
        %v311 = vld [vmem:[%s259] sm:$0xff]
        %v312 = vunpack.c.0.s8 %v311
        %v313 = vunpack.c.1.s8 %v311
        %v314 = vunpack.c.2.s8 %v311
        %v315 = vunpack.c.3.s8 %v311
        %vm316 = vcmp.gt.s32.totalorder %v312, 0
        %vm317 = vcmp.gt.s32.totalorder %v313, 0
        %vm318 = vcmp.gt.s32.totalorder %v314, 0
        %vm319 = vcmp.gt.s32.totalorder %v315, 0
        %v320 = vld [vmem:[%s2] sm:$0xff]
        %v321 = vld [vmem:[%s2 + $0x8] sm:$0xff]
        %v322 = vld [vmem:[%s2 + $0x10] sm:$0xff]
        %v323 = vld [vmem:[%s2 + $0x18] sm:$0xff]
        %v324 = vld [vmem:[%s2 + $0x20] sm:$0xff]
        %v325 = vld [vmem:[%s2 + $0x28] sm:$0xff]
        %v326 = vld [vmem:[%s2 + $0x30] sm:$0xff]
        %v327 = vld [vmem:[%s2 + $0x38] sm:$0xff]
        %vm328 = vcmask 523264
        %v330 = vsel %vm328, %v293, 0
        %v333 = vsel %vm328, %v294, 0
        %v336 = vsel %vm328, %v295, 0
        %v339 = vsel %vm328, %v296, 0
        %v342 = vsel %vm328, %v297, 0
        %v345 = vsel %vm328, %v298, 0
        %v348 = vsel %vm328, %v299, 0
        %v351 = vsel %vm328, %v300, 0
        %353 = vmatprep.subr.mxu0 0.0
        %354 = vmatpush1.msra.mxu0 0.0
        %355 = vmatprep.subr.mxu0 0.0
        %356 = vmatpush1.msra.mxu0 0.0
        %357 = vmatprep.subr.mxu0 0.0
        %358 = vmatpush1.msra.mxu0 0.0
        %359 = vmatprep.subr.mxu0 0.0
        %360 = vmatpush1.msra.mxu0 0.0
        %361 = vmatprep.subr.mxu0 0.0
        %362 = vmatpush1.msra.mxu0 0.0
        %363 = vmatprep.subr.mxu0 0.0
        %364 = vmatpush1.msra.mxu0 0.0
        %365 = vmatprep.subr.mxu0 0.0
        %366 = vmatpush1.msra.mxu0 0.0
        %367 = vmatprep.subr.mxu0 0.0
        %368 = vmatpush1.msra.mxu0 0.0
        %369 = vmatprep.subr.mxu0 0.0
        %370 = vmatpush1.msra.mxu0 %v327
        %371 = vmatprep.subr.mxu0 0.0
        %372 = vmatpush1.msra.mxu0 %v326
        %373 = vmatprep.subr.mxu0 0.0
        %374 = vmatpush1.msra.mxu0 %v325
        %375 = vmatprep.subr.mxu0 0.0
        %376 = vmatpush1.msra.mxu0 %v324
        %377 = vmatprep.subr.mxu0 0.0
        %378 = vmatpush1.msra.mxu0 %v323
        %379 = vmatprep.subr.mxu0 0.0
        %380 = vmatpush1.msra.mxu0 %v322
        %381 = vmatprep.subr.mxu0 0.0
        %382 = vmatpush1.msra.mxu0 %v321
        %383 = vmatprep.subr.mxu0 0.0
        %384 = vmatpush1.msra.mxu0 %v320
        %385 = vmatprep.subr.mxu0 0.0
        %386 = vmatpush2.msra.mxu0 0.0
        %387 = vmatprep.subr.mxu0 0.0
        %388 = vmatpush2.msra.mxu0 0.0
        %389 = vmatprep.subr.mxu0 0.0
        %390 = vmatpush2.msra.mxu0 0.0
        %391 = vmatprep.subr.mxu0 0.0
        %392 = vmatpush2.msra.mxu0 0.0
        %393 = vmatprep.subr.mxu0 0.0
        %394 = vmatpush2.msra.mxu0 0.0
        %395 = vmatprep.subr.mxu0 0.0
        %396 = vmatpush2.msra.mxu0 0.0
        %397 = vmatprep.subr.mxu0 0.0
        %398 = vmatpush2.msra.mxu0 0.0
        %399 = vmatprep.subr.mxu0 0.0
        %400 = vmatpush2.msra.mxu0 0.0
        %401 = vmatprep.subr.mxu0 0.0
        %402 = vmatpush2.msra.mxu0 0.0
        %403 = vmatprep.subr.mxu0 0.0
        %404 = vmatpush2.msra.mxu0 0.0
        %405 = vmatprep.subr.mxu0 0.0
        %406 = vmatpush2.msra.mxu0 0.0
        %407 = vmatprep.subr.mxu0 0.0
        %408 = vmatpush2.msra.mxu0 0.0
        %409 = vmatprep.subr.mxu0 0.0
        %410 = vmatpush2.msra.mxu0 0.0
        %411 = vmatprep.subr.mxu0 0.0
        %412 = vmatpush2.msra.mxu0 0.0
        %413 = vmatprep.subr.mxu0 0.0
        %414 = vmatpush2.msra.mxu0 0.0
        %415 = vmatprep.subr.mxu0 0.0
        %416 = vmatpush2.msra.mxu0 0.0
        %417 = vmatprep.mubr.f32.mxu0 0.0
        %418 = vmatmul.mubr.f32.gmra.mxu0 %v330
        %v419 = vpop.f32.mrf.mxu0
        %v420 = vadd.f32 0.0, %v419
        %v421 = vpop.f32.mrf.mxu0
        %422 = vmatprep.mubr.f32.mxu0 0.0
        %423 = vmatmul.mubr.f32.gmra.mxu0 %v333
        %v424 = vpop.f32.mrf.mxu0
        %v425 = vadd.f32 0.0, %v424
        %v426 = vpop.f32.mrf.mxu0
        %427 = vmatprep.mubr.f32.mxu0 0.0
        %428 = vmatmul.mubr.f32.gmra.mxu0 %v336
        %v429 = vpop.f32.mrf.mxu0
        %v430 = vadd.f32 0.0, %v429
        %v431 = vpop.f32.mrf.mxu0
        %432 = vmatprep.mubr.f32.mxu0 0.0
        %433 = vmatmul.mubr.f32.gmra.mxu0 %v339
        %v434 = vpop.f32.mrf.mxu0
        %v435 = vadd.f32 0.0, %v434
        %v436 = vpop.f32.mrf.mxu0
        %437 = vmatprep.mubr.f32.mxu0 0.0
        %438 = vmatmul.mubr.f32.gmra.mxu0 %v342
        %v439 = vpop.f32.mrf.mxu0
        %v440 = vadd.f32 0.0, %v439
        %v441 = vpop.f32.mrf.mxu0
        %442 = vmatprep.mubr.f32.mxu0 0.0
        %443 = vmatmul.mubr.f32.gmra.mxu0 %v345
        %v444 = vpop.f32.mrf.mxu0
        %v445 = vadd.f32 0.0, %v444
        %v446 = vpop.f32.mrf.mxu0
        %447 = vmatprep.mubr.f32.mxu0 0.0
        %448 = vmatmul.mubr.f32.gmra.mxu0 %v348
        %v449 = vpop.f32.mrf.mxu0
        %v450 = vadd.f32 0.0, %v449
        %v451 = vpop.f32.mrf.mxu0
        %452 = vmatprep.mubr.f32.mxu0 0.0
        %453 = vmatmul.mubr.f32.gmra.mxu0 %v351
        %v454 = vpop.f32.mrf.mxu0
        %v455 = vadd.f32 0.0, %v454
        %v456 = vpop.f32.mrf.mxu0
        %457 = vdwg.mxu0
        %v459 = vsel %vm328, %v302, 0
        %v462 = vsel %vm328, %v303, 0
        %v465 = vsel %vm328, %v304, 0
        %v468 = vsel %vm328, %v305, 0
        %470 = vmatprep.subr.mxu0 0.0
        %471 = vmatpush1.msra.mxu0 0.0
        %472 = vmatprep.subr.mxu0 0.0
        %473 = vmatpush1.msra.mxu0 0.0
        %474 = vmatprep.subr.mxu0 0.0
        %475 = vmatpush1.msra.mxu0 0.0
        %476 = vmatprep.subr.mxu0 0.0
        %477 = vmatpush1.msra.mxu0 0.0
        %478 = vmatprep.subr.mxu0 0.0
        %479 = vmatpush1.msra.mxu0 0.0
        %480 = vmatprep.subr.mxu0 0.0
        %481 = vmatpush1.msra.mxu0 0.0
        %482 = vmatprep.subr.mxu0 0.0
        %483 = vmatpush1.msra.mxu0 0.0
        %484 = vmatprep.subr.mxu0 0.0
        %485 = vmatpush1.msra.mxu0 0.0
        %486 = vmatprep.subr.mxu0 0.0
        %487 = vmatpush1.msra.mxu0 %v327
        %488 = vmatprep.subr.mxu0 0.0
        %489 = vmatpush1.msra.mxu0 %v326
        %490 = vmatprep.subr.mxu0 0.0
        %491 = vmatpush1.msra.mxu0 %v325
        %492 = vmatprep.subr.mxu0 0.0
        %493 = vmatpush1.msra.mxu0 %v324
        %494 = vmatprep.subr.mxu0 0.0
        %495 = vmatpush1.msra.mxu0 %v323
        %496 = vmatprep.subr.mxu0 0.0
        %497 = vmatpush1.msra.mxu0 %v322
        %498 = vmatprep.subr.mxu0 0.0
        %499 = vmatpush1.msra.mxu0 %v321
        %500 = vmatprep.subr.mxu0 0.0
        %501 = vmatpush1.msra.mxu0 %v320
        %502 = vmatprep.subr.mxu0 0.0
        %503 = vmatpush2.msra.mxu0 0.0
        %504 = vmatprep.subr.mxu0 0.0
        %505 = vmatpush2.msra.mxu0 0.0
        %506 = vmatprep.subr.mxu0 0.0
        %507 = vmatpush2.msra.mxu0 0.0
        %508 = vmatprep.subr.mxu0 0.0
        %509 = vmatpush2.msra.mxu0 0.0
        %510 = vmatprep.subr.mxu0 0.0
        %511 = vmatpush2.msra.mxu0 0.0
        %512 = vmatprep.subr.mxu0 0.0
        %513 = vmatpush2.msra.mxu0 0.0
        %514 = vmatprep.subr.mxu0 0.0
        %515 = vmatpush2.msra.mxu0 0.0
        %516 = vmatprep.subr.mxu0 0.0
        %517 = vmatpush2.msra.mxu0 0.0
        %518 = vmatprep.subr.mxu0 0.0
        %519 = vmatpush2.msra.mxu0 0.0
        %520 = vmatprep.subr.mxu0 0.0
        %521 = vmatpush2.msra.mxu0 0.0
        %522 = vmatprep.subr.mxu0 0.0
        %523 = vmatpush2.msra.mxu0 0.0
        %524 = vmatprep.subr.mxu0 0.0
        %525 = vmatpush2.msra.mxu0 0.0
        %526 = vmatprep.subr.mxu0 0.0
        %527 = vmatpush2.msra.mxu0 0.0
        %528 = vmatprep.subr.mxu0 0.0
        %529 = vmatpush2.msra.mxu0 0.0
        %530 = vmatprep.subr.mxu0 0.0
        %531 = vmatpush2.msra.mxu0 0.0
        %532 = vmatprep.subr.mxu0 0.0
        %533 = vmatpush2.msra.mxu0 0.0
        %534 = vmatprep.mubr.f32.mxu0 0.0
        %535 = vmatmul.mubr.f32.gmra.mxu0 %v459
        %v536 = vpop.f32.mrf.mxu0
        %v537 = vadd.f32 0.0, %v536
        %v538 = vpop.f32.mrf.mxu0
        %539 = vmatprep.mubr.f32.mxu0 0.0
        %540 = vmatmul.mubr.f32.gmra.mxu0 %v462
        %v541 = vpop.f32.mrf.mxu0
        %v542 = vadd.f32 0.0, %v541
        %v543 = vpop.f32.mrf.mxu0
        %544 = vmatprep.mubr.f32.mxu0 0.0
        %545 = vmatmul.mubr.f32.gmra.mxu0 %v465
        %v546 = vpop.f32.mrf.mxu0
        %v547 = vadd.f32 0.0, %v546
        %v548 = vpop.f32.mrf.mxu0
        %549 = vmatprep.mubr.f32.mxu0 0.0
        %550 = vmatmul.mubr.f32.gmra.mxu0 %v468
        %v551 = vpop.f32.mrf.mxu0
        %v552 = vadd.f32 0.0, %v551
        %v553 = vpop.f32.mrf.mxu0
        %554 = vdwg.mxu0
        %v555 = vld [vmem:[%s3] sm:$0x3]
        %v557 = vsel %vm306, %v555, 0
        %v560 = vsel %vm306, %v420, 0
        %v563 = vsel %vm306, %v425, 0
        %v566 = vsel %vm306, %v430, 0
        %v569 = vsel %vm306, %v435, 0
        %v572 = vsel %vm306, %v440, 0
        %v575 = vsel %vm306, %v445, 0
        %v578 = vsel %vm306, %v450, 0
        %v581 = vsel %vm306, %v455, 0
        %583 = vmatprep.subr.mxu0 0.0
        %584 = vmatpush1.xpose.msra.mxu0 0.0
        %585 = vmatprep.subr.mxu0 0.0
        %586 = vmatpush1.xpose.msra.mxu0 0.0
        %587 = vmatprep.subr.mxu0 0.0
        %588 = vmatpush1.xpose.msra.mxu0 0.0
        %589 = vmatprep.subr.mxu0 0.0
        %590 = vmatpush1.xpose.msra.mxu0 0.0
        %591 = vmatprep.subr.mxu0 0.0
        %592 = vmatpush1.xpose.msra.mxu0 0.0
        %593 = vmatprep.subr.mxu0 0.0
        %594 = vmatpush1.xpose.msra.mxu0 0.0
        %595 = vmatprep.subr.mxu0 0.0
        %596 = vmatpush1.xpose.msra.mxu0 0.0
        %597 = vmatprep.subr.mxu0 0.0
        %598 = vmatpush1.xpose.msra.mxu0 0.0
        %599 = vmatprep.subr.mxu0 0.0
        %600 = vmatpush1.xpose.msra.mxu0 %v581
        %601 = vmatprep.subr.mxu0 0.0
        %602 = vmatpush1.xpose.msra.mxu0 %v578
        %603 = vmatprep.subr.mxu0 0.0
        %604 = vmatpush1.xpose.msra.mxu0 %v575
        %605 = vmatprep.subr.mxu0 0.0
        %606 = vmatpush1.xpose.msra.mxu0 %v572
        %607 = vmatprep.subr.mxu0 0.0
        %608 = vmatpush1.xpose.msra.mxu0 %v569
        %609 = vmatprep.subr.mxu0 0.0
        %610 = vmatpush1.xpose.msra.mxu0 %v566
        %611 = vmatprep.subr.mxu0 0.0
        %612 = vmatpush1.xpose.msra.mxu0 %v563
        %613 = vmatprep.subr.mxu0 0.0
        %614 = vmatpush1.xpose.msra.mxu0 %v560
        %615 = vmatprep.subr.mxu0 0.0
        %616 = vmatpush2.xpose.msra.mxu0 0.0
        %617 = vmatprep.subr.mxu0 0.0
        %618 = vmatpush2.xpose.msra.mxu0 0.0
        %619 = vmatprep.subr.mxu0 0.0
        %620 = vmatpush2.xpose.msra.mxu0 0.0
        %621 = vmatprep.subr.mxu0 0.0
        %622 = vmatpush2.xpose.msra.mxu0 0.0
        %623 = vmatprep.subr.mxu0 0.0
        %624 = vmatpush2.xpose.msra.mxu0 0.0
        %625 = vmatprep.subr.mxu0 0.0
        %626 = vmatpush2.xpose.msra.mxu0 0.0
        %627 = vmatprep.subr.mxu0 0.0
        %628 = vmatpush2.xpose.msra.mxu0 0.0
        %629 = vmatprep.subr.mxu0 0.0
        %630 = vmatpush2.xpose.msra.mxu0 0.0
        %631 = vmatprep.subr.mxu0 0.0
        %632 = vmatpush2.xpose.msra.mxu0 0.0
        %633 = vmatprep.subr.mxu0 0.0
        %634 = vmatpush2.xpose.msra.mxu0 0.0
        %635 = vmatprep.subr.mxu0 0.0
        %636 = vmatpush2.xpose.msra.mxu0 0.0
        %637 = vmatprep.subr.mxu0 0.0
        %638 = vmatpush2.xpose.msra.mxu0 0.0
        %639 = vmatprep.subr.mxu0 0.0
        %640 = vmatpush2.xpose.msra.mxu0 0.0
        %641 = vmatprep.subr.mxu0 0.0
        %642 = vmatpush2.xpose.msra.mxu0 0.0
        %643 = vmatprep.subr.mxu0 0.0
        %644 = vmatpush2.xpose.msra.mxu0 0.0
        %645 = vmatprep.subr.mxu0 0.0
        %646 = vmatpush2.xpose.msra.mxu0 0.0
        %647 = vmatprep.mubr.f32.mxu0 0.0
        %648 = vmatmul.mubr.f32.gmra.mxu0 %v557
        %v649 = vpop.f32.mrf.mxu0
        %v650 = vadd.f32 0.0, %v649
        %v651 = vpop.f32.mrf.mxu0
        %652 = vdwg.mxu0
        %v653 = vld [vmem:[%s4] sm:$0x3]
        %v655 = vsel %vm306, %v537, 0
        %v658 = vsel %vm306, %v542, 0
        %v661 = vsel %vm306, %v547, 0
        %v664 = vsel %vm306, %v552, 0
        %v667 = vsel %vm306, %v653, 0
        %669 = vmatprep.subr.mxu0 0.0
        %670 = vmatpush1.xpose.msra.mxu0 0.0
        %671 = vmatprep.subr.mxu0 0.0
        %672 = vmatpush1.xpose.msra.mxu0 0.0
        %673 = vmatprep.subr.mxu0 0.0
        %674 = vmatpush1.xpose.msra.mxu0 0.0
        %675 = vmatprep.subr.mxu0 0.0
        %676 = vmatpush1.xpose.msra.mxu0 0.0
        %677 = vmatprep.subr.mxu0 0.0
        %678 = vmatpush1.xpose.msra.mxu0 0.0
        %679 = vmatprep.subr.mxu0 0.0
        %680 = vmatpush1.xpose.msra.mxu0 0.0
        %681 = vmatprep.subr.mxu0 0.0
        %682 = vmatpush1.xpose.msra.mxu0 0.0
        %683 = vmatprep.subr.mxu0 0.0
        %684 = vmatpush1.xpose.msra.mxu0 0.0
        %685 = vmatprep.subr.mxu0 0.0
        %686 = vmatpush1.xpose.msra.mxu0 0.0
        %687 = vmatprep.subr.mxu0 0.0
        %688 = vmatpush1.xpose.msra.mxu0 0.0
        %689 = vmatprep.subr.mxu0 0.0
        %690 = vmatpush1.xpose.msra.mxu0 0.0
        %691 = vmatprep.subr.mxu0 0.0
        %692 = vmatpush1.xpose.msra.mxu0 0.0
        %693 = vmatprep.subr.mxu0 0.0
        %694 = vmatpush1.xpose.msra.mxu0 0.0
        %695 = vmatprep.subr.mxu0 0.0
        %696 = vmatpush1.xpose.msra.mxu0 0.0
        %697 = vmatprep.subr.mxu0 0.0
        %698 = vmatpush1.xpose.msra.mxu0 0.0
        %699 = vmatprep.subr.mxu0 0.0
        %700 = vmatpush1.xpose.msra.mxu0 %v667
        %701 = vmatprep.subr.mxu0 0.0
        %702 = vmatpush2.xpose.msra.mxu0 0.0
        %703 = vmatprep.subr.mxu0 0.0
        %704 = vmatpush2.xpose.msra.mxu0 0.0
        %705 = vmatprep.subr.mxu0 0.0
        %706 = vmatpush2.xpose.msra.mxu0 0.0
        %707 = vmatprep.subr.mxu0 0.0
        %708 = vmatpush2.xpose.msra.mxu0 0.0
        %709 = vmatprep.subr.mxu0 0.0
        %710 = vmatpush2.xpose.msra.mxu0 0.0
        %711 = vmatprep.subr.mxu0 0.0
        %712 = vmatpush2.xpose.msra.mxu0 0.0
        %713 = vmatprep.subr.mxu0 0.0
        %714 = vmatpush2.xpose.msra.mxu0 0.0
        %715 = vmatprep.subr.mxu0 0.0
        %716 = vmatpush2.xpose.msra.mxu0 0.0
        %717 = vmatprep.subr.mxu0 0.0
        %718 = vmatpush2.xpose.msra.mxu0 0.0
        %719 = vmatprep.subr.mxu0 0.0
        %720 = vmatpush2.xpose.msra.mxu0 0.0
        %721 = vmatprep.subr.mxu0 0.0
        %722 = vmatpush2.xpose.msra.mxu0 0.0
        %723 = vmatprep.subr.mxu0 0.0
        %724 = vmatpush2.xpose.msra.mxu0 0.0
        %725 = vmatprep.subr.mxu0 0.0
        %726 = vmatpush2.xpose.msra.mxu0 0.0
        %727 = vmatprep.subr.mxu0 0.0
        %728 = vmatpush2.xpose.msra.mxu0 0.0
        %729 = vmatprep.subr.mxu0 0.0
        %730 = vmatpush2.xpose.msra.mxu0 0.0
        %731 = vmatprep.subr.mxu0 0.0
        %732 = vmatpush2.xpose.msra.mxu0 0.0
        %733 = vmatprep.mubr.f32.mxu0 0.0
        %734 = vmatmul.mubr.f32.gmra.mxu0 %v655
        %v735 = vpop.f32.mrf.mxu0
        %v736 = vadd.f32 0.0, %v735
        %v737 = vpop.f32.mrf.mxu0
        %738 = vmatprep.mubr.f32.mxu0 0.0
        %739 = vmatmul.mubr.f32.gmra.mxu0 %v658
        %v740 = vpop.f32.mrf.mxu0
        %v741 = vadd.f32 0.0, %v740
        %v742 = vpop.f32.mrf.mxu0
        %743 = vmatprep.mubr.f32.mxu0 0.0
        %744 = vmatmul.mubr.f32.gmra.mxu0 %v661
        %v745 = vpop.f32.mrf.mxu0
        %v746 = vadd.f32 0.0, %v745
        %v747 = vpop.f32.mrf.mxu0
        %748 = vmatprep.mubr.f32.mxu0 0.0
        %749 = vmatmul.mubr.f32.gmra.mxu0 %v664
        %v750 = vpop.f32.mrf.mxu0
        %v751 = vadd.f32 0.0, %v750
        %v752 = vpop.f32.mrf.mxu0
        %753 = vdwg.mxu0
        %755 = vset.pattern.permute.xlu0 0
        %756 = vperm.xlu0 %755, %v736
        %v757 = vpop.permute.xlu0 %756
        %760 = vset.pattern.permute.xlu0 0
        %761 = vperm.xlu0 %760, %v741
        %v762 = vpop.permute.xlu0 %761
        %765 = vset.pattern.permute.xlu0 0
        %766 = vperm.xlu0 %765, %v746
        %v767 = vpop.permute.xlu0 %766
        %770 = vset.pattern.permute.xlu0 0
        %771 = vperm.xlu0 %770, %v751
        %v772 = vpop.permute.xlu0 %771
        %v774 = vlaneseq
        %v775 = vshrl.u32 %v774, 7
        %v776 = vsub.s32 0, %v775
        %v777 = vrot.slane %v650, %v776
        %v778 = vadd.f32 %v757, %v777
        %v779 = vadd.f32 %v762, %v777
        %v780 = vadd.f32 %v767, %v777
        %v781 = vadd.f32 %v772, %v777
        %v782 = vmul.f32 %v778, 0.2
        %v783 = vmul.f32 %v779, 0.2
        %v784 = vmul.f32 %v780, 0.2
        %v785 = vmul.f32 %v781, 0.2
        %v786 = vmax.f32 %v778, %v782
        %v787 = vmax.f32 %v779, %v783
        %v788 = vmax.f32 %v780, %v784
        %v789 = vmax.f32 %v781, %v785
        %v790 = vsel %vm316, %v786, -1e+30
        %v791 = vsel %vm317, %v787, -1e+30
        %v792 = vsel %vm318, %v788, -1e+30
        %v793 = vsel %vm319, %v789, -1e+30
        %v794 = vsel %vm328, %v790, -inf
        %795 = vmax.xlane.f32.xlu0 %v794
        %v796 = vpop.xlane.xlu0 %795
        %v797 = vsel %vm328, %v791, -inf
        %798 = vmax.xlane.f32.xlu0 %v797
        %v799 = vpop.xlane.xlu0 %798
        %v800 = vsel %vm328, %v792, -inf
        %801 = vmax.xlane.f32.xlu0 %v800
        %v802 = vpop.xlane.xlu0 %801
        %v803 = vsel %vm328, %v793, -inf
        %804 = vmax.xlane.f32.xlu0 %v803
        %v805 = vpop.xlane.xlu0 %804
        %v806 = vsub.f32 %v790, %v796
        %v807 = vsub.f32 %v791, %v799
        %v808 = vsub.f32 %v792, %v802
        %v809 = vsub.f32 %v793, %v805
        %v810 = vmul.f32 %v806, 1.442695
        %v811 = vpow.pop %v810
        %v812 = vmul.f32 %v807, 1.442695
        %v813 = vpow.pop %v812
        %v814 = vmul.f32 %v808, 1.442695
        %v815 = vpow.pop %v814
        %v816 = vmul.f32 %v809, 1.442695
        %v817 = vpow.pop %v816
        %v818 = vsel %vm328, %v811, 0.0
        %819 = vadd.xlane.f32.xlu0 %v818
        %v820 = vpop.xlane.xlu0 %819
        %v821 = vsel %vm328, %v813, 0.0
        %822 = vadd.xlane.f32.xlu0 %v821
        %v823 = vpop.xlane.xlu0 %822
        %v824 = vsel %vm328, %v815, 0.0
        %825 = vadd.xlane.f32.xlu0 %v824
        %v826 = vpop.xlane.xlu0 %825
        %v827 = vsel %vm328, %v817, 0.0
        %828 = vadd.xlane.f32.xlu0 %v827
        %v829 = vpop.xlane.xlu0 %828
        %v830 = vrcp.pop %v820
        %v831 = vrcp.pop %v823
        %v832 = vrcp.pop %v826
        %v833 = vrcp.pop %v829
        %v835 = vsel %vm328, %v811, 0
        %v838 = vsel %vm328, %v813, 0
        %v841 = vsel %vm328, %v815, 0
        %v844 = vsel %vm328, %v817, 0
        %846 = vmatprep.subr.mxu0 0.0
        %847 = vmatpush1.msra.mxu0 0.0
        %848 = vmatprep.subr.mxu0 0.0
        %849 = vmatpush1.msra.mxu0 0.0
        %850 = vmatprep.subr.mxu0 0.0
        %851 = vmatpush1.msra.mxu0 0.0
        %852 = vmatprep.subr.mxu0 0.0
        %853 = vmatpush1.msra.mxu0 0.0
        %854 = vmatprep.subr.mxu0 0.0
        %855 = vmatpush1.msra.mxu0 0.0
        %856 = vmatprep.subr.mxu0 0.0
        %857 = vmatpush1.msra.mxu0 0.0
        %858 = vmatprep.subr.mxu0 0.0
        %859 = vmatpush1.msra.mxu0 0.0
        %860 = vmatprep.subr.mxu0 0.0
        %861 = vmatpush1.msra.mxu0 0.0
        %862 = vmatprep.subr.mxu0 0.0
        %863 = vmatpush1.msra.mxu0 %v455
        %864 = vmatprep.subr.mxu0 0.0
        %865 = vmatpush1.msra.mxu0 %v450
        %866 = vmatprep.subr.mxu0 0.0
        %867 = vmatpush1.msra.mxu0 %v445
        %868 = vmatprep.subr.mxu0 0.0
        %869 = vmatpush1.msra.mxu0 %v440
        %870 = vmatprep.subr.mxu0 0.0
        %871 = vmatpush1.msra.mxu0 %v435
        %872 = vmatprep.subr.mxu0 0.0
        %873 = vmatpush1.msra.mxu0 %v430
        %874 = vmatprep.subr.mxu0 0.0
        %875 = vmatpush1.msra.mxu0 %v425
        %876 = vmatprep.subr.mxu0 0.0
        %877 = vmatpush1.msra.mxu0 %v420
        %878 = vmatprep.subr.mxu0 0.0
        %879 = vmatpush2.msra.mxu0 0.0
        %880 = vmatprep.subr.mxu0 0.0
        %881 = vmatpush2.msra.mxu0 0.0
        %882 = vmatprep.subr.mxu0 0.0
        %883 = vmatpush2.msra.mxu0 0.0
        %884 = vmatprep.subr.mxu0 0.0
        %885 = vmatpush2.msra.mxu0 0.0
        %886 = vmatprep.subr.mxu0 0.0
        %887 = vmatpush2.msra.mxu0 0.0
        %888 = vmatprep.subr.mxu0 0.0
        %889 = vmatpush2.msra.mxu0 0.0
        %890 = vmatprep.subr.mxu0 0.0
        %891 = vmatpush2.msra.mxu0 0.0
        %892 = vmatprep.subr.mxu0 0.0
        %893 = vmatpush2.msra.mxu0 0.0
        %894 = vmatprep.subr.mxu0 0.0
        %895 = vmatpush2.msra.mxu0 0.0
        %896 = vmatprep.subr.mxu0 0.0
        %897 = vmatpush2.msra.mxu0 0.0
        %898 = vmatprep.subr.mxu0 0.0
        %899 = vmatpush2.msra.mxu0 0.0
        %900 = vmatprep.subr.mxu0 0.0
        %901 = vmatpush2.msra.mxu0 0.0
        %902 = vmatprep.subr.mxu0 0.0
        %903 = vmatpush2.msra.mxu0 0.0
        %904 = vmatprep.subr.mxu0 0.0
        %905 = vmatpush2.msra.mxu0 0.0
        %906 = vmatprep.subr.mxu0 0.0
        %907 = vmatpush2.msra.mxu0 0.0
        %908 = vmatprep.subr.mxu0 0.0
        %909 = vmatpush2.msra.mxu0 0.0
        %910 = vmatprep.mubr.f32.mxu0 0.0
        %911 = vmatmul.mubr.f32.gmra.mxu0 %v835
        %v912 = vpop.f32.mrf.mxu0
        %v913 = vadd.f32 0.0, %v912
        %v914 = vpop.f32.mrf.mxu0
        %915 = vmatprep.mubr.f32.mxu0 0.0
        %916 = vmatmul.mubr.f32.gmra.mxu0 %v838
        %v917 = vpop.f32.mrf.mxu0
        %v918 = vadd.f32 0.0, %v917
        %v919 = vpop.f32.mrf.mxu0
        %920 = vmatprep.mubr.f32.mxu0 0.0
        %921 = vmatmul.mubr.f32.gmra.mxu0 %v841
        %v922 = vpop.f32.mrf.mxu0
        %v923 = vadd.f32 0.0, %v922
        %v924 = vpop.f32.mrf.mxu0
        %925 = vmatprep.mubr.f32.mxu0 0.0
        %926 = vmatmul.mubr.f32.gmra.mxu0 %v844
        %v927 = vpop.f32.mrf.mxu0
        %v928 = vadd.f32 0.0, %v927
        %v929 = vpop.f32.mrf.mxu0
        %930 = vdwg.mxu0
        %v931 = vld [vmem:[%s290] sm:$0xff]
        %v932 = vld [vmem:[%s290 + $0x8] sm:$0xff]
        %v933 = vld [vmem:[%s290 + $0x10] sm:$0xff]
        %v934 = vld [vmem:[%s290 + $0x18] sm:$0xff]
        %v935 = vmul.f32 %v913, %v830
        %v936 = vmul.f32 %v918, %v831
        %v937 = vmul.f32 %v923, %v832
        %v938 = vmul.f32 %v928, %v833
        %v939 = vadd.f32 %v931, %v935
        %v940 = vadd.f32 %v932, %v936
        %v941 = vadd.f32 %v933, %v937
        %v942 = vadd.f32 %v934, %v938
        %vm943 = vcmask 130048
        %944 = vst.msk [vmem:[%s290] sm:$0xff] %vm943, %v939
        %945 = vst.msk [vmem:[%s290 + $0x8] sm:$0xff] %vm943, %v940
        %946 = vst.msk [vmem:[%s290 + $0x10] sm:$0xff] %vm943, %v941
        %947 = vst.msk [vmem:[%s290 + $0x18] sm:$0xff] %vm943, %v942
        %948 = vset.pattern.permute.xlu0 1
        %949 = vperm.xlu0 %948, %v736
        %v950 = vpop.permute.xlu0 %949
        %952 = vset.pattern.permute.xlu0 1
        %953 = vperm.xlu0 %952, %v741
        %v954 = vpop.permute.xlu0 %953
        %956 = vset.pattern.permute.xlu0 1
        %957 = vperm.xlu0 %956, %v746
        %v958 = vpop.permute.xlu0 %957
        %960 = vset.pattern.permute.xlu0 1
        %961 = vperm.xlu0 %960, %v751
        %v962 = vpop.permute.xlu0 %961
        %v964 = vlaneseq
        %v965 = vshrl.u32 %v964, 7
        %v966 = vsub.s32 1, %v965
        %v967 = vrot.slane %v650, %v966
        %v968 = vadd.f32 %v950, %v967
        %v969 = vadd.f32 %v954, %v967
        %v970 = vadd.f32 %v958, %v967
        %v971 = vadd.f32 %v962, %v967
        %v972 = vmul.f32 %v968, 0.2
        %v973 = vmul.f32 %v969, 0.2
        %v974 = vmul.f32 %v970, 0.2
        %v975 = vmul.f32 %v971, 0.2
        %v976 = vmax.f32 %v968, %v972
        %v977 = vmax.f32 %v969, %v973
        %v978 = vmax.f32 %v970, %v974
        %v979 = vmax.f32 %v971, %v975
        %v980 = vsel %vm316, %v976, -1e+30
        %v981 = vsel %vm317, %v977, -1e+30
        %v982 = vsel %vm318, %v978, -1e+30
        %v983 = vsel %vm319, %v979, -1e+30
        %v984 = vsel %vm328, %v980, -inf
        %985 = vmax.xlane.f32.xlu0 %v984
        %v986 = vpop.xlane.xlu0 %985
        %v987 = vsel %vm328, %v981, -inf
        %988 = vmax.xlane.f32.xlu0 %v987
        %v989 = vpop.xlane.xlu0 %988
        %v990 = vsel %vm328, %v982, -inf
        %991 = vmax.xlane.f32.xlu0 %v990
        %v992 = vpop.xlane.xlu0 %991
        %v993 = vsel %vm328, %v983, -inf
        %994 = vmax.xlane.f32.xlu0 %v993
        %v995 = vpop.xlane.xlu0 %994
        %v996 = vsub.f32 %v980, %v986
        %v997 = vsub.f32 %v981, %v989
        %v998 = vsub.f32 %v982, %v992
        %v999 = vsub.f32 %v983, %v995
        %v1000 = vmul.f32 %v996, 1.442695
        %v1001 = vpow.pop %v1000
        %v1002 = vmul.f32 %v997, 1.442695
        %v1003 = vpow.pop %v1002
        %v1004 = vmul.f32 %v998, 1.442695
        %v1005 = vpow.pop %v1004
        %v1006 = vmul.f32 %v999, 1.442695
        %v1007 = vpow.pop %v1006
        %v1008 = vsel %vm328, %v1001, 0.0
        %1009 = vadd.xlane.f32.xlu0 %v1008
        %v1010 = vpop.xlane.xlu0 %1009
        %v1011 = vsel %vm328, %v1003, 0.0
        %1012 = vadd.xlane.f32.xlu0 %v1011
        %v1013 = vpop.xlane.xlu0 %1012
        %v1014 = vsel %vm328, %v1005, 0.0
        %1015 = vadd.xlane.f32.xlu0 %v1014
        %v1016 = vpop.xlane.xlu0 %1015
        %v1017 = vsel %vm328, %v1007, 0.0
        %1018 = vadd.xlane.f32.xlu0 %v1017
        %v1019 = vpop.xlane.xlu0 %1018
        %v1020 = vrcp.pop %v1010
        %v1021 = vrcp.pop %v1013
        %v1022 = vrcp.pop %v1016
        %v1023 = vrcp.pop %v1019
        %1024 = vrot.lane.b32.xlu0 %v420, 112
        %v1025 = vpop.permute.xlu0 %1024
        %1026 = vrot.lane.b32.xlu0 %v425, 112
        %v1027 = vpop.permute.xlu0 %1026
        %1028 = vrot.lane.b32.xlu0 %v430, 112
        %v1029 = vpop.permute.xlu0 %1028
        %1030 = vrot.lane.b32.xlu0 %v435, 112
        %v1031 = vpop.permute.xlu0 %1030
        %1032 = vrot.lane.b32.xlu0 %v440, 112
        %v1033 = vpop.permute.xlu0 %1032
        %1034 = vrot.lane.b32.xlu0 %v445, 112
        %v1035 = vpop.permute.xlu0 %1034
        %1036 = vrot.lane.b32.xlu0 %v450, 112
        %v1037 = vpop.permute.xlu0 %1036
        %1038 = vrot.lane.b32.xlu0 %v455, 112
        %v1039 = vpop.permute.xlu0 %1038
        %v1049 = vsel %vm328, %v1001, 0
        %v1052 = vsel %vm328, %v1003, 0
        %v1055 = vsel %vm328, %v1005, 0
        %v1058 = vsel %vm328, %v1007, 0
        %1060 = vmatprep.subr.mxu0 0.0
        %1061 = vmatpush1.msra.mxu0 0.0
        %1062 = vmatprep.subr.mxu0 0.0
        %1063 = vmatpush1.msra.mxu0 0.0
        %1064 = vmatprep.subr.mxu0 0.0
        %1065 = vmatpush1.msra.mxu0 0.0
        %1066 = vmatprep.subr.mxu0 0.0
        %1067 = vmatpush1.msra.mxu0 0.0
        %1068 = vmatprep.subr.mxu0 0.0
        %1069 = vmatpush1.msra.mxu0 0.0
        %1070 = vmatprep.subr.mxu0 0.0
        %1071 = vmatpush1.msra.mxu0 0.0
        %1072 = vmatprep.subr.mxu0 0.0
        %1073 = vmatpush1.msra.mxu0 0.0
        %1074 = vmatprep.subr.mxu0 0.0
        %1075 = vmatpush1.msra.mxu0 0.0
        %1076 = vmatprep.subr.mxu0 0.0
        %1077 = vmatpush1.msra.mxu0 %v1039
        %1078 = vmatprep.subr.mxu0 0.0
        %1079 = vmatpush1.msra.mxu0 %v1037
        %1080 = vmatprep.subr.mxu0 0.0
        %1081 = vmatpush1.msra.mxu0 %v1035
        %1082 = vmatprep.subr.mxu0 0.0
        %1083 = vmatpush1.msra.mxu0 %v1033
        %1084 = vmatprep.subr.mxu0 0.0
        %1085 = vmatpush1.msra.mxu0 %v1031
        %1086 = vmatprep.subr.mxu0 0.0
        %1087 = vmatpush1.msra.mxu0 %v1029
        %1088 = vmatprep.subr.mxu0 0.0
        %1089 = vmatpush1.msra.mxu0 %v1027
        %1090 = vmatprep.subr.mxu0 0.0
        %1091 = vmatpush1.msra.mxu0 %v1025
        %1092 = vmatprep.subr.mxu0 0.0
        %1093 = vmatpush2.msra.mxu0 0.0
        %1094 = vmatprep.subr.mxu0 0.0
        %1095 = vmatpush2.msra.mxu0 0.0
        %1096 = vmatprep.subr.mxu0 0.0
        %1097 = vmatpush2.msra.mxu0 0.0
        %1098 = vmatprep.subr.mxu0 0.0
        %1099 = vmatpush2.msra.mxu0 0.0
        %1100 = vmatprep.subr.mxu0 0.0
        %1101 = vmatpush2.msra.mxu0 0.0
        %1102 = vmatprep.subr.mxu0 0.0
        %1103 = vmatpush2.msra.mxu0 0.0
        %1104 = vmatprep.subr.mxu0 0.0
        %1105 = vmatpush2.msra.mxu0 0.0
        %1106 = vmatprep.subr.mxu0 0.0
        %1107 = vmatpush2.msra.mxu0 0.0
        %1108 = vmatprep.subr.mxu0 0.0
        %1109 = vmatpush2.msra.mxu0 0.0
        %1110 = vmatprep.subr.mxu0 0.0
        %1111 = vmatpush2.msra.mxu0 0.0
        %1112 = vmatprep.subr.mxu0 0.0
        %1113 = vmatpush2.msra.mxu0 0.0
        %1114 = vmatprep.subr.mxu0 0.0
        %1115 = vmatpush2.msra.mxu0 0.0
        %1116 = vmatprep.subr.mxu0 0.0
        %1117 = vmatpush2.msra.mxu0 0.0
        %1118 = vmatprep.subr.mxu0 0.0
        %1119 = vmatpush2.msra.mxu0 0.0
        %1120 = vmatprep.subr.mxu0 0.0
        %1121 = vmatpush2.msra.mxu0 0.0
        %1122 = vmatprep.subr.mxu0 0.0
        %1123 = vmatpush2.msra.mxu0 0.0
        %1124 = vmatprep.mubr.f32.mxu0 0.0
        %1125 = vmatmul.mubr.f32.gmra.mxu0 %v1049
        %v1126 = vpop.f32.mrf.mxu0
        %v1127 = vadd.f32 0.0, %v1126
        %v1128 = vpop.f32.mrf.mxu0
        %1129 = vmatprep.mubr.f32.mxu0 0.0
        %1130 = vmatmul.mubr.f32.gmra.mxu0 %v1052
        %v1131 = vpop.f32.mrf.mxu0
        %v1132 = vadd.f32 0.0, %v1131
        %v1133 = vpop.f32.mrf.mxu0
        %1134 = vmatprep.mubr.f32.mxu0 0.0
        %1135 = vmatmul.mubr.f32.gmra.mxu0 %v1055
        %v1136 = vpop.f32.mrf.mxu0
        %v1137 = vadd.f32 0.0, %v1136
        %v1138 = vpop.f32.mrf.mxu0
        %1139 = vmatprep.mubr.f32.mxu0 0.0
        %1140 = vmatmul.mubr.f32.gmra.mxu0 %v1058
        %v1141 = vpop.f32.mrf.mxu0
        %v1142 = vadd.f32 0.0, %v1141
        %v1143 = vpop.f32.mrf.mxu0
        %1144 = vdwg.mxu0
        %v1145 = vld [vmem:[%s290] sm:$0xff]
        %v1146 = vld [vmem:[%s290 + $0x8] sm:$0xff]
        %v1147 = vld [vmem:[%s290 + $0x10] sm:$0xff]
        %v1148 = vld [vmem:[%s290 + $0x18] sm:$0xff]
        %v1149 = vmul.f32 %v1127, %v1020
        %v1150 = vmul.f32 %v1132, %v1021
        %v1151 = vmul.f32 %v1137, %v1022
        %v1152 = vmul.f32 %v1142, %v1023
        %1157 = vrot.lane.b32.xlu0 %v1149, 16
        %v1158 = vpop.permute.xlu0 %1157
        %1159 = vrot.lane.b32.xlu0 %v1150, 16
        %v1160 = vpop.permute.xlu0 %1159
        %1161 = vrot.lane.b32.xlu0 %v1151, 16
        %v1162 = vpop.permute.xlu0 %1161
        %1163 = vrot.lane.b32.xlu0 %v1152, 16
        %v1164 = vpop.permute.xlu0 %1163
        %v1169 = vadd.f32 %v1145, %v1158
        %v1170 = vadd.f32 %v1146, %v1160
        %v1171 = vadd.f32 %v1147, %v1162
        %v1172 = vadd.f32 %v1148, %v1164
        %vm1173 = vcmask 261248
        %1174 = vst.msk [vmem:[%s290] sm:$0xff] %vm1173, %v1169
        %1175 = vst.msk [vmem:[%s290 + $0x8] sm:$0xff] %vm1173, %v1170
        %1176 = vst.msk [vmem:[%s290 + $0x10] sm:$0xff] %vm1173, %v1171
        %1177 = vst.msk [vmem:[%s290 + $0x18] sm:$0xff] %vm1173, %v1172
        %s1178 = scalar_lea.vmem %s259, 8 [#allocation2]
        %v1179 = vld [vmem:[%s1178] sm:$0xff]
        %v1180 = vunpack.c.0.s8 %v1179
        %v1181 = vunpack.c.1.s8 %v1179
        %v1182 = vunpack.c.2.s8 %v1179
        %v1183 = vunpack.c.3.s8 %v1179
        %vm1184 = vcmp.gt.s32.totalorder %v1180, 0
        %vm1185 = vcmp.gt.s32.totalorder %v1181, 0
        %vm1186 = vcmp.gt.s32.totalorder %v1182, 0
        %vm1187 = vcmp.gt.s32.totalorder %v1183, 0
        %s1188 = scalar_lea.vmem %s2, 64
        %v1189 = vld [vmem:[%s1188] sm:$0xff]
        %v1190 = vld [vmem:[%s1188 + $0x8] sm:$0xff]
        %v1191 = vld [vmem:[%s1188 + $0x10] sm:$0xff]
        %v1192 = vld [vmem:[%s1188 + $0x18] sm:$0xff]
        %v1193 = vld [vmem:[%s1188 + $0x20] sm:$0xff]
        %v1194 = vld [vmem:[%s1188 + $0x28] sm:$0xff]
        %v1195 = vld [vmem:[%s1188 + $0x30] sm:$0xff]
        %v1196 = vld [vmem:[%s1188 + $0x38] sm:$0xff]
        %1197 = vmatprep.subr.mxu0 0.0
        %1198 = vmatpush1.msra.mxu0 0.0
        %1199 = vmatprep.subr.mxu0 0.0
        %1200 = vmatpush1.msra.mxu0 0.0
        %1201 = vmatprep.subr.mxu0 0.0
        %1202 = vmatpush1.msra.mxu0 0.0
        %1203 = vmatprep.subr.mxu0 0.0
        %1204 = vmatpush1.msra.mxu0 0.0
        %1205 = vmatprep.subr.mxu0 0.0
        %1206 = vmatpush1.msra.mxu0 0.0
        %1207 = vmatprep.subr.mxu0 0.0
        %1208 = vmatpush1.msra.mxu0 0.0
        %1209 = vmatprep.subr.mxu0 0.0
        %1210 = vmatpush1.msra.mxu0 0.0
        %1211 = vmatprep.subr.mxu0 0.0
        %1212 = vmatpush1.msra.mxu0 0.0
        %1213 = vmatprep.subr.mxu0 0.0
        %1214 = vmatpush1.msra.mxu0 %v1196
        %1215 = vmatprep.subr.mxu0 0.0
        %1216 = vmatpush1.msra.mxu0 %v1195
        %1217 = vmatprep.subr.mxu0 0.0
        %1218 = vmatpush1.msra.mxu0 %v1194
        %1219 = vmatprep.subr.mxu0 0.0
        %1220 = vmatpush1.msra.mxu0 %v1193
        %1221 = vmatprep.subr.mxu0 0.0
        %1222 = vmatpush1.msra.mxu0 %v1192
        %1223 = vmatprep.subr.mxu0 0.0
        %1224 = vmatpush1.msra.mxu0 %v1191
        %1225 = vmatprep.subr.mxu0 0.0
        %1226 = vmatpush1.msra.mxu0 %v1190
        %1227 = vmatprep.subr.mxu0 0.0
        %1228 = vmatpush1.msra.mxu0 %v1189
        %1229 = vmatprep.subr.mxu0 0.0
        %1230 = vmatpush2.msra.mxu0 0.0
        %1231 = vmatprep.subr.mxu0 0.0
        %1232 = vmatpush2.msra.mxu0 0.0
        %1233 = vmatprep.subr.mxu0 0.0
        %1234 = vmatpush2.msra.mxu0 0.0
        %1235 = vmatprep.subr.mxu0 0.0
        %1236 = vmatpush2.msra.mxu0 0.0
        %1237 = vmatprep.subr.mxu0 0.0
        %1238 = vmatpush2.msra.mxu0 0.0
        %1239 = vmatprep.subr.mxu0 0.0
        %1240 = vmatpush2.msra.mxu0 0.0
        %1241 = vmatprep.subr.mxu0 0.0
        %1242 = vmatpush2.msra.mxu0 0.0
        %1243 = vmatprep.subr.mxu0 0.0
        %1244 = vmatpush2.msra.mxu0 0.0
        %1245 = vmatprep.subr.mxu0 0.0
        %1246 = vmatpush2.msra.mxu0 0.0
        %1247 = vmatprep.subr.mxu0 0.0
        %1248 = vmatpush2.msra.mxu0 0.0
        %1249 = vmatprep.subr.mxu0 0.0
        %1250 = vmatpush2.msra.mxu0 0.0
        %1251 = vmatprep.subr.mxu0 0.0
        %1252 = vmatpush2.msra.mxu0 0.0
        %1253 = vmatprep.subr.mxu0 0.0
        %1254 = vmatpush2.msra.mxu0 0.0
        %1255 = vmatprep.subr.mxu0 0.0
        %1256 = vmatpush2.msra.mxu0 0.0
        %1257 = vmatprep.subr.mxu0 0.0
        %1258 = vmatpush2.msra.mxu0 0.0
        %1259 = vmatprep.subr.mxu0 0.0
        %1260 = vmatpush2.msra.mxu0 0.0
        %1261 = vmatprep.mubr.f32.mxu0 0.0
        %1262 = vmatmul.mubr.f32.gmra.mxu0 %v330
        %v1263 = vpop.f32.mrf.mxu0
        %v1264 = vadd.f32 0.0, %v1263
        %v1265 = vpop.f32.mrf.mxu0
        %1266 = vmatprep.mubr.f32.mxu0 0.0
        %1267 = vmatmul.mubr.f32.gmra.mxu0 %v333
        %v1268 = vpop.f32.mrf.mxu0
        %v1269 = vadd.f32 0.0, %v1268
        %v1270 = vpop.f32.mrf.mxu0
        %1271 = vmatprep.mubr.f32.mxu0 0.0
        %1272 = vmatmul.mubr.f32.gmra.mxu0 %v336
        %v1273 = vpop.f32.mrf.mxu0
        %v1274 = vadd.f32 0.0, %v1273
        %v1275 = vpop.f32.mrf.mxu0
        %1276 = vmatprep.mubr.f32.mxu0 0.0
        %1277 = vmatmul.mubr.f32.gmra.mxu0 %v339
        %v1278 = vpop.f32.mrf.mxu0
        %v1279 = vadd.f32 0.0, %v1278
        %v1280 = vpop.f32.mrf.mxu0
        %1281 = vmatprep.mubr.f32.mxu0 0.0
        %1282 = vmatmul.mubr.f32.gmra.mxu0 %v342
        %v1283 = vpop.f32.mrf.mxu0
        %v1284 = vadd.f32 0.0, %v1283
        %v1285 = vpop.f32.mrf.mxu0
        %1286 = vmatprep.mubr.f32.mxu0 0.0
        %1287 = vmatmul.mubr.f32.gmra.mxu0 %v345
        %v1288 = vpop.f32.mrf.mxu0
        %v1289 = vadd.f32 0.0, %v1288
        %v1290 = vpop.f32.mrf.mxu0
        %1291 = vmatprep.mubr.f32.mxu0 0.0
        %1292 = vmatmul.mubr.f32.gmra.mxu0 %v348
        %v1293 = vpop.f32.mrf.mxu0
        %v1294 = vadd.f32 0.0, %v1293
        %v1295 = vpop.f32.mrf.mxu0
        %1296 = vmatprep.mubr.f32.mxu0 0.0
        %1297 = vmatmul.mubr.f32.gmra.mxu0 %v351
        %v1298 = vpop.f32.mrf.mxu0
        %v1299 = vadd.f32 0.0, %v1298
        %v1300 = vpop.f32.mrf.mxu0
        %1301 = vdwg.mxu0
        %1302 = vmatprep.subr.mxu0 0.0
        %1303 = vmatpush1.msra.mxu0 0.0
        %1304 = vmatprep.subr.mxu0 0.0
        %1305 = vmatpush1.msra.mxu0 0.0
        %1306 = vmatprep.subr.mxu0 0.0
        %1307 = vmatpush1.msra.mxu0 0.0
        %1308 = vmatprep.subr.mxu0 0.0
        %1309 = vmatpush1.msra.mxu0 0.0
        %1310 = vmatprep.subr.mxu0 0.0
        %1311 = vmatpush1.msra.mxu0 0.0
        %1312 = vmatprep.subr.mxu0 0.0
        %1313 = vmatpush1.msra.mxu0 0.0
        %1314 = vmatprep.subr.mxu0 0.0
        %1315 = vmatpush1.msra.mxu0 0.0
        %1316 = vmatprep.subr.mxu0 0.0
        %1317 = vmatpush1.msra.mxu0 0.0
        %1318 = vmatprep.subr.mxu0 0.0
        %1319 = vmatpush1.msra.mxu0 %v1196
        %1320 = vmatprep.subr.mxu0 0.0
        %1321 = vmatpush1.msra.mxu0 %v1195
        %1322 = vmatprep.subr.mxu0 0.0
        %1323 = vmatpush1.msra.mxu0 %v1194
        %1324 = vmatprep.subr.mxu0 0.0
        %1325 = vmatpush1.msra.mxu0 %v1193
        %1326 = vmatprep.subr.mxu0 0.0
        %1327 = vmatpush1.msra.mxu0 %v1192
        %1328 = vmatprep.subr.mxu0 0.0
        %1329 = vmatpush1.msra.mxu0 %v1191
        %1330 = vmatprep.subr.mxu0 0.0
        %1331 = vmatpush1.msra.mxu0 %v1190
        %1332 = vmatprep.subr.mxu0 0.0
        %1333 = vmatpush1.msra.mxu0 %v1189
        %1334 = vmatprep.subr.mxu0 0.0
        %1335 = vmatpush2.msra.mxu0 0.0
        %1336 = vmatprep.subr.mxu0 0.0
        %1337 = vmatpush2.msra.mxu0 0.0
        %1338 = vmatprep.subr.mxu0 0.0
        %1339 = vmatpush2.msra.mxu0 0.0
        %1340 = vmatprep.subr.mxu0 0.0
        %1341 = vmatpush2.msra.mxu0 0.0
        %1342 = vmatprep.subr.mxu0 0.0
        %1343 = vmatpush2.msra.mxu0 0.0
        %1344 = vmatprep.subr.mxu0 0.0
        %1345 = vmatpush2.msra.mxu0 0.0
        %1346 = vmatprep.subr.mxu0 0.0
        %1347 = vmatpush2.msra.mxu0 0.0
        %1348 = vmatprep.subr.mxu0 0.0
        %1349 = vmatpush2.msra.mxu0 0.0
        %1350 = vmatprep.subr.mxu0 0.0
        %1351 = vmatpush2.msra.mxu0 0.0
        %1352 = vmatprep.subr.mxu0 0.0
        %1353 = vmatpush2.msra.mxu0 0.0
        %1354 = vmatprep.subr.mxu0 0.0
        %1355 = vmatpush2.msra.mxu0 0.0
        %1356 = vmatprep.subr.mxu0 0.0
        %1357 = vmatpush2.msra.mxu0 0.0
        %1358 = vmatprep.subr.mxu0 0.0
        %1359 = vmatpush2.msra.mxu0 0.0
        %1360 = vmatprep.subr.mxu0 0.0
        %1361 = vmatpush2.msra.mxu0 0.0
        %1362 = vmatprep.subr.mxu0 0.0
        %1363 = vmatpush2.msra.mxu0 0.0
        %1364 = vmatprep.subr.mxu0 0.0
        %1365 = vmatpush2.msra.mxu0 0.0
        %1366 = vmatprep.mubr.f32.mxu0 0.0
        %1367 = vmatmul.mubr.f32.gmra.mxu0 %v459
        %v1368 = vpop.f32.mrf.mxu0
        %v1369 = vadd.f32 0.0, %v1368
        %v1370 = vpop.f32.mrf.mxu0
        %1371 = vmatprep.mubr.f32.mxu0 0.0
        %1372 = vmatmul.mubr.f32.gmra.mxu0 %v462
        %v1373 = vpop.f32.mrf.mxu0
        %v1374 = vadd.f32 0.0, %v1373
        %v1375 = vpop.f32.mrf.mxu0
        %1376 = vmatprep.mubr.f32.mxu0 0.0
        %1377 = vmatmul.mubr.f32.gmra.mxu0 %v465
        %v1378 = vpop.f32.mrf.mxu0
        %v1379 = vadd.f32 0.0, %v1378
        %v1380 = vpop.f32.mrf.mxu0
        %1381 = vmatprep.mubr.f32.mxu0 0.0
        %1382 = vmatmul.mubr.f32.gmra.mxu0 %v468
        %v1383 = vpop.f32.mrf.mxu0
        %v1384 = vadd.f32 0.0, %v1383
        %v1385 = vpop.f32.mrf.mxu0
        %1386 = vdwg.mxu0
        %s1387 = scalar_lea.vmem %s3, 2
        %v1388 = vld [vmem:[%s1387] sm:$0x3]
        %v1390 = vsel %vm306, %v1388, 0
        %v1393 = vsel %vm306, %v1264, 0
        %v1396 = vsel %vm306, %v1269, 0
        %v1399 = vsel %vm306, %v1274, 0
        %v1402 = vsel %vm306, %v1279, 0
        %v1405 = vsel %vm306, %v1284, 0
        %v1408 = vsel %vm306, %v1289, 0
        %v1411 = vsel %vm306, %v1294, 0
        %v1414 = vsel %vm306, %v1299, 0
        %1416 = vmatprep.subr.mxu0 0.0
        %1417 = vmatpush1.xpose.msra.mxu0 0.0
        %1418 = vmatprep.subr.mxu0 0.0
        %1419 = vmatpush1.xpose.msra.mxu0 0.0
        %1420 = vmatprep.subr.mxu0 0.0
        %1421 = vmatpush1.xpose.msra.mxu0 0.0
        %1422 = vmatprep.subr.mxu0 0.0
        %1423 = vmatpush1.xpose.msra.mxu0 0.0
        %1424 = vmatprep.subr.mxu0 0.0
        %1425 = vmatpush1.xpose.msra.mxu0 0.0
        %1426 = vmatprep.subr.mxu0 0.0
        %1427 = vmatpush1.xpose.msra.mxu0 0.0
        %1428 = vmatprep.subr.mxu0 0.0
        %1429 = vmatpush1.xpose.msra.mxu0 0.0
        %1430 = vmatprep.subr.mxu0 0.0
        %1431 = vmatpush1.xpose.msra.mxu0 0.0
        %1432 = vmatprep.subr.mxu0 0.0
        %1433 = vmatpush1.xpose.msra.mxu0 %v1414
        %1434 = vmatprep.subr.mxu0 0.0
        %1435 = vmatpush1.xpose.msra.mxu0 %v1411
        %1436 = vmatprep.subr.mxu0 0.0
        %1437 = vmatpush1.xpose.msra.mxu0 %v1408
        %1438 = vmatprep.subr.mxu0 0.0
        %1439 = vmatpush1.xpose.msra.mxu0 %v1405
        %1440 = vmatprep.subr.mxu0 0.0
        %1441 = vmatpush1.xpose.msra.mxu0 %v1402
        %1442 = vmatprep.subr.mxu0 0.0
        %1443 = vmatpush1.xpose.msra.mxu0 %v1399
        %1444 = vmatprep.subr.mxu0 0.0
        %1445 = vmatpush1.xpose.msra.mxu0 %v1396
        %1446 = vmatprep.subr.mxu0 0.0
        %1447 = vmatpush1.xpose.msra.mxu0 %v1393
        %1448 = vmatprep.subr.mxu0 0.0
        %1449 = vmatpush2.xpose.msra.mxu0 0.0
        %1450 = vmatprep.subr.mxu0 0.0
        %1451 = vmatpush2.xpose.msra.mxu0 0.0
        %1452 = vmatprep.subr.mxu0 0.0
        %1453 = vmatpush2.xpose.msra.mxu0 0.0
        %1454 = vmatprep.subr.mxu0 0.0
        %1455 = vmatpush2.xpose.msra.mxu0 0.0
        %1456 = vmatprep.subr.mxu0 0.0
        %1457 = vmatpush2.xpose.msra.mxu0 0.0
        %1458 = vmatprep.subr.mxu0 0.0
        %1459 = vmatpush2.xpose.msra.mxu0 0.0
        %1460 = vmatprep.subr.mxu0 0.0
        %1461 = vmatpush2.xpose.msra.mxu0 0.0
        %1462 = vmatprep.subr.mxu0 0.0
        %1463 = vmatpush2.xpose.msra.mxu0 0.0
        %1464 = vmatprep.subr.mxu0 0.0
        %1465 = vmatpush2.xpose.msra.mxu0 0.0
        %1466 = vmatprep.subr.mxu0 0.0
        %1467 = vmatpush2.xpose.msra.mxu0 0.0
        %1468 = vmatprep.subr.mxu0 0.0
        %1469 = vmatpush2.xpose.msra.mxu0 0.0
        %1470 = vmatprep.subr.mxu0 0.0
        %1471 = vmatpush2.xpose.msra.mxu0 0.0
        %1472 = vmatprep.subr.mxu0 0.0
        %1473 = vmatpush2.xpose.msra.mxu0 0.0
        %1474 = vmatprep.subr.mxu0 0.0
        %1475 = vmatpush2.xpose.msra.mxu0 0.0
        %1476 = vmatprep.subr.mxu0 0.0
        %1477 = vmatpush2.xpose.msra.mxu0 0.0
        %1478 = vmatprep.subr.mxu0 0.0
        %1479 = vmatpush2.xpose.msra.mxu0 0.0
        %1480 = vmatprep.mubr.f32.mxu0 0.0
        %1481 = vmatmul.mubr.f32.gmra.mxu0 %v1390
        %v1482 = vpop.f32.mrf.mxu0
        %v1483 = vadd.f32 0.0, %v1482
        %v1484 = vpop.f32.mrf.mxu0
        %1485 = vdwg.mxu0
        %s1486 = scalar_lea.vmem %s4, 2
        %v1487 = vld [vmem:[%s1486] sm:$0x3]
        %v1489 = vsel %vm306, %v1369, 0
        %v1492 = vsel %vm306, %v1374, 0
        %v1495 = vsel %vm306, %v1379, 0
        %v1498 = vsel %vm306, %v1384, 0
        %v1501 = vsel %vm306, %v1487, 0
        %1503 = vmatprep.subr.mxu0 0.0
        %1504 = vmatpush1.xpose.msra.mxu0 0.0
        %1505 = vmatprep.subr.mxu0 0.0
        %1506 = vmatpush1.xpose.msra.mxu0 0.0
        %1507 = vmatprep.subr.mxu0 0.0
        %1508 = vmatpush1.xpose.msra.mxu0 0.0
        %1509 = vmatprep.subr.mxu0 0.0
        %1510 = vmatpush1.xpose.msra.mxu0 0.0
        %1511 = vmatprep.subr.mxu0 0.0
        %1512 = vmatpush1.xpose.msra.mxu0 0.0
        %1513 = vmatprep.subr.mxu0 0.0
        %1514 = vmatpush1.xpose.msra.mxu0 0.0
        %1515 = vmatprep.subr.mxu0 0.0
        %1516 = vmatpush1.xpose.msra.mxu0 0.0
        %1517 = vmatprep.subr.mxu0 0.0
        %1518 = vmatpush1.xpose.msra.mxu0 0.0
        %1519 = vmatprep.subr.mxu0 0.0
        %1520 = vmatpush1.xpose.msra.mxu0 0.0
        %1521 = vmatprep.subr.mxu0 0.0
        %1522 = vmatpush1.xpose.msra.mxu0 0.0
        %1523 = vmatprep.subr.mxu0 0.0
        %1524 = vmatpush1.xpose.msra.mxu0 0.0
        %1525 = vmatprep.subr.mxu0 0.0
        %1526 = vmatpush1.xpose.msra.mxu0 0.0
        %1527 = vmatprep.subr.mxu0 0.0
        %1528 = vmatpush1.xpose.msra.mxu0 0.0
        %1529 = vmatprep.subr.mxu0 0.0
        %1530 = vmatpush1.xpose.msra.mxu0 0.0
        %1531 = vmatprep.subr.mxu0 0.0
        %1532 = vmatpush1.xpose.msra.mxu0 0.0
        %1533 = vmatprep.subr.mxu0 0.0
        %1534 = vmatpush1.xpose.msra.mxu0 %v1501
        %1535 = vmatprep.subr.mxu0 0.0
        %1536 = vmatpush2.xpose.msra.mxu0 0.0
        %1537 = vmatprep.subr.mxu0 0.0
        %1538 = vmatpush2.xpose.msra.mxu0 0.0
        %1539 = vmatprep.subr.mxu0 0.0
        %1540 = vmatpush2.xpose.msra.mxu0 0.0
        %1541 = vmatprep.subr.mxu0 0.0
        %1542 = vmatpush2.xpose.msra.mxu0 0.0
        %1543 = vmatprep.subr.mxu0 0.0
        %1544 = vmatpush2.xpose.msra.mxu0 0.0
        %1545 = vmatprep.subr.mxu0 0.0
        %1546 = vmatpush2.xpose.msra.mxu0 0.0
        %1547 = vmatprep.subr.mxu0 0.0
        %1548 = vmatpush2.xpose.msra.mxu0 0.0
        %1549 = vmatprep.subr.mxu0 0.0
        %1550 = vmatpush2.xpose.msra.mxu0 0.0
        %1551 = vmatprep.subr.mxu0 0.0
        %1552 = vmatpush2.xpose.msra.mxu0 0.0
        %1553 = vmatprep.subr.mxu0 0.0
        %1554 = vmatpush2.xpose.msra.mxu0 0.0
        %1555 = vmatprep.subr.mxu0 0.0
        %1556 = vmatpush2.xpose.msra.mxu0 0.0
        %1557 = vmatprep.subr.mxu0 0.0
        %1558 = vmatpush2.xpose.msra.mxu0 0.0
        %1559 = vmatprep.subr.mxu0 0.0
        %1560 = vmatpush2.xpose.msra.mxu0 0.0
        %1561 = vmatprep.subr.mxu0 0.0
        %1562 = vmatpush2.xpose.msra.mxu0 0.0
        %1563 = vmatprep.subr.mxu0 0.0
        %1564 = vmatpush2.xpose.msra.mxu0 0.0
        %1565 = vmatprep.subr.mxu0 0.0
        %1566 = vmatpush2.xpose.msra.mxu0 0.0
        %1567 = vmatprep.mubr.f32.mxu0 0.0
        %1568 = vmatmul.mubr.f32.gmra.mxu0 %v1489
        %v1569 = vpop.f32.mrf.mxu0
        %v1570 = vadd.f32 0.0, %v1569
        %v1571 = vpop.f32.mrf.mxu0
        %1572 = vmatprep.mubr.f32.mxu0 0.0
        %1573 = vmatmul.mubr.f32.gmra.mxu0 %v1492
        %v1574 = vpop.f32.mrf.mxu0
        %v1575 = vadd.f32 0.0, %v1574
        %v1576 = vpop.f32.mrf.mxu0
        %1577 = vmatprep.mubr.f32.mxu0 0.0
        %1578 = vmatmul.mubr.f32.gmra.mxu0 %v1495
        %v1579 = vpop.f32.mrf.mxu0
        %v1580 = vadd.f32 0.0, %v1579
        %v1581 = vpop.f32.mrf.mxu0
        %1582 = vmatprep.mubr.f32.mxu0 0.0
        %1583 = vmatmul.mubr.f32.gmra.mxu0 %v1498
        %v1584 = vpop.f32.mrf.mxu0
        %v1585 = vadd.f32 0.0, %v1584
        %v1586 = vpop.f32.mrf.mxu0
        %1587 = vdwg.mxu0
        %1589 = vset.pattern.permute.xlu0 0
        %1590 = vperm.xlu0 %1589, %v1570
        %v1591 = vpop.permute.xlu0 %1590
        %1594 = vset.pattern.permute.xlu0 0
        %1595 = vperm.xlu0 %1594, %v1575
        %v1596 = vpop.permute.xlu0 %1595
        %1599 = vset.pattern.permute.xlu0 0
        %1600 = vperm.xlu0 %1599, %v1580
        %v1601 = vpop.permute.xlu0 %1600
        %1604 = vset.pattern.permute.xlu0 0
        %1605 = vperm.xlu0 %1604, %v1585
        %v1606 = vpop.permute.xlu0 %1605
        %v1608 = vlaneseq
        %v1609 = vshrl.u32 %v1608, 7
        %v1610 = vsub.s32 0, %v1609
        %v1611 = vrot.slane %v1483, %v1610
        %v1612 = vadd.f32 %v1591, %v1611
        %v1613 = vadd.f32 %v1596, %v1611
        %v1614 = vadd.f32 %v1601, %v1611
        %v1615 = vadd.f32 %v1606, %v1611
        %v1616 = vmul.f32 %v1612, 0.2
        %v1617 = vmul.f32 %v1613, 0.2
        %v1618 = vmul.f32 %v1614, 0.2
        %v1619 = vmul.f32 %v1615, 0.2
        %v1620 = vmax.f32 %v1612, %v1616
        %v1621 = vmax.f32 %v1613, %v1617
        %v1622 = vmax.f32 %v1614, %v1618
        %v1623 = vmax.f32 %v1615, %v1619
        %v1624 = vsel %vm1184, %v1620, -1e+30
        %v1625 = vsel %vm1185, %v1621, -1e+30
        %v1626 = vsel %vm1186, %v1622, -1e+30
        %v1627 = vsel %vm1187, %v1623, -1e+30
        %v1628 = vsel %vm328, %v1624, -inf
        %1629 = vmax.xlane.f32.xlu0 %v1628
        %v1630 = vpop.xlane.xlu0 %1629
        %v1631 = vsel %vm328, %v1625, -inf
        %1632 = vmax.xlane.f32.xlu0 %v1631
        %v1633 = vpop.xlane.xlu0 %1632
        %v1634 = vsel %vm328, %v1626, -inf
        %1635 = vmax.xlane.f32.xlu0 %v1634
        %v1636 = vpop.xlane.xlu0 %1635
        %v1637 = vsel %vm328, %v1627, -inf
        %1638 = vmax.xlane.f32.xlu0 %v1637
        %v1639 = vpop.xlane.xlu0 %1638
        %v1640 = vsub.f32 %v1624, %v1630
        %v1641 = vsub.f32 %v1625, %v1633
        %v1642 = vsub.f32 %v1626, %v1636
        %v1643 = vsub.f32 %v1627, %v1639
        %v1644 = vmul.f32 %v1640, 1.442695
        %v1645 = vpow.pop %v1644
        %v1646 = vmul.f32 %v1641, 1.442695
        %v1647 = vpow.pop %v1646
        %v1648 = vmul.f32 %v1642, 1.442695
        %v1649 = vpow.pop %v1648
        %v1650 = vmul.f32 %v1643, 1.442695
        %v1651 = vpow.pop %v1650
        %v1652 = vsel %vm328, %v1645, 0.0
        %1653 = vadd.xlane.f32.xlu0 %v1652
        %v1654 = vpop.xlane.xlu0 %1653
        %v1655 = vsel %vm328, %v1647, 0.0
        %1656 = vadd.xlane.f32.xlu0 %v1655
        %v1657 = vpop.xlane.xlu0 %1656
        %v1658 = vsel %vm328, %v1649, 0.0
        %1659 = vadd.xlane.f32.xlu0 %v1658
        %v1660 = vpop.xlane.xlu0 %1659
        %v1661 = vsel %vm328, %v1651, 0.0
        %1662 = vadd.xlane.f32.xlu0 %v1661
        %v1663 = vpop.xlane.xlu0 %1662
        %v1664 = vrcp.pop %v1654
        %v1665 = vrcp.pop %v1657
        %v1666 = vrcp.pop %v1660
        %v1667 = vrcp.pop %v1663
        %v1669 = vsel %vm328, %v1645, 0
        %v1672 = vsel %vm328, %v1647, 0
        %v1675 = vsel %vm328, %v1649, 0
        %v1678 = vsel %vm328, %v1651, 0
        %1680 = vmatprep.subr.mxu0 0.0
        %1681 = vmatpush1.msra.mxu0 0.0
        %1682 = vmatprep.subr.mxu0 0.0
        %1683 = vmatpush1.msra.mxu0 0.0
        %1684 = vmatprep.subr.mxu0 0.0
        %1685 = vmatpush1.msra.mxu0 0.0
        %1686 = vmatprep.subr.mxu0 0.0
        %1687 = vmatpush1.msra.mxu0 0.0
        %1688 = vmatprep.subr.mxu0 0.0
        %1689 = vmatpush1.msra.mxu0 0.0
        %1690 = vmatprep.subr.mxu0 0.0
        %1691 = vmatpush1.msra.mxu0 0.0
        %1692 = vmatprep.subr.mxu0 0.0
        %1693 = vmatpush1.msra.mxu0 0.0
        %1694 = vmatprep.subr.mxu0 0.0
        %1695 = vmatpush1.msra.mxu0 0.0
        %1696 = vmatprep.subr.mxu0 0.0
        %1697 = vmatpush1.msra.mxu0 %v1299
        %1698 = vmatprep.subr.mxu0 0.0
        %1699 = vmatpush1.msra.mxu0 %v1294
        %1700 = vmatprep.subr.mxu0 0.0
        %1701 = vmatpush1.msra.mxu0 %v1289
        %1702 = vmatprep.subr.mxu0 0.0
        %1703 = vmatpush1.msra.mxu0 %v1284
        %1704 = vmatprep.subr.mxu0 0.0
        %1705 = vmatpush1.msra.mxu0 %v1279
        %1706 = vmatprep.subr.mxu0 0.0
        %1707 = vmatpush1.msra.mxu0 %v1274
        %1708 = vmatprep.subr.mxu0 0.0
        %1709 = vmatpush1.msra.mxu0 %v1269
        %1710 = vmatprep.subr.mxu0 0.0
        %1711 = vmatpush1.msra.mxu0 %v1264
        %1712 = vmatprep.subr.mxu0 0.0
        %1713 = vmatpush2.msra.mxu0 0.0
        %1714 = vmatprep.subr.mxu0 0.0
        %1715 = vmatpush2.msra.mxu0 0.0
        %1716 = vmatprep.subr.mxu0 0.0
        %1717 = vmatpush2.msra.mxu0 0.0
        %1718 = vmatprep.subr.mxu0 0.0
        %1719 = vmatpush2.msra.mxu0 0.0
        %1720 = vmatprep.subr.mxu0 0.0
        %1721 = vmatpush2.msra.mxu0 0.0
        %1722 = vmatprep.subr.mxu0 0.0
        %1723 = vmatpush2.msra.mxu0 0.0
        %1724 = vmatprep.subr.mxu0 0.0
        %1725 = vmatpush2.msra.mxu0 0.0
        %1726 = vmatprep.subr.mxu0 0.0
        %1727 = vmatpush2.msra.mxu0 0.0
        %1728 = vmatprep.subr.mxu0 0.0
        %1729 = vmatpush2.msra.mxu0 0.0
        %1730 = vmatprep.subr.mxu0 0.0
        %1731 = vmatpush2.msra.mxu0 0.0
        %1732 = vmatprep.subr.mxu0 0.0
        %1733 = vmatpush2.msra.mxu0 0.0
        %1734 = vmatprep.subr.mxu0 0.0
        %1735 = vmatpush2.msra.mxu0 0.0
        %1736 = vmatprep.subr.mxu0 0.0
        %1737 = vmatpush2.msra.mxu0 0.0
        %1738 = vmatprep.subr.mxu0 0.0
        %1739 = vmatpush2.msra.mxu0 0.0
        %1740 = vmatprep.subr.mxu0 0.0
        %1741 = vmatpush2.msra.mxu0 0.0
        %1742 = vmatprep.subr.mxu0 0.0
        %1743 = vmatpush2.msra.mxu0 0.0
        %1744 = vmatprep.mubr.f32.mxu0 0.0
        %1745 = vmatmul.mubr.f32.gmra.mxu0 %v1669
        %v1746 = vpop.f32.mrf.mxu0
        %v1747 = vadd.f32 0.0, %v1746
        %v1748 = vpop.f32.mrf.mxu0
        %1749 = vmatprep.mubr.f32.mxu0 0.0
        %1750 = vmatmul.mubr.f32.gmra.mxu0 %v1672
        %v1751 = vpop.f32.mrf.mxu0
        %v1752 = vadd.f32 0.0, %v1751
        %v1753 = vpop.f32.mrf.mxu0
        %1754 = vmatprep.mubr.f32.mxu0 0.0
        %1755 = vmatmul.mubr.f32.gmra.mxu0 %v1675
        %v1756 = vpop.f32.mrf.mxu0
        %v1757 = vadd.f32 0.0, %v1756
        %v1758 = vpop.f32.mrf.mxu0
        %1759 = vmatprep.mubr.f32.mxu0 0.0
        %1760 = vmatmul.mubr.f32.gmra.mxu0 %v1678
        %v1761 = vpop.f32.mrf.mxu0
        %v1762 = vadd.f32 0.0, %v1761
        %v1763 = vpop.f32.mrf.mxu0
        %1764 = vdwg.mxu0
        %v1765 = vld [vmem:[%s290] sm:$0xff]
        %v1766 = vld [vmem:[%s290 + $0x8] sm:$0xff]
        %v1767 = vld [vmem:[%s290 + $0x10] sm:$0xff]
        %v1768 = vld [vmem:[%s290 + $0x18] sm:$0xff]
        %v1769 = vmul.f32 %v1747, %v1664
        %v1770 = vmul.f32 %v1752, %v1665
        %v1771 = vmul.f32 %v1757, %v1666
        %v1772 = vmul.f32 %v1762, %v1667
        %v1773 = vadd.f32 %v1765, %v1769
        %v1774 = vadd.f32 %v1766, %v1770
        %v1775 = vadd.f32 %v1767, %v1771
        %v1776 = vadd.f32 %v1768, %v1772
        %1777 = vst.msk [vmem:[%s290] sm:$0xff] %vm943, %v1773
        %1778 = vst.msk [vmem:[%s290 + $0x8] sm:$0xff] %vm943, %v1774
        %1779 = vst.msk [vmem:[%s290 + $0x10] sm:$0xff] %vm943, %v1775
        %1780 = vst.msk [vmem:[%s290 + $0x18] sm:$0xff] %vm943, %v1776
        %1781 = vset.pattern.permute.xlu0 1
        %1782 = vperm.xlu0 %1781, %v1570
        %v1783 = vpop.permute.xlu0 %1782
        %1785 = vset.pattern.permute.xlu0 1
        %1786 = vperm.xlu0 %1785, %v1575
        %v1787 = vpop.permute.xlu0 %1786
        %1789 = vset.pattern.permute.xlu0 1
        %1790 = vperm.xlu0 %1789, %v1580
        %v1791 = vpop.permute.xlu0 %1790
        %1793 = vset.pattern.permute.xlu0 1
        %1794 = vperm.xlu0 %1793, %v1585
        %v1795 = vpop.permute.xlu0 %1794
        %v1797 = vlaneseq
        %v1798 = vshrl.u32 %v1797, 7
        %v1799 = vsub.s32 1, %v1798
        %v1800 = vrot.slane %v1483, %v1799
        %v1801 = vadd.f32 %v1783, %v1800
        %v1802 = vadd.f32 %v1787, %v1800
        %v1803 = vadd.f32 %v1791, %v1800
        %v1804 = vadd.f32 %v1795, %v1800
        %v1805 = vmul.f32 %v1801, 0.2
        %v1806 = vmul.f32 %v1802, 0.2
        %v1807 = vmul.f32 %v1803, 0.2
        %v1808 = vmul.f32 %v1804, 0.2
        %v1809 = vmax.f32 %v1801, %v1805
        %v1810 = vmax.f32 %v1802, %v1806
        %v1811 = vmax.f32 %v1803, %v1807
        %v1812 = vmax.f32 %v1804, %v1808
        %v1813 = vsel %vm1184, %v1809, -1e+30
        %v1814 = vsel %vm1185, %v1810, -1e+30
        %v1815 = vsel %vm1186, %v1811, -1e+30
        %v1816 = vsel %vm1187, %v1812, -1e+30
        %v1817 = vsel %vm328, %v1813, -inf
        %1818 = vmax.xlane.f32.xlu0 %v1817
        %v1819 = vpop.xlane.xlu0 %1818
        %v1820 = vsel %vm328, %v1814, -inf
        %1821 = vmax.xlane.f32.xlu0 %v1820
        %v1822 = vpop.xlane.xlu0 %1821
        %v1823 = vsel %vm328, %v1815, -inf
        %1824 = vmax.xlane.f32.xlu0 %v1823
        %v1825 = vpop.xlane.xlu0 %1824
        %v1826 = vsel %vm328, %v1816, -inf
        %1827 = vmax.xlane.f32.xlu0 %v1826
        %v1828 = vpop.xlane.xlu0 %1827
        %v1829 = vsub.f32 %v1813, %v1819
        %v1830 = vsub.f32 %v1814, %v1822
        %v1831 = vsub.f32 %v1815, %v1825
        %v1832 = vsub.f32 %v1816, %v1828
        %v1833 = vmul.f32 %v1829, 1.442695
        %v1834 = vpow.pop %v1833
        %v1835 = vmul.f32 %v1830, 1.442695
        %v1836 = vpow.pop %v1835
        %v1837 = vmul.f32 %v1831, 1.442695
        %v1838 = vpow.pop %v1837
        %v1839 = vmul.f32 %v1832, 1.442695
        %v1840 = vpow.pop %v1839
        %v1841 = vsel %vm328, %v1834, 0.0
        %1842 = vadd.xlane.f32.xlu0 %v1841
        %v1843 = vpop.xlane.xlu0 %1842
        %v1844 = vsel %vm328, %v1836, 0.0
        %1845 = vadd.xlane.f32.xlu0 %v1844
        %v1846 = vpop.xlane.xlu0 %1845
        %v1847 = vsel %vm328, %v1838, 0.0
        %1848 = vadd.xlane.f32.xlu0 %v1847
        %v1849 = vpop.xlane.xlu0 %1848
        %v1850 = vsel %vm328, %v1840, 0.0
        %1851 = vadd.xlane.f32.xlu0 %v1850
        %v1852 = vpop.xlane.xlu0 %1851
        %v1853 = vrcp.pop %v1843
        %v1854 = vrcp.pop %v1846
        %v1855 = vrcp.pop %v1849
        %v1856 = vrcp.pop %v1852
        %1857 = vrot.lane.b32.xlu0 %v1264, 112
        %v1858 = vpop.permute.xlu0 %1857
        %1859 = vrot.lane.b32.xlu0 %v1269, 112
        %v1860 = vpop.permute.xlu0 %1859
        %1861 = vrot.lane.b32.xlu0 %v1274, 112
        %v1862 = vpop.permute.xlu0 %1861
        %1863 = vrot.lane.b32.xlu0 %v1279, 112
        %v1864 = vpop.permute.xlu0 %1863
        %1865 = vrot.lane.b32.xlu0 %v1284, 112
        %v1866 = vpop.permute.xlu0 %1865
        %1867 = vrot.lane.b32.xlu0 %v1289, 112
        %v1868 = vpop.permute.xlu0 %1867
        %1869 = vrot.lane.b32.xlu0 %v1294, 112
        %v1870 = vpop.permute.xlu0 %1869
        %1871 = vrot.lane.b32.xlu0 %v1299, 112
        %v1872 = vpop.permute.xlu0 %1871
        %v1882 = vsel %vm328, %v1834, 0
        %v1885 = vsel %vm328, %v1836, 0
        %v1888 = vsel %vm328, %v1838, 0
        %v1891 = vsel %vm328, %v1840, 0
        %1893 = vmatprep.subr.mxu0 0.0
        %1894 = vmatpush1.msra.mxu0 0.0
        %1895 = vmatprep.subr.mxu0 0.0
        %1896 = vmatpush1.msra.mxu0 0.0
        %1897 = vmatprep.subr.mxu0 0.0
        %1898 = vmatpush1.msra.mxu0 0.0
        %1899 = vmatprep.subr.mxu0 0.0
        %1900 = vmatpush1.msra.mxu0 0.0
        %1901 = vmatprep.subr.mxu0 0.0
        %1902 = vmatpush1.msra.mxu0 0.0
        %1903 = vmatprep.subr.mxu0 0.0
        %1904 = vmatpush1.msra.mxu0 0.0
        %1905 = vmatprep.subr.mxu0 0.0
        %1906 = vmatpush1.msra.mxu0 0.0
        %1907 = vmatprep.subr.mxu0 0.0
        %1908 = vmatpush1.msra.mxu0 0.0
        %1909 = vmatprep.subr.mxu0 0.0
        %1910 = vmatpush1.msra.mxu0 %v1872
        %1911 = vmatprep.subr.mxu0 0.0
        %1912 = vmatpush1.msra.mxu0 %v1870
        %1913 = vmatprep.subr.mxu0 0.0
        %1914 = vmatpush1.msra.mxu0 %v1868
        %1915 = vmatprep.subr.mxu0 0.0
        %1916 = vmatpush1.msra.mxu0 %v1866
        %1917 = vmatprep.subr.mxu0 0.0
        %1918 = vmatpush1.msra.mxu0 %v1864
        %1919 = vmatprep.subr.mxu0 0.0
        %1920 = vmatpush1.msra.mxu0 %v1862
        %1921 = vmatprep.subr.mxu0 0.0
        %1922 = vmatpush1.msra.mxu0 %v1860
        %1923 = vmatprep.subr.mxu0 0.0
        %1924 = vmatpush1.msra.mxu0 %v1858
        %1925 = vmatprep.subr.mxu0 0.0
        %1926 = vmatpush2.msra.mxu0 0.0
        %1927 = vmatprep.subr.mxu0 0.0
        %1928 = vmatpush2.msra.mxu0 0.0
        %1929 = vmatprep.subr.mxu0 0.0
        %1930 = vmatpush2.msra.mxu0 0.0
        %1931 = vmatprep.subr.mxu0 0.0
        %1932 = vmatpush2.msra.mxu0 0.0
        %1933 = vmatprep.subr.mxu0 0.0
        %1934 = vmatpush2.msra.mxu0 0.0
        %1935 = vmatprep.subr.mxu0 0.0
        %1936 = vmatpush2.msra.mxu0 0.0
        %1937 = vmatprep.subr.mxu0 0.0
        %1938 = vmatpush2.msra.mxu0 0.0
        %1939 = vmatprep.subr.mxu0 0.0
        %1940 = vmatpush2.msra.mxu0 0.0
        %1941 = vmatprep.subr.mxu0 0.0
        %1942 = vmatpush2.msra.mxu0 0.0
        %1943 = vmatprep.subr.mxu0 0.0
        %1944 = vmatpush2.msra.mxu0 0.0
        %1945 = vmatprep.subr.mxu0 0.0
        %1946 = vmatpush2.msra.mxu0 0.0
        %1947 = vmatprep.subr.mxu0 0.0
        %1948 = vmatpush2.msra.mxu0 0.0
        %1949 = vmatprep.subr.mxu0 0.0
        %1950 = vmatpush2.msra.mxu0 0.0
        %1951 = vmatprep.subr.mxu0 0.0
        %1952 = vmatpush2.msra.mxu0 0.0
        %1953 = vmatprep.subr.mxu0 0.0
        %1954 = vmatpush2.msra.mxu0 0.0
        %1955 = vmatprep.subr.mxu0 0.0
        %1956 = vmatpush2.msra.mxu0 0.0
        %1957 = vmatprep.mubr.f32.mxu0 0.0
        %1958 = vmatmul.mubr.f32.gmra.mxu0 %v1882
        %v1959 = vpop.f32.mrf.mxu0
        %v1960 = vadd.f32 0.0, %v1959
        %v1961 = vpop.f32.mrf.mxu0
        %1962 = vmatprep.mubr.f32.mxu0 0.0
        %1963 = vmatmul.mubr.f32.gmra.mxu0 %v1885
        %v1964 = vpop.f32.mrf.mxu0
        %v1965 = vadd.f32 0.0, %v1964
        %v1966 = vpop.f32.mrf.mxu0
        %1967 = vmatprep.mubr.f32.mxu0 0.0
        %1968 = vmatmul.mubr.f32.gmra.mxu0 %v1888
        %v1969 = vpop.f32.mrf.mxu0
        %v1970 = vadd.f32 0.0, %v1969
        %v1971 = vpop.f32.mrf.mxu0
        %1972 = vmatprep.mubr.f32.mxu0 0.0
        %1973 = vmatmul.mubr.f32.gmra.mxu0 %v1891
        %v1974 = vpop.f32.mrf.mxu0
        %v1975 = vadd.f32 0.0, %v1974
        %v1976 = vpop.f32.mrf.mxu0
        %1977 = vdwg.mxu0
        %v1978 = vld [vmem:[%s290] sm:$0xff]
        %v1979 = vld [vmem:[%s290 + $0x8] sm:$0xff]
        %v1980 = vld [vmem:[%s290 + $0x10] sm:$0xff]
        %v1981 = vld [vmem:[%s290 + $0x18] sm:$0xff]
        %v1982 = vmul.f32 %v1960, %v1853
        %v1983 = vmul.f32 %v1965, %v1854
        %v1984 = vmul.f32 %v1970, %v1855
        %v1985 = vmul.f32 %v1975, %v1856
        %1990 = vrot.lane.b32.xlu0 %v1982, 16
        %v1991 = vpop.permute.xlu0 %1990
        %1992 = vrot.lane.b32.xlu0 %v1983, 16
        %v1993 = vpop.permute.xlu0 %1992
        %1994 = vrot.lane.b32.xlu0 %v1984, 16
        %v1995 = vpop.permute.xlu0 %1994
        %1996 = vrot.lane.b32.xlu0 %v1985, 16
        %v1997 = vpop.permute.xlu0 %1996
        %v2002 = vadd.f32 %v1978, %v1991
        %v2003 = vadd.f32 %v1979, %v1993
        %v2004 = vadd.f32 %v1980, %v1995
        %v2005 = vadd.f32 %v1981, %v1997
        %2006 = vst.msk [vmem:[%s290] sm:$0xff] %vm1173, %v2002
        %2007 = vst.msk [vmem:[%s290 + $0x8] sm:$0xff] %vm1173, %v2003
        %2008 = vst.msk [vmem:[%s290 + $0x10] sm:$0xff] %vm1173, %v2004
        %2009 = vst.msk [vmem:[%s290 + $0x18] sm:$0xff] %vm1173, %v2005
        %v2010 = vld [vmem:[%s290] sm:$0xff]
        %v2011 = vld [vmem:[%s290 + $0x8] sm:$0xff]
        %v2012 = vld [vmem:[%s290 + $0x10] sm:$0xff]
        %v2013 = vld [vmem:[%s290 + $0x18] sm:$0xff]
        %v2014 = vld [vmem:[%s5] sm:$0x1]
        %v2016 = vlaneseq
        %v2017 = vshrl.u32 %v2016, 7
        %v2018 = vsub.s32 0, %v2017
        %v2019 = vrot.slane %v2014, %v2018
        %v2021 = vadd.f32 %v2010, %v2019
        %v2022 = vadd.f32 %v2011, %v2019
        %v2023 = vadd.f32 %v2012, %v2019
        %v2024 = vadd.f32 %v2013, %v2019
        %2025 = vst.msk [vmem:[%s290] sm:$0xff] %vm306, %v2021
        %2026 = vst.msk [vmem:[%s290 + $0x8] sm:$0xff] %vm306, %v2022
        %2027 = vst.msk [vmem:[%s290 + $0x10] sm:$0xff] %vm306, %v2023
        %2028 = vst.msk [vmem:[%s290 + $0x18] sm:$0xff] %vm306, %v2024
        %s2029 = smul.u32 4, %s17
        %p2030 = scmp.lt.s32.totalorder %s2029, 7
        %s2031 = scalar_select %p2030, %s2029, 7
        %s2032 = smul.addr %s2031, 8
        %s2033 = scalar_lea.vmem %s6, %s2032
        // Predicated region
        $region83: #{hetero_gat_forward.4} parent=77 // pred_check
          %p2034 = pneg %p166
        $region84: #{hetero_gat_forward.4} parent=77 // pred_check_branch
          %2036 = sbr.rel (%p2034) target = $region86
        $region85: #{hetero_gat_forward.4} parent=77 // pred_region
          %s2037 = smul.u32 4, %s17
        $region86: #{hetero_gat_forward.4} parent=77 // pred_fallthru
          _
      $region78: #{hetero_gat_forward.4} parent=5 // pred_fallthru
        _
      %p2038 = scmp.le.s32.totalorder 2, %s12
      // Predicated region
      $region87: #{hetero_gat_forward.4} parent=5 // pred_check
        %p2039 = pneg %p2038
      $region88: #{hetero_gat_forward.4} parent=5 // pred_check_branch
        %2041 = sbr.rel (%p2039) target = $region90
      $region89: #{hetero_gat_forward.4} parent=5 // pred_region
        %s2042 = ssub.s32 %s12, 2
        // Predicated region
        $region91: #{hetero_gat_forward.4} parent=89 // pred_check
          %p2043 = pneg %p172
        $region92: #{hetero_gat_forward.4} parent=89 // pred_check_branch
          %2045 = sbr.rel (%p2043) target = $region94
        $region93: #{hetero_gat_forward.4} parent=89 // pred_region
          %s2046 = smul.u32 4, %s18
          %p2047 = scmp.lt.s32.totalorder %s2046, 7
          %s2048 = scalar_select %p2047, %s2046, 7
          %s2049 = smul.addr %s2048, 8
          %s2050 = scalar_lea.vmem %s6, %s2049
        $region94: #{hetero_gat_forward.4} parent=89 // pred_fallthru
          _
      $region90: #{hetero_gat_forward.4} parent=5 // pred_fallthru
        _
    $region6: #{hetero_gat_forward.4} parent=1 // loop_footer
      %s16 = sadd.s32 1, %s12
    $region7: #{hetero_gat_forward.4} parent=1 // loop_footer_branch
      %11 = sbr.rel target = $region3
    $region8: #{hetero_gat_forward.4} parent=1 // loop_exit
      _

</llo_original>
